<compile_context>
chip_gen: v7x
topology: tpu7x:2x2x1
jax: 0.10.0
libtpu: 0.0.40
codegen_flags: <defaults>
</compile_context>

<pallas_src>
import jax
import jax.numpy as jnp
from jax import lax
from jax.experimental import pallas as pl
from jax.experimental.pallas import tpu as pltpu


# ------------------------- static layout constants -------------------------

K = 5                                   # all conv kernels are 5x5
W1L = 32                                # layer-1 layout width (28x28 input padded to 32x32)
LEN_C1 = 28 * W1L                       # 896  conv1 output flat length per sample
LEN_IN1 = (K - 1) * (W1L + 1) + LEN_C1  # 1028 per-sample input row length
POOL1_BLK = 14 * 32                     # 448  pooled-1 map per-sample block (14 rows x 32)
# conv2 output is indexed p2 = 32*i + 2*j (rows compact at stride 32, columns 2-dilated).
# Needed outputs reach 32*9 + 2*9 = 306, and the im2col source read for shift off<=136
# must stay inside the 448-lane h2 block  =>  307 <= P2B <= 312.
P2B = 312                               # conv2 output per-sample block width
MARGIN = 64                             # zeroed shift margin after the last sample


def _full_spec(shape):
    # whole array as a single VMEM block (no grid)
    return pl.BlockSpec(shape, lambda: (0,) * len(shape))


# ------------------------- the fused kernel -------------------------

def _mixlenet_kernel(x_ref, w1_ref, b1_ref, w2_ref, b2_ref, w3_ref, b3_ref,
                     wfc_ref, bfc_ref, g_ref, beta_ref, wcls_ref, bcls_ref,
                     o_ref,
                     y1s, h2s, xcat2, y2s, h3s, xcat3):
    f32 = jnp.float32
    n_batch = o_ref.shape[1]
    l1 = n_batch * LEN_C1               # total conv1-output lanes
    l2 = n_batch * P2B                  # total conv2-output lanes

    # Zero only the small shift margins (the pool taps of the LAST sample read them).
    y1s[:, l1:l1 + MARGIN] = jnp.zeros((y1s.shape[0], MARGIN), f32)
    y2s[:, l2:l2 + MARGIN] = jnp.zeros((y2s.shape[0], MARGIN), f32)

    # -------- layer1: conv1(1->6, k5, pad2) as 25 rank-1 VPU FMAs per sample --------
    for n in range(n_batch):
        acc = b1_ref[...]                                    # (8,1) -> broadcasts
        for di in range(K):
            for dj in range(K):
                s = di * K + dj
                off = di * W1L + dj
                acc = acc + w1_ref[:, s:s + 1] * x_ref[n:n + 1, off:off + LEN_C1]
        y1s[:, n * LEN_C1:(n + 1) * LEN_C1] = acc            # width-32 layout, rows 6,7 = 0

    # -------- maxpool2 + relu (layer1 tail) --------
    # window max at every position, then compact the 14 pooled rows (64-stride chunks
    # of 32 lanes -> 32-stride); columns stay 2-dilated inside each 32-lane row and the
    # dilation is absorbed into conv2's shift offsets below.
    m1 = jnp.maximum(
        jnp.maximum(y1s[:, 0:l1], y1s[:, 1:1 + l1]),
        jnp.maximum(y1s[:, W1L:W1L + l1], y1s[:, W1L + 1:W1L + 1 + l1]))
    m1 = jnp.maximum(m1, 0.0)
    for n in range(n_batch):
        for a in range(14):
            dst = n * POOL1_BLK + 32 * a
            src = n * LEN_C1 + 64 * a
            h2s[:, dst:dst + 32] = m1[:, src:src + 32]

    # -------- layer2: conv2(6->16, k5) as ONE batched im2col GEMM --------
    for n in range(n_batch):
        for di in range(K):
            for dj in range(K):
                s = di * K + dj
                off = 32 * di + 2 * dj                       # 2x column dilation
                xcat2[s * 8:(s + 1) * 8, n * P2B:(n + 1) * P2B] = \
                    h2s[:, n * POOL1_BLK + off:n * POOL1_BLK + off + P2B]
    y2s[:, 0:l2] = (jnp.dot(w2_ref[...], xcat2[...],
                            preferred_element_type=f32) + b2_ref[...])

    # -------- maxpool2 + relu (layer2 tail), kept at 2x-dilated indexing --------
    m2 = jnp.maximum(
        jnp.maximum(y2s[:, 0:l2], y2s[:, 2:2 + l2]),
        jnp.maximum(y2s[:, 32:32 + l2], y2s[:, 34:34 + l2]))
    h3s[...] = jnp.maximum(m2, 0.0)

    # -------- layer3: conv3(16->120, k5 on 5x5) -> relu, batched over samples --------
    for n in range(n_batch):
        for di in range(K):
            for dj in range(K):
                s = di * K + dj
                col = n * P2B + 64 * di + 4 * dj
                xcat3[s * 16:(s + 1) * 16, n:n + 1] = h3s[:, col:col + 1]
    feats = jnp.maximum(jnp.dot(w3_ref[...], xcat3[...],
                                preferred_element_type=f32) + b3_ref[...], 0.0)  # (120,N)

    # -------- layer4: fc1 -> BatchNorm1d (training batch stats) -> relu --------
    z = jnp.dot(wfc_ref[...], feats, preferred_element_type=f32) + bfc_ref[...]  # (84,N)
    mean = jnp.mean(z, axis=1, keepdims=True)
    var = jnp.mean((z - mean) ** 2, axis=1, keepdims=True)
    h4 = jnp.maximum((z - mean) * lax.rsqrt(var + 1e-5) * g_ref[...] + beta_ref[...], 0.0)

    # -------- classifier (84 -> 1); one output column per sample --------
    o_ref[...] = jnp.dot(wcls_ref[...], h4, preferred_element_type=f32) + bcls_ref[...]


# ------------------------- parameter packing (one-time) -------------------------

def init_params(key):
    ks = jax.random.split(key, 10)

    def rnd(k, shape, fan_in):
        return jax.random.normal(k, shape, jnp.float32) / jnp.sqrt(float(fan_in))

    return {
        "w1": rnd(ks[0], (6, 1, 5, 5), 25),
        "b1": rnd(ks[1], (6,), 25),
        "w2": rnd(ks[2], (16, 6, 5, 5), 150),
        "b2": rnd(ks[3], (16,), 150),
        "w3": rnd(ks[4], (120, 16, 5, 5), 400),
        "b3": rnd(ks[5], (120,), 400),
        "wfc1": rnd(ks[6], (120, 84), 120),   # stored (in, out)
        "bfc1": rnd(ks[7], (84,), 120),
        "gamma": jnp.ones((84,), jnp.float32),   # BatchNorm1d default init
        "beta": jnp.zeros((84,), jnp.float32),
        "wcls": rnd(ks[8], (84, 1), 84),
        "bcls": rnd(ks[9], (1,), 84),
    }


def prepare_params(p):
    """One-time packing/padding of parameters into the kernel's layouts."""
    f32 = jnp.float32
    # conv1: (6,1,5,5) -> (8, 32); one column per 5x5 tap s = 5*di + dj
    w1 = jnp.zeros((8, 32), f32).at[:6, :25].set(p["w1"].reshape(6, 25))
    b1 = jnp.zeros((8, 1), f32).at[:6, 0].set(p["b1"])
    # conv2: (16,6,5,5) -> (16, 200); im2col column index = s*8 + cin (cin 6,7 zero)
    w2t = p["w2"].transpose(0, 2, 3, 1).reshape(16, 25, 6)
    w2 = jnp.zeros((16, 25, 8), f32).at[:, :, :6].set(w2t).reshape(16, 200)
    b2 = p["b2"].reshape(16, 1)
    # conv3: (120,16,5,5) -> (120, 400); column index = s*16 + cin
    w3 = p["w3"].transpose(0, 2, 3, 1).reshape(120, 400)
    b3 = p["b3"].reshape(120, 1)
    return {
        "w1": w1, "b1": b1, "w2": w2, "b2": b2, "w3": w3, "b3": b3,
        "wfc": p["wfc1"].T, "bfc": p["bfc1"].reshape(84, 1),
        "gamma": p["gamma"].reshape(84, 1), "beta": p["beta"].reshape(84, 1),
        "wcls": p["wcls"].T, "bcls": p["bcls"].reshape(1, 1),
    }


# ------------------------- forward wrapper -------------------------

def mixlenet_forward(x, pp):
    """x: (N, 1, 28, 28) NCHW float32; pp: prepare_params(...) output. Returns (N, 1)."""
    n = x.shape[0]
    npad = ((n + 7) // 8) * 8
    # Lay the spatially padded 32x32 image out flat (one sample per row), with 4 trailing
    # zero lanes so every in-kernel shift slice stays in bounds.
    xp = jnp.pad(x, ((0, 0), (0, 0), (2, 2), (2, 2))).reshape(n, W1L * W1L)
    xp = jnp.pad(xp, ((0, npad - n), (0, LEN_IN1 - W1L * W1L)))

    inputs = (xp, pp["w1"], pp["b1"], pp["w2"], pp["b2"], pp["w3"], pp["b3"],
              pp["wfc"], pp["bfc"], pp["gamma"], pp["beta"], pp["wcls"], pp["bcls"])

    out = pl.pallas_call(
        _mixlenet_kernel,
        out_shape=jax.ShapeDtypeStruct((1, n), jnp.float32),
        in_specs=[_full_spec(a.shape) for a in inputs],
        out_specs=_full_spec((1, n)),
        scratch_shapes=[
            pltpu.VMEM((8, n * LEN_C1 + MARGIN), jnp.float32),    # y1s   conv1 out
            pltpu.VMEM((8, n * POOL1_BLK), jnp.float32),          # h2s   pooled-1 map
            pltpu.VMEM((K * K * 8, n * P2B), jnp.float32),        # xcat2 conv2 im2col
            pltpu.VMEM((16, n * P2B + MARGIN), jnp.float32),      # y2s   conv2 out
            pltpu.VMEM((16, n * P2B), jnp.float32),               # h3s   pooled-2 map
            pltpu.VMEM((K * K * 16, n), jnp.float32),             # xcat3 conv3 im2col
        ],
    )(*inputs)
    return out.reshape(n, 1)


# ------------------------- pure-JAX reference -------------------------

def ref_forward(x, p):
    dn = ("NCHW", "OIHW", "NCHW")
    hi = lax.Precision.HIGHEST
    h = lax.conv_general_dilated(x, p["w1"], (1, 1), ((2, 2), (2, 2)),
                                 dimension_numbers=dn, precision=hi)
    h = h + p["b1"][None, :, None, None]
    h = lax.reduce_window(h, -jnp.inf, lax.max, (1, 1, 2, 2), (1, 1, 2, 2), "VALID")
    h = jnp.maximum(h, 0.0)
    h = lax.conv_general_dilated(h, p["w2"], (1, 1), ((0, 0), (0, 0)),
                                 dimension_numbers=dn, precision=hi)
    h = h + p["b2"][None, :, None, None]
    h = lax.reduce_window(h, -jnp.inf, lax.max, (1, 1, 2, 2), (1, 1, 2, 2), "VALID")
    h = jnp.maximum(h, 0.0)
    h = lax.conv_general_dilated(h, p["w3"], (1, 1), ((0, 0), (0, 0)),
                                 dimension_numbers=dn, precision=hi)
    h = h + p["b3"][None, :, None, None]
    h = jnp.maximum(h, 0.0)
    hf = h.reshape(h.shape[0], -1)
    y = jnp.dot(hf, p["wfc1"], precision=hi) + p["bfc1"]
    mean = y.mean(0, keepdims=True)
    var = ((y - mean) ** 2).mean(0, keepdims=True)
    y = (y - mean) / jnp.sqrt(var + 1e-5) * p["gamma"] + p["beta"]
    h_ = jnp.maximum(y, 0.0)
    return jnp.dot(h_, p["wcls"], precision=hi) + p["bcls"]


if __name__ == "__main__":
    key = jax.random.PRNGKey(0)
    kx, kp = jax.random.split(key)
    x = jax.random.normal(kx, (2, 1, 28, 28), jnp.float32)   # NCHW, MNIST-sized
    params = init_params(kp)
    packed = prepare_params(params)                           # one-time packing

    fwd = jax.jit(mixlenet_forward)
    out = jax.block_until_ready(fwd(x, packed))

    ref = ref_forward(x, params)
    assert out.shape == (2, 1), out.shape
    assert jnp.allclose(out, ref, atol=5e-3, rtol=5e-3), (out, ref)
    print("KERNEL_OK")
</pallas_src>

<mosaic_0001>
module attributes {stable_mosaic.version = 11 : i64} {
  func.func @_mixlenet_kernel(%arg0: memref<8x1028xf32, #tpu.memory_space<vmem>>, %arg1: memref<8x32xf32, #tpu.memory_space<vmem>>, %arg2: memref<8x1xf32, #tpu.memory_space<vmem>>, %arg3: memref<16x200xf32, #tpu.memory_space<vmem>>, %arg4: memref<16x1xf32, #tpu.memory_space<vmem>>, %arg5: memref<120x400xf32, #tpu.memory_space<vmem>>, %arg6: memref<120x1xf32, #tpu.memory_space<vmem>>, %arg7: memref<84x120xf32, #tpu.memory_space<vmem>>, %arg8: memref<84x1xf32, #tpu.memory_space<vmem>>, %arg9: memref<84x1xf32, #tpu.memory_space<vmem>>, %arg10: memref<84x1xf32, #tpu.memory_space<vmem>>, %arg11: memref<1x84xf32, #tpu.memory_space<vmem>>, %arg12: memref<1x1xf32, #tpu.memory_space<vmem>>, %arg13: memref<1x2xf32, #tpu.memory_space<vmem>>, %arg14: memref<8x1856xf32, #tpu.memory_space<vmem>>, %arg15: memref<8x896xf32, #tpu.memory_space<vmem>>, %arg16: memref<200x624xf32, #tpu.memory_space<vmem>>, %arg17: memref<16x688xf32, #tpu.memory_space<vmem>>, %arg18: memref<16x624xf32, #tpu.memory_space<vmem>>, %arg19: memref<400x2xf32, #tpu.memory_space<vmem>>) attributes {dimension_semantics = [], scalar_prefetch = 0 : i64, scratch_operands = 6 : i64, tpu.core_type = #tpu.core_type<tc>} {
    %cst = arith.constant 0.000000e+00 : f32
    %0 = vector.broadcast %cst : f32 to vector<8x64xf32>
    %c0 = arith.constant 0 : index
    %c1792 = arith.constant 1792 : index
    %1 = vector.load %arg14[%c0, %c1792] : memref<8x1856xf32, #tpu.memory_space<vmem>>, vector<8x64xf32>
    tpu.vector_store %arg14[%c0, %c1792], %0 {strides = array<i32>} : memref<8x1856xf32, #tpu.memory_space<vmem>>, vector<8x64xf32>,
    %cst_0 = arith.constant 0.000000e+00 : f32
    %2 = vector.broadcast %cst_0 : f32 to vector<16x64xf32>
    %c0_1 = arith.constant 0 : index
    %c624 = arith.constant 624 : index
    %3 = vector.load %arg17[%c0_1, %c624] : memref<16x688xf32, #tpu.memory_space<vmem>>, vector<16x64xf32>
    tpu.vector_store %arg17[%c0_1, %c624], %2 {strides = array<i32>} : memref<16x688xf32, #tpu.memory_space<vmem>>, vector<16x64xf32>,
    %c0_2 = arith.constant 0 : index
    %c0_3 = arith.constant 0 : index
    %4 = vector.load %arg2[%c0_2, %c0_3] : memref<8x1xf32, #tpu.memory_space<vmem>>, vector<8x1xf32>
    %c0_4 = arith.constant 0 : index
    %c0_5 = arith.constant 0 : index
    %5 = vector.load %arg1[%c0_4, %c0_5] : memref<8x32xf32, #tpu.memory_space<vmem>>, vector<8x1xf32>
    %c0_6 = arith.constant 0 : index
    %c0_7 = arith.constant 0 : index
    %6 = vector.load %arg0[%c0_6, %c0_7] : memref<8x1028xf32, #tpu.memory_space<vmem>>, vector<1x896xf32>
    %7 = vector.broadcast %5 : vector<8x1xf32> to vector<8x896xf32>
    %8 = vector.broadcast %6 : vector<1x896xf32> to vector<8x896xf32>
    %9 = arith.mulf %7, %8 : vector<8x896xf32>
    %10 = vector.broadcast %4 : vector<8x1xf32> to vector<8x896xf32>
    %11 = arith.addf %10, %9 : vector<8x896xf32>
    %c0_8 = arith.constant 0 : index
    %c1 = arith.constant 1 : index
    %12 = vector.load %arg1[%c0_8, %c1] : memref<8x32xf32, #tpu.memory_space<vmem>>, vector<8x1xf32>
    %c0_9 = arith.constant 0 : index
    %c1_10 = arith.constant 1 : index
    %13 = vector.load %arg0[%c0_9, %c1_10] : memref<8x1028xf32, #tpu.memory_space<vmem>>, vector<1x896xf32>
    %14 = vector.broadcast %12 : vector<8x1xf32> to vector<8x896xf32>
    %15 = vector.broadcast %13 : vector<1x896xf32> to vector<8x896xf32>
    %16 = arith.mulf %14, %15 : vector<8x896xf32>
    %17 = arith.addf %11, %16 : vector<8x896xf32>
    %c0_11 = arith.constant 0 : index
    %c2 = arith.constant 2 : index
    %18 = vector.load %arg1[%c0_11, %c2] : memref<8x32xf32, #tpu.memory_space<vmem>>, vector<8x1xf32>
    %c0_12 = arith.constant 0 : index
    %c2_13 = arith.constant 2 : index
    %19 = vector.load %arg0[%c0_12, %c2_13] : memref<8x1028xf32, #tpu.memory_space<vmem>>, vector<1x896xf32>
    %20 = vector.broadcast %18 : vector<8x1xf32> to vector<8x896xf32>
    %21 = vector.broadcast %19 : vector<1x896xf32> to vector<8x896xf32>
    %22 = arith.mulf %20, %21 : vector<8x896xf32>
    %23 = arith.addf %17, %22 : vector<8x896xf32>
    %c0_14 = arith.constant 0 : index
    %c3 = arith.constant 3 : index
    %24 = vector.load %arg1[%c0_14, %c3] : memref<8x32xf32, #tpu.memory_space<vmem>>, vector<8x1xf32>
    %c0_15 = arith.constant 0 : index
    %c3_16 = arith.constant 3 : index
    %25 = vector.load %arg0[%c0_15, %c3_16] : memref<8x1028xf32, #tpu.memory_space<vmem>>, vector<1x896xf32>
    %26 = vector.broadcast %24 : vector<8x1xf32> to vector<8x896xf32>
    %27 = vector.broadcast %25 : vector<1x896xf32> to vector<8x896xf32>
    %28 = arith.mulf %26, %27 : vector<8x896xf32>
    %29 = arith.addf %23, %28 : vector<8x896xf32>
    %c0_17 = arith.constant 0 : index
    %c4 = arith.constant 4 : index
    %30 = vector.load %arg1[%c0_17, %c4] : memref<8x32xf32, #tpu.memory_space<vmem>>, vector<8x1xf32>
    %c0_18 = arith.constant 0 : index
    %c4_19 = arith.constant 4 : index
    %31 = vector.load %arg0[%c0_18, %c4_19] : memref<8x1028xf32, #tpu.memory_space<vmem>>, vector<1x896xf32>
    %32 = vector.broadcast %30 : vector<8x1xf32> to vector<8x896xf32>
    %33 = vector.broadcast %31 : vector<1x896xf32> to vector<8x896xf32>
    %34 = arith.mulf %32, %33 : vector<8x896xf32>
    %35 = arith.addf %29, %34 : vector<8x896xf32>
    %c0_20 = arith.constant 0 : index
    %c5 = arith.constant 5 : index
    %36 = vector.load %arg1[%c0_20, %c5] : memref<8x32xf32, #tpu.memory_space<vmem>>, vector<8x1xf32>
    %c0_21 = arith.constant 0 : index
    %c32 = arith.constant 32 : index
    %37 = vector.load %arg0[%c0_21, %c32] : memref<8x1028xf32, #tpu.memory_space<vmem>>, vector<1x896xf32>
    %38 = vector.broadcast %36 : vector<8x1xf32> to vector<8x896xf32>
    %39 = vector.broadcast %37 : vector<1x896xf32> to vector<8x896xf32>
    %40 = arith.mulf %38, %39 : vector<8x896xf32>
    %41 = arith.addf %35, %40 : vector<8x896xf32>
    %c0_22 = arith.constant 0 : index
    %c6 = arith.constant 6 : index
    %42 = vector.load %arg1[%c0_22, %c6] : memref<8x32xf32, #tpu.memory_space<vmem>>, vector<8x1xf32>
    %c0_23 = arith.constant 0 : index
    %c33 = arith.constant 33 : index
    %43 = vector.load %arg0[%c0_23, %c33] : memref<8x1028xf32, #tpu.memory_space<vmem>>, vector<1x896xf32>
    %44 = vector.broadcast %42 : vector<8x1xf32> to vector<8x896xf32>
    %45 = vector.broadcast %43 : vector<1x896xf32> to vector<8x896xf32>
    %46 = arith.mulf %44, %45 : vector<8x896xf32>
    %47 = arith.addf %41, %46 : vector<8x896xf32>
    %c0_24 = arith.constant 0 : index
    %c7 = arith.constant 7 : index
    %48 = vector.load %arg1[%c0_24, %c7] : memref<8x32xf32, #tpu.memory_space<vmem>>, vector<8x1xf32>
    %c0_25 = arith.constant 0 : index
    %c34 = arith.constant 34 : index
    %49 = vector.load %arg0[%c0_25, %c34] : memref<8x1028xf32, #tpu.memory_space<vmem>>, vector<1x896xf32>
    %50 = vector.broadcast %48 : vector<8x1xf32> to vector<8x896xf32>
    %51 = vector.broadcast %49 : vector<1x896xf32> to vector<8x896xf32>
    %52 = arith.mulf %50, %51 : vector<8x896xf32>
    %53 = arith.addf %47, %52 : vector<8x896xf32>
    %c0_26 = arith.constant 0 : index
    %c8 = arith.constant 8 : index
    %54 = vector.load %arg1[%c0_26, %c8] : memref<8x32xf32, #tpu.memory_space<vmem>>, vector<8x1xf32>
    %c0_27 = arith.constant 0 : index
    %c35 = arith.constant 35 : index
    %55 = vector.load %arg0[%c0_27, %c35] : memref<8x1028xf32, #tpu.memory_space<vmem>>, vector<1x896xf32>
    %56 = vector.broadcast %54 : vector<8x1xf32> to vector<8x896xf32>
    %57 = vector.broadcast %55 : vector<1x896xf32> to vector<8x896xf32>
    %58 = arith.mulf %56, %57 : vector<8x896xf32>
    %59 = arith.addf %53, %58 : vector<8x896xf32>
    %c0_28 = arith.constant 0 : index
    %c9 = arith.constant 9 : index
    %60 = vector.load %arg1[%c0_28, %c9] : memref<8x32xf32, #tpu.memory_space<vmem>>, vector<8x1xf32>
    %c0_29 = arith.constant 0 : index
    %c36 = arith.constant 36 : index
    %61 = vector.load %arg0[%c0_29, %c36] : memref<8x1028xf32, #tpu.memory_space<vmem>>, vector<1x896xf32>
    %62 = vector.broadcast %60 : vector<8x1xf32> to vector<8x896xf32>
    %63 = vector.broadcast %61 : vector<1x896xf32> to vector<8x896xf32>
    %64 = arith.mulf %62, %63 : vector<8x896xf32>
    %65 = arith.addf %59, %64 : vector<8x896xf32>
    %c0_30 = arith.constant 0 : index
    %c10 = arith.constant 10 : index
    %66 = vector.load %arg1[%c0_30, %c10] : memref<8x32xf32, #tpu.memory_space<vmem>>, vector<8x1xf32>
    %c0_31 = arith.constant 0 : index
    %c64 = arith.constant 64 : index
    %67 = vector.load %arg0[%c0_31, %c64] : memref<8x1028xf32, #tpu.memory_space<vmem>>, vector<1x896xf32>
    %68 = vector.broadcast %66 : vector<8x1xf32> to vector<8x896xf32>
    %69 = vector.broadcast %67 : vector<1x896xf32> to vector<8x896xf32>
    %70 = arith.mulf %68, %69 : vector<8x896xf32>
    %71 = arith.addf %65, %70 : vector<8x896xf32>
    %c0_32 = arith.constant 0 : index
    %c11 = arith.constant 11 : index
    %72 = vector.load %arg1[%c0_32, %c11] : memref<8x32xf32, #tpu.memory_space<vmem>>, vector<8x1xf32>
    %c0_33 = arith.constant 0 : index
    %c65 = arith.constant 65 : index
    %73 = vector.load %arg0[%c0_33, %c65] : memref<8x1028xf32, #tpu.memory_space<vmem>>, vector<1x896xf32>
    %74 = vector.broadcast %72 : vector<8x1xf32> to vector<8x896xf32>
    %75 = vector.broadcast %73 : vector<1x896xf32> to vector<8x896xf32>
    %76 = arith.mulf %74, %75 : vector<8x896xf32>
    %77 = arith.addf %71, %76 : vector<8x896xf32>
    %c0_34 = arith.constant 0 : index
    %c12 = arith.constant 12 : index
    %78 = vector.load %arg1[%c0_34, %c12] : memref<8x32xf32, #tpu.memory_space<vmem>>, vector<8x1xf32>
    %c0_35 = arith.constant 0 : index
    %c66 = arith.constant 66 : index
    %79 = vector.load %arg0[%c0_35, %c66] : memref<8x1028xf32, #tpu.memory_space<vmem>>, vector<1x896xf32>
    %80 = vector.broadcast %78 : vector<8x1xf32> to vector<8x896xf32>
    %81 = vector.broadcast %79 : vector<1x896xf32> to vector<8x896xf32>
    %82 = arith.mulf %80, %81 : vector<8x896xf32>
    %83 = arith.addf %77, %82 : vector<8x896xf32>
    %c0_36 = arith.constant 0 : index
    %c13 = arith.constant 13 : index
    %84 = vector.load %arg1[%c0_36, %c13] : memref<8x32xf32, #tpu.memory_space<vmem>>, vector<8x1xf32>
    %c0_37 = arith.constant 0 : index
    %c67 = arith.constant 67 : index
    %85 = vector.load %arg0[%c0_37, %c67] : memref<8x1028xf32, #tpu.memory_space<vmem>>, vector<1x896xf32>
    %86 = vector.broadcast %84 : vector<8x1xf32> to vector<8x896xf32>
    %87 = vector.broadcast %85 : vector<1x896xf32> to vector<8x896xf32>
    %88 = arith.mulf %86, %87 : vector<8x896xf32>
    %89 = arith.addf %83, %88 : vector<8x896xf32>
    %c0_38 = arith.constant 0 : index
    %c14 = arith.constant 14 : index
    %90 = vector.load %arg1[%c0_38, %c14] : memref<8x32xf32, #tpu.memory_space<vmem>>, vector<8x1xf32>
    %c0_39 = arith.constant 0 : index
    %c68 = arith.constant 68 : index
    %91 = vector.load %arg0[%c0_39, %c68] : memref<8x1028xf32, #tpu.memory_space<vmem>>, vector<1x896xf32>
    %92 = vector.broadcast %90 : vector<8x1xf32> to vector<8x896xf32>
    %93 = vector.broadcast %91 : vector<1x896xf32> to vector<8x896xf32>
    %94 = arith.mulf %92, %93 : vector<8x896xf32>
    %95 = arith.addf %89, %94 : vector<8x896xf32>
    %c0_40 = arith.constant 0 : index
    %c15 = arith.constant 15 : index
    %96 = vector.load %arg1[%c0_40, %c15] : memref<8x32xf32, #tpu.memory_space<vmem>>, vector<8x1xf32>
    %c0_41 = arith.constant 0 : index
    %c96 = arith.constant 96 : index
    %97 = vector.load %arg0[%c0_41, %c96] : memref<8x1028xf32, #tpu.memory_space<vmem>>, vector<1x896xf32>
    %98 = vector.broadcast %96 : vector<8x1xf32> to vector<8x896xf32>
    %99 = vector.broadcast %97 : vector<1x896xf32> to vector<8x896xf32>
    %100 = arith.mulf %98, %99 : vector<8x896xf32>
    %101 = arith.addf %95, %100 : vector<8x896xf32>
    %c0_42 = arith.constant 0 : index
    %c16 = arith.constant 16 : index
    %102 = vector.load %arg1[%c0_42, %c16] : memref<8x32xf32, #tpu.memory_space<vmem>>, vector<8x1xf32>
    %c0_43 = arith.constant 0 : index
    %c97 = arith.constant 97 : index
    %103 = vector.load %arg0[%c0_43, %c97] : memref<8x1028xf32, #tpu.memory_space<vmem>>, vector<1x896xf32>
    %104 = vector.broadcast %102 : vector<8x1xf32> to vector<8x896xf32>
    %105 = vector.broadcast %103 : vector<1x896xf32> to vector<8x896xf32>
    %106 = arith.mulf %104, %105 : vector<8x896xf32>
    %107 = arith.addf %101, %106 : vector<8x896xf32>
    %c0_44 = arith.constant 0 : index
    %c17 = arith.constant 17 : index
    %108 = vector.load %arg1[%c0_44, %c17] : memref<8x32xf32, #tpu.memory_space<vmem>>, vector<8x1xf32>
    %c0_45 = arith.constant 0 : index
    %c98 = arith.constant 98 : index
    %109 = vector.load %arg0[%c0_45, %c98] : memref<8x1028xf32, #tpu.memory_space<vmem>>, vector<1x896xf32>
    %110 = vector.broadcast %108 : vector<8x1xf32> to vector<8x896xf32>
    %111 = vector.broadcast %109 : vector<1x896xf32> to vector<8x896xf32>
    %112 = arith.mulf %110, %111 : vector<8x896xf32>
    %113 = arith.addf %107, %112 : vector<8x896xf32>
    %c0_46 = arith.constant 0 : index
    %c18 = arith.constant 18 : index
    %114 = vector.load %arg1[%c0_46, %c18] : memref<8x32xf32, #tpu.memory_space<vmem>>, vector<8x1xf32>
    %c0_47 = arith.constant 0 : index
    %c99 = arith.constant 99 : index
    %115 = vector.load %arg0[%c0_47, %c99] : memref<8x1028xf32, #tpu.memory_space<vmem>>, vector<1x896xf32>
    %116 = vector.broadcast %114 : vector<8x1xf32> to vector<8x896xf32>
    %117 = vector.broadcast %115 : vector<1x896xf32> to vector<8x896xf32>
    %118 = arith.mulf %116, %117 : vector<8x896xf32>
    %119 = arith.addf %113, %118 : vector<8x896xf32>
    %c0_48 = arith.constant 0 : index
    %c19 = arith.constant 19 : index
    %120 = vector.load %arg1[%c0_48, %c19] : memref<8x32xf32, #tpu.memory_space<vmem>>, vector<8x1xf32>
    %c0_49 = arith.constant 0 : index
    %c100 = arith.constant 100 : index
    %121 = vector.load %arg0[%c0_49, %c100] : memref<8x1028xf32, #tpu.memory_space<vmem>>, vector<1x896xf32>
    %122 = vector.broadcast %120 : vector<8x1xf32> to vector<8x896xf32>
    %123 = vector.broadcast %121 : vector<1x896xf32> to vector<8x896xf32>
    %124 = arith.mulf %122, %123 : vector<8x896xf32>
    %125 = arith.addf %119, %124 : vector<8x896xf32>
    %c0_50 = arith.constant 0 : index
    %c20 = arith.constant 20 : index
    %126 = vector.load %arg1[%c0_50, %c20] : memref<8x32xf32, #tpu.memory_space<vmem>>, vector<8x1xf32>
    %c0_51 = arith.constant 0 : index
    %c128 = arith.constant 128 : index
    %127 = vector.load %arg0[%c0_51, %c128] : memref<8x1028xf32, #tpu.memory_space<vmem>>, vector<1x896xf32>
    %128 = vector.broadcast %126 : vector<8x1xf32> to vector<8x896xf32>
    %129 = vector.broadcast %127 : vector<1x896xf32> to vector<8x896xf32>
    %130 = arith.mulf %128, %129 : vector<8x896xf32>
    %131 = arith.addf %125, %130 : vector<8x896xf32>
    %c0_52 = arith.constant 0 : index
    %c21 = arith.constant 21 : index
    %132 = vector.load %arg1[%c0_52, %c21] : memref<8x32xf32, #tpu.memory_space<vmem>>, vector<8x1xf32>
    %c0_53 = arith.constant 0 : index
    %c129 = arith.constant 129 : index
    %133 = vector.load %arg0[%c0_53, %c129] : memref<8x1028xf32, #tpu.memory_space<vmem>>, vector<1x896xf32>
    %134 = vector.broadcast %132 : vector<8x1xf32> to vector<8x896xf32>
    %135 = vector.broadcast %133 : vector<1x896xf32> to vector<8x896xf32>
    %136 = arith.mulf %134, %135 : vector<8x896xf32>
    %137 = arith.addf %131, %136 : vector<8x896xf32>
    %c0_54 = arith.constant 0 : index
    %c22 = arith.constant 22 : index
    %138 = vector.load %arg1[%c0_54, %c22] : memref<8x32xf32, #tpu.memory_space<vmem>>, vector<8x1xf32>
    %c0_55 = arith.constant 0 : index
    %c130 = arith.constant 130 : index
    %139 = vector.load %arg0[%c0_55, %c130] : memref<8x1028xf32, #tpu.memory_space<vmem>>, vector<1x896xf32>
    %140 = vector.broadcast %138 : vector<8x1xf32> to vector<8x896xf32>
    %141 = vector.broadcast %139 : vector<1x896xf32> to vector<8x896xf32>
    %142 = arith.mulf %140, %141 : vector<8x896xf32>
    %143 = arith.addf %137, %142 : vector<8x896xf32>
    %c0_56 = arith.constant 0 : index
    %c23 = arith.constant 23 : index
    %144 = vector.load %arg1[%c0_56, %c23] : memref<8x32xf32, #tpu.memory_space<vmem>>, vector<8x1xf32>
    %c0_57 = arith.constant 0 : index
    %c131 = arith.constant 131 : index
    %145 = vector.load %arg0[%c0_57, %c131] : memref<8x1028xf32, #tpu.memory_space<vmem>>, vector<1x896xf32>
    %146 = vector.broadcast %144 : vector<8x1xf32> to vector<8x896xf32>
    %147 = vector.broadcast %145 : vector<1x896xf32> to vector<8x896xf32>
    %148 = arith.mulf %146, %147 : vector<8x896xf32>
    %149 = arith.addf %143, %148 : vector<8x896xf32>
    %c0_58 = arith.constant 0 : index
    %c24 = arith.constant 24 : index
    %150 = vector.load %arg1[%c0_58, %c24] : memref<8x32xf32, #tpu.memory_space<vmem>>, vector<8x1xf32>
    %c0_59 = arith.constant 0 : index
    %c132 = arith.constant 132 : index
    %151 = vector.load %arg0[%c0_59, %c132] : memref<8x1028xf32, #tpu.memory_space<vmem>>, vector<1x896xf32>
    %152 = vector.broadcast %150 : vector<8x1xf32> to vector<8x896xf32>
    %153 = vector.broadcast %151 : vector<1x896xf32> to vector<8x896xf32>
    %154 = arith.mulf %152, %153 : vector<8x896xf32>
    %155 = arith.addf %149, %154 : vector<8x896xf32>
    %c0_60 = arith.constant 0 : index
    %c0_61 = arith.constant 0 : index
    %156 = vector.load %arg14[%c0_60, %c0_61] : memref<8x1856xf32, #tpu.memory_space<vmem>>, vector<8x896xf32>
    tpu.vector_store %arg14[%c0_60, %c0_61], %155 {strides = array<i32>} : memref<8x1856xf32, #tpu.memory_space<vmem>>, vector<8x896xf32>,
    %c0_62 = arith.constant 0 : index
    %c0_63 = arith.constant 0 : index
    %157 = vector.load %arg2[%c0_62, %c0_63] : memref<8x1xf32, #tpu.memory_space<vmem>>, vector<8x1xf32>
    %c0_64 = arith.constant 0 : index
    %c0_65 = arith.constant 0 : index
    %158 = vector.load %arg1[%c0_64, %c0_65] : memref<8x32xf32, #tpu.memory_space<vmem>>, vector<8x1xf32>
    %c1_66 = arith.constant 1 : index
    %c0_67 = arith.constant 0 : index
    %159 = vector.load %arg0[%c1_66, %c0_67] : memref<8x1028xf32, #tpu.memory_space<vmem>>, vector<1x896xf32>
    %160 = vector.broadcast %158 : vector<8x1xf32> to vector<8x896xf32>
    %161 = vector.broadcast %159 : vector<1x896xf32> to vector<8x896xf32>
    %162 = arith.mulf %160, %161 : vector<8x896xf32>
    %163 = vector.broadcast %157 : vector<8x1xf32> to vector<8x896xf32>
    %164 = arith.addf %163, %162 : vector<8x896xf32>
    %c0_68 = arith.constant 0 : index
    %c1_69 = arith.constant 1 : index
    %165 = vector.load %arg1[%c0_68, %c1_69] : memref<8x32xf32, #tpu.memory_space<vmem>>, vector<8x1xf32>
    %c1_70 = arith.constant 1 : index
    %c1_71 = arith.constant 1 : index
    %166 = vector.load %arg0[%c1_70, %c1_71] : memref<8x1028xf32, #tpu.memory_space<vmem>>, vector<1x896xf32>
    %167 = vector.broadcast %165 : vector<8x1xf32> to vector<8x896xf32>
    %168 = vector.broadcast %166 : vector<1x896xf32> to vector<8x896xf32>
    %169 = arith.mulf %167, %168 : vector<8x896xf32>
    %170 = arith.addf %164, %169 : vector<8x896xf32>
    %c0_72 = arith.constant 0 : index
    %c2_73 = arith.constant 2 : index
    %171 = vector.load %arg1[%c0_72, %c2_73] : memref<8x32xf32, #tpu.memory_space<vmem>>, vector<8x1xf32>
    %c1_74 = arith.constant 1 : index
    %c2_75 = arith.constant 2 : index
    %172 = vector.load %arg0[%c1_74, %c2_75] : memref<8x1028xf32, #tpu.memory_space<vmem>>, vector<1x896xf32>
    %173 = vector.broadcast %171 : vector<8x1xf32> to vector<8x896xf32>
    %174 = vector.broadcast %172 : vector<1x896xf32> to vector<8x896xf32>
    %175 = arith.mulf %173, %174 : vector<8x896xf32>
    %176 = arith.addf %170, %175 : vector<8x896xf32>
    %c0_76 = arith.constant 0 : index
    %c3_77 = arith.constant 3 : index
    %177 = vector.load %arg1[%c0_76, %c3_77] : memref<8x32xf32, #tpu.memory_space<vmem>>, vector<8x1xf32>
    %c1_78 = arith.constant 1 : index
    %c3_79 = arith.constant 3 : index
    %178 = vector.load %arg0[%c1_78, %c3_79] : memref<8x1028xf32, #tpu.memory_space<vmem>>, vector<1x896xf32>
    %179 = vector.broadcast %177 : vector<8x1xf32> to vector<8x896xf32>
    %180 = vector.broadcast %178 : vector<1x896xf32> to vector<8x896xf32>
    %181 = arith.mulf %179, %180 : vector<8x896xf32>
    %182 = arith.addf %176, %181 : vector<8x896xf32>
    %c0_80 = arith.constant 0 : index
    %c4_81 = arith.constant 4 : index
    %183 = vector.load %arg1[%c0_80, %c4_81] : memref<8x32xf32, #tpu.memory_space<vmem>>, vector<8x1xf32>
    %c1_82 = arith.constant 1 : index
    %c4_83 = arith.constant 4 : index
    %184 = vector.load %arg0[%c1_82, %c4_83] : memref<8x1028xf32, #tpu.memory_space<vmem>>, vector<1x896xf32>
    %185 = vector.broadcast %183 : vector<8x1xf32> to vector<8x896xf32>
    %186 = vector.broadcast %184 : vector<1x896xf32> to vector<8x896xf32>
    %187 = arith.mulf %185, %186 : vector<8x896xf32>
    %188 = arith.addf %182, %187 : vector<8x896xf32>
    %c0_84 = arith.constant 0 : index
    %c5_85 = arith.constant 5 : index
    %189 = vector.load %arg1[%c0_84, %c5_85] : memref<8x32xf32, #tpu.memory_space<vmem>>, vector<8x1xf32>
    %c1_86 = arith.constant 1 : index
    %c32_87 = arith.constant 32 : index
    %190 = vector.load %arg0[%c1_86, %c32_87] : memref<8x1028xf32, #tpu.memory_space<vmem>>, vector<1x896xf32>
    %191 = vector.broadcast %189 : vector<8x1xf32> to vector<8x896xf32>
    %192 = vector.broadcast %190 : vector<1x896xf32> to vector<8x896xf32>
    %193 = arith.mulf %191, %192 : vector<8x896xf32>
    %194 = arith.addf %188, %193 : vector<8x896xf32>
    %c0_88 = arith.constant 0 : index
    %c6_89 = arith.constant 6 : index
    %195 = vector.load %arg1[%c0_88, %c6_89] : memref<8x32xf32, #tpu.memory_space<vmem>>, vector<8x1xf32>
    %c1_90 = arith.constant 1 : index
    %c33_91 = arith.constant 33 : index
    %196 = vector.load %arg0[%c1_90, %c33_91] : memref<8x1028xf32, #tpu.memory_space<vmem>>, vector<1x896xf32>
    %197 = vector.broadcast %195 : vector<8x1xf32> to vector<8x896xf32>
    %198 = vector.broadcast %196 : vector<1x896xf32> to vector<8x896xf32>
    %199 = arith.mulf %197, %198 : vector<8x896xf32>
    %200 = arith.addf %194, %199 : vector<8x896xf32>
    %c0_92 = arith.constant 0 : index
    %c7_93 = arith.constant 7 : index
    %201 = vector.load %arg1[%c0_92, %c7_93] : memref<8x32xf32, #tpu.memory_space<vmem>>, vector<8x1xf32>
    %c1_94 = arith.constant 1 : index
    %c34_95 = arith.constant 34 : index
    %202 = vector.load %arg0[%c1_94, %c34_95] : memref<8x1028xf32, #tpu.memory_space<vmem>>, vector<1x896xf32>
    %203 = vector.broadcast %201 : vector<8x1xf32> to vector<8x896xf32>
    %204 = vector.broadcast %202 : vector<1x896xf32> to vector<8x896xf32>
    %205 = arith.mulf %203, %204 : vector<8x896xf32>
    %206 = arith.addf %200, %205 : vector<8x896xf32>
    %c0_96 = arith.constant 0 : index
    %c8_97 = arith.constant 8 : index
    %207 = vector.load %arg1[%c0_96, %c8_97] : memref<8x32xf32, #tpu.memory_space<vmem>>, vector<8x1xf32>
    %c1_98 = arith.constant 1 : index
    %c35_99 = arith.constant 35 : index
    %208 = vector.load %arg0[%c1_98, %c35_99] : memref<8x1028xf32, #tpu.memory_space<vmem>>, vector<1x896xf32>
    %209 = vector.broadcast %207 : vector<8x1xf32> to vector<8x896xf32>
    %210 = vector.broadcast %208 : vector<1x896xf32> to vector<8x896xf32>
    %211 = arith.mulf %209, %210 : vector<8x896xf32>
    %212 = arith.addf %206, %211 : vector<8x896xf32>
    %c0_100 = arith.constant 0 : index
    %c9_101 = arith.constant 9 : index
    %213 = vector.load %arg1[%c0_100, %c9_101] : memref<8x32xf32, #tpu.memory_space<vmem>>, vector<8x1xf32>
    %c1_102 = arith.constant 1 : index
    %c36_103 = arith.constant 36 : index
    %214 = vector.load %arg0[%c1_102, %c36_103] : memref<8x1028xf32, #tpu.memory_space<vmem>>, vector<1x896xf32>
    %215 = vector.broadcast %213 : vector<8x1xf32> to vector<8x896xf32>
    %216 = vector.broadcast %214 : vector<1x896xf32> to vector<8x896xf32>
    %217 = arith.mulf %215, %216 : vector<8x896xf32>
    %218 = arith.addf %212, %217 : vector<8x896xf32>
    %c0_104 = arith.constant 0 : index
    %c10_105 = arith.constant 10 : index
    %219 = vector.load %arg1[%c0_104, %c10_105] : memref<8x32xf32, #tpu.memory_space<vmem>>, vector<8x1xf32>
    %c1_106 = arith.constant 1 : index
    %c64_107 = arith.constant 64 : index
    %220 = vector.load %arg0[%c1_106, %c64_107] : memref<8x1028xf32, #tpu.memory_space<vmem>>, vector<1x896xf32>
    %221 = vector.broadcast %219 : vector<8x1xf32> to vector<8x896xf32>
    %222 = vector.broadcast %220 : vector<1x896xf32> to vector<8x896xf32>
    %223 = arith.mulf %221, %222 : vector<8x896xf32>
    %224 = arith.addf %218, %223 : vector<8x896xf32>
    %c0_108 = arith.constant 0 : index
    %c11_109 = arith.constant 11 : index
    %225 = vector.load %arg1[%c0_108, %c11_109] : memref<8x32xf32, #tpu.memory_space<vmem>>, vector<8x1xf32>
    %c1_110 = arith.constant 1 : index
    %c65_111 = arith.constant 65 : index
    %226 = vector.load %arg0[%c1_110, %c65_111] : memref<8x1028xf32, #tpu.memory_space<vmem>>, vector<1x896xf32>
    %227 = vector.broadcast %225 : vector<8x1xf32> to vector<8x896xf32>
    %228 = vector.broadcast %226 : vector<1x896xf32> to vector<8x896xf32>
    %229 = arith.mulf %227, %228 : vector<8x896xf32>
    %230 = arith.addf %224, %229 : vector<8x896xf32>
    %c0_112 = arith.constant 0 : index
    %c12_113 = arith.constant 12 : index
    %231 = vector.load %arg1[%c0_112, %c12_113] : memref<8x32xf32, #tpu.memory_space<vmem>>, vector<8x1xf32>
    %c1_114 = arith.constant 1 : index
    %c66_115 = arith.constant 66 : index
    %232 = vector.load %arg0[%c1_114, %c66_115] : memref<8x1028xf32, #tpu.memory_space<vmem>>, vector<1x896xf32>
    %233 = vector.broadcast %231 : vector<8x1xf32> to vector<8x896xf32>
    %234 = vector.broadcast %232 : vector<1x896xf32> to vector<8x896xf32>
    %235 = arith.mulf %233, %234 : vector<8x896xf32>
    %236 = arith.addf %230, %235 : vector<8x896xf32>
    %c0_116 = arith.constant 0 : index
    %c13_117 = arith.constant 13 : index
    %237 = vector.load %arg1[%c0_116, %c13_117] : memref<8x32xf32, #tpu.memory_space<vmem>>, vector<8x1xf32>
    %c1_118 = arith.constant 1 : index
    %c67_119 = arith.constant 67 : index
    %238 = vector.load %arg0[%c1_118, %c67_119] : memref<8x1028xf32, #tpu.memory_space<vmem>>, vector<1x896xf32>
    %239 = vector.broadcast %237 : vector<8x1xf32> to vector<8x896xf32>
    %240 = vector.broadcast %238 : vector<1x896xf32> to vector<8x896xf32>
    %241 = arith.mulf %239, %240 : vector<8x896xf32>
    %242 = arith.addf %236, %241 : vector<8x896xf32>
    %c0_120 = arith.constant 0 : index
    %c14_121 = arith.constant 14 : index
    %243 = vector.load %arg1[%c0_120, %c14_121] : memref<8x32xf32, #tpu.memory_space<vmem>>, vector<8x1xf32>
    %c1_122 = arith.constant 1 : index
    %c68_123 = arith.constant 68 : index
    %244 = vector.load %arg0[%c1_122, %c68_123] : memref<8x1028xf32, #tpu.memory_space<vmem>>, vector<1x896xf32>
    %245 = vector.broadcast %243 : vector<8x1xf32> to vector<8x896xf32>
    %246 = vector.broadcast %244 : vector<1x896xf32> to vector<8x896xf32>
    %247 = arith.mulf %245, %246 : vector<8x896xf32>
    %248 = arith.addf %242, %247 : vector<8x896xf32>
    %c0_124 = arith.constant 0 : index
    %c15_125 = arith.constant 15 : index
    %249 = vector.load %arg1[%c0_124, %c15_125] : memref<8x32xf32, #tpu.memory_space<vmem>>, vector<8x1xf32>
    %c1_126 = arith.constant 1 : index
    %c96_127 = arith.constant 96 : index
    %250 = vector.load %arg0[%c1_126, %c96_127] : memref<8x1028xf32, #tpu.memory_space<vmem>>, vector<1x896xf32>
    %251 = vector.broadcast %249 : vector<8x1xf32> to vector<8x896xf32>
    %252 = vector.broadcast %250 : vector<1x896xf32> to vector<8x896xf32>
    %253 = arith.mulf %251, %252 : vector<8x896xf32>
    %254 = arith.addf %248, %253 : vector<8x896xf32>
    %c0_128 = arith.constant 0 : index
    %c16_129 = arith.constant 16 : index
    %255 = vector.load %arg1[%c0_128, %c16_129] : memref<8x32xf32, #tpu.memory_space<vmem>>, vector<8x1xf32>
    %c1_130 = arith.constant 1 : index
    %c97_131 = arith.constant 97 : index
    %256 = vector.load %arg0[%c1_130, %c97_131] : memref<8x1028xf32, #tpu.memory_space<vmem>>, vector<1x896xf32>
    %257 = vector.broadcast %255 : vector<8x1xf32> to vector<8x896xf32>
    %258 = vector.broadcast %256 : vector<1x896xf32> to vector<8x896xf32>
    %259 = arith.mulf %257, %258 : vector<8x896xf32>
    %260 = arith.addf %254, %259 : vector<8x896xf32>
    %c0_132 = arith.constant 0 : index
    %c17_133 = arith.constant 17 : index
    %261 = vector.load %arg1[%c0_132, %c17_133] : memref<8x32xf32, #tpu.memory_space<vmem>>, vector<8x1xf32>
    %c1_134 = arith.constant 1 : index
    %c98_135 = arith.constant 98 : index
    %262 = vector.load %arg0[%c1_134, %c98_135] : memref<8x1028xf32, #tpu.memory_space<vmem>>, vector<1x896xf32>
    %263 = vector.broadcast %261 : vector<8x1xf32> to vector<8x896xf32>
    %264 = vector.broadcast %262 : vector<1x896xf32> to vector<8x896xf32>
    %265 = arith.mulf %263, %264 : vector<8x896xf32>
    %266 = arith.addf %260, %265 : vector<8x896xf32>
    %c0_136 = arith.constant 0 : index
    %c18_137 = arith.constant 18 : index
    %267 = vector.load %arg1[%c0_136, %c18_137] : memref<8x32xf32, #tpu.memory_space<vmem>>, vector<8x1xf32>
    %c1_138 = arith.constant 1 : index
    %c99_139 = arith.constant 99 : index
    %268 = vector.load %arg0[%c1_138, %c99_139] : memref<8x1028xf32, #tpu.memory_space<vmem>>, vector<1x896xf32>
    %269 = vector.broadcast %267 : vector<8x1xf32> to vector<8x896xf32>
    %270 = vector.broadcast %268 : vector<1x896xf32> to vector<8x896xf32>
    %271 = arith.mulf %269, %270 : vector<8x896xf32>
    %272 = arith.addf %266, %271 : vector<8x896xf32>
    %c0_140 = arith.constant 0 : index
    %c19_141 = arith.constant 19 : index
    %273 = vector.load %arg1[%c0_140, %c19_141] : memref<8x32xf32, #tpu.memory_space<vmem>>, vector<8x1xf32>
    %c1_142 = arith.constant 1 : index
    %c100_143 = arith.constant 100 : index
    %274 = vector.load %arg0[%c1_142, %c100_143] : memref<8x1028xf32, #tpu.memory_space<vmem>>, vector<1x896xf32>
    %275 = vector.broadcast %273 : vector<8x1xf32> to vector<8x896xf32>
    %276 = vector.broadcast %274 : vector<1x896xf32> to vector<8x896xf32>
    %277 = arith.mulf %275, %276 : vector<8x896xf32>
    %278 = arith.addf %272, %277 : vector<8x896xf32>
    %c0_144 = arith.constant 0 : index
    %c20_145 = arith.constant 20 : index
    %279 = vector.load %arg1[%c0_144, %c20_145] : memref<8x32xf32, #tpu.memory_space<vmem>>, vector<8x1xf32>
    %c1_146 = arith.constant 1 : index
    %c128_147 = arith.constant 128 : index
    %280 = vector.load %arg0[%c1_146, %c128_147] : memref<8x1028xf32, #tpu.memory_space<vmem>>, vector<1x896xf32>
    %281 = vector.broadcast %279 : vector<8x1xf32> to vector<8x896xf32>
    %282 = vector.broadcast %280 : vector<1x896xf32> to vector<8x896xf32>
    %283 = arith.mulf %281, %282 : vector<8x896xf32>
    %284 = arith.addf %278, %283 : vector<8x896xf32>
    %c0_148 = arith.constant 0 : index
    %c21_149 = arith.constant 21 : index
    %285 = vector.load %arg1[%c0_148, %c21_149] : memref<8x32xf32, #tpu.memory_space<vmem>>, vector<8x1xf32>
    %c1_150 = arith.constant 1 : index
    %c129_151 = arith.constant 129 : index
    %286 = vector.load %arg0[%c1_150, %c129_151] : memref<8x1028xf32, #tpu.memory_space<vmem>>, vector<1x896xf32>
    %287 = vector.broadcast %285 : vector<8x1xf32> to vector<8x896xf32>
    %288 = vector.broadcast %286 : vector<1x896xf32> to vector<8x896xf32>
    %289 = arith.mulf %287, %288 : vector<8x896xf32>
    %290 = arith.addf %284, %289 : vector<8x896xf32>
    %c0_152 = arith.constant 0 : index
    %c22_153 = arith.constant 22 : index
    %291 = vector.load %arg1[%c0_152, %c22_153] : memref<8x32xf32, #tpu.memory_space<vmem>>, vector<8x1xf32>
    %c1_154 = arith.constant 1 : index
    %c130_155 = arith.constant 130 : index
    %292 = vector.load %arg0[%c1_154, %c130_155] : memref<8x1028xf32, #tpu.memory_space<vmem>>, vector<1x896xf32>
    %293 = vector.broadcast %291 : vector<8x1xf32> to vector<8x896xf32>
    %294 = vector.broadcast %292 : vector<1x896xf32> to vector<8x896xf32>
    %295 = arith.mulf %293, %294 : vector<8x896xf32>
    %296 = arith.addf %290, %295 : vector<8x896xf32>
    %c0_156 = arith.constant 0 : index
    %c23_157 = arith.constant 23 : index
    %297 = vector.load %arg1[%c0_156, %c23_157] : memref<8x32xf32, #tpu.memory_space<vmem>>, vector<8x1xf32>
    %c1_158 = arith.constant 1 : index
    %c131_159 = arith.constant 131 : index
    %298 = vector.load %arg0[%c1_158, %c131_159] : memref<8x1028xf32, #tpu.memory_space<vmem>>, vector<1x896xf32>
    %299 = vector.broadcast %297 : vector<8x1xf32> to vector<8x896xf32>
    %300 = vector.broadcast %298 : vector<1x896xf32> to vector<8x896xf32>
    %301 = arith.mulf %299, %300 : vector<8x896xf32>
    %302 = arith.addf %296, %301 : vector<8x896xf32>
    %c0_160 = arith.constant 0 : index
    %c24_161 = arith.constant 24 : index
    %303 = vector.load %arg1[%c0_160, %c24_161] : memref<8x32xf32, #tpu.memory_space<vmem>>, vector<8x1xf32>
    %c1_162 = arith.constant 1 : index
    %c132_163 = arith.constant 132 : index
    %304 = vector.load %arg0[%c1_162, %c132_163] : memref<8x1028xf32, #tpu.memory_space<vmem>>, vector<1x896xf32>
    %305 = vector.broadcast %303 : vector<8x1xf32> to vector<8x896xf32>
    %306 = vector.broadcast %304 : vector<1x896xf32> to vector<8x896xf32>
    %307 = arith.mulf %305, %306 : vector<8x896xf32>
    %308 = arith.addf %302, %307 : vector<8x896xf32>
    %c0_164 = arith.constant 0 : index
    %c896 = arith.constant 896 : index
    %309 = vector.load %arg14[%c0_164, %c896] : memref<8x1856xf32, #tpu.memory_space<vmem>>, vector<8x896xf32>
    tpu.vector_store %arg14[%c0_164, %c896], %308 {strides = array<i32>} : memref<8x1856xf32, #tpu.memory_space<vmem>>, vector<8x896xf32>,
    %c0_165 = arith.constant 0 : index
    %c0_166 = arith.constant 0 : index
    %310 = vector.load %arg14[%c0_165, %c0_166] : memref<8x1856xf32, #tpu.memory_space<vmem>>, vector<8x1792xf32>
    %c0_167 = arith.constant 0 : index
    %c1_168 = arith.constant 1 : index
    %311 = vector.load %arg14[%c0_167, %c1_168] : memref<8x1856xf32, #tpu.memory_space<vmem>>, vector<8x1792xf32>
    %312 = arith.maximumf %310, %311 : vector<8x1792xf32>
    %c0_169 = arith.constant 0 : index
    %c32_170 = arith.constant 32 : index
    %313 = vector.load %arg14[%c0_169, %c32_170] : memref<8x1856xf32, #tpu.memory_space<vmem>>, vector<8x1792xf32>
    %c0_171 = arith.constant 0 : index
    %c33_172 = arith.constant 33 : index
    %314 = vector.load %arg14[%c0_171, %c33_172] : memref<8x1856xf32, #tpu.memory_space<vmem>>, vector<8x1792xf32>
    %315 = arith.maximumf %313, %314 : vector<8x1792xf32>
    %316 = arith.maximumf %312, %315 : vector<8x1792xf32>
    %cst_173 = arith.constant 0.000000e+00 : f32
    %317 = vector.broadcast %cst_173 : f32 to vector<8x1792xf32>
    %318 = arith.maximumf %316, %317 : vector<8x1792xf32>
    %319 = vector.extract_strided_slice %318 {offsets = [0, 0], sizes = [8, 32], strides = [1, 1]} : vector<8x1792xf32> to vector<8x32xf32>
    %c0_174 = arith.constant 0 : index
    %c0_175 = arith.constant 0 : index
    %320 = vector.load %arg15[%c0_174, %c0_175] : memref<8x896xf32, #tpu.memory_space<vmem>>, vector<8x32xf32>
    tpu.vector_store %arg15[%c0_174, %c0_175], %319 {strides = array<i32>} : memref<8x896xf32, #tpu.memory_space<vmem>>, vector<8x32xf32>,
    %321 = vector.extract_strided_slice %318 {offsets = [0, 64], sizes = [8, 32], strides = [1, 1]} : vector<8x1792xf32> to vector<8x32xf32>
    %c0_176 = arith.constant 0 : index
    %c32_177 = arith.constant 32 : index
    %322 = vector.load %arg15[%c0_176, %c32_177] : memref<8x896xf32, #tpu.memory_space<vmem>>, vector<8x32xf32>
    tpu.vector_store %arg15[%c0_176, %c32_177], %321 {strides = array<i32>} : memref<8x896xf32, #tpu.memory_space<vmem>>, vector<8x32xf32>,
    %323 = vector.extract_strided_slice %318 {offsets = [0, 128], sizes = [8, 32], strides = [1, 1]} : vector<8x1792xf32> to vector<8x32xf32>
    %c0_178 = arith.constant 0 : index
    %c64_179 = arith.constant 64 : index
    %324 = vector.load %arg15[%c0_178, %c64_179] : memref<8x896xf32, #tpu.memory_space<vmem>>, vector<8x32xf32>
    tpu.vector_store %arg15[%c0_178, %c64_179], %323 {strides = array<i32>} : memref<8x896xf32, #tpu.memory_space<vmem>>, vector<8x32xf32>,
    %325 = vector.extract_strided_slice %318 {offsets = [0, 192], sizes = [8, 32], strides = [1, 1]} : vector<8x1792xf32> to vector<8x32xf32>
    %c0_180 = arith.constant 0 : index
    %c96_181 = arith.constant 96 : index
    %326 = vector.load %arg15[%c0_180, %c96_181] : memref<8x896xf32, #tpu.memory_space<vmem>>, vector<8x32xf32>
    tpu.vector_store %arg15[%c0_180, %c96_181], %325 {strides = array<i32>} : memref<8x896xf32, #tpu.memory_space<vmem>>, vector<8x32xf32>,
    %327 = vector.extract_strided_slice %318 {offsets = [0, 256], sizes = [8, 32], strides = [1, 1]} : vector<8x1792xf32> to vector<8x32xf32>
    %c0_182 = arith.constant 0 : index
    %c128_183 = arith.constant 128 : index
    %328 = vector.load %arg15[%c0_182, %c128_183] : memref<8x896xf32, #tpu.memory_space<vmem>>, vector<8x32xf32>
    tpu.vector_store %arg15[%c0_182, %c128_183], %327 {strides = array<i32>} : memref<8x896xf32, #tpu.memory_space<vmem>>, vector<8x32xf32>,
    %329 = vector.extract_strided_slice %318 {offsets = [0, 320], sizes = [8, 32], strides = [1, 1]} : vector<8x1792xf32> to vector<8x32xf32>
    %c0_184 = arith.constant 0 : index
    %c160 = arith.constant 160 : index
    %330 = vector.load %arg15[%c0_184, %c160] : memref<8x896xf32, #tpu.memory_space<vmem>>, vector<8x32xf32>
    tpu.vector_store %arg15[%c0_184, %c160], %329 {strides = array<i32>} : memref<8x896xf32, #tpu.memory_space<vmem>>, vector<8x32xf32>,
    %331 = vector.extract_strided_slice %318 {offsets = [0, 384], sizes = [8, 32], strides = [1, 1]} : vector<8x1792xf32> to vector<8x32xf32>
    %c0_185 = arith.constant 0 : index
    %c192 = arith.constant 192 : index
    %332 = vector.load %arg15[%c0_185, %c192] : memref<8x896xf32, #tpu.memory_space<vmem>>, vector<8x32xf32>
    tpu.vector_store %arg15[%c0_185, %c192], %331 {strides = array<i32>} : memref<8x896xf32, #tpu.memory_space<vmem>>, vector<8x32xf32>,
    %333 = vector.extract_strided_slice %318 {offsets = [0, 448], sizes = [8, 32], strides = [1, 1]} : vector<8x1792xf32> to vector<8x32xf32>
    %c0_186 = arith.constant 0 : index
    %c224 = arith.constant 224 : index
    %334 = vector.load %arg15[%c0_186, %c224] : memref<8x896xf32, #tpu.memory_space<vmem>>, vector<8x32xf32>
    tpu.vector_store %arg15[%c0_186, %c224], %333 {strides = array<i32>} : memref<8x896xf32, #tpu.memory_space<vmem>>, vector<8x32xf32>,
    %335 = vector.extract_strided_slice %318 {offsets = [0, 512], sizes = [8, 32], strides = [1, 1]} : vector<8x1792xf32> to vector<8x32xf32>
    %c0_187 = arith.constant 0 : index
    %c256 = arith.constant 256 : index
    %336 = vector.load %arg15[%c0_187, %c256] : memref<8x896xf32, #tpu.memory_space<vmem>>, vector<8x32xf32>
    tpu.vector_store %arg15[%c0_187, %c256], %335 {strides = array<i32>} : memref<8x896xf32, #tpu.memory_space<vmem>>, vector<8x32xf32>,
    %337 = vector.extract_strided_slice %318 {offsets = [0, 576], sizes = [8, 32], strides = [1, 1]} : vector<8x1792xf32> to vector<8x32xf32>
    %c0_188 = arith.constant 0 : index
    %c288 = arith.constant 288 : index
    %338 = vector.load %arg15[%c0_188, %c288] : memref<8x896xf32, #tpu.memory_space<vmem>>, vector<8x32xf32>
    tpu.vector_store %arg15[%c0_188, %c288], %337 {strides = array<i32>} : memref<8x896xf32, #tpu.memory_space<vmem>>, vector<8x32xf32>,
    %339 = vector.extract_strided_slice %318 {offsets = [0, 640], sizes = [8, 32], strides = [1, 1]} : vector<8x1792xf32> to vector<8x32xf32>
    %c0_189 = arith.constant 0 : index
    %c320 = arith.constant 320 : index
    %340 = vector.load %arg15[%c0_189, %c320] : memref<8x896xf32, #tpu.memory_space<vmem>>, vector<8x32xf32>
    tpu.vector_store %arg15[%c0_189, %c320], %339 {strides = array<i32>} : memref<8x896xf32, #tpu.memory_space<vmem>>, vector<8x32xf32>,
    %341 = vector.extract_strided_slice %318 {offsets = [0, 704], sizes = [8, 32], strides = [1, 1]} : vector<8x1792xf32> to vector<8x32xf32>
    %c0_190 = arith.constant 0 : index
    %c352 = arith.constant 352 : index
    %342 = vector.load %arg15[%c0_190, %c352] : memref<8x896xf32, #tpu.memory_space<vmem>>, vector<8x32xf32>
    tpu.vector_store %arg15[%c0_190, %c352], %341 {strides = array<i32>} : memref<8x896xf32, #tpu.memory_space<vmem>>, vector<8x32xf32>,
    %343 = vector.extract_strided_slice %318 {offsets = [0, 768], sizes = [8, 32], strides = [1, 1]} : vector<8x1792xf32> to vector<8x32xf32>
    %c0_191 = arith.constant 0 : index
    %c384 = arith.constant 384 : index
    %344 = vector.load %arg15[%c0_191, %c384] : memref<8x896xf32, #tpu.memory_space<vmem>>, vector<8x32xf32>
    tpu.vector_store %arg15[%c0_191, %c384], %343 {strides = array<i32>} : memref<8x896xf32, #tpu.memory_space<vmem>>, vector<8x32xf32>,
    %345 = vector.extract_strided_slice %318 {offsets = [0, 832], sizes = [8, 32], strides = [1, 1]} : vector<8x1792xf32> to vector<8x32xf32>
    %c0_192 = arith.constant 0 : index
    %c416 = arith.constant 416 : index
    %346 = vector.load %arg15[%c0_192, %c416] : memref<8x896xf32, #tpu.memory_space<vmem>>, vector<8x32xf32>
    tpu.vector_store %arg15[%c0_192, %c416], %345 {strides = array<i32>} : memref<8x896xf32, #tpu.memory_space<vmem>>, vector<8x32xf32>,
    %347 = vector.extract_strided_slice %318 {offsets = [0, 896], sizes = [8, 32], strides = [1, 1]} : vector<8x1792xf32> to vector<8x32xf32>
    %c0_193 = arith.constant 0 : index
    %c448 = arith.constant 448 : index
    %348 = vector.load %arg15[%c0_193, %c448] : memref<8x896xf32, #tpu.memory_space<vmem>>, vector<8x32xf32>
    tpu.vector_store %arg15[%c0_193, %c448], %347 {strides = array<i32>} : memref<8x896xf32, #tpu.memory_space<vmem>>, vector<8x32xf32>,
    %349 = vector.extract_strided_slice %318 {offsets = [0, 960], sizes = [8, 32], strides = [1, 1]} : vector<8x1792xf32> to vector<8x32xf32>
    %c0_194 = arith.constant 0 : index
    %c480 = arith.constant 480 : index
    %350 = vector.load %arg15[%c0_194, %c480] : memref<8x896xf32, #tpu.memory_space<vmem>>, vector<8x32xf32>
    tpu.vector_store %arg15[%c0_194, %c480], %349 {strides = array<i32>} : memref<8x896xf32, #tpu.memory_space<vmem>>, vector<8x32xf32>,
    %351 = vector.extract_strided_slice %318 {offsets = [0, 1024], sizes = [8, 32], strides = [1, 1]} : vector<8x1792xf32> to vector<8x32xf32>
    %c0_195 = arith.constant 0 : index
    %c512 = arith.constant 512 : index
    %352 = vector.load %arg15[%c0_195, %c512] : memref<8x896xf32, #tpu.memory_space<vmem>>, vector<8x32xf32>
    tpu.vector_store %arg15[%c0_195, %c512], %351 {strides = array<i32>} : memref<8x896xf32, #tpu.memory_space<vmem>>, vector<8x32xf32>,
    %353 = vector.extract_strided_slice %318 {offsets = [0, 1088], sizes = [8, 32], strides = [1, 1]} : vector<8x1792xf32> to vector<8x32xf32>
    %c0_196 = arith.constant 0 : index
    %c544 = arith.constant 544 : index
    %354 = vector.load %arg15[%c0_196, %c544] : memref<8x896xf32, #tpu.memory_space<vmem>>, vector<8x32xf32>
    tpu.vector_store %arg15[%c0_196, %c544], %353 {strides = array<i32>} : memref<8x896xf32, #tpu.memory_space<vmem>>, vector<8x32xf32>,
    %355 = vector.extract_strided_slice %318 {offsets = [0, 1152], sizes = [8, 32], strides = [1, 1]} : vector<8x1792xf32> to vector<8x32xf32>
    %c0_197 = arith.constant 0 : index
    %c576 = arith.constant 576 : index
    %356 = vector.load %arg15[%c0_197, %c576] : memref<8x896xf32, #tpu.memory_space<vmem>>, vector<8x32xf32>
    tpu.vector_store %arg15[%c0_197, %c576], %355 {strides = array<i32>} : memref<8x896xf32, #tpu.memory_space<vmem>>, vector<8x32xf32>,
    %357 = vector.extract_strided_slice %318 {offsets = [0, 1216], sizes = [8, 32], strides = [1, 1]} : vector<8x1792xf32> to vector<8x32xf32>
    %c0_198 = arith.constant 0 : index
    %c608 = arith.constant 608 : index
    %358 = vector.load %arg15[%c0_198, %c608] : memref<8x896xf32, #tpu.memory_space<vmem>>, vector<8x32xf32>
    tpu.vector_store %arg15[%c0_198, %c608], %357 {strides = array<i32>} : memref<8x896xf32, #tpu.memory_space<vmem>>, vector<8x32xf32>,
    %359 = vector.extract_strided_slice %318 {offsets = [0, 1280], sizes = [8, 32], strides = [1, 1]} : vector<8x1792xf32> to vector<8x32xf32>
    %c0_199 = arith.constant 0 : index
    %c640 = arith.constant 640 : index
    %360 = vector.load %arg15[%c0_199, %c640] : memref<8x896xf32, #tpu.memory_space<vmem>>, vector<8x32xf32>
    tpu.vector_store %arg15[%c0_199, %c640], %359 {strides = array<i32>} : memref<8x896xf32, #tpu.memory_space<vmem>>, vector<8x32xf32>,
    %361 = vector.extract_strided_slice %318 {offsets = [0, 1344], sizes = [8, 32], strides = [1, 1]} : vector<8x1792xf32> to vector<8x32xf32>
    %c0_200 = arith.constant 0 : index
    %c672 = arith.constant 672 : index
    %362 = vector.load %arg15[%c0_200, %c672] : memref<8x896xf32, #tpu.memory_space<vmem>>, vector<8x32xf32>
    tpu.vector_store %arg15[%c0_200, %c672], %361 {strides = array<i32>} : memref<8x896xf32, #tpu.memory_space<vmem>>, vector<8x32xf32>,
    %363 = vector.extract_strided_slice %318 {offsets = [0, 1408], sizes = [8, 32], strides = [1, 1]} : vector<8x1792xf32> to vector<8x32xf32>
    %c0_201 = arith.constant 0 : index
    %c704 = arith.constant 704 : index
    %364 = vector.load %arg15[%c0_201, %c704] : memref<8x896xf32, #tpu.memory_space<vmem>>, vector<8x32xf32>
    tpu.vector_store %arg15[%c0_201, %c704], %363 {strides = array<i32>} : memref<8x896xf32, #tpu.memory_space<vmem>>, vector<8x32xf32>,
    %365 = vector.extract_strided_slice %318 {offsets = [0, 1472], sizes = [8, 32], strides = [1, 1]} : vector<8x1792xf32> to vector<8x32xf32>
    %c0_202 = arith.constant 0 : index
    %c736 = arith.constant 736 : index
    %366 = vector.load %arg15[%c0_202, %c736] : memref<8x896xf32, #tpu.memory_space<vmem>>, vector<8x32xf32>
    tpu.vector_store %arg15[%c0_202, %c736], %365 {strides = array<i32>} : memref<8x896xf32, #tpu.memory_space<vmem>>, vector<8x32xf32>,
    %367 = vector.extract_strided_slice %318 {offsets = [0, 1536], sizes = [8, 32], strides = [1, 1]} : vector<8x1792xf32> to vector<8x32xf32>
    %c0_203 = arith.constant 0 : index
    %c768 = arith.constant 768 : index
    %368 = vector.load %arg15[%c0_203, %c768] : memref<8x896xf32, #tpu.memory_space<vmem>>, vector<8x32xf32>
    tpu.vector_store %arg15[%c0_203, %c768], %367 {strides = array<i32>} : memref<8x896xf32, #tpu.memory_space<vmem>>, vector<8x32xf32>,
    %369 = vector.extract_strided_slice %318 {offsets = [0, 1600], sizes = [8, 32], strides = [1, 1]} : vector<8x1792xf32> to vector<8x32xf32>
    %c0_204 = arith.constant 0 : index
    %c800 = arith.constant 800 : index
    %370 = vector.load %arg15[%c0_204, %c800] : memref<8x896xf32, #tpu.memory_space<vmem>>, vector<8x32xf32>
    tpu.vector_store %arg15[%c0_204, %c800], %369 {strides = array<i32>} : memref<8x896xf32, #tpu.memory_space<vmem>>, vector<8x32xf32>,
    %371 = vector.extract_strided_slice %318 {offsets = [0, 1664], sizes = [8, 32], strides = [1, 1]} : vector<8x1792xf32> to vector<8x32xf32>
    %c0_205 = arith.constant 0 : index
    %c832 = arith.constant 832 : index
    %372 = vector.load %arg15[%c0_205, %c832] : memref<8x896xf32, #tpu.memory_space<vmem>>, vector<8x32xf32>
    tpu.vector_store %arg15[%c0_205, %c832], %371 {strides = array<i32>} : memref<8x896xf32, #tpu.memory_space<vmem>>, vector<8x32xf32>,
    %373 = vector.extract_strided_slice %318 {offsets = [0, 1728], sizes = [8, 32], strides = [1, 1]} : vector<8x1792xf32> to vector<8x32xf32>
    %c0_206 = arith.constant 0 : index
    %c864 = arith.constant 864 : index
    %374 = vector.load %arg15[%c0_206, %c864] : memref<8x896xf32, #tpu.memory_space<vmem>>, vector<8x32xf32>
    tpu.vector_store %arg15[%c0_206, %c864], %373 {strides = array<i32>} : memref<8x896xf32, #tpu.memory_space<vmem>>, vector<8x32xf32>,
    %c0_207 = arith.constant 0 : index
    %c0_208 = arith.constant 0 : index
    %375 = vector.load %arg15[%c0_207, %c0_208] : memref<8x896xf32, #tpu.memory_space<vmem>>, vector<8x312xf32>
    %c0_209 = arith.constant 0 : index
    %c0_210 = arith.constant 0 : index
    %376 = vector.load %arg16[%c0_209, %c0_210] : memref<200x624xf32, #tpu.memory_space<vmem>>, vector<8x312xf32>
    tpu.vector_store %arg16[%c0_209, %c0_210], %375 {strides = array<i32>} : memref<200x624xf32, #tpu.memory_space<vmem>>, vector<8x312xf32>,
    %c0_211 = arith.constant 0 : index
    %c2_212 = arith.constant 2 : index
    %377 = vector.load %arg15[%c0_211, %c2_212] : memref<8x896xf32, #tpu.memory_space<vmem>>, vector<8x312xf32>
    %c8_213 = arith.constant 8 : index
    %c0_214 = arith.constant 0 : index
    %378 = vector.load %arg16[%c8_213, %c0_214] : memref<200x624xf32, #tpu.memory_space<vmem>>, vector<8x312xf32>
    tpu.vector_store %arg16[%c8_213, %c0_214], %377 {strides = array<i32>} : memref<200x624xf32, #tpu.memory_space<vmem>>, vector<8x312xf32>,
    %c0_215 = arith.constant 0 : index
    %c4_216 = arith.constant 4 : index
    %379 = vector.load %arg15[%c0_215, %c4_216] : memref<8x896xf32, #tpu.memory_space<vmem>>, vector<8x312xf32>
    %c16_217 = arith.constant 16 : index
    %c0_218 = arith.constant 0 : index
    %380 = vector.load %arg16[%c16_217, %c0_218] : memref<200x624xf32, #tpu.memory_space<vmem>>, vector<8x312xf32>
    tpu.vector_store %arg16[%c16_217, %c0_218], %379 {strides = array<i32>} : memref<200x624xf32, #tpu.memory_space<vmem>>, vector<8x312xf32>,
    %c0_219 = arith.constant 0 : index
    %c6_220 = arith.constant 6 : index
    %381 = vector.load %arg15[%c0_219, %c6_220] : memref<8x896xf32, #tpu.memory_space<vmem>>, vector<8x312xf32>
    %c24_221 = arith.constant 24 : index
    %c0_222 = arith.constant 0 : index
    %382 = vector.load %arg16[%c24_221, %c0_222] : memref<200x624xf32, #tpu.memory_space<vmem>>, vector<8x312xf32>
    tpu.vector_store %arg16[%c24_221, %c0_222], %381 {strides = array<i32>} : memref<200x624xf32, #tpu.memory_space<vmem>>, vector<8x312xf32>,
    %c0_223 = arith.constant 0 : index
    %c8_224 = arith.constant 8 : index
    %383 = vector.load %arg15[%c0_223, %c8_224] : memref<8x896xf32, #tpu.memory_space<vmem>>, vector<8x312xf32>
    %c32_225 = arith.constant 32 : index
    %c0_226 = arith.constant 0 : index
    %384 = vector.load %arg16[%c32_225, %c0_226] : memref<200x624xf32, #tpu.memory_space<vmem>>, vector<8x312xf32>
    tpu.vector_store %arg16[%c32_225, %c0_226], %383 {strides = array<i32>} : memref<200x624xf32, #tpu.memory_space<vmem>>, vector<8x312xf32>,
    %c0_227 = arith.constant 0 : index
    %c32_228 = arith.constant 32 : index
    %385 = vector.load %arg15[%c0_227, %c32_228] : memref<8x896xf32, #tpu.memory_space<vmem>>, vector<8x312xf32>
    %c40 = arith.constant 40 : index
    %c0_229 = arith.constant 0 : index
    %386 = vector.load %arg16[%c40, %c0_229] : memref<200x624xf32, #tpu.memory_space<vmem>>, vector<8x312xf32>
    tpu.vector_store %arg16[%c40, %c0_229], %385 {strides = array<i32>} : memref<200x624xf32, #tpu.memory_space<vmem>>, vector<8x312xf32>,
    %c0_230 = arith.constant 0 : index
    %c34_231 = arith.constant 34 : index
    %387 = vector.load %arg15[%c0_230, %c34_231] : memref<8x896xf32, #tpu.memory_space<vmem>>, vector<8x312xf32>
    %c48 = arith.constant 48 : index
    %c0_232 = arith.constant 0 : index
    %388 = vector.load %arg16[%c48, %c0_232] : memref<200x624xf32, #tpu.memory_space<vmem>>, vector<8x312xf32>
    tpu.vector_store %arg16[%c48, %c0_232], %387 {strides = array<i32>} : memref<200x624xf32, #tpu.memory_space<vmem>>, vector<8x312xf32>,
    %c0_233 = arith.constant 0 : index
    %c36_234 = arith.constant 36 : index
    %389 = vector.load %arg15[%c0_233, %c36_234] : memref<8x896xf32, #tpu.memory_space<vmem>>, vector<8x312xf32>
    %c56 = arith.constant 56 : index
    %c0_235 = arith.constant 0 : index
    %390 = vector.load %arg16[%c56, %c0_235] : memref<200x624xf32, #tpu.memory_space<vmem>>, vector<8x312xf32>
    tpu.vector_store %arg16[%c56, %c0_235], %389 {strides = array<i32>} : memref<200x624xf32, #tpu.memory_space<vmem>>, vector<8x312xf32>,
    %c0_236 = arith.constant 0 : index
    %c38 = arith.constant 38 : index
    %391 = vector.load %arg15[%c0_236, %c38] : memref<8x896xf32, #tpu.memory_space<vmem>>, vector<8x312xf32>
    %c64_237 = arith.constant 64 : index
    %c0_238 = arith.constant 0 : index
    %392 = vector.load %arg16[%c64_237, %c0_238] : memref<200x624xf32, #tpu.memory_space<vmem>>, vector<8x312xf32>
    tpu.vector_store %arg16[%c64_237, %c0_238], %391 {strides = array<i32>} : memref<200x624xf32, #tpu.memory_space<vmem>>, vector<8x312xf32>,
    %c0_239 = arith.constant 0 : index
    %c40_240 = arith.constant 40 : index
    %393 = vector.load %arg15[%c0_239, %c40_240] : memref<8x896xf32, #tpu.memory_space<vmem>>, vector<8x312xf32>
    %c72 = arith.constant 72 : index
    %c0_241 = arith.constant 0 : index
    %394 = vector.load %arg16[%c72, %c0_241] : memref<200x624xf32, #tpu.memory_space<vmem>>, vector<8x312xf32>
    tpu.vector_store %arg16[%c72, %c0_241], %393 {strides = array<i32>} : memref<200x624xf32, #tpu.memory_space<vmem>>, vector<8x312xf32>,
    %c0_242 = arith.constant 0 : index
    %c64_243 = arith.constant 64 : index
    %395 = vector.load %arg15[%c0_242, %c64_243] : memref<8x896xf32, #tpu.memory_space<vmem>>, vector<8x312xf32>
    %c80 = arith.constant 80 : index
    %c0_244 = arith.constant 0 : index
    %396 = vector.load %arg16[%c80, %c0_244] : memref<200x624xf32, #tpu.memory_space<vmem>>, vector<8x312xf32>
    tpu.vector_store %arg16[%c80, %c0_244], %395 {strides = array<i32>} : memref<200x624xf32, #tpu.memory_space<vmem>>, vector<8x312xf32>,
    %c0_245 = arith.constant 0 : index
    %c66_246 = arith.constant 66 : index
    %397 = vector.load %arg15[%c0_245, %c66_246] : memref<8x896xf32, #tpu.memory_space<vmem>>, vector<8x312xf32>
    %c88 = arith.constant 88 : index
    %c0_247 = arith.constant 0 : index
    %398 = vector.load %arg16[%c88, %c0_247] : memref<200x624xf32, #tpu.memory_space<vmem>>, vector<8x312xf32>
    tpu.vector_store %arg16[%c88, %c0_247], %397 {strides = array<i32>} : memref<200x624xf32, #tpu.memory_space<vmem>>, vector<8x312xf32>,
    %c0_248 = arith.constant 0 : index
    %c68_249 = arith.constant 68 : index
    %399 = vector.load %arg15[%c0_248, %c68_249] : memref<8x896xf32, #tpu.memory_space<vmem>>, vector<8x312xf32>
    %c96_250 = arith.constant 96 : index
    %c0_251 = arith.constant 0 : index
    %400 = vector.load %arg16[%c96_250, %c0_251] : memref<200x624xf32, #tpu.memory_space<vmem>>, vector<8x312xf32>
    tpu.vector_store %arg16[%c96_250, %c0_251], %399 {strides = array<i32>} : memref<200x624xf32, #tpu.memory_space<vmem>>, vector<8x312xf32>,
    %c0_252 = arith.constant 0 : index
    %c70 = arith.constant 70 : index
    %401 = vector.load %arg15[%c0_252, %c70] : memref<8x896xf32, #tpu.memory_space<vmem>>, vector<8x312xf32>
    %c104 = arith.constant 104 : index
    %c0_253 = arith.constant 0 : index
    %402 = vector.load %arg16[%c104, %c0_253] : memref<200x624xf32, #tpu.memory_space<vmem>>, vector<8x312xf32>
    tpu.vector_store %arg16[%c104, %c0_253], %401 {strides = array<i32>} : memref<200x624xf32, #tpu.memory_space<vmem>>, vector<8x312xf32>,
    %c0_254 = arith.constant 0 : index
    %c72_255 = arith.constant 72 : index
    %403 = vector.load %arg15[%c0_254, %c72_255] : memref<8x896xf32, #tpu.memory_space<vmem>>, vector<8x312xf32>
    %c112 = arith.constant 112 : index
    %c0_256 = arith.constant 0 : index
    %404 = vector.load %arg16[%c112, %c0_256] : memref<200x624xf32, #tpu.memory_space<vmem>>, vector<8x312xf32>
    tpu.vector_store %arg16[%c112, %c0_256], %403 {strides = array<i32>} : memref<200x624xf32, #tpu.memory_space<vmem>>, vector<8x312xf32>,
    %c0_257 = arith.constant 0 : index
    %c96_258 = arith.constant 96 : index
    %405 = vector.load %arg15[%c0_257, %c96_258] : memref<8x896xf32, #tpu.memory_space<vmem>>, vector<8x312xf32>
    %c120 = arith.constant 120 : index
    %c0_259 = arith.constant 0 : index
    %406 = vector.load %arg16[%c120, %c0_259] : memref<200x624xf32, #tpu.memory_space<vmem>>, vector<8x312xf32>
    tpu.vector_store %arg16[%c120, %c0_259], %405 {strides = array<i32>} : memref<200x624xf32, #tpu.memory_space<vmem>>, vector<8x312xf32>,
    %c0_260 = arith.constant 0 : index
    %c98_261 = arith.constant 98 : index
    %407 = vector.load %arg15[%c0_260, %c98_261] : memref<8x896xf32, #tpu.memory_space<vmem>>, vector<8x312xf32>
    %c128_262 = arith.constant 128 : index
    %c0_263 = arith.constant 0 : index
    %408 = vector.load %arg16[%c128_262, %c0_263] : memref<200x624xf32, #tpu.memory_space<vmem>>, vector<8x312xf32>
    tpu.vector_store %arg16[%c128_262, %c0_263], %407 {strides = array<i32>} : memref<200x624xf32, #tpu.memory_space<vmem>>, vector<8x312xf32>,
    %c0_264 = arith.constant 0 : index
    %c100_265 = arith.constant 100 : index
    %409 = vector.load %arg15[%c0_264, %c100_265] : memref<8x896xf32, #tpu.memory_space<vmem>>, vector<8x312xf32>
    %c136 = arith.constant 136 : index
    %c0_266 = arith.constant 0 : index
    %410 = vector.load %arg16[%c136, %c0_266] : memref<200x624xf32, #tpu.memory_space<vmem>>, vector<8x312xf32>
    tpu.vector_store %arg16[%c136, %c0_266], %409 {strides = array<i32>} : memref<200x624xf32, #tpu.memory_space<vmem>>, vector<8x312xf32>,
    %c0_267 = arith.constant 0 : index
    %c102 = arith.constant 102 : index
    %411 = vector.load %arg15[%c0_267, %c102] : memref<8x896xf32, #tpu.memory_space<vmem>>, vector<8x312xf32>
    %c144 = arith.constant 144 : index
    %c0_268 = arith.constant 0 : index
    %412 = vector.load %arg16[%c144, %c0_268] : memref<200x624xf32, #tpu.memory_space<vmem>>, vector<8x312xf32>
    tpu.vector_store %arg16[%c144, %c0_268], %411 {strides = array<i32>} : memref<200x624xf32, #tpu.memory_space<vmem>>, vector<8x312xf32>,
    %c0_269 = arith.constant 0 : index
    %c104_270 = arith.constant 104 : index
    %413 = vector.load %arg15[%c0_269, %c104_270] : memref<8x896xf32, #tpu.memory_space<vmem>>, vector<8x312xf32>
    %c152 = arith.constant 152 : index
    %c0_271 = arith.constant 0 : index
    %414 = vector.load %arg16[%c152, %c0_271] : memref<200x624xf32, #tpu.memory_space<vmem>>, vector<8x312xf32>
    tpu.vector_store %arg16[%c152, %c0_271], %413 {strides = array<i32>} : memref<200x624xf32, #tpu.memory_space<vmem>>, vector<8x312xf32>,
    %c0_272 = arith.constant 0 : index
    %c128_273 = arith.constant 128 : index
    %415 = vector.load %arg15[%c0_272, %c128_273] : memref<8x896xf32, #tpu.memory_space<vmem>>, vector<8x312xf32>
    %c160_274 = arith.constant 160 : index
    %c0_275 = arith.constant 0 : index
    %416 = vector.load %arg16[%c160_274, %c0_275] : memref<200x624xf32, #tpu.memory_space<vmem>>, vector<8x312xf32>
    tpu.vector_store %arg16[%c160_274, %c0_275], %415 {strides = array<i32>} : memref<200x624xf32, #tpu.memory_space<vmem>>, vector<8x312xf32>,
    %c0_276 = arith.constant 0 : index
    %c130_277 = arith.constant 130 : index
    %417 = vector.load %arg15[%c0_276, %c130_277] : memref<8x896xf32, #tpu.memory_space<vmem>>, vector<8x312xf32>
    %c168 = arith.constant 168 : index
    %c0_278 = arith.constant 0 : index
    %418 = vector.load %arg16[%c168, %c0_278] : memref<200x624xf32, #tpu.memory_space<vmem>>, vector<8x312xf32>
    tpu.vector_store %arg16[%c168, %c0_278], %417 {strides = array<i32>} : memref<200x624xf32, #tpu.memory_space<vmem>>, vector<8x312xf32>,
    %c0_279 = arith.constant 0 : index
    %c132_280 = arith.constant 132 : index
    %419 = vector.load %arg15[%c0_279, %c132_280] : memref<8x896xf32, #tpu.memory_space<vmem>>, vector<8x312xf32>
    %c176 = arith.constant 176 : index
    %c0_281 = arith.constant 0 : index
    %420 = vector.load %arg16[%c176, %c0_281] : memref<200x624xf32, #tpu.memory_space<vmem>>, vector<8x312xf32>
    tpu.vector_store %arg16[%c176, %c0_281], %419 {strides = array<i32>} : memref<200x624xf32, #tpu.memory_space<vmem>>, vector<8x312xf32>,
    %c0_282 = arith.constant 0 : index
    %c134 = arith.constant 134 : index
    %421 = vector.load %arg15[%c0_282, %c134] : memref<8x896xf32, #tpu.memory_space<vmem>>, vector<8x312xf32>
    %c184 = arith.constant 184 : index
    %c0_283 = arith.constant 0 : index
    %422 = vector.load %arg16[%c184, %c0_283] : memref<200x624xf32, #tpu.memory_space<vmem>>, vector<8x312xf32>
    tpu.vector_store %arg16[%c184, %c0_283], %421 {strides = array<i32>} : memref<200x624xf32, #tpu.memory_space<vmem>>, vector<8x312xf32>,
    %c0_284 = arith.constant 0 : index
    %c136_285 = arith.constant 136 : index
    %423 = vector.load %arg15[%c0_284, %c136_285] : memref<8x896xf32, #tpu.memory_space<vmem>>, vector<8x312xf32>
    %c192_286 = arith.constant 192 : index
    %c0_287 = arith.constant 0 : index
    %424 = vector.load %arg16[%c192_286, %c0_287] : memref<200x624xf32, #tpu.memory_space<vmem>>, vector<8x312xf32>
    tpu.vector_store %arg16[%c192_286, %c0_287], %423 {strides = array<i32>} : memref<200x624xf32, #tpu.memory_space<vmem>>, vector<8x312xf32>,
    %c0_288 = arith.constant 0 : index
    %c448_289 = arith.constant 448 : index
    %425 = vector.load %arg15[%c0_288, %c448_289] : memref<8x896xf32, #tpu.memory_space<vmem>>, vector<8x312xf32>
    %c0_290 = arith.constant 0 : index
    %c312 = arith.constant 312 : index
    %426 = vector.load %arg16[%c0_290, %c312] : memref<200x624xf32, #tpu.memory_space<vmem>>, vector<8x312xf32>
    tpu.vector_store %arg16[%c0_290, %c312], %425 {strides = array<i32>} : memref<200x624xf32, #tpu.memory_space<vmem>>, vector<8x312xf32>,
    %c0_291 = arith.constant 0 : index
    %c450 = arith.constant 450 : index
    %427 = vector.load %arg15[%c0_291, %c450] : memref<8x896xf32, #tpu.memory_space<vmem>>, vector<8x312xf32>
    %c8_292 = arith.constant 8 : index
    %c312_293 = arith.constant 312 : index
    %428 = vector.load %arg16[%c8_292, %c312_293] : memref<200x624xf32, #tpu.memory_space<vmem>>, vector<8x312xf32>
    tpu.vector_store %arg16[%c8_292, %c312_293], %427 {strides = array<i32>} : memref<200x624xf32, #tpu.memory_space<vmem>>, vector<8x312xf32>,
    %c0_294 = arith.constant 0 : index
    %c452 = arith.constant 452 : index
    %429 = vector.load %arg15[%c0_294, %c452] : memref<8x896xf32, #tpu.memory_space<vmem>>, vector<8x312xf32>
    %c16_295 = arith.constant 16 : index
    %c312_296 = arith.constant 312 : index
    %430 = vector.load %arg16[%c16_295, %c312_296] : memref<200x624xf32, #tpu.memory_space<vmem>>, vector<8x312xf32>
    tpu.vector_store %arg16[%c16_295, %c312_296], %429 {strides = array<i32>} : memref<200x624xf32, #tpu.memory_space<vmem>>, vector<8x312xf32>,
    %c0_297 = arith.constant 0 : index
    %c454 = arith.constant 454 : index
    %431 = vector.load %arg15[%c0_297, %c454] : memref<8x896xf32, #tpu.memory_space<vmem>>, vector<8x312xf32>
    %c24_298 = arith.constant 24 : index
    %c312_299 = arith.constant 312 : index
    %432 = vector.load %arg16[%c24_298, %c312_299] : memref<200x624xf32, #tpu.memory_space<vmem>>, vector<8x312xf32>
    tpu.vector_store %arg16[%c24_298, %c312_299], %431 {strides = array<i32>} : memref<200x624xf32, #tpu.memory_space<vmem>>, vector<8x312xf32>,
    %c0_300 = arith.constant 0 : index
    %c456 = arith.constant 456 : index
    %433 = vector.load %arg15[%c0_300, %c456] : memref<8x896xf32, #tpu.memory_space<vmem>>, vector<8x312xf32>
    %c32_301 = arith.constant 32 : index
    %c312_302 = arith.constant 312 : index
    %434 = vector.load %arg16[%c32_301, %c312_302] : memref<200x624xf32, #tpu.memory_space<vmem>>, vector<8x312xf32>
    tpu.vector_store %arg16[%c32_301, %c312_302], %433 {strides = array<i32>} : memref<200x624xf32, #tpu.memory_space<vmem>>, vector<8x312xf32>,
    %c0_303 = arith.constant 0 : index
    %c480_304 = arith.constant 480 : index
    %435 = vector.load %arg15[%c0_303, %c480_304] : memref<8x896xf32, #tpu.memory_space<vmem>>, vector<8x312xf32>
    %c40_305 = arith.constant 40 : index
    %c312_306 = arith.constant 312 : index
    %436 = vector.load %arg16[%c40_305, %c312_306] : memref<200x624xf32, #tpu.memory_space<vmem>>, vector<8x312xf32>
    tpu.vector_store %arg16[%c40_305, %c312_306], %435 {strides = array<i32>} : memref<200x624xf32, #tpu.memory_space<vmem>>, vector<8x312xf32>,
    %c0_307 = arith.constant 0 : index
    %c482 = arith.constant 482 : index
    %437 = vector.load %arg15[%c0_307, %c482] : memref<8x896xf32, #tpu.memory_space<vmem>>, vector<8x312xf32>
    %c48_308 = arith.constant 48 : index
    %c312_309 = arith.constant 312 : index
    %438 = vector.load %arg16[%c48_308, %c312_309] : memref<200x624xf32, #tpu.memory_space<vmem>>, vector<8x312xf32>
    tpu.vector_store %arg16[%c48_308, %c312_309], %437 {strides = array<i32>} : memref<200x624xf32, #tpu.memory_space<vmem>>, vector<8x312xf32>,
    %c0_310 = arith.constant 0 : index
    %c484 = arith.constant 484 : index
    %439 = vector.load %arg15[%c0_310, %c484] : memref<8x896xf32, #tpu.memory_space<vmem>>, vector<8x312xf32>
    %c56_311 = arith.constant 56 : index
    %c312_312 = arith.constant 312 : index
    %440 = vector.load %arg16[%c56_311, %c312_312] : memref<200x624xf32, #tpu.memory_space<vmem>>, vector<8x312xf32>
    tpu.vector_store %arg16[%c56_311, %c312_312], %439 {strides = array<i32>} : memref<200x624xf32, #tpu.memory_space<vmem>>, vector<8x312xf32>,
    %c0_313 = arith.constant 0 : index
    %c486 = arith.constant 486 : index
    %441 = vector.load %arg15[%c0_313, %c486] : memref<8x896xf32, #tpu.memory_space<vmem>>, vector<8x312xf32>
    %c64_314 = arith.constant 64 : index
    %c312_315 = arith.constant 312 : index
    %442 = vector.load %arg16[%c64_314, %c312_315] : memref<200x624xf32, #tpu.memory_space<vmem>>, vector<8x312xf32>
    tpu.vector_store %arg16[%c64_314, %c312_315], %441 {strides = array<i32>} : memref<200x624xf32, #tpu.memory_space<vmem>>, vector<8x312xf32>,
    %c0_316 = arith.constant 0 : index
    %c488 = arith.constant 488 : index
    %443 = vector.load %arg15[%c0_316, %c488] : memref<8x896xf32, #tpu.memory_space<vmem>>, vector<8x312xf32>
    %c72_317 = arith.constant 72 : index
    %c312_318 = arith.constant 312 : index
    %444 = vector.load %arg16[%c72_317, %c312_318] : memref<200x624xf32, #tpu.memory_space<vmem>>, vector<8x312xf32>
    tpu.vector_store %arg16[%c72_317, %c312_318], %443 {strides = array<i32>} : memref<200x624xf32, #tpu.memory_space<vmem>>, vector<8x312xf32>,
    %c0_319 = arith.constant 0 : index
    %c512_320 = arith.constant 512 : index
    %445 = vector.load %arg15[%c0_319, %c512_320] : memref<8x896xf32, #tpu.memory_space<vmem>>, vector<8x312xf32>
    %c80_321 = arith.constant 80 : index
    %c312_322 = arith.constant 312 : index
    %446 = vector.load %arg16[%c80_321, %c312_322] : memref<200x624xf32, #tpu.memory_space<vmem>>, vector<8x312xf32>
    tpu.vector_store %arg16[%c80_321, %c312_322], %445 {strides = array<i32>} : memref<200x624xf32, #tpu.memory_space<vmem>>, vector<8x312xf32>,
    %c0_323 = arith.constant 0 : index
    %c514 = arith.constant 514 : index
    %447 = vector.load %arg15[%c0_323, %c514] : memref<8x896xf32, #tpu.memory_space<vmem>>, vector<8x312xf32>
    %c88_324 = arith.constant 88 : index
    %c312_325 = arith.constant 312 : index
    %448 = vector.load %arg16[%c88_324, %c312_325] : memref<200x624xf32, #tpu.memory_space<vmem>>, vector<8x312xf32>
    tpu.vector_store %arg16[%c88_324, %c312_325], %447 {strides = array<i32>} : memref<200x624xf32, #tpu.memory_space<vmem>>, vector<8x312xf32>,
    %c0_326 = arith.constant 0 : index
    %c516 = arith.constant 516 : index
    %449 = vector.load %arg15[%c0_326, %c516] : memref<8x896xf32, #tpu.memory_space<vmem>>, vector<8x312xf32>
    %c96_327 = arith.constant 96 : index
    %c312_328 = arith.constant 312 : index
    %450 = vector.load %arg16[%c96_327, %c312_328] : memref<200x624xf32, #tpu.memory_space<vmem>>, vector<8x312xf32>
    tpu.vector_store %arg16[%c96_327, %c312_328], %449 {strides = array<i32>} : memref<200x624xf32, #tpu.memory_space<vmem>>, vector<8x312xf32>,
    %c0_329 = arith.constant 0 : index
    %c518 = arith.constant 518 : index
    %451 = vector.load %arg15[%c0_329, %c518] : memref<8x896xf32, #tpu.memory_space<vmem>>, vector<8x312xf32>
    %c104_330 = arith.constant 104 : index
    %c312_331 = arith.constant 312 : index
    %452 = vector.load %arg16[%c104_330, %c312_331] : memref<200x624xf32, #tpu.memory_space<vmem>>, vector<8x312xf32>
    tpu.vector_store %arg16[%c104_330, %c312_331], %451 {strides = array<i32>} : memref<200x624xf32, #tpu.memory_space<vmem>>, vector<8x312xf32>,
    %c0_332 = arith.constant 0 : index
    %c520 = arith.constant 520 : index
    %453 = vector.load %arg15[%c0_332, %c520] : memref<8x896xf32, #tpu.memory_space<vmem>>, vector<8x312xf32>
    %c112_333 = arith.constant 112 : index
    %c312_334 = arith.constant 312 : index
    %454 = vector.load %arg16[%c112_333, %c312_334] : memref<200x624xf32, #tpu.memory_space<vmem>>, vector<8x312xf32>
    tpu.vector_store %arg16[%c112_333, %c312_334], %453 {strides = array<i32>} : memref<200x624xf32, #tpu.memory_space<vmem>>, vector<8x312xf32>,
    %c0_335 = arith.constant 0 : index
    %c544_336 = arith.constant 544 : index
    %455 = vector.load %arg15[%c0_335, %c544_336] : memref<8x896xf32, #tpu.memory_space<vmem>>, vector<8x312xf32>
    %c120_337 = arith.constant 120 : index
    %c312_338 = arith.constant 312 : index
    %456 = vector.load %arg16[%c120_337, %c312_338] : memref<200x624xf32, #tpu.memory_space<vmem>>, vector<8x312xf32>
    tpu.vector_store %arg16[%c120_337, %c312_338], %455 {strides = array<i32>} : memref<200x624xf32, #tpu.memory_space<vmem>>, vector<8x312xf32>,
    %c0_339 = arith.constant 0 : index
    %c546 = arith.constant 546 : index
    %457 = vector.load %arg15[%c0_339, %c546] : memref<8x896xf32, #tpu.memory_space<vmem>>, vector<8x312xf32>
    %c128_340 = arith.constant 128 : index
    %c312_341 = arith.constant 312 : index
    %458 = vector.load %arg16[%c128_340, %c312_341] : memref<200x624xf32, #tpu.memory_space<vmem>>, vector<8x312xf32>
    tpu.vector_store %arg16[%c128_340, %c312_341], %457 {strides = array<i32>} : memref<200x624xf32, #tpu.memory_space<vmem>>, vector<8x312xf32>,
    %c0_342 = arith.constant 0 : index
    %c548 = arith.constant 548 : index
    %459 = vector.load %arg15[%c0_342, %c548] : memref<8x896xf32, #tpu.memory_space<vmem>>, vector<8x312xf32>
    %c136_343 = arith.constant 136 : index
    %c312_344 = arith.constant 312 : index
    %460 = vector.load %arg16[%c136_343, %c312_344] : memref<200x624xf32, #tpu.memory_space<vmem>>, vector<8x312xf32>
    tpu.vector_store %arg16[%c136_343, %c312_344], %459 {strides = array<i32>} : memref<200x624xf32, #tpu.memory_space<vmem>>, vector<8x312xf32>,
    %c0_345 = arith.constant 0 : index
    %c550 = arith.constant 550 : index
    %461 = vector.load %arg15[%c0_345, %c550] : memref<8x896xf32, #tpu.memory_space<vmem>>, vector<8x312xf32>
    %c144_346 = arith.constant 144 : index
    %c312_347 = arith.constant 312 : index
    %462 = vector.load %arg16[%c144_346, %c312_347] : memref<200x624xf32, #tpu.memory_space<vmem>>, vector<8x312xf32>
    tpu.vector_store %arg16[%c144_346, %c312_347], %461 {strides = array<i32>} : memref<200x624xf32, #tpu.memory_space<vmem>>, vector<8x312xf32>,
    %c0_348 = arith.constant 0 : index
    %c552 = arith.constant 552 : index
    %463 = vector.load %arg15[%c0_348, %c552] : memref<8x896xf32, #tpu.memory_space<vmem>>, vector<8x312xf32>
    %c152_349 = arith.constant 152 : index
    %c312_350 = arith.constant 312 : index
    %464 = vector.load %arg16[%c152_349, %c312_350] : memref<200x624xf32, #tpu.memory_space<vmem>>, vector<8x312xf32>
    tpu.vector_store %arg16[%c152_349, %c312_350], %463 {strides = array<i32>} : memref<200x624xf32, #tpu.memory_space<vmem>>, vector<8x312xf32>,
    %c0_351 = arith.constant 0 : index
    %c576_352 = arith.constant 576 : index
    %465 = vector.load %arg15[%c0_351, %c576_352] : memref<8x896xf32, #tpu.memory_space<vmem>>, vector<8x312xf32>
    %c160_353 = arith.constant 160 : index
    %c312_354 = arith.constant 312 : index
    %466 = vector.load %arg16[%c160_353, %c312_354] : memref<200x624xf32, #tpu.memory_space<vmem>>, vector<8x312xf32>
    tpu.vector_store %arg16[%c160_353, %c312_354], %465 {strides = array<i32>} : memref<200x624xf32, #tpu.memory_space<vmem>>, vector<8x312xf32>,
    %c0_355 = arith.constant 0 : index
    %c578 = arith.constant 578 : index
    %467 = vector.load %arg15[%c0_355, %c578] : memref<8x896xf32, #tpu.memory_space<vmem>>, vector<8x312xf32>
    %c168_356 = arith.constant 168 : index
    %c312_357 = arith.constant 312 : index
    %468 = vector.load %arg16[%c168_356, %c312_357] : memref<200x624xf32, #tpu.memory_space<vmem>>, vector<8x312xf32>
    tpu.vector_store %arg16[%c168_356, %c312_357], %467 {strides = array<i32>} : memref<200x624xf32, #tpu.memory_space<vmem>>, vector<8x312xf32>,
    %c0_358 = arith.constant 0 : index
    %c580 = arith.constant 580 : index
    %469 = vector.load %arg15[%c0_358, %c580] : memref<8x896xf32, #tpu.memory_space<vmem>>, vector<8x312xf32>
    %c176_359 = arith.constant 176 : index
    %c312_360 = arith.constant 312 : index
    %470 = vector.load %arg16[%c176_359, %c312_360] : memref<200x624xf32, #tpu.memory_space<vmem>>, vector<8x312xf32>
    tpu.vector_store %arg16[%c176_359, %c312_360], %469 {strides = array<i32>} : memref<200x624xf32, #tpu.memory_space<vmem>>, vector<8x312xf32>,
    %c0_361 = arith.constant 0 : index
    %c582 = arith.constant 582 : index
    %471 = vector.load %arg15[%c0_361, %c582] : memref<8x896xf32, #tpu.memory_space<vmem>>, vector<8x312xf32>
    %c184_362 = arith.constant 184 : index
    %c312_363 = arith.constant 312 : index
    %472 = vector.load %arg16[%c184_362, %c312_363] : memref<200x624xf32, #tpu.memory_space<vmem>>, vector<8x312xf32>
    tpu.vector_store %arg16[%c184_362, %c312_363], %471 {strides = array<i32>} : memref<200x624xf32, #tpu.memory_space<vmem>>, vector<8x312xf32>,
    %c0_364 = arith.constant 0 : index
    %c584 = arith.constant 584 : index
    %473 = vector.load %arg15[%c0_364, %c584] : memref<8x896xf32, #tpu.memory_space<vmem>>, vector<8x312xf32>
    %c192_365 = arith.constant 192 : index
    %c312_366 = arith.constant 312 : index
    %474 = vector.load %arg16[%c192_365, %c312_366] : memref<200x624xf32, #tpu.memory_space<vmem>>, vector<8x312xf32>
    tpu.vector_store %arg16[%c192_365, %c312_366], %473 {strides = array<i32>} : memref<200x624xf32, #tpu.memory_space<vmem>>, vector<8x312xf32>,
    %c0_367 = arith.constant 0 : index
    %c0_368 = arith.constant 0 : index
    %475 = vector.load %arg3[%c0_367, %c0_368] : memref<16x200xf32, #tpu.memory_space<vmem>>, vector<16x200xf32>
    %c0_369 = arith.constant 0 : index
    %c0_370 = arith.constant 0 : index
    %476 = vector.load %arg16[%c0_369, %c0_370] : memref<200x624xf32, #tpu.memory_space<vmem>>, vector<200x624xf32>
    %cst_371 = arith.constant dense<0.000000e+00> : vector<16x624xf32>
    %477 = tpu.matmul %475, %476, %cst_371 {dimension_numbers = #tpu.dot_dimension_numbers<[1], [0], [0], [1], [0, 0, 1, 1], [], []>} : vector<16x200xf32>, vector<200x624xf32>, vector<16x624xf32> -> vector<16x624xf32>
    %c0_372 = arith.constant 0 : index
    %c0_373 = arith.constant 0 : index
    %478 = vector.load %arg4[%c0_372, %c0_373] : memref<16x1xf32, #tpu.memory_space<vmem>>, vector<16x1xf32>
    %479 = vector.broadcast %478 : vector<16x1xf32> to vector<16x624xf32>
    %480 = arith.addf %477, %479 : vector<16x624xf32>
    %c0_374 = arith.constant 0 : index
    %c0_375 = arith.constant 0 : index
    %481 = vector.load %arg17[%c0_374, %c0_375] : memref<16x688xf32, #tpu.memory_space<vmem>>, vector<16x624xf32>
    tpu.vector_store %arg17[%c0_374, %c0_375], %480 {strides = array<i32>} : memref<16x688xf32, #tpu.memory_space<vmem>>, vector<16x624xf32>,
    %c0_376 = arith.constant 0 : index
    %c0_377 = arith.constant 0 : index
    %482 = vector.load %arg17[%c0_376, %c0_377] : memref<16x688xf32, #tpu.memory_space<vmem>>, vector<16x624xf32>
    %c0_378 = arith.constant 0 : index
    %c2_379 = arith.constant 2 : index
    %483 = vector.load %arg17[%c0_378, %c2_379] : memref<16x688xf32, #tpu.memory_space<vmem>>, vector<16x624xf32>
    %484 = arith.maximumf %482, %483 : vector<16x624xf32>
    %c0_380 = arith.constant 0 : index
    %c32_381 = arith.constant 32 : index
    %485 = vector.load %arg17[%c0_380, %c32_381] : memref<16x688xf32, #tpu.memory_space<vmem>>, vector<16x624xf32>
    %c0_382 = arith.constant 0 : index
    %c34_383 = arith.constant 34 : index
    %486 = vector.load %arg17[%c0_382, %c34_383] : memref<16x688xf32, #tpu.memory_space<vmem>>, vector<16x624xf32>
    %487 = arith.maximumf %485, %486 : vector<16x624xf32>
    %488 = arith.maximumf %484, %487 : vector<16x624xf32>
    %cst_384 = arith.constant 0.000000e+00 : f32
    %489 = vector.broadcast %cst_384 : f32 to vector<16x624xf32>
    %490 = arith.maximumf %488, %489 : vector<16x624xf32>
    %c0_385 = arith.constant 0 : index
    %c0_386 = arith.constant 0 : index
    %491 = vector.load %arg18[%c0_385, %c0_386] : memref<16x624xf32, #tpu.memory_space<vmem>>, vector<16x624xf32>
    tpu.vector_store %arg18[%c0_385, %c0_386], %490 {strides = array<i32>} : memref<16x624xf32, #tpu.memory_space<vmem>>, vector<16x624xf32>,
    %c0_387 = arith.constant 0 : index
    %c0_388 = arith.constant 0 : index
    %492 = vector.load %arg18[%c0_387, %c0_388] : memref<16x624xf32, #tpu.memory_space<vmem>>, vector<16x1xf32>
    %c0_389 = arith.constant 0 : index
    %c0_390 = arith.constant 0 : index
    %493 = vector.load %arg19[%c0_389, %c0_390] : memref<400x2xf32, #tpu.memory_space<vmem>>, vector<16x1xf32>
    tpu.vector_store %arg19[%c0_389, %c0_390], %492 {strides = array<i32>} : memref<400x2xf32, #tpu.memory_space<vmem>>, vector<16x1xf32>,
    %c0_391 = arith.constant 0 : index
    %c4_392 = arith.constant 4 : index
    %494 = vector.load %arg18[%c0_391, %c4_392] : memref<16x624xf32, #tpu.memory_space<vmem>>, vector<16x1xf32>
    %c16_393 = arith.constant 16 : index
    %c0_394 = arith.constant 0 : index
    %495 = vector.load %arg19[%c16_393, %c0_394] : memref<400x2xf32, #tpu.memory_space<vmem>>, vector<16x1xf32>
    tpu.vector_store %arg19[%c16_393, %c0_394], %494 {strides = array<i32>} : memref<400x2xf32, #tpu.memory_space<vmem>>, vector<16x1xf32>,
    %c0_395 = arith.constant 0 : index
    %c8_396 = arith.constant 8 : index
    %496 = vector.load %arg18[%c0_395, %c8_396] : memref<16x624xf32, #tpu.memory_space<vmem>>, vector<16x1xf32>
    %c32_397 = arith.constant 32 : index
    %c0_398 = arith.constant 0 : index
    %497 = vector.load %arg19[%c32_397, %c0_398] : memref<400x2xf32, #tpu.memory_space<vmem>>, vector<16x1xf32>
    tpu.vector_store %arg19[%c32_397, %c0_398], %496 {strides = array<i32>} : memref<400x2xf32, #tpu.memory_space<vmem>>, vector<16x1xf32>,
    %c0_399 = arith.constant 0 : index
    %c12_400 = arith.constant 12 : index
    %498 = vector.load %arg18[%c0_399, %c12_400] : memref<16x624xf32, #tpu.memory_space<vmem>>, vector<16x1xf32>
    %c48_401 = arith.constant 48 : index
    %c0_402 = arith.constant 0 : index
    %499 = vector.load %arg19[%c48_401, %c0_402] : memref<400x2xf32, #tpu.memory_space<vmem>>, vector<16x1xf32>
    tpu.vector_store %arg19[%c48_401, %c0_402], %498 {strides = array<i32>} : memref<400x2xf32, #tpu.memory_space<vmem>>, vector<16x1xf32>,
    %c0_403 = arith.constant 0 : index
    %c16_404 = arith.constant 16 : index
    %500 = vector.load %arg18[%c0_403, %c16_404] : memref<16x624xf32, #tpu.memory_space<vmem>>, vector<16x1xf32>
    %c64_405 = arith.constant 64 : index
    %c0_406 = arith.constant 0 : index
    %501 = vector.load %arg19[%c64_405, %c0_406] : memref<400x2xf32, #tpu.memory_space<vmem>>, vector<16x1xf32>
    tpu.vector_store %arg19[%c64_405, %c0_406], %500 {strides = array<i32>} : memref<400x2xf32, #tpu.memory_space<vmem>>, vector<16x1xf32>,
    %c0_407 = arith.constant 0 : index
    %c64_408 = arith.constant 64 : index
    %502 = vector.load %arg18[%c0_407, %c64_408] : memref<16x624xf32, #tpu.memory_space<vmem>>, vector<16x1xf32>
    %c80_409 = arith.constant 80 : index
    %c0_410 = arith.constant 0 : index
    %503 = vector.load %arg19[%c80_409, %c0_410] : memref<400x2xf32, #tpu.memory_space<vmem>>, vector<16x1xf32>
    tpu.vector_store %arg19[%c80_409, %c0_410], %502 {strides = array<i32>} : memref<400x2xf32, #tpu.memory_space<vmem>>, vector<16x1xf32>,
    %c0_411 = arith.constant 0 : index
    %c68_412 = arith.constant 68 : index
    %504 = vector.load %arg18[%c0_411, %c68_412] : memref<16x624xf32, #tpu.memory_space<vmem>>, vector<16x1xf32>
    %c96_413 = arith.constant 96 : index
    %c0_414 = arith.constant 0 : index
    %505 = vector.load %arg19[%c96_413, %c0_414] : memref<400x2xf32, #tpu.memory_space<vmem>>, vector<16x1xf32>
    tpu.vector_store %arg19[%c96_413, %c0_414], %504 {strides = array<i32>} : memref<400x2xf32, #tpu.memory_space<vmem>>, vector<16x1xf32>,
    %c0_415 = arith.constant 0 : index
    %c72_416 = arith.constant 72 : index
    %506 = vector.load %arg18[%c0_415, %c72_416] : memref<16x624xf32, #tpu.memory_space<vmem>>, vector<16x1xf32>
    %c112_417 = arith.constant 112 : index
    %c0_418 = arith.constant 0 : index
    %507 = vector.load %arg19[%c112_417, %c0_418] : memref<400x2xf32, #tpu.memory_space<vmem>>, vector<16x1xf32>
    tpu.vector_store %arg19[%c112_417, %c0_418], %506 {strides = array<i32>} : memref<400x2xf32, #tpu.memory_space<vmem>>, vector<16x1xf32>,
    %c0_419 = arith.constant 0 : index
    %c76 = arith.constant 76 : index
    %508 = vector.load %arg18[%c0_419, %c76] : memref<16x624xf32, #tpu.memory_space<vmem>>, vector<16x1xf32>
    %c128_420 = arith.constant 128 : index
    %c0_421 = arith.constant 0 : index
    %509 = vector.load %arg19[%c128_420, %c0_421] : memref<400x2xf32, #tpu.memory_space<vmem>>, vector<16x1xf32>
    tpu.vector_store %arg19[%c128_420, %c0_421], %508 {strides = array<i32>} : memref<400x2xf32, #tpu.memory_space<vmem>>, vector<16x1xf32>,
    %c0_422 = arith.constant 0 : index
    %c80_423 = arith.constant 80 : index
    %510 = vector.load %arg18[%c0_422, %c80_423] : memref<16x624xf32, #tpu.memory_space<vmem>>, vector<16x1xf32>
    %c144_424 = arith.constant 144 : index
    %c0_425 = arith.constant 0 : index
    %511 = vector.load %arg19[%c144_424, %c0_425] : memref<400x2xf32, #tpu.memory_space<vmem>>, vector<16x1xf32>
    tpu.vector_store %arg19[%c144_424, %c0_425], %510 {strides = array<i32>} : memref<400x2xf32, #tpu.memory_space<vmem>>, vector<16x1xf32>,
    %c0_426 = arith.constant 0 : index
    %c128_427 = arith.constant 128 : index
    %512 = vector.load %arg18[%c0_426, %c128_427] : memref<16x624xf32, #tpu.memory_space<vmem>>, vector<16x1xf32>
    %c160_428 = arith.constant 160 : index
    %c0_429 = arith.constant 0 : index
    %513 = vector.load %arg19[%c160_428, %c0_429] : memref<400x2xf32, #tpu.memory_space<vmem>>, vector<16x1xf32>
    tpu.vector_store %arg19[%c160_428, %c0_429], %512 {strides = array<i32>} : memref<400x2xf32, #tpu.memory_space<vmem>>, vector<16x1xf32>,
    %c0_430 = arith.constant 0 : index
    %c132_431 = arith.constant 132 : index
    %514 = vector.load %arg18[%c0_430, %c132_431] : memref<16x624xf32, #tpu.memory_space<vmem>>, vector<16x1xf32>
    %c176_432 = arith.constant 176 : index
    %c0_433 = arith.constant 0 : index
    %515 = vector.load %arg19[%c176_432, %c0_433] : memref<400x2xf32, #tpu.memory_space<vmem>>, vector<16x1xf32>
    tpu.vector_store %arg19[%c176_432, %c0_433], %514 {strides = array<i32>} : memref<400x2xf32, #tpu.memory_space<vmem>>, vector<16x1xf32>,
    %c0_434 = arith.constant 0 : index
    %c136_435 = arith.constant 136 : index
    %516 = vector.load %arg18[%c0_434, %c136_435] : memref<16x624xf32, #tpu.memory_space<vmem>>, vector<16x1xf32>
    %c192_436 = arith.constant 192 : index
    %c0_437 = arith.constant 0 : index
    %517 = vector.load %arg19[%c192_436, %c0_437] : memref<400x2xf32, #tpu.memory_space<vmem>>, vector<16x1xf32>
    tpu.vector_store %arg19[%c192_436, %c0_437], %516 {strides = array<i32>} : memref<400x2xf32, #tpu.memory_space<vmem>>, vector<16x1xf32>,
    %c0_438 = arith.constant 0 : index
    %c140 = arith.constant 140 : index
    %518 = vector.load %arg18[%c0_438, %c140] : memref<16x624xf32, #tpu.memory_space<vmem>>, vector<16x1xf32>
    %c208 = arith.constant 208 : index
    %c0_439 = arith.constant 0 : index
    %519 = vector.load %arg19[%c208, %c0_439] : memref<400x2xf32, #tpu.memory_space<vmem>>, vector<16x1xf32>
    tpu.vector_store %arg19[%c208, %c0_439], %518 {strides = array<i32>} : memref<400x2xf32, #tpu.memory_space<vmem>>, vector<16x1xf32>,
    %c0_440 = arith.constant 0 : index
    %c144_441 = arith.constant 144 : index
    %520 = vector.load %arg18[%c0_440, %c144_441] : memref<16x624xf32, #tpu.memory_space<vmem>>, vector<16x1xf32>
    %c224_442 = arith.constant 224 : index
    %c0_443 = arith.constant 0 : index
    %521 = vector.load %arg19[%c224_442, %c0_443] : memref<400x2xf32, #tpu.memory_space<vmem>>, vector<16x1xf32>
    tpu.vector_store %arg19[%c224_442, %c0_443], %520 {strides = array<i32>} : memref<400x2xf32, #tpu.memory_space<vmem>>, vector<16x1xf32>,
    %c0_444 = arith.constant 0 : index
    %c192_445 = arith.constant 192 : index
    %522 = vector.load %arg18[%c0_444, %c192_445] : memref<16x624xf32, #tpu.memory_space<vmem>>, vector<16x1xf32>
    %c240 = arith.constant 240 : index
    %c0_446 = arith.constant 0 : index
    %523 = vector.load %arg19[%c240, %c0_446] : memref<400x2xf32, #tpu.memory_space<vmem>>, vector<16x1xf32>
    tpu.vector_store %arg19[%c240, %c0_446], %522 {strides = array<i32>} : memref<400x2xf32, #tpu.memory_space<vmem>>, vector<16x1xf32>,
    %c0_447 = arith.constant 0 : index
    %c196 = arith.constant 196 : index
    %524 = vector.load %arg18[%c0_447, %c196] : memref<16x624xf32, #tpu.memory_space<vmem>>, vector<16x1xf32>
    %c256_448 = arith.constant 256 : index
    %c0_449 = arith.constant 0 : index
    %525 = vector.load %arg19[%c256_448, %c0_449] : memref<400x2xf32, #tpu.memory_space<vmem>>, vector<16x1xf32>
    tpu.vector_store %arg19[%c256_448, %c0_449], %524 {strides = array<i32>} : memref<400x2xf32, #tpu.memory_space<vmem>>, vector<16x1xf32>,
    %c0_450 = arith.constant 0 : index
    %c200 = arith.constant 200 : index
    %526 = vector.load %arg18[%c0_450, %c200] : memref<16x624xf32, #tpu.memory_space<vmem>>, vector<16x1xf32>
    %c272 = arith.constant 272 : index
    %c0_451 = arith.constant 0 : index
    %527 = vector.load %arg19[%c272, %c0_451] : memref<400x2xf32, #tpu.memory_space<vmem>>, vector<16x1xf32>
    tpu.vector_store %arg19[%c272, %c0_451], %526 {strides = array<i32>} : memref<400x2xf32, #tpu.memory_space<vmem>>, vector<16x1xf32>,
    %c0_452 = arith.constant 0 : index
    %c204 = arith.constant 204 : index
    %528 = vector.load %arg18[%c0_452, %c204] : memref<16x624xf32, #tpu.memory_space<vmem>>, vector<16x1xf32>
    %c288_453 = arith.constant 288 : index
    %c0_454 = arith.constant 0 : index
    %529 = vector.load %arg19[%c288_453, %c0_454] : memref<400x2xf32, #tpu.memory_space<vmem>>, vector<16x1xf32>
    tpu.vector_store %arg19[%c288_453, %c0_454], %528 {strides = array<i32>} : memref<400x2xf32, #tpu.memory_space<vmem>>, vector<16x1xf32>,
    %c0_455 = arith.constant 0 : index
    %c208_456 = arith.constant 208 : index
    %530 = vector.load %arg18[%c0_455, %c208_456] : memref<16x624xf32, #tpu.memory_space<vmem>>, vector<16x1xf32>
    %c304 = arith.constant 304 : index
    %c0_457 = arith.constant 0 : index
    %531 = vector.load %arg19[%c304, %c0_457] : memref<400x2xf32, #tpu.memory_space<vmem>>, vector<16x1xf32>
    tpu.vector_store %arg19[%c304, %c0_457], %530 {strides = array<i32>} : memref<400x2xf32, #tpu.memory_space<vmem>>, vector<16x1xf32>,
    %c0_458 = arith.constant 0 : index
    %c256_459 = arith.constant 256 : index
    %532 = vector.load %arg18[%c0_458, %c256_459] : memref<16x624xf32, #tpu.memory_space<vmem>>, vector<16x1xf32>
    %c320_460 = arith.constant 320 : index
    %c0_461 = arith.constant 0 : index
    %533 = vector.load %arg19[%c320_460, %c0_461] : memref<400x2xf32, #tpu.memory_space<vmem>>, vector<16x1xf32>
    tpu.vector_store %arg19[%c320_460, %c0_461], %532 {strides = array<i32>} : memref<400x2xf32, #tpu.memory_space<vmem>>, vector<16x1xf32>,
    %c0_462 = arith.constant 0 : index
    %c260 = arith.constant 260 : index
    %534 = vector.load %arg18[%c0_462, %c260] : memref<16x624xf32, #tpu.memory_space<vmem>>, vector<16x1xf32>
    %c336 = arith.constant 336 : index
    %c0_463 = arith.constant 0 : index
    %535 = vector.load %arg19[%c336, %c0_463] : memref<400x2xf32, #tpu.memory_space<vmem>>, vector<16x1xf32>
    tpu.vector_store %arg19[%c336, %c0_463], %534 {strides = array<i32>} : memref<400x2xf32, #tpu.memory_space<vmem>>, vector<16x1xf32>,
    %c0_464 = arith.constant 0 : index
    %c264 = arith.constant 264 : index
    %536 = vector.load %arg18[%c0_464, %c264] : memref<16x624xf32, #tpu.memory_space<vmem>>, vector<16x1xf32>
    %c352_465 = arith.constant 352 : index
    %c0_466 = arith.constant 0 : index
    %537 = vector.load %arg19[%c352_465, %c0_466] : memref<400x2xf32, #tpu.memory_space<vmem>>, vector<16x1xf32>
    tpu.vector_store %arg19[%c352_465, %c0_466], %536 {strides = array<i32>} : memref<400x2xf32, #tpu.memory_space<vmem>>, vector<16x1xf32>,
    %c0_467 = arith.constant 0 : index
    %c268 = arith.constant 268 : index
    %538 = vector.load %arg18[%c0_467, %c268] : memref<16x624xf32, #tpu.memory_space<vmem>>, vector<16x1xf32>
    %c368 = arith.constant 368 : index
    %c0_468 = arith.constant 0 : index
    %539 = vector.load %arg19[%c368, %c0_468] : memref<400x2xf32, #tpu.memory_space<vmem>>, vector<16x1xf32>
    tpu.vector_store %arg19[%c368, %c0_468], %538 {strides = array<i32>} : memref<400x2xf32, #tpu.memory_space<vmem>>, vector<16x1xf32>,
    %c0_469 = arith.constant 0 : index
    %c272_470 = arith.constant 272 : index
    %540 = vector.load %arg18[%c0_469, %c272_470] : memref<16x624xf32, #tpu.memory_space<vmem>>, vector<16x1xf32>
    %c384_471 = arith.constant 384 : index
    %c0_472 = arith.constant 0 : index
    %541 = vector.load %arg19[%c384_471, %c0_472] : memref<400x2xf32, #tpu.memory_space<vmem>>, vector<16x1xf32>
    tpu.vector_store %arg19[%c384_471, %c0_472], %540 {strides = array<i32>} : memref<400x2xf32, #tpu.memory_space<vmem>>, vector<16x1xf32>,
    %c0_473 = arith.constant 0 : index
    %c312_474 = arith.constant 312 : index
    %542 = vector.load %arg18[%c0_473, %c312_474] : memref<16x624xf32, #tpu.memory_space<vmem>>, vector<16x1xf32>
    %c0_475 = arith.constant 0 : index
    %c1_476 = arith.constant 1 : index
    %543 = vector.load %arg19[%c0_475, %c1_476] : memref<400x2xf32, #tpu.memory_space<vmem>>, vector<16x1xf32>
    tpu.vector_store %arg19[%c0_475, %c1_476], %542 {strides = array<i32>} : memref<400x2xf32, #tpu.memory_space<vmem>>, vector<16x1xf32>,
    %c0_477 = arith.constant 0 : index
    %c316 = arith.constant 316 : index
    %544 = vector.load %arg18[%c0_477, %c316] : memref<16x624xf32, #tpu.memory_space<vmem>>, vector<16x1xf32>
    %c16_478 = arith.constant 16 : index
    %c1_479 = arith.constant 1 : index
    %545 = vector.load %arg19[%c16_478, %c1_479] : memref<400x2xf32, #tpu.memory_space<vmem>>, vector<16x1xf32>
    tpu.vector_store %arg19[%c16_478, %c1_479], %544 {strides = array<i32>} : memref<400x2xf32, #tpu.memory_space<vmem>>, vector<16x1xf32>,
    %c0_480 = arith.constant 0 : index
    %c320_481 = arith.constant 320 : index
    %546 = vector.load %arg18[%c0_480, %c320_481] : memref<16x624xf32, #tpu.memory_space<vmem>>, vector<16x1xf32>
    %c32_482 = arith.constant 32 : index
    %c1_483 = arith.constant 1 : index
    %547 = vector.load %arg19[%c32_482, %c1_483] : memref<400x2xf32, #tpu.memory_space<vmem>>, vector<16x1xf32>
    tpu.vector_store %arg19[%c32_482, %c1_483], %546 {strides = array<i32>} : memref<400x2xf32, #tpu.memory_space<vmem>>, vector<16x1xf32>,
    %c0_484 = arith.constant 0 : index
    %c324 = arith.constant 324 : index
    %548 = vector.load %arg18[%c0_484, %c324] : memref<16x624xf32, #tpu.memory_space<vmem>>, vector<16x1xf32>
    %c48_485 = arith.constant 48 : index
    %c1_486 = arith.constant 1 : index
    %549 = vector.load %arg19[%c48_485, %c1_486] : memref<400x2xf32, #tpu.memory_space<vmem>>, vector<16x1xf32>
    tpu.vector_store %arg19[%c48_485, %c1_486], %548 {strides = array<i32>} : memref<400x2xf32, #tpu.memory_space<vmem>>, vector<16x1xf32>,
    %c0_487 = arith.constant 0 : index
    %c328 = arith.constant 328 : index
    %550 = vector.load %arg18[%c0_487, %c328] : memref<16x624xf32, #tpu.memory_space<vmem>>, vector<16x1xf32>
    %c64_488 = arith.constant 64 : index
    %c1_489 = arith.constant 1 : index
    %551 = vector.load %arg19[%c64_488, %c1_489] : memref<400x2xf32, #tpu.memory_space<vmem>>, vector<16x1xf32>
    tpu.vector_store %arg19[%c64_488, %c1_489], %550 {strides = array<i32>} : memref<400x2xf32, #tpu.memory_space<vmem>>, vector<16x1xf32>,
    %c0_490 = arith.constant 0 : index
    %c376 = arith.constant 376 : index
    %552 = vector.load %arg18[%c0_490, %c376] : memref<16x624xf32, #tpu.memory_space<vmem>>, vector<16x1xf32>
    %c80_491 = arith.constant 80 : index
    %c1_492 = arith.constant 1 : index
    %553 = vector.load %arg19[%c80_491, %c1_492] : memref<400x2xf32, #tpu.memory_space<vmem>>, vector<16x1xf32>
    tpu.vector_store %arg19[%c80_491, %c1_492], %552 {strides = array<i32>} : memref<400x2xf32, #tpu.memory_space<vmem>>, vector<16x1xf32>,
    %c0_493 = arith.constant 0 : index
    %c380 = arith.constant 380 : index
    %554 = vector.load %arg18[%c0_493, %c380] : memref<16x624xf32, #tpu.memory_space<vmem>>, vector<16x1xf32>
    %c96_494 = arith.constant 96 : index
    %c1_495 = arith.constant 1 : index
    %555 = vector.load %arg19[%c96_494, %c1_495] : memref<400x2xf32, #tpu.memory_space<vmem>>, vector<16x1xf32>
    tpu.vector_store %arg19[%c96_494, %c1_495], %554 {strides = array<i32>} : memref<400x2xf32, #tpu.memory_space<vmem>>, vector<16x1xf32>,
    %c0_496 = arith.constant 0 : index
    %c384_497 = arith.constant 384 : index
    %556 = vector.load %arg18[%c0_496, %c384_497] : memref<16x624xf32, #tpu.memory_space<vmem>>, vector<16x1xf32>
    %c112_498 = arith.constant 112 : index
    %c1_499 = arith.constant 1 : index
    %557 = vector.load %arg19[%c112_498, %c1_499] : memref<400x2xf32, #tpu.memory_space<vmem>>, vector<16x1xf32>
    tpu.vector_store %arg19[%c112_498, %c1_499], %556 {strides = array<i32>} : memref<400x2xf32, #tpu.memory_space<vmem>>, vector<16x1xf32>,
    %c0_500 = arith.constant 0 : index
    %c388 = arith.constant 388 : index
    %558 = vector.load %arg18[%c0_500, %c388] : memref<16x624xf32, #tpu.memory_space<vmem>>, vector<16x1xf32>
    %c128_501 = arith.constant 128 : index
    %c1_502 = arith.constant 1 : index
    %559 = vector.load %arg19[%c128_501, %c1_502] : memref<400x2xf32, #tpu.memory_space<vmem>>, vector<16x1xf32>
    tpu.vector_store %arg19[%c128_501, %c1_502], %558 {strides = array<i32>} : memref<400x2xf32, #tpu.memory_space<vmem>>, vector<16x1xf32>,
    %c0_503 = arith.constant 0 : index
    %c392 = arith.constant 392 : index
    %560 = vector.load %arg18[%c0_503, %c392] : memref<16x624xf32, #tpu.memory_space<vmem>>, vector<16x1xf32>
    %c144_504 = arith.constant 144 : index
    %c1_505 = arith.constant 1 : index
    %561 = vector.load %arg19[%c144_504, %c1_505] : memref<400x2xf32, #tpu.memory_space<vmem>>, vector<16x1xf32>
    tpu.vector_store %arg19[%c144_504, %c1_505], %560 {strides = array<i32>} : memref<400x2xf32, #tpu.memory_space<vmem>>, vector<16x1xf32>,
    %c0_506 = arith.constant 0 : index
    %c440 = arith.constant 440 : index
    %562 = vector.load %arg18[%c0_506, %c440] : memref<16x624xf32, #tpu.memory_space<vmem>>, vector<16x1xf32>
    %c160_507 = arith.constant 160 : index
    %c1_508 = arith.constant 1 : index
    %563 = vector.load %arg19[%c160_507, %c1_508] : memref<400x2xf32, #tpu.memory_space<vmem>>, vector<16x1xf32>
    tpu.vector_store %arg19[%c160_507, %c1_508], %562 {strides = array<i32>} : memref<400x2xf32, #tpu.memory_space<vmem>>, vector<16x1xf32>,
    %c0_509 = arith.constant 0 : index
    %c444 = arith.constant 444 : index
    %564 = vector.load %arg18[%c0_509, %c444] : memref<16x624xf32, #tpu.memory_space<vmem>>, vector<16x1xf32>
    %c176_510 = arith.constant 176 : index
    %c1_511 = arith.constant 1 : index
    %565 = vector.load %arg19[%c176_510, %c1_511] : memref<400x2xf32, #tpu.memory_space<vmem>>, vector<16x1xf32>
    tpu.vector_store %arg19[%c176_510, %c1_511], %564 {strides = array<i32>} : memref<400x2xf32, #tpu.memory_space<vmem>>, vector<16x1xf32>,
    %c0_512 = arith.constant 0 : index
    %c448_513 = arith.constant 448 : index
    %566 = vector.load %arg18[%c0_512, %c448_513] : memref<16x624xf32, #tpu.memory_space<vmem>>, vector<16x1xf32>
    %c192_514 = arith.constant 192 : index
    %c1_515 = arith.constant 1 : index
    %567 = vector.load %arg19[%c192_514, %c1_515] : memref<400x2xf32, #tpu.memory_space<vmem>>, vector<16x1xf32>
    tpu.vector_store %arg19[%c192_514, %c1_515], %566 {strides = array<i32>} : memref<400x2xf32, #tpu.memory_space<vmem>>, vector<16x1xf32>,
    %c0_516 = arith.constant 0 : index
    %c452_517 = arith.constant 452 : index
    %568 = vector.load %arg18[%c0_516, %c452_517] : memref<16x624xf32, #tpu.memory_space<vmem>>, vector<16x1xf32>
    %c208_518 = arith.constant 208 : index
    %c1_519 = arith.constant 1 : index
    %569 = vector.load %arg19[%c208_518, %c1_519] : memref<400x2xf32, #tpu.memory_space<vmem>>, vector<16x1xf32>
    tpu.vector_store %arg19[%c208_518, %c1_519], %568 {strides = array<i32>} : memref<400x2xf32, #tpu.memory_space<vmem>>, vector<16x1xf32>,
    %c0_520 = arith.constant 0 : index
    %c456_521 = arith.constant 456 : index
    %570 = vector.load %arg18[%c0_520, %c456_521] : memref<16x624xf32, #tpu.memory_space<vmem>>, vector<16x1xf32>
    %c224_522 = arith.constant 224 : index
    %c1_523 = arith.constant 1 : index
    %571 = vector.load %arg19[%c224_522, %c1_523] : memref<400x2xf32, #tpu.memory_space<vmem>>, vector<16x1xf32>
    tpu.vector_store %arg19[%c224_522, %c1_523], %570 {strides = array<i32>} : memref<400x2xf32, #tpu.memory_space<vmem>>, vector<16x1xf32>,
    %c0_524 = arith.constant 0 : index
    %c504 = arith.constant 504 : index
    %572 = vector.load %arg18[%c0_524, %c504] : memref<16x624xf32, #tpu.memory_space<vmem>>, vector<16x1xf32>
    %c240_525 = arith.constant 240 : index
    %c1_526 = arith.constant 1 : index
    %573 = vector.load %arg19[%c240_525, %c1_526] : memref<400x2xf32, #tpu.memory_space<vmem>>, vector<16x1xf32>
    tpu.vector_store %arg19[%c240_525, %c1_526], %572 {strides = array<i32>} : memref<400x2xf32, #tpu.memory_space<vmem>>, vector<16x1xf32>,
    %c0_527 = arith.constant 0 : index
    %c508 = arith.constant 508 : index
    %574 = vector.load %arg18[%c0_527, %c508] : memref<16x624xf32, #tpu.memory_space<vmem>>, vector<16x1xf32>
    %c256_528 = arith.constant 256 : index
    %c1_529 = arith.constant 1 : index
    %575 = vector.load %arg19[%c256_528, %c1_529] : memref<400x2xf32, #tpu.memory_space<vmem>>, vector<16x1xf32>
    tpu.vector_store %arg19[%c256_528, %c1_529], %574 {strides = array<i32>} : memref<400x2xf32, #tpu.memory_space<vmem>>, vector<16x1xf32>,
    %c0_530 = arith.constant 0 : index
    %c512_531 = arith.constant 512 : index
    %576 = vector.load %arg18[%c0_530, %c512_531] : memref<16x624xf32, #tpu.memory_space<vmem>>, vector<16x1xf32>
    %c272_532 = arith.constant 272 : index
    %c1_533 = arith.constant 1 : index
    %577 = vector.load %arg19[%c272_532, %c1_533] : memref<400x2xf32, #tpu.memory_space<vmem>>, vector<16x1xf32>
    tpu.vector_store %arg19[%c272_532, %c1_533], %576 {strides = array<i32>} : memref<400x2xf32, #tpu.memory_space<vmem>>, vector<16x1xf32>,
    %c0_534 = arith.constant 0 : index
    %c516_535 = arith.constant 516 : index
    %578 = vector.load %arg18[%c0_534, %c516_535] : memref<16x624xf32, #tpu.memory_space<vmem>>, vector<16x1xf32>
    %c288_536 = arith.constant 288 : index
    %c1_537 = arith.constant 1 : index
    %579 = vector.load %arg19[%c288_536, %c1_537] : memref<400x2xf32, #tpu.memory_space<vmem>>, vector<16x1xf32>
    tpu.vector_store %arg19[%c288_536, %c1_537], %578 {strides = array<i32>} : memref<400x2xf32, #tpu.memory_space<vmem>>, vector<16x1xf32>,
    %c0_538 = arith.constant 0 : index
    %c520_539 = arith.constant 520 : index
    %580 = vector.load %arg18[%c0_538, %c520_539] : memref<16x624xf32, #tpu.memory_space<vmem>>, vector<16x1xf32>
    %c304_540 = arith.constant 304 : index
    %c1_541 = arith.constant 1 : index
    %581 = vector.load %arg19[%c304_540, %c1_541] : memref<400x2xf32, #tpu.memory_space<vmem>>, vector<16x1xf32>
    tpu.vector_store %arg19[%c304_540, %c1_541], %580 {strides = array<i32>} : memref<400x2xf32, #tpu.memory_space<vmem>>, vector<16x1xf32>,
    %c0_542 = arith.constant 0 : index
    %c568 = arith.constant 568 : index
    %582 = vector.load %arg18[%c0_542, %c568] : memref<16x624xf32, #tpu.memory_space<vmem>>, vector<16x1xf32>
    %c320_543 = arith.constant 320 : index
    %c1_544 = arith.constant 1 : index
    %583 = vector.load %arg19[%c320_543, %c1_544] : memref<400x2xf32, #tpu.memory_space<vmem>>, vector<16x1xf32>
    tpu.vector_store %arg19[%c320_543, %c1_544], %582 {strides = array<i32>} : memref<400x2xf32, #tpu.memory_space<vmem>>, vector<16x1xf32>,
    %c0_545 = arith.constant 0 : index
    %c572 = arith.constant 572 : index
    %584 = vector.load %arg18[%c0_545, %c572] : memref<16x624xf32, #tpu.memory_space<vmem>>, vector<16x1xf32>
    %c336_546 = arith.constant 336 : index
    %c1_547 = arith.constant 1 : index
    %585 = vector.load %arg19[%c336_546, %c1_547] : memref<400x2xf32, #tpu.memory_space<vmem>>, vector<16x1xf32>
    tpu.vector_store %arg19[%c336_546, %c1_547], %584 {strides = array<i32>} : memref<400x2xf32, #tpu.memory_space<vmem>>, vector<16x1xf32>,
    %c0_548 = arith.constant 0 : index
    %c576_549 = arith.constant 576 : index
    %586 = vector.load %arg18[%c0_548, %c576_549] : memref<16x624xf32, #tpu.memory_space<vmem>>, vector<16x1xf32>
    %c352_550 = arith.constant 352 : index
    %c1_551 = arith.constant 1 : index
    %587 = vector.load %arg19[%c352_550, %c1_551] : memref<400x2xf32, #tpu.memory_space<vmem>>, vector<16x1xf32>
    tpu.vector_store %arg19[%c352_550, %c1_551], %586 {strides = array<i32>} : memref<400x2xf32, #tpu.memory_space<vmem>>, vector<16x1xf32>,
    %c0_552 = arith.constant 0 : index
    %c580_553 = arith.constant 580 : index
    %588 = vector.load %arg18[%c0_552, %c580_553] : memref<16x624xf32, #tpu.memory_space<vmem>>, vector<16x1xf32>
    %c368_554 = arith.constant 368 : index
    %c1_555 = arith.constant 1 : index
    %589 = vector.load %arg19[%c368_554, %c1_555] : memref<400x2xf32, #tpu.memory_space<vmem>>, vector<16x1xf32>
    tpu.vector_store %arg19[%c368_554, %c1_555], %588 {strides = array<i32>} : memref<400x2xf32, #tpu.memory_space<vmem>>, vector<16x1xf32>,
    %c0_556 = arith.constant 0 : index
    %c584_557 = arith.constant 584 : index
    %590 = vector.load %arg18[%c0_556, %c584_557] : memref<16x624xf32, #tpu.memory_space<vmem>>, vector<16x1xf32>
    %c384_558 = arith.constant 384 : index
    %c1_559 = arith.constant 1 : index
    %591 = vector.load %arg19[%c384_558, %c1_559] : memref<400x2xf32, #tpu.memory_space<vmem>>, vector<16x1xf32>
    tpu.vector_store %arg19[%c384_558, %c1_559], %590 {strides = array<i32>} : memref<400x2xf32, #tpu.memory_space<vmem>>, vector<16x1xf32>,
    %c0_560 = arith.constant 0 : index
    %c0_561 = arith.constant 0 : index
    %592 = vector.load %arg5[%c0_560, %c0_561] : memref<120x400xf32, #tpu.memory_space<vmem>>, vector<120x400xf32>
    %c0_562 = arith.constant 0 : index
    %c0_563 = arith.constant 0 : index
    %593 = vector.load %arg19[%c0_562, %c0_563] : memref<400x2xf32, #tpu.memory_space<vmem>>, vector<400x2xf32>
    %cst_564 = arith.constant dense<0.000000e+00> : vector<120x2xf32>
    %594 = tpu.matmul %592, %593, %cst_564 {dimension_numbers = #tpu.dot_dimension_numbers<[1], [0], [0], [1], [0, 0, 1, 1], [], []>} : vector<120x400xf32>, vector<400x2xf32>, vector<120x2xf32> -> vector<120x2xf32>
    %c0_565 = arith.constant 0 : index
    %c0_566 = arith.constant 0 : index
    %595 = vector.load %arg6[%c0_565, %c0_566] : memref<120x1xf32, #tpu.memory_space<vmem>>, vector<120x1xf32>
    %596 = vector.broadcast %595 : vector<120x1xf32> to vector<120x2xf32>
    %597 = arith.addf %594, %596 : vector<120x2xf32>
    %cst_567 = arith.constant 0.000000e+00 : f32
    %598 = vector.broadcast %cst_567 : f32 to vector<120x2xf32>
    %599 = arith.maximumf %597, %598 : vector<120x2xf32>
    %c0_568 = arith.constant 0 : index
    %c0_569 = arith.constant 0 : index
    %600 = vector.load %arg7[%c0_568, %c0_569] : memref<84x120xf32, #tpu.memory_space<vmem>>, vector<84x120xf32>
    %cst_570 = arith.constant dense<0.000000e+00> : vector<84x2xf32>
    %601 = tpu.matmul %600, %599, %cst_570 {dimension_numbers = #tpu.dot_dimension_numbers<[1], [0], [0], [1], [0, 0, 1, 1], [], []>} : vector<84x120xf32>, vector<120x2xf32>, vector<84x2xf32> -> vector<84x2xf32>
    %c0_571 = arith.constant 0 : index
    %c0_572 = arith.constant 0 : index
    %602 = vector.load %arg8[%c0_571, %c0_572] : memref<84x1xf32, #tpu.memory_space<vmem>>, vector<84x1xf32>
    %603 = vector.broadcast %602 : vector<84x1xf32> to vector<84x2xf32>
    %604 = arith.addf %601, %603 : vector<84x2xf32>
    %cst_573 = arith.constant dense<0.000000e+00> : vector<84xf32>
    %605 = vector.multi_reduction <add>, %604, %cst_573 [1] : vector<84x2xf32> to vector<84xf32>
    %606 = vector.shape_cast %605 : vector<84xf32> to vector<84x1xf32>
    %cst_574 = arith.constant 2.000000e+00 : f32
    %607 = vector.broadcast %cst_574 : f32 to vector<84x1xf32>
    %608 = arith.divf %606, %607 : vector<84x1xf32>
    %609 = vector.broadcast %608 : vector<84x1xf32> to vector<84x2xf32>
    %610 = arith.subf %604, %609 : vector<84x2xf32>
    %611 = arith.mulf %610, %610 : vector<84x2xf32>
    %cst_575 = arith.constant dense<0.000000e+00> : vector<84xf32>
    %612 = vector.multi_reduction <add>, %611, %cst_575 [1] : vector<84x2xf32> to vector<84xf32>
    %613 = vector.shape_cast %612 : vector<84xf32> to vector<84x1xf32>
    %cst_576 = arith.constant 2.000000e+00 : f32
    %614 = vector.broadcast %cst_576 : f32 to vector<84x1xf32>
    %615 = arith.divf %613, %614 : vector<84x1xf32>
    %616 = vector.broadcast %608 : vector<84x1xf32> to vector<84x2xf32>
    %617 = arith.subf %604, %616 : vector<84x2xf32>
    %cst_577 = arith.constant 9.99999974E-6 : f32
    %618 = vector.broadcast %cst_577 : f32 to vector<84x1xf32>
    %619 = arith.addf %615, %618 : vector<84x1xf32>
    %620 = math.rsqrt %619 : vector<84x1xf32>
    %621 = vector.broadcast %620 : vector<84x1xf32> to vector<84x2xf32>
    %622 = arith.mulf %617, %621 : vector<84x2xf32>
    %c0_578 = arith.constant 0 : index
    %c0_579 = arith.constant 0 : index
    %623 = vector.load %arg9[%c0_578, %c0_579] : memref<84x1xf32, #tpu.memory_space<vmem>>, vector<84x1xf32>
    %624 = vector.broadcast %623 : vector<84x1xf32> to vector<84x2xf32>
    %625 = arith.mulf %622, %624 : vector<84x2xf32>
    %c0_580 = arith.constant 0 : index
    %c0_581 = arith.constant 0 : index
    %626 = vector.load %arg10[%c0_580, %c0_581] : memref<84x1xf32, #tpu.memory_space<vmem>>, vector<84x1xf32>
    %627 = vector.broadcast %626 : vector<84x1xf32> to vector<84x2xf32>
    %628 = arith.addf %625, %627 : vector<84x2xf32>
    %cst_582 = arith.constant 0.000000e+00 : f32
    %629 = vector.broadcast %cst_582 : f32 to vector<84x2xf32>
    %630 = arith.maximumf %628, %629 : vector<84x2xf32>
    %c0_583 = arith.constant 0 : index
    %c0_584 = arith.constant 0 : index
    %631 = vector.load %arg11[%c0_583, %c0_584] : memref<1x84xf32, #tpu.memory_space<vmem>>, vector<1x84xf32>
    %cst_585 = arith.constant dense<0.000000e+00> : vector<1x2xf32>
    %632 = tpu.matmul %631, %630, %cst_585 {dimension_numbers = #tpu.dot_dimension_numbers<[1], [0], [0], [1], [0, 0, 1, 1], [], []>} : vector<1x84xf32>, vector<84x2xf32>, vector<1x2xf32> -> vector<1x2xf32>
    %c0_586 = arith.constant 0 : index
    %c0_587 = arith.constant 0 : index
    %633 = vector.load %arg12[%c0_586, %c0_587] : memref<1x1xf32, #tpu.memory_space<vmem>>, vector<1x1xf32>
    %634 = vector.broadcast %633 : vector<1x1xf32> to vector<1x2xf32>
    %635 = arith.addf %632, %634 : vector<1x2xf32>
    %c0_588 = arith.constant 0 : index
    %c0_589 = arith.constant 0 : index
    %636 = vector.load %arg13[%c0_588, %c0_589] : memref<1x2xf32, #tpu.memory_space<vmem>>, vector<1x2xf32>
    tpu.vector_store %arg13[%c0_588, %c0_589], %635 {strides = array<i32>} : memref<1x2xf32, #tpu.memory_space<vmem>>, vector<1x2xf32>,
    return
  }
}

</mosaic_0001>

<llo_original>
// kernel: mixlenet_forward.1
$region0: #{mixlenet_forward.1}
  #allocation0 [shape = 'u32[]', space=smem, size = 0x4, offset = 0x4, fixed_abs, tag = 'smem constant byte address 0x4 - core index']
  #allocation1 [shape = 'u32[144,128]{1,0:T(1,128)}', space=vmem, size = 0x12000, scoped, tag = 'internal scratch']
  #allocation2 [shape = 'f32[8,1856]{1,0:T(8,128)}', space=vmem, size = 0xf000, scoped, tag = 'scratch operand']
  #allocation3 [shape = 'f32[8,896]{1,0:T(8,128)}', space=vmem, size = 0x7000, scoped, tag = 'scratch operand']
  #allocation4 [shape = 'f32[200,624]{1,0:T(8,128)}', space=vmem, size = 0x7d000, scoped, tag = 'scratch operand']
  #allocation5 [shape = 'f32[16,688]{1,0:T(8,128)}', space=vmem, size = 0xc000, scoped, tag = 'scratch operand']
  #allocation6 [shape = 'f32[16,624]{1,0:T(8,128)}', space=vmem, size = 0xa000, scoped, tag = 'scratch operand']
  #allocation7 [shape = 'f32[400,2]{1,0:T(8,128)}', space=vmem, size = 0x32000, scoped, tag = 'scratch operand']
  #allocation8 [shape = 'f32[1,1]{1,0:T(1,128)S(1)}', space=vmem, size = 0x200, scoped, tag = 'scoped memory for mixlenet_forward.1']
  %s0 = inlined_call_operand.vmem [shape: f32[8,1028], index: 0, kind: input, shape index: {}]
  %s1 = inlined_call_operand.vmem [shape: f32[8,32], index: 1, kind: input, shape index: {}]
  %s2 = inlined_call_operand.vmem [shape: f32[8,1], index: 2, kind: input, shape index: {}]
  %s3 = inlined_call_operand.vmem [shape: f32[16,200], index: 3, kind: input, shape index: {}]
  %s4 = inlined_call_operand.vmem [shape: f32[16,1], index: 4, kind: input, shape index: {}]
  %s5 = inlined_call_operand.vmem [shape: f32[120,400], index: 5, kind: input, shape index: {}]
  %s6 = inlined_call_operand.vmem [shape: f32[120,1], index: 6, kind: input, shape index: {}]
  %s7 = inlined_call_operand.vmem [shape: f32[84,120], index: 7, kind: input, shape index: {}]
  %s8 = inlined_call_operand.vmem [shape: f32[84,1], index: 8, kind: input, shape index: {}]
  %s9 = inlined_call_operand.vmem [shape: f32[84,1], index: 9, kind: input, shape index: {}]
  %s10 = inlined_call_operand.vmem [shape: f32[84,1], index: 10, kind: input, shape index: {}]
  %s11 = inlined_call_operand.vmem [shape: f32[1,84], index: 11, kind: input, shape index: {}]
  %s12 = inlined_call_operand.<no memory space> [shape: f32[1,1], index: 12, kind: input, shape index: {}]
  %s13 = inlined_call_operand.hbm [shape: f32[1,2], index: 13, kind: output, shape index: {}]
  %s14 = sld [smem:[#allocation0]]
  $region62: #{mixlenet_forward.1} parent=0
    _
  %s16 = ssub.s32 1, %s14
  %s17 = scalar_select 0, %s16, %s14
  %v18 = vstv %s12
  %19 = vst [vmem:[#allocation8] sm:$0x1] %v18
  $region1: #{mixlenet_forward.1} parent=0
    #allocation9 [shape = 'u8[512]{0}', space=vmem, size = 0x400, scoped, tag = 'output window, operand 0, single buffered']
    #allocation10 [shape = 's32[1]{0}', space=sflag, size = 0x4, scoped, tag = 'scoped memory for mixlenet_forward.1']
    %20 = vsyncpa [#allocation10], 0
    // Predicated region
    $region2: #{mixlenet_forward.1} parent=1 // pred_check
      _
    $region3: #{mixlenet_forward.1} parent=1 // pred_check_branch
      %22 = sbr.rel (0) target = $region5
    $region4: #{mixlenet_forward.1} parent=1 // pred_region
      _
    $region5: #{mixlenet_forward.1} parent=1 // pred_fallthru
      _
    // Predicated region
    $region6: #{mixlenet_forward.1} parent=1 // pred_check
      _
    $region7: #{mixlenet_forward.1} parent=1 // pred_check_branch
      %24 = sbr.rel (0) target = $region9
    $region8: #{mixlenet_forward.1} parent=1 // pred_region
      _
    $region9: #{mixlenet_forward.1} parent=1 // pred_fallthru
      _
    // Predicated region
    $region10: #{mixlenet_forward.1} parent=1 // pred_check
      _
    $region11: #{mixlenet_forward.1} parent=1 // pred_check_branch
      %26 = sbr.rel (0) target = $region13
    $region12: #{mixlenet_forward.1} parent=1 // pred_region
      _
    $region13: #{mixlenet_forward.1} parent=1 // pred_fallthru
      _
    // Predicated region
    $region14: #{mixlenet_forward.1} parent=1 // pred_check
      _
    $region15: #{mixlenet_forward.1} parent=1 // pred_check_branch
      %28 = sbr.rel (0) target = $region17
    $region16: #{mixlenet_forward.1} parent=1 // pred_region
      _
    $region17: #{mixlenet_forward.1} parent=1 // pred_fallthru
      _
    // Predicated region
    $region18: #{mixlenet_forward.1} parent=1 // pred_check
      _
    $region19: #{mixlenet_forward.1} parent=1 // pred_check_branch
      %30 = sbr.rel (0) target = $region21
    $region20: #{mixlenet_forward.1} parent=1 // pred_region
      _
    $region21: #{mixlenet_forward.1} parent=1 // pred_fallthru
      _
    // Predicated region
    $region22: #{mixlenet_forward.1} parent=1 // pred_check
      _
    $region23: #{mixlenet_forward.1} parent=1 // pred_check_branch
      %32 = sbr.rel (0) target = $region25
    $region24: #{mixlenet_forward.1} parent=1 // pred_region
      _
    $region25: #{mixlenet_forward.1} parent=1 // pred_fallthru
      _
    // Predicated region
    $region26: #{mixlenet_forward.1} parent=1 // pred_check
      _
    $region27: #{mixlenet_forward.1} parent=1 // pred_check_branch
      %34 = sbr.rel (0) target = $region29
    $region28: #{mixlenet_forward.1} parent=1 // pred_region
      _
    $region29: #{mixlenet_forward.1} parent=1 // pred_fallthru
      _
    // Predicated region
    $region30: #{mixlenet_forward.1} parent=1 // pred_check
      _
    $region31: #{mixlenet_forward.1} parent=1 // pred_check_branch
      %36 = sbr.rel (0) target = $region33
    $region32: #{mixlenet_forward.1} parent=1 // pred_region
      _
    $region33: #{mixlenet_forward.1} parent=1 // pred_fallthru
      _
    // Predicated region
    $region34: #{mixlenet_forward.1} parent=1 // pred_check
      _
    $region35: #{mixlenet_forward.1} parent=1 // pred_check_branch
      %38 = sbr.rel (0) target = $region37
    $region36: #{mixlenet_forward.1} parent=1 // pred_region
      _
    $region37: #{mixlenet_forward.1} parent=1 // pred_fallthru
      _
    // Predicated region
    $region38: #{mixlenet_forward.1} parent=1 // pred_check
      _
    $region39: #{mixlenet_forward.1} parent=1 // pred_check_branch
      %40 = sbr.rel (0) target = $region41
    $region40: #{mixlenet_forward.1} parent=1 // pred_region
      _
    $region41: #{mixlenet_forward.1} parent=1 // pred_fallthru
      _
    // Predicated region
    $region42: #{mixlenet_forward.1} parent=1 // pred_check
      _
    $region43: #{mixlenet_forward.1} parent=1 // pred_check_branch
      %42 = sbr.rel (0) target = $region45
    $region44: #{mixlenet_forward.1} parent=1 // pred_region
      _
    $region45: #{mixlenet_forward.1} parent=1 // pred_fallthru
      _
    // Predicated region
    $region46: #{mixlenet_forward.1} parent=1 // pred_check
      _
    $region47: #{mixlenet_forward.1} parent=1 // pred_check_branch
      %44 = sbr.rel (0) target = $region49
    $region48: #{mixlenet_forward.1} parent=1 // pred_region
      _
    $region49: #{mixlenet_forward.1} parent=1 // pred_fallthru
      _
    // Predicated region
    $region50: #{mixlenet_forward.1} parent=1 // pred_check
      _
    $region51: #{mixlenet_forward.1} parent=1 // pred_check_branch
      %46 = sbr.rel (0) target = $region53
    $region52: #{mixlenet_forward.1} parent=1 // pred_region
      _
    $region53: #{mixlenet_forward.1} parent=1 // pred_fallthru
      _
    %vm47 = vcmask 523264
    %48 = vst.msk [vmem:[#allocation2 + $0x70] sm:$0xff] %vm47, 0.0
    %vm49 = vcmask 1048448
    %50 = vst.msk [vmem:[#allocation5 + $0x20] sm:$0xff] %vm49, 0.0
    %vm51 = vcmask 392192
    %52 = vst.msk [vmem:[#allocation5 + $0x28] sm:$0xff] %vm51, 0.0
    %53 = vst.msk [vmem:[#allocation5 + $0x50] sm:$0xff] %vm49, 0.0
    %54 = vst.msk [vmem:[#allocation5 + $0x58] sm:$0xff] %vm51, 0.0
    %v55 = vld [vmem:[%s2] sm:$0xff]
    %v56 = vld [vmem:[%s1] sm:$0xff]
    %v57 = vld [vmem:[%s0] ss:$8 sm:$0xf]
    %v58 = vld [vmem:[%s0] ss:$8 sm:$0xf0]
    %v59 = vor.u32 %v57, %v58
    %61 = vset.pattern.permute.xlu0 0
    %62 = vperm.xlu0 %61, %v56
    %v63 = vpop.permute.xlu0 %62
    %v66 = vlaneseq
    %v67 = vshrl.u32 %v66, 7
    %v68 = vsub.s32 0, %v67
    %v69 = vrot.slane %v59, %v68
    %v70 = vlaneseq
    %v71 = vshrl.u32 %v70, 7
    %v72 = vsub.s32 1, %v71
    %v73 = vrot.slane %v59, %v72
    %v74 = vlaneseq
    %v75 = vshrl.u32 %v74, 7
    %v76 = vsub.s32 2, %v75
    %v77 = vrot.slane %v59, %v76
    %v78 = vlaneseq
    %v79 = vshrl.u32 %v78, 7
    %v80 = vsub.s32 3, %v79
    %v81 = vrot.slane %v59, %v80
    %v82 = vlaneseq
    %v83 = vshrl.u32 %v82, 7
    %v84 = vsub.s32 4, %v83
    %v85 = vrot.slane %v59, %v84
    %v86 = vlaneseq
    %v87 = vshrl.u32 %v86, 7
    %v88 = vsub.s32 5, %v87
    %v89 = vrot.slane %v59, %v88
    %v90 = vlaneseq
    %v91 = vshrl.u32 %v90, 7
    %v92 = vsub.s32 6, %v91
    %v93 = vrot.slane %v59, %v92
    %v101 = vmul.f32 %v63, %v69
    %v102 = vmul.f32 %v63, %v73
    %v103 = vmul.f32 %v63, %v77
    %v104 = vmul.f32 %v63, %v81
    %v105 = vmul.f32 %v63, %v85
    %v106 = vmul.f32 %v63, %v89
    %v107 = vmul.f32 %v63, %v93
    %109 = vset.pattern.permute.xlu0 0
    %110 = vperm.xlu0 %109, %v55
    %v111 = vpop.permute.xlu0 %110
    %v113 = vadd.f32 %v111, %v101
    %v114 = vadd.f32 %v111, %v102
    %v115 = vadd.f32 %v111, %v103
    %v116 = vadd.f32 %v111, %v104
    %v117 = vadd.f32 %v111, %v105
    %v118 = vadd.f32 %v111, %v106
    %v119 = vadd.f32 %v111, %v107
    %v120 = vld [vmem:[%s0] ss:$8 sm:$0xf]
    %v121 = vld [vmem:[%s0] ss:$8 sm:$0xf0]
    %v122 = vor.u32 %v120, %v121
    %123 = vset.pattern.permute.xlu0 1
    %124 = vperm.xlu0 %123, %v56
    %v125 = vpop.permute.xlu0 %124
    %v128 = vlaneseq
    %v129 = vshrl.u32 %v128, 7
    %v130 = vsub.s32 0, %v129
    %v131 = vrot.slane %v122, %v130
    %v132 = vlaneseq
    %v133 = vshrl.u32 %v132, 7
    %v134 = vsub.s32 1, %v133
    %v135 = vrot.slane %v122, %v134
    %v136 = vlaneseq
    %v137 = vshrl.u32 %v136, 7
    %v138 = vsub.s32 2, %v137
    %v139 = vrot.slane %v122, %v138
    %v140 = vlaneseq
    %v141 = vshrl.u32 %v140, 7
    %v142 = vsub.s32 3, %v141
    %v143 = vrot.slane %v122, %v142
    %v144 = vlaneseq
    %v145 = vshrl.u32 %v144, 7
    %v146 = vsub.s32 4, %v145
    %v147 = vrot.slane %v122, %v146
    %v148 = vlaneseq
    %v149 = vshrl.u32 %v148, 7
    %v150 = vsub.s32 5, %v149
    %v151 = vrot.slane %v122, %v150
    %v152 = vlaneseq
    %v153 = vshrl.u32 %v152, 7
    %v154 = vsub.s32 6, %v153
    %v155 = vrot.slane %v122, %v154
    %v156 = vlaneseq
    %v157 = vshrl.u32 %v156, 7
    %v158 = vsub.s32 7, %v157
    %v159 = vrot.slane %v122, %v158
    %v168 = vmul.f32 %v125, %v131
    %v169 = vmul.f32 %v125, %v135
    %v170 = vmul.f32 %v125, %v139
    %v171 = vmul.f32 %v125, %v143
    %v172 = vmul.f32 %v125, %v147
    %v173 = vmul.f32 %v125, %v151
    %v174 = vmul.f32 %v125, %v155
    %v175 = vmul.f32 %v125, %v159
    %184 = vrot.lane.b32.xlu0 %v168, 127
    %v185 = vpop.permute.xlu0 %184
    %186 = vrot.lane.b32.xlu0 %v169, 127
    %v187 = vpop.permute.xlu0 %186
    %188 = vrot.lane.b32.xlu0 %v170, 127
    %v189 = vpop.permute.xlu0 %188
    %190 = vrot.lane.b32.xlu0 %v171, 127
    %v191 = vpop.permute.xlu0 %190
    %192 = vrot.lane.b32.xlu0 %v172, 127
    %v193 = vpop.permute.xlu0 %192
    %194 = vrot.lane.b32.xlu0 %v173, 127
    %v195 = vpop.permute.xlu0 %194
    %196 = vrot.lane.b32.xlu0 %v174, 127
    %v197 = vpop.permute.xlu0 %196
    %198 = vrot.lane.b32.xlu0 %v175, 127
    %v199 = vpop.permute.xlu0 %198
    %vm200 = vcmask 1039360
    %v201 = vsel %vm200, %v185, %v187
    %v202 = vsel %vm200, %v187, %v189
    %v203 = vsel %vm200, %v189, %v191
    %v204 = vsel %vm200, %v191, %v193
    %v205 = vsel %vm200, %v193, %v195
    %v206 = vsel %vm200, %v195, %v197
    %v207 = vsel %vm200, %v197, %v199
    %v215 = vadd.f32 %v113, %v201
    %v216 = vadd.f32 %v114, %v202
    %v217 = vadd.f32 %v115, %v203
    %v218 = vadd.f32 %v116, %v204
    %v219 = vadd.f32 %v117, %v205
    %v220 = vadd.f32 %v118, %v206
    %v221 = vadd.f32 %v119, %v207
    %222 = vset.pattern.permute.xlu0 2
    %223 = vperm.xlu0 %222, %v56
    %v224 = vpop.permute.xlu0 %223
    %v226 = vmul.f32 %v224, %v131
    %v227 = vmul.f32 %v224, %v135
    %v228 = vmul.f32 %v224, %v139
    %v229 = vmul.f32 %v224, %v143
    %v230 = vmul.f32 %v224, %v147
    %v231 = vmul.f32 %v224, %v151
    %v232 = vmul.f32 %v224, %v155
    %v233 = vmul.f32 %v224, %v159
    %242 = vrot.lane.b32.xlu0 %v226, 126
    %v243 = vpop.permute.xlu0 %242
    %244 = vrot.lane.b32.xlu0 %v227, 126
    %v245 = vpop.permute.xlu0 %244
    %246 = vrot.lane.b32.xlu0 %v228, 126
    %v247 = vpop.permute.xlu0 %246
    %248 = vrot.lane.b32.xlu0 %v229, 126
    %v249 = vpop.permute.xlu0 %248
    %250 = vrot.lane.b32.xlu0 %v230, 126
    %v251 = vpop.permute.xlu0 %250
    %252 = vrot.lane.b32.xlu0 %v231, 126
    %v253 = vpop.permute.xlu0 %252
    %254 = vrot.lane.b32.xlu0 %v232, 126
    %v255 = vpop.permute.xlu0 %254
    %256 = vrot.lane.b32.xlu0 %v233, 126
    %v257 = vpop.permute.xlu0 %256
    %vm258 = vcmask 1031168
    %v259 = vsel %vm258, %v243, %v245
    %v260 = vsel %vm258, %v245, %v247
    %v261 = vsel %vm258, %v247, %v249
    %v262 = vsel %vm258, %v249, %v251
    %v263 = vsel %vm258, %v251, %v253
    %v264 = vsel %vm258, %v253, %v255
    %v265 = vsel %vm258, %v255, %v257
    %v273 = vadd.f32 %v215, %v259
    %v274 = vadd.f32 %v216, %v260
    %v275 = vadd.f32 %v217, %v261
    %v276 = vadd.f32 %v218, %v262
    %v277 = vadd.f32 %v219, %v263
    %v278 = vadd.f32 %v220, %v264
    %v279 = vadd.f32 %v221, %v265
    %280 = vset.pattern.permute.xlu0 3
    %281 = vperm.xlu0 %280, %v56
    %v282 = vpop.permute.xlu0 %281
    %v284 = vmul.f32 %v282, %v131
    %v285 = vmul.f32 %v282, %v135
    %v286 = vmul.f32 %v282, %v139
    %v287 = vmul.f32 %v282, %v143
    %v288 = vmul.f32 %v282, %v147
    %v289 = vmul.f32 %v282, %v151
    %v290 = vmul.f32 %v282, %v155
    %v291 = vmul.f32 %v282, %v159
    %300 = vrot.lane.b32.xlu0 %v284, 125
    %v301 = vpop.permute.xlu0 %300
    %302 = vrot.lane.b32.xlu0 %v285, 125
    %v303 = vpop.permute.xlu0 %302
    %304 = vrot.lane.b32.xlu0 %v286, 125
    %v305 = vpop.permute.xlu0 %304
    %306 = vrot.lane.b32.xlu0 %v287, 125
    %v307 = vpop.permute.xlu0 %306
    %308 = vrot.lane.b32.xlu0 %v288, 125
    %v309 = vpop.permute.xlu0 %308
    %310 = vrot.lane.b32.xlu0 %v289, 125
    %v311 = vpop.permute.xlu0 %310
    %312 = vrot.lane.b32.xlu0 %v290, 125
    %v313 = vpop.permute.xlu0 %312
    %314 = vrot.lane.b32.xlu0 %v291, 125
    %v315 = vpop.permute.xlu0 %314
    %vm316 = vcmask 1022976
    %v317 = vsel %vm316, %v301, %v303
    %v318 = vsel %vm316, %v303, %v305
    %v319 = vsel %vm316, %v305, %v307
    %v320 = vsel %vm316, %v307, %v309
    %v321 = vsel %vm316, %v309, %v311
    %v322 = vsel %vm316, %v311, %v313
    %v323 = vsel %vm316, %v313, %v315
    %v331 = vadd.f32 %v273, %v317
    %v332 = vadd.f32 %v274, %v318
    %v333 = vadd.f32 %v275, %v319
    %v334 = vadd.f32 %v276, %v320
    %v335 = vadd.f32 %v277, %v321
    %v336 = vadd.f32 %v278, %v322
    %v337 = vadd.f32 %v279, %v323
    %338 = vset.pattern.permute.xlu0 4
    %339 = vperm.xlu0 %338, %v56
    %v340 = vpop.permute.xlu0 %339
    %v342 = vmul.f32 %v340, %v131
    %v343 = vmul.f32 %v340, %v135
    %v344 = vmul.f32 %v340, %v139
    %v345 = vmul.f32 %v340, %v143
    %v346 = vmul.f32 %v340, %v147
    %v347 = vmul.f32 %v340, %v151
    %v348 = vmul.f32 %v340, %v155
    %v349 = vmul.f32 %v340, %v159
    %358 = vrot.lane.b32.xlu0 %v342, 124
    %v359 = vpop.permute.xlu0 %358
    %360 = vrot.lane.b32.xlu0 %v343, 124
    %v361 = vpop.permute.xlu0 %360
    %362 = vrot.lane.b32.xlu0 %v344, 124
    %v363 = vpop.permute.xlu0 %362
    %364 = vrot.lane.b32.xlu0 %v345, 124
    %v365 = vpop.permute.xlu0 %364
    %366 = vrot.lane.b32.xlu0 %v346, 124
    %v367 = vpop.permute.xlu0 %366
    %368 = vrot.lane.b32.xlu0 %v347, 124
    %v369 = vpop.permute.xlu0 %368
    %370 = vrot.lane.b32.xlu0 %v348, 124
    %v371 = vpop.permute.xlu0 %370
    %372 = vrot.lane.b32.xlu0 %v349, 124
    %v373 = vpop.permute.xlu0 %372
    %vm374 = vcmask 1014784
    %v375 = vsel %vm374, %v359, %v361
    %v376 = vsel %vm374, %v361, %v363
    %v377 = vsel %vm374, %v363, %v365
    %v378 = vsel %vm374, %v365, %v367
    %v379 = vsel %vm374, %v367, %v369
    %v380 = vsel %vm374, %v369, %v371
    %v381 = vsel %vm374, %v371, %v373
    %v389 = vadd.f32 %v331, %v375
    %v390 = vadd.f32 %v332, %v376
    %v391 = vadd.f32 %v333, %v377
    %v392 = vadd.f32 %v334, %v378
    %v393 = vadd.f32 %v335, %v379
    %v394 = vadd.f32 %v336, %v380
    %v395 = vadd.f32 %v337, %v381
    %396 = vset.pattern.permute.xlu0 5
    %397 = vperm.xlu0 %396, %v56
    %v398 = vpop.permute.xlu0 %397
    %v400 = vmul.f32 %v398, %v131
    %v401 = vmul.f32 %v398, %v135
    %v402 = vmul.f32 %v398, %v139
    %v403 = vmul.f32 %v398, %v143
    %v404 = vmul.f32 %v398, %v147
    %v405 = vmul.f32 %v398, %v151
    %v406 = vmul.f32 %v398, %v155
    %v407 = vmul.f32 %v398, %v159
    %416 = vrot.lane.b32.xlu0 %v400, 96
    %v417 = vpop.permute.xlu0 %416
    %418 = vrot.lane.b32.xlu0 %v401, 96
    %v419 = vpop.permute.xlu0 %418
    %420 = vrot.lane.b32.xlu0 %v402, 96
    %v421 = vpop.permute.xlu0 %420
    %422 = vrot.lane.b32.xlu0 %v403, 96
    %v423 = vpop.permute.xlu0 %422
    %424 = vrot.lane.b32.xlu0 %v404, 96
    %v425 = vpop.permute.xlu0 %424
    %426 = vrot.lane.b32.xlu0 %v405, 96
    %v427 = vpop.permute.xlu0 %426
    %428 = vrot.lane.b32.xlu0 %v406, 96
    %v429 = vpop.permute.xlu0 %428
    %430 = vrot.lane.b32.xlu0 %v407, 96
    %v431 = vpop.permute.xlu0 %430
    %vm432 = vcmask 785408
    %v433 = vsel %vm432, %v417, %v419
    %v434 = vsel %vm432, %v419, %v421
    %v435 = vsel %vm432, %v421, %v423
    %v436 = vsel %vm432, %v423, %v425
    %v437 = vsel %vm432, %v425, %v427
    %v438 = vsel %vm432, %v427, %v429
    %v439 = vsel %vm432, %v429, %v431
    %v447 = vadd.f32 %v389, %v433
    %v448 = vadd.f32 %v390, %v434
    %v449 = vadd.f32 %v391, %v435
    %v450 = vadd.f32 %v392, %v436
    %v451 = vadd.f32 %v393, %v437
    %v452 = vadd.f32 %v394, %v438
    %v453 = vadd.f32 %v395, %v439
    %454 = vset.pattern.permute.xlu0 6
    %455 = vperm.xlu0 %454, %v56
    %v456 = vpop.permute.xlu0 %455
    %v458 = vmul.f32 %v456, %v131
    %v459 = vmul.f32 %v456, %v135
    %v460 = vmul.f32 %v456, %v139
    %v461 = vmul.f32 %v456, %v143
    %v462 = vmul.f32 %v456, %v147
    %v463 = vmul.f32 %v456, %v151
    %v464 = vmul.f32 %v456, %v155
    %v465 = vmul.f32 %v456, %v159
    %474 = vrot.lane.b32.xlu0 %v458, 95
    %v475 = vpop.permute.xlu0 %474
    %476 = vrot.lane.b32.xlu0 %v459, 95
    %v477 = vpop.permute.xlu0 %476
    %478 = vrot.lane.b32.xlu0 %v460, 95
    %v479 = vpop.permute.xlu0 %478
    %480 = vrot.lane.b32.xlu0 %v461, 95
    %v481 = vpop.permute.xlu0 %480
    %482 = vrot.lane.b32.xlu0 %v462, 95
    %v483 = vpop.permute.xlu0 %482
    %484 = vrot.lane.b32.xlu0 %v463, 95
    %v485 = vpop.permute.xlu0 %484
    %486 = vrot.lane.b32.xlu0 %v464, 95
    %v487 = vpop.permute.xlu0 %486
    %488 = vrot.lane.b32.xlu0 %v465, 95
    %v489 = vpop.permute.xlu0 %488
    %vm490 = vcmask 777216
    %v491 = vsel %vm490, %v475, %v477
    %v492 = vsel %vm490, %v477, %v479
    %v493 = vsel %vm490, %v479, %v481
    %v494 = vsel %vm490, %v481, %v483
    %v495 = vsel %vm490, %v483, %v485
    %v496 = vsel %vm490, %v485, %v487
    %v497 = vsel %vm490, %v487, %v489
    %v505 = vadd.f32 %v447, %v491
    %v506 = vadd.f32 %v448, %v492
    %v507 = vadd.f32 %v449, %v493
    %v508 = vadd.f32 %v450, %v494
    %v509 = vadd.f32 %v451, %v495
    %v510 = vadd.f32 %v452, %v496
    %v511 = vadd.f32 %v453, %v497
    %512 = vset.pattern.permute.xlu0 7
    %513 = vperm.xlu0 %512, %v56
    %v514 = vpop.permute.xlu0 %513
    %v516 = vmul.f32 %v514, %v131
    %v517 = vmul.f32 %v514, %v135
    %v518 = vmul.f32 %v514, %v139
    %v519 = vmul.f32 %v514, %v143
    %v520 = vmul.f32 %v514, %v147
    %v521 = vmul.f32 %v514, %v151
    %v522 = vmul.f32 %v514, %v155
    %v523 = vmul.f32 %v514, %v159
    %532 = vrot.lane.b32.xlu0 %v516, 94
    %v533 = vpop.permute.xlu0 %532
    %534 = vrot.lane.b32.xlu0 %v517, 94
    %v535 = vpop.permute.xlu0 %534
    %536 = vrot.lane.b32.xlu0 %v518, 94
    %v537 = vpop.permute.xlu0 %536
    %538 = vrot.lane.b32.xlu0 %v519, 94
    %v539 = vpop.permute.xlu0 %538
    %540 = vrot.lane.b32.xlu0 %v520, 94
    %v541 = vpop.permute.xlu0 %540
    %542 = vrot.lane.b32.xlu0 %v521, 94
    %v543 = vpop.permute.xlu0 %542
    %544 = vrot.lane.b32.xlu0 %v522, 94
    %v545 = vpop.permute.xlu0 %544
    %546 = vrot.lane.b32.xlu0 %v523, 94
    %v547 = vpop.permute.xlu0 %546
    %vm548 = vcmask 769024
    %v549 = vsel %vm548, %v533, %v535
    %v550 = vsel %vm548, %v535, %v537
    %v551 = vsel %vm548, %v537, %v539
    %v552 = vsel %vm548, %v539, %v541
    %v553 = vsel %vm548, %v541, %v543
    %v554 = vsel %vm548, %v543, %v545
    %v555 = vsel %vm548, %v545, %v547
    %v563 = vadd.f32 %v505, %v549
    %v564 = vadd.f32 %v506, %v550
    %v565 = vadd.f32 %v507, %v551
    %v566 = vadd.f32 %v508, %v552
    %v567 = vadd.f32 %v509, %v553
    %v568 = vadd.f32 %v510, %v554
    %v569 = vadd.f32 %v511, %v555
    %570 = vset.pattern.permute.xlu0 8
    %571 = vperm.xlu0 %570, %v56
    %v572 = vpop.permute.xlu0 %571
    %v574 = vmul.f32 %v572, %v131
    %v575 = vmul.f32 %v572, %v135
    %v576 = vmul.f32 %v572, %v139
    %v577 = vmul.f32 %v572, %v143
    %v578 = vmul.f32 %v572, %v147
    %v579 = vmul.f32 %v572, %v151
    %v580 = vmul.f32 %v572, %v155
    %v581 = vmul.f32 %v572, %v159
    %590 = vrot.lane.b32.xlu0 %v574, 93
    %v591 = vpop.permute.xlu0 %590
    %592 = vrot.lane.b32.xlu0 %v575, 93
    %v593 = vpop.permute.xlu0 %592
    %594 = vrot.lane.b32.xlu0 %v576, 93
    %v595 = vpop.permute.xlu0 %594
    %596 = vrot.lane.b32.xlu0 %v577, 93
    %v597 = vpop.permute.xlu0 %596
    %598 = vrot.lane.b32.xlu0 %v578, 93
    %v599 = vpop.permute.xlu0 %598
    %600 = vrot.lane.b32.xlu0 %v579, 93
    %v601 = vpop.permute.xlu0 %600
    %602 = vrot.lane.b32.xlu0 %v580, 93
    %v603 = vpop.permute.xlu0 %602
    %604 = vrot.lane.b32.xlu0 %v581, 93
    %v605 = vpop.permute.xlu0 %604
    %vm606 = vcmask 760832
    %v607 = vsel %vm606, %v591, %v593
    %v608 = vsel %vm606, %v593, %v595
    %v609 = vsel %vm606, %v595, %v597
    %v610 = vsel %vm606, %v597, %v599
    %v611 = vsel %vm606, %v599, %v601
    %v612 = vsel %vm606, %v601, %v603
    %v613 = vsel %vm606, %v603, %v605
    %v621 = vadd.f32 %v563, %v607
    %v622 = vadd.f32 %v564, %v608
    %v623 = vadd.f32 %v565, %v609
    %v624 = vadd.f32 %v566, %v610
    %v625 = vadd.f32 %v567, %v611
    %v626 = vadd.f32 %v568, %v612
    %v627 = vadd.f32 %v569, %v613
    %628 = vset.pattern.permute.xlu0 9
    %629 = vperm.xlu0 %628, %v56
    %v630 = vpop.permute.xlu0 %629
    %v632 = vmul.f32 %v630, %v131
    %v633 = vmul.f32 %v630, %v135
    %v634 = vmul.f32 %v630, %v139
    %v635 = vmul.f32 %v630, %v143
    %v636 = vmul.f32 %v630, %v147
    %v637 = vmul.f32 %v630, %v151
    %v638 = vmul.f32 %v630, %v155
    %v639 = vmul.f32 %v630, %v159
    %648 = vrot.lane.b32.xlu0 %v632, 92
    %v649 = vpop.permute.xlu0 %648
    %650 = vrot.lane.b32.xlu0 %v633, 92
    %v651 = vpop.permute.xlu0 %650
    %652 = vrot.lane.b32.xlu0 %v634, 92
    %v653 = vpop.permute.xlu0 %652
    %654 = vrot.lane.b32.xlu0 %v635, 92
    %v655 = vpop.permute.xlu0 %654
    %656 = vrot.lane.b32.xlu0 %v636, 92
    %v657 = vpop.permute.xlu0 %656
    %658 = vrot.lane.b32.xlu0 %v637, 92
    %v659 = vpop.permute.xlu0 %658
    %660 = vrot.lane.b32.xlu0 %v638, 92
    %v661 = vpop.permute.xlu0 %660
    %662 = vrot.lane.b32.xlu0 %v639, 92
    %v663 = vpop.permute.xlu0 %662
    %vm664 = vcmask 752640
    %v665 = vsel %vm664, %v649, %v651
    %v666 = vsel %vm664, %v651, %v653
    %v667 = vsel %vm664, %v653, %v655
    %v668 = vsel %vm664, %v655, %v657
    %v669 = vsel %vm664, %v657, %v659
    %v670 = vsel %vm664, %v659, %v661
    %v671 = vsel %vm664, %v661, %v663
    %v679 = vadd.f32 %v621, %v665
    %v680 = vadd.f32 %v622, %v666
    %v681 = vadd.f32 %v623, %v667
    %v682 = vadd.f32 %v624, %v668
    %v683 = vadd.f32 %v625, %v669
    %v684 = vadd.f32 %v626, %v670
    %v685 = vadd.f32 %v627, %v671
    %686 = vset.pattern.permute.xlu0 10
    %687 = vperm.xlu0 %686, %v56
    %v688 = vpop.permute.xlu0 %687
    %v690 = vmul.f32 %v688, %v131
    %v691 = vmul.f32 %v688, %v135
    %v692 = vmul.f32 %v688, %v139
    %v693 = vmul.f32 %v688, %v143
    %v694 = vmul.f32 %v688, %v147
    %v695 = vmul.f32 %v688, %v151
    %v696 = vmul.f32 %v688, %v155
    %v697 = vmul.f32 %v688, %v159
    %706 = vrot.lane.b32.xlu0 %v690, 64
    %v707 = vpop.permute.xlu0 %706
    %708 = vrot.lane.b32.xlu0 %v691, 64
    %v709 = vpop.permute.xlu0 %708
    %710 = vrot.lane.b32.xlu0 %v692, 64
    %v711 = vpop.permute.xlu0 %710
    %712 = vrot.lane.b32.xlu0 %v693, 64
    %v713 = vpop.permute.xlu0 %712
    %714 = vrot.lane.b32.xlu0 %v694, 64
    %v715 = vpop.permute.xlu0 %714
    %716 = vrot.lane.b32.xlu0 %v695, 64
    %v717 = vpop.permute.xlu0 %716
    %718 = vrot.lane.b32.xlu0 %v696, 64
    %v719 = vpop.permute.xlu0 %718
    %720 = vrot.lane.b32.xlu0 %v697, 64
    %v721 = vpop.permute.xlu0 %720
    %v722 = vsel %vm47, %v707, %v709
    %v723 = vsel %vm47, %v709, %v711
    %v724 = vsel %vm47, %v711, %v713
    %v725 = vsel %vm47, %v713, %v715
    %v726 = vsel %vm47, %v715, %v717
    %v727 = vsel %vm47, %v717, %v719
    %v728 = vsel %vm47, %v719, %v721
    %v736 = vadd.f32 %v679, %v722
    %v737 = vadd.f32 %v680, %v723
    %v738 = vadd.f32 %v681, %v724
    %v739 = vadd.f32 %v682, %v725
    %v740 = vadd.f32 %v683, %v726
    %v741 = vadd.f32 %v684, %v727
    %v742 = vadd.f32 %v685, %v728
    %743 = vset.pattern.permute.xlu0 11
    %744 = vperm.xlu0 %743, %v56
    %v745 = vpop.permute.xlu0 %744
    %v747 = vmul.f32 %v745, %v131
    %v748 = vmul.f32 %v745, %v135
    %v749 = vmul.f32 %v745, %v139
    %v750 = vmul.f32 %v745, %v143
    %v751 = vmul.f32 %v745, %v147
    %v752 = vmul.f32 %v745, %v151
    %v753 = vmul.f32 %v745, %v155
    %v754 = vmul.f32 %v745, %v159
    %763 = vrot.lane.b32.xlu0 %v747, 63
    %v764 = vpop.permute.xlu0 %763
    %765 = vrot.lane.b32.xlu0 %v748, 63
    %v766 = vpop.permute.xlu0 %765
    %767 = vrot.lane.b32.xlu0 %v749, 63
    %v768 = vpop.permute.xlu0 %767
    %769 = vrot.lane.b32.xlu0 %v750, 63
    %v770 = vpop.permute.xlu0 %769
    %771 = vrot.lane.b32.xlu0 %v751, 63
    %v772 = vpop.permute.xlu0 %771
    %773 = vrot.lane.b32.xlu0 %v752, 63
    %v774 = vpop.permute.xlu0 %773
    %775 = vrot.lane.b32.xlu0 %v753, 63
    %v776 = vpop.permute.xlu0 %775
    %777 = vrot.lane.b32.xlu0 %v754, 63
    %v778 = vpop.permute.xlu0 %777
    %vm779 = vcmask 515072
    %v780 = vsel %vm779, %v764, %v766
    %v781 = vsel %vm779, %v766, %v768
    %v782 = vsel %vm779, %v768, %v770
    %v783 = vsel %vm779, %v770, %v772
    %v784 = vsel %vm779, %v772, %v774
    %v785 = vsel %vm779, %v774, %v776
    %v786 = vsel %vm779, %v776, %v778
    %v794 = vadd.f32 %v736, %v780
    %v795 = vadd.f32 %v737, %v781
    %v796 = vadd.f32 %v738, %v782
    %v797 = vadd.f32 %v739, %v783
    %v798 = vadd.f32 %v740, %v784
    %v799 = vadd.f32 %v741, %v785
    %v800 = vadd.f32 %v742, %v786
    %801 = vset.pattern.permute.xlu0 12
    %802 = vperm.xlu0 %801, %v56
    %v803 = vpop.permute.xlu0 %802
    %v805 = vmul.f32 %v803, %v131
    %v806 = vmul.f32 %v803, %v135
    %v807 = vmul.f32 %v803, %v139
    %v808 = vmul.f32 %v803, %v143
    %v809 = vmul.f32 %v803, %v147
    %v810 = vmul.f32 %v803, %v151
    %v811 = vmul.f32 %v803, %v155
    %v812 = vmul.f32 %v803, %v159
    %821 = vrot.lane.b32.xlu0 %v805, 62
    %v822 = vpop.permute.xlu0 %821
    %823 = vrot.lane.b32.xlu0 %v806, 62
    %v824 = vpop.permute.xlu0 %823
    %825 = vrot.lane.b32.xlu0 %v807, 62
    %v826 = vpop.permute.xlu0 %825
    %827 = vrot.lane.b32.xlu0 %v808, 62
    %v828 = vpop.permute.xlu0 %827
    %829 = vrot.lane.b32.xlu0 %v809, 62
    %v830 = vpop.permute.xlu0 %829
    %831 = vrot.lane.b32.xlu0 %v810, 62
    %v832 = vpop.permute.xlu0 %831
    %833 = vrot.lane.b32.xlu0 %v811, 62
    %v834 = vpop.permute.xlu0 %833
    %835 = vrot.lane.b32.xlu0 %v812, 62
    %v836 = vpop.permute.xlu0 %835
    %vm837 = vcmask 506880
    %v838 = vsel %vm837, %v822, %v824
    %v839 = vsel %vm837, %v824, %v826
    %v840 = vsel %vm837, %v826, %v828
    %v841 = vsel %vm837, %v828, %v830
    %v842 = vsel %vm837, %v830, %v832
    %v843 = vsel %vm837, %v832, %v834
    %v844 = vsel %vm837, %v834, %v836
    %v852 = vadd.f32 %v794, %v838
    %v853 = vadd.f32 %v795, %v839
    %v854 = vadd.f32 %v796, %v840
    %v855 = vadd.f32 %v797, %v841
    %v856 = vadd.f32 %v798, %v842
    %v857 = vadd.f32 %v799, %v843
    %v858 = vadd.f32 %v800, %v844
    %859 = vset.pattern.permute.xlu0 13
    %860 = vperm.xlu0 %859, %v56
    %v861 = vpop.permute.xlu0 %860
    %v863 = vmul.f32 %v861, %v131
    %v864 = vmul.f32 %v861, %v135
    %v865 = vmul.f32 %v861, %v139
    %v866 = vmul.f32 %v861, %v143
    %v867 = vmul.f32 %v861, %v147
    %v868 = vmul.f32 %v861, %v151
    %v869 = vmul.f32 %v861, %v155
    %v870 = vmul.f32 %v861, %v159
    %879 = vrot.lane.b32.xlu0 %v863, 61
    %v880 = vpop.permute.xlu0 %879
    %881 = vrot.lane.b32.xlu0 %v864, 61
    %v882 = vpop.permute.xlu0 %881
    %883 = vrot.lane.b32.xlu0 %v865, 61
    %v884 = vpop.permute.xlu0 %883
    %885 = vrot.lane.b32.xlu0 %v866, 61
    %v886 = vpop.permute.xlu0 %885
    %887 = vrot.lane.b32.xlu0 %v867, 61
    %v888 = vpop.permute.xlu0 %887
    %889 = vrot.lane.b32.xlu0 %v868, 61
    %v890 = vpop.permute.xlu0 %889
    %891 = vrot.lane.b32.xlu0 %v869, 61
    %v892 = vpop.permute.xlu0 %891
    %893 = vrot.lane.b32.xlu0 %v870, 61
    %v894 = vpop.permute.xlu0 %893
    %vm895 = vcmask 498688
    %v896 = vsel %vm895, %v880, %v882
    %v897 = vsel %vm895, %v882, %v884
    %v898 = vsel %vm895, %v884, %v886
    %v899 = vsel %vm895, %v886, %v888
    %v900 = vsel %vm895, %v888, %v890
    %v901 = vsel %vm895, %v890, %v892
    %v902 = vsel %vm895, %v892, %v894
    %v910 = vadd.f32 %v852, %v896
    %v911 = vadd.f32 %v853, %v897
    %v912 = vadd.f32 %v854, %v898
    %v913 = vadd.f32 %v855, %v899
    %v914 = vadd.f32 %v856, %v900
    %v915 = vadd.f32 %v857, %v901
    %v916 = vadd.f32 %v858, %v902
    %917 = vset.pattern.permute.xlu0 14
    %918 = vperm.xlu0 %917, %v56
    %v919 = vpop.permute.xlu0 %918
    %v921 = vmul.f32 %v919, %v131
    %v922 = vmul.f32 %v919, %v135
    %v923 = vmul.f32 %v919, %v139
    %v924 = vmul.f32 %v919, %v143
    %v925 = vmul.f32 %v919, %v147
    %v926 = vmul.f32 %v919, %v151
    %v927 = vmul.f32 %v919, %v155
    %v928 = vmul.f32 %v919, %v159
    %937 = vrot.lane.b32.xlu0 %v921, 60
    %v938 = vpop.permute.xlu0 %937
    %939 = vrot.lane.b32.xlu0 %v922, 60
    %v940 = vpop.permute.xlu0 %939
    %941 = vrot.lane.b32.xlu0 %v923, 60
    %v942 = vpop.permute.xlu0 %941
    %943 = vrot.lane.b32.xlu0 %v924, 60
    %v944 = vpop.permute.xlu0 %943
    %945 = vrot.lane.b32.xlu0 %v925, 60
    %v946 = vpop.permute.xlu0 %945
    %947 = vrot.lane.b32.xlu0 %v926, 60
    %v948 = vpop.permute.xlu0 %947
    %949 = vrot.lane.b32.xlu0 %v927, 60
    %v950 = vpop.permute.xlu0 %949
    %951 = vrot.lane.b32.xlu0 %v928, 60
    %v952 = vpop.permute.xlu0 %951
    %vm953 = vcmask 490496
    %v954 = vsel %vm953, %v938, %v940
    %v955 = vsel %vm953, %v940, %v942
    %v956 = vsel %vm953, %v942, %v944
    %v957 = vsel %vm953, %v944, %v946
    %v958 = vsel %vm953, %v946, %v948
    %v959 = vsel %vm953, %v948, %v950
    %v960 = vsel %vm953, %v950, %v952
    %v968 = vadd.f32 %v910, %v954
    %v969 = vadd.f32 %v911, %v955
    %v970 = vadd.f32 %v912, %v956
    %v971 = vadd.f32 %v913, %v957
    %v972 = vadd.f32 %v914, %v958
    %v973 = vadd.f32 %v915, %v959
    %v974 = vadd.f32 %v916, %v960
    %975 = vset.pattern.permute.xlu0 15
    %976 = vperm.xlu0 %975, %v56
    %v977 = vpop.permute.xlu0 %976
    %v979 = vmul.f32 %v977, %v131
    %v980 = vmul.f32 %v977, %v135
    %v981 = vmul.f32 %v977, %v139
    %v982 = vmul.f32 %v977, %v143
    %v983 = vmul.f32 %v977, %v147
    %v984 = vmul.f32 %v977, %v151
    %v985 = vmul.f32 %v977, %v155
    %v986 = vmul.f32 %v977, %v159
    %995 = vrot.lane.b32.xlu0 %v979, 32
    %v996 = vpop.permute.xlu0 %995
    %997 = vrot.lane.b32.xlu0 %v980, 32
    %v998 = vpop.permute.xlu0 %997
    %999 = vrot.lane.b32.xlu0 %v981, 32
    %v1000 = vpop.permute.xlu0 %999
    %1001 = vrot.lane.b32.xlu0 %v982, 32
    %v1002 = vpop.permute.xlu0 %1001
    %1003 = vrot.lane.b32.xlu0 %v983, 32
    %v1004 = vpop.permute.xlu0 %1003
    %1005 = vrot.lane.b32.xlu0 %v984, 32
    %v1006 = vpop.permute.xlu0 %1005
    %1007 = vrot.lane.b32.xlu0 %v985, 32
    %v1008 = vpop.permute.xlu0 %1007
    %1009 = vrot.lane.b32.xlu0 %v986, 32
    %v1010 = vpop.permute.xlu0 %1009
    %vm1011 = vcmask 261120
    %v1012 = vsel %vm1011, %v996, %v998
    %v1013 = vsel %vm1011, %v998, %v1000
    %v1014 = vsel %vm1011, %v1000, %v1002
    %v1015 = vsel %vm1011, %v1002, %v1004
    %v1016 = vsel %vm1011, %v1004, %v1006
    %v1017 = vsel %vm1011, %v1006, %v1008
    %v1018 = vsel %vm1011, %v1008, %v1010
    %v1026 = vadd.f32 %v968, %v1012
    %v1027 = vadd.f32 %v969, %v1013
    %v1028 = vadd.f32 %v970, %v1014
    %v1029 = vadd.f32 %v971, %v1015
    %v1030 = vadd.f32 %v972, %v1016
    %v1031 = vadd.f32 %v973, %v1017
    %v1032 = vadd.f32 %v974, %v1018
    %1033 = vset.pattern.permute.xlu0 16
    %1034 = vperm.xlu0 %1033, %v56
    %v1035 = vpop.permute.xlu0 %1034
    %v1037 = vmul.f32 %v1035, %v131
    %v1038 = vmul.f32 %v1035, %v135
    %v1039 = vmul.f32 %v1035, %v139
    %v1040 = vmul.f32 %v1035, %v143
    %v1041 = vmul.f32 %v1035, %v147
    %v1042 = vmul.f32 %v1035, %v151
    %v1043 = vmul.f32 %v1035, %v155
    %v1044 = vmul.f32 %v1035, %v159
    %1053 = vrot.lane.b32.xlu0 %v1037, 31
    %v1054 = vpop.permute.xlu0 %1053
    %1055 = vrot.lane.b32.xlu0 %v1038, 31
    %v1056 = vpop.permute.xlu0 %1055
    %1057 = vrot.lane.b32.xlu0 %v1039, 31
    %v1058 = vpop.permute.xlu0 %1057
    %1059 = vrot.lane.b32.xlu0 %v1040, 31
    %v1060 = vpop.permute.xlu0 %1059
    %1061 = vrot.lane.b32.xlu0 %v1041, 31
    %v1062 = vpop.permute.xlu0 %1061
    %1063 = vrot.lane.b32.xlu0 %v1042, 31
    %v1064 = vpop.permute.xlu0 %1063
    %1065 = vrot.lane.b32.xlu0 %v1043, 31
    %v1066 = vpop.permute.xlu0 %1065
    %1067 = vrot.lane.b32.xlu0 %v1044, 31
    %v1068 = vpop.permute.xlu0 %1067
    %vm1069 = vcmask 252928
    %v1070 = vsel %vm1069, %v1054, %v1056
    %v1071 = vsel %vm1069, %v1056, %v1058
    %v1072 = vsel %vm1069, %v1058, %v1060
    %v1073 = vsel %vm1069, %v1060, %v1062
    %v1074 = vsel %vm1069, %v1062, %v1064
    %v1075 = vsel %vm1069, %v1064, %v1066
    %v1076 = vsel %vm1069, %v1066, %v1068
    %v1084 = vadd.f32 %v1026, %v1070
    %v1085 = vadd.f32 %v1027, %v1071
    %v1086 = vadd.f32 %v1028, %v1072
    %v1087 = vadd.f32 %v1029, %v1073
    %v1088 = vadd.f32 %v1030, %v1074
    %v1089 = vadd.f32 %v1031, %v1075
    %v1090 = vadd.f32 %v1032, %v1076
    %1091 = vset.pattern.permute.xlu0 17
    %1092 = vperm.xlu0 %1091, %v56
    %v1093 = vpop.permute.xlu0 %1092
    %v1095 = vmul.f32 %v1093, %v131
    %v1096 = vmul.f32 %v1093, %v135
    %v1097 = vmul.f32 %v1093, %v139
    %v1098 = vmul.f32 %v1093, %v143
    %v1099 = vmul.f32 %v1093, %v147
    %v1100 = vmul.f32 %v1093, %v151
    %v1101 = vmul.f32 %v1093, %v155
    %v1102 = vmul.f32 %v1093, %v159
    %1111 = vrot.lane.b32.xlu0 %v1095, 30
    %v1112 = vpop.permute.xlu0 %1111
    %1113 = vrot.lane.b32.xlu0 %v1096, 30
    %v1114 = vpop.permute.xlu0 %1113
    %1115 = vrot.lane.b32.xlu0 %v1097, 30
    %v1116 = vpop.permute.xlu0 %1115
    %1117 = vrot.lane.b32.xlu0 %v1098, 30
    %v1118 = vpop.permute.xlu0 %1117
    %1119 = vrot.lane.b32.xlu0 %v1099, 30
    %v1120 = vpop.permute.xlu0 %1119
    %1121 = vrot.lane.b32.xlu0 %v1100, 30
    %v1122 = vpop.permute.xlu0 %1121
    %1123 = vrot.lane.b32.xlu0 %v1101, 30
    %v1124 = vpop.permute.xlu0 %1123
    %1125 = vrot.lane.b32.xlu0 %v1102, 30
    %v1126 = vpop.permute.xlu0 %1125
    %vm1127 = vcmask 244736
    %v1128 = vsel %vm1127, %v1112, %v1114
    %v1129 = vsel %vm1127, %v1114, %v1116
    %v1130 = vsel %vm1127, %v1116, %v1118
    %v1131 = vsel %vm1127, %v1118, %v1120
    %v1132 = vsel %vm1127, %v1120, %v1122
    %v1133 = vsel %vm1127, %v1122, %v1124
    %v1134 = vsel %vm1127, %v1124, %v1126
    %v1142 = vadd.f32 %v1084, %v1128
    %v1143 = vadd.f32 %v1085, %v1129
    %v1144 = vadd.f32 %v1086, %v1130
    %v1145 = vadd.f32 %v1087, %v1131
    %v1146 = vadd.f32 %v1088, %v1132
    %v1147 = vadd.f32 %v1089, %v1133
    %v1148 = vadd.f32 %v1090, %v1134
    %1149 = vset.pattern.permute.xlu0 18
    %1150 = vperm.xlu0 %1149, %v56
    %v1151 = vpop.permute.xlu0 %1150
    %v1153 = vmul.f32 %v1151, %v131
    %v1154 = vmul.f32 %v1151, %v135
    %v1155 = vmul.f32 %v1151, %v139
    %v1156 = vmul.f32 %v1151, %v143
    %v1157 = vmul.f32 %v1151, %v147
    %v1158 = vmul.f32 %v1151, %v151
    %v1159 = vmul.f32 %v1151, %v155
    %v1160 = vmul.f32 %v1151, %v159
    %1169 = vrot.lane.b32.xlu0 %v1153, 29
    %v1170 = vpop.permute.xlu0 %1169
    %1171 = vrot.lane.b32.xlu0 %v1154, 29
    %v1172 = vpop.permute.xlu0 %1171
    %1173 = vrot.lane.b32.xlu0 %v1155, 29
    %v1174 = vpop.permute.xlu0 %1173
    %1175 = vrot.lane.b32.xlu0 %v1156, 29
    %v1176 = vpop.permute.xlu0 %1175
    %1177 = vrot.lane.b32.xlu0 %v1157, 29
    %v1178 = vpop.permute.xlu0 %1177
    %1179 = vrot.lane.b32.xlu0 %v1158, 29
    %v1180 = vpop.permute.xlu0 %1179
    %1181 = vrot.lane.b32.xlu0 %v1159, 29
    %v1182 = vpop.permute.xlu0 %1181
    %1183 = vrot.lane.b32.xlu0 %v1160, 29
    %v1184 = vpop.permute.xlu0 %1183
    %vm1185 = vcmask 236544
    %v1186 = vsel %vm1185, %v1170, %v1172
    %v1187 = vsel %vm1185, %v1172, %v1174
    %v1188 = vsel %vm1185, %v1174, %v1176
    %v1189 = vsel %vm1185, %v1176, %v1178
    %v1190 = vsel %vm1185, %v1178, %v1180
    %v1191 = vsel %vm1185, %v1180, %v1182
    %v1192 = vsel %vm1185, %v1182, %v1184
    %v1200 = vadd.f32 %v1142, %v1186
    %v1201 = vadd.f32 %v1143, %v1187
    %v1202 = vadd.f32 %v1144, %v1188
    %v1203 = vadd.f32 %v1145, %v1189
    %v1204 = vadd.f32 %v1146, %v1190
    %v1205 = vadd.f32 %v1147, %v1191
    %v1206 = vadd.f32 %v1148, %v1192
    %1207 = vset.pattern.permute.xlu0 19
    %1208 = vperm.xlu0 %1207, %v56
    %v1209 = vpop.permute.xlu0 %1208
    %v1211 = vmul.f32 %v1209, %v131
    %v1212 = vmul.f32 %v1209, %v135
    %v1213 = vmul.f32 %v1209, %v139
    %v1214 = vmul.f32 %v1209, %v143
    %v1215 = vmul.f32 %v1209, %v147
    %v1216 = vmul.f32 %v1209, %v151
    %v1217 = vmul.f32 %v1209, %v155
    %v1218 = vmul.f32 %v1209, %v159
    %1227 = vrot.lane.b32.xlu0 %v1211, 28
    %v1228 = vpop.permute.xlu0 %1227
    %1229 = vrot.lane.b32.xlu0 %v1212, 28
    %v1230 = vpop.permute.xlu0 %1229
    %1231 = vrot.lane.b32.xlu0 %v1213, 28
    %v1232 = vpop.permute.xlu0 %1231
    %1233 = vrot.lane.b32.xlu0 %v1214, 28
    %v1234 = vpop.permute.xlu0 %1233
    %1235 = vrot.lane.b32.xlu0 %v1215, 28
    %v1236 = vpop.permute.xlu0 %1235
    %1237 = vrot.lane.b32.xlu0 %v1216, 28
    %v1238 = vpop.permute.xlu0 %1237
    %1239 = vrot.lane.b32.xlu0 %v1217, 28
    %v1240 = vpop.permute.xlu0 %1239
    %1241 = vrot.lane.b32.xlu0 %v1218, 28
    %v1242 = vpop.permute.xlu0 %1241
    %vm1243 = vcmask 228352
    %v1244 = vsel %vm1243, %v1228, %v1230
    %v1245 = vsel %vm1243, %v1230, %v1232
    %v1246 = vsel %vm1243, %v1232, %v1234
    %v1247 = vsel %vm1243, %v1234, %v1236
    %v1248 = vsel %vm1243, %v1236, %v1238
    %v1249 = vsel %vm1243, %v1238, %v1240
    %v1250 = vsel %vm1243, %v1240, %v1242
    %v1258 = vadd.f32 %v1200, %v1244
    %v1259 = vadd.f32 %v1201, %v1245
    %v1260 = vadd.f32 %v1202, %v1246
    %v1261 = vadd.f32 %v1203, %v1247
    %v1262 = vadd.f32 %v1204, %v1248
    %v1263 = vadd.f32 %v1205, %v1249
    %v1264 = vadd.f32 %v1206, %v1250
    %s1265 = scalar_lea.vmem %s0, 8
    %v1266 = vld [vmem:[%s1265] ss:$8 sm:$0xf]
    %v1267 = vld [vmem:[%s1265] ss:$8 sm:$0xf0]
    %v1268 = vor.u32 %v1266, %v1267
    %1269 = vset.pattern.permute.xlu0 20
    %1270 = vperm.xlu0 %1269, %v56
    %v1271 = vpop.permute.xlu0 %1270
    %v1274 = vlaneseq
    %v1275 = vshrl.u32 %v1274, 7
    %v1276 = vsub.s32 0, %v1275
    %v1277 = vrot.slane %v1268, %v1276
    %v1278 = vlaneseq
    %v1279 = vshrl.u32 %v1278, 7
    %v1280 = vsub.s32 1, %v1279
    %v1281 = vrot.slane %v1268, %v1280
    %v1282 = vlaneseq
    %v1283 = vshrl.u32 %v1282, 7
    %v1284 = vsub.s32 2, %v1283
    %v1285 = vrot.slane %v1268, %v1284
    %v1286 = vlaneseq
    %v1287 = vshrl.u32 %v1286, 7
    %v1288 = vsub.s32 3, %v1287
    %v1289 = vrot.slane %v1268, %v1288
    %v1290 = vlaneseq
    %v1291 = vshrl.u32 %v1290, 7
    %v1292 = vsub.s32 4, %v1291
    %v1293 = vrot.slane %v1268, %v1292
    %v1294 = vlaneseq
    %v1295 = vshrl.u32 %v1294, 7
    %v1296 = vsub.s32 5, %v1295
    %v1297 = vrot.slane %v1268, %v1296
    %v1298 = vlaneseq
    %v1299 = vshrl.u32 %v1298, 7
    %v1300 = vsub.s32 6, %v1299
    %v1301 = vrot.slane %v1268, %v1300
    %v1309 = vmul.f32 %v1271, %v1277
    %v1310 = vmul.f32 %v1271, %v1281
    %v1311 = vmul.f32 %v1271, %v1285
    %v1312 = vmul.f32 %v1271, %v1289
    %v1313 = vmul.f32 %v1271, %v1293
    %v1314 = vmul.f32 %v1271, %v1297
    %v1315 = vmul.f32 %v1271, %v1301
    %v1316 = vadd.f32 %v1258, %v1309
    %v1317 = vadd.f32 %v1259, %v1310
    %v1318 = vadd.f32 %v1260, %v1311
    %v1319 = vadd.f32 %v1261, %v1312
    %v1320 = vadd.f32 %v1262, %v1313
    %v1321 = vadd.f32 %v1263, %v1314
    %v1322 = vadd.f32 %v1264, %v1315
    %v1323 = vld [vmem:[%s1265] ss:$8 sm:$0xf]
    %v1324 = vld [vmem:[%s1265] ss:$8 sm:$0xf0]
    %v1325 = vor.u32 %v1323, %v1324
    %1326 = vset.pattern.permute.xlu0 21
    %1327 = vperm.xlu0 %1326, %v56
    %v1328 = vpop.permute.xlu0 %1327
    %v1331 = vlaneseq
    %v1332 = vshrl.u32 %v1331, 7
    %v1333 = vsub.s32 0, %v1332
    %v1334 = vrot.slane %v1325, %v1333
    %v1335 = vlaneseq
    %v1336 = vshrl.u32 %v1335, 7
    %v1337 = vsub.s32 1, %v1336
    %v1338 = vrot.slane %v1325, %v1337
    %v1339 = vlaneseq
    %v1340 = vshrl.u32 %v1339, 7
    %v1341 = vsub.s32 2, %v1340
    %v1342 = vrot.slane %v1325, %v1341
    %v1343 = vlaneseq
    %v1344 = vshrl.u32 %v1343, 7
    %v1345 = vsub.s32 3, %v1344
    %v1346 = vrot.slane %v1325, %v1345
    %v1347 = vlaneseq
    %v1348 = vshrl.u32 %v1347, 7
    %v1349 = vsub.s32 4, %v1348
    %v1350 = vrot.slane %v1325, %v1349
    %v1351 = vlaneseq
    %v1352 = vshrl.u32 %v1351, 7
    %v1353 = vsub.s32 5, %v1352
    %v1354 = vrot.slane %v1325, %v1353
    %v1355 = vlaneseq
    %v1356 = vshrl.u32 %v1355, 7
    %v1357 = vsub.s32 6, %v1356
    %v1358 = vrot.slane %v1325, %v1357
    %v1359 = vlaneseq
    %v1360 = vshrl.u32 %v1359, 7
    %v1361 = vsub.s32 7, %v1360
    %v1362 = vrot.slane %v1325, %v1361
    %v1371 = vmul.f32 %v1328, %v1334
    %v1372 = vmul.f32 %v1328, %v1338
    %v1373 = vmul.f32 %v1328, %v1342
    %v1374 = vmul.f32 %v1328, %v1346
    %v1375 = vmul.f32 %v1328, %v1350
    %v1376 = vmul.f32 %v1328, %v1354
    %v1377 = vmul.f32 %v1328, %v1358
    %v1378 = vmul.f32 %v1328, %v1362
    %1387 = vrot.lane.b32.xlu0 %v1371, 127
    %v1388 = vpop.permute.xlu0 %1387
    %1389 = vrot.lane.b32.xlu0 %v1372, 127
    %v1390 = vpop.permute.xlu0 %1389
    %1391 = vrot.lane.b32.xlu0 %v1373, 127
    %v1392 = vpop.permute.xlu0 %1391
    %1393 = vrot.lane.b32.xlu0 %v1374, 127
    %v1394 = vpop.permute.xlu0 %1393
    %1395 = vrot.lane.b32.xlu0 %v1375, 127
    %v1396 = vpop.permute.xlu0 %1395
    %1397 = vrot.lane.b32.xlu0 %v1376, 127
    %v1398 = vpop.permute.xlu0 %1397
    %1399 = vrot.lane.b32.xlu0 %v1377, 127
    %v1400 = vpop.permute.xlu0 %1399
    %1401 = vrot.lane.b32.xlu0 %v1378, 127
    %v1402 = vpop.permute.xlu0 %1401
    %v1403 = vsel %vm200, %v1388, %v1390
    %v1404 = vsel %vm200, %v1390, %v1392
    %v1405 = vsel %vm200, %v1392, %v1394
    %v1406 = vsel %vm200, %v1394, %v1396
    %v1407 = vsel %vm200, %v1396, %v1398
    %v1408 = vsel %vm200, %v1398, %v1400
    %v1409 = vsel %vm200, %v1400, %v1402
    %v1417 = vadd.f32 %v1316, %v1403
    %v1418 = vadd.f32 %v1317, %v1404
    %v1419 = vadd.f32 %v1318, %v1405
    %v1420 = vadd.f32 %v1319, %v1406
    %v1421 = vadd.f32 %v1320, %v1407
    %v1422 = vadd.f32 %v1321, %v1408
    %v1423 = vadd.f32 %v1322, %v1409
    %1424 = vset.pattern.permute.xlu0 22
    %1425 = vperm.xlu0 %1424, %v56
    %v1426 = vpop.permute.xlu0 %1425
    %v1428 = vmul.f32 %v1426, %v1334
    %v1429 = vmul.f32 %v1426, %v1338
    %v1430 = vmul.f32 %v1426, %v1342
    %v1431 = vmul.f32 %v1426, %v1346
    %v1432 = vmul.f32 %v1426, %v1350
    %v1433 = vmul.f32 %v1426, %v1354
    %v1434 = vmul.f32 %v1426, %v1358
    %v1435 = vmul.f32 %v1426, %v1362
    %1444 = vrot.lane.b32.xlu0 %v1428, 126
    %v1445 = vpop.permute.xlu0 %1444
    %1446 = vrot.lane.b32.xlu0 %v1429, 126
    %v1447 = vpop.permute.xlu0 %1446
    %1448 = vrot.lane.b32.xlu0 %v1430, 126
    %v1449 = vpop.permute.xlu0 %1448
    %1450 = vrot.lane.b32.xlu0 %v1431, 126
    %v1451 = vpop.permute.xlu0 %1450
    %1452 = vrot.lane.b32.xlu0 %v1432, 126
    %v1453 = vpop.permute.xlu0 %1452
    %1454 = vrot.lane.b32.xlu0 %v1433, 126
    %v1455 = vpop.permute.xlu0 %1454
    %1456 = vrot.lane.b32.xlu0 %v1434, 126
    %v1457 = vpop.permute.xlu0 %1456
    %1458 = vrot.lane.b32.xlu0 %v1435, 126
    %v1459 = vpop.permute.xlu0 %1458
    %v1460 = vsel %vm258, %v1445, %v1447
    %v1461 = vsel %vm258, %v1447, %v1449
    %v1462 = vsel %vm258, %v1449, %v1451
    %v1463 = vsel %vm258, %v1451, %v1453
    %v1464 = vsel %vm258, %v1453, %v1455
    %v1465 = vsel %vm258, %v1455, %v1457
    %v1466 = vsel %vm258, %v1457, %v1459
    %v1474 = vadd.f32 %v1417, %v1460
    %v1475 = vadd.f32 %v1418, %v1461
    %v1476 = vadd.f32 %v1419, %v1462
    %v1477 = vadd.f32 %v1420, %v1463
    %v1478 = vadd.f32 %v1421, %v1464
    %v1479 = vadd.f32 %v1422, %v1465
    %v1480 = vadd.f32 %v1423, %v1466
    %1481 = vset.pattern.permute.xlu0 23
    %1482 = vperm.xlu0 %1481, %v56
    %v1483 = vpop.permute.xlu0 %1482
    %v1485 = vmul.f32 %v1483, %v1334
    %v1486 = vmul.f32 %v1483, %v1338
    %v1487 = vmul.f32 %v1483, %v1342
    %v1488 = vmul.f32 %v1483, %v1346
    %v1489 = vmul.f32 %v1483, %v1350
    %v1490 = vmul.f32 %v1483, %v1354
    %v1491 = vmul.f32 %v1483, %v1358
    %v1492 = vmul.f32 %v1483, %v1362
    %1501 = vrot.lane.b32.xlu0 %v1485, 125
    %v1502 = vpop.permute.xlu0 %1501
    %1503 = vrot.lane.b32.xlu0 %v1486, 125
    %v1504 = vpop.permute.xlu0 %1503
    %1505 = vrot.lane.b32.xlu0 %v1487, 125
    %v1506 = vpop.permute.xlu0 %1505
    %1507 = vrot.lane.b32.xlu0 %v1488, 125
    %v1508 = vpop.permute.xlu0 %1507
    %1509 = vrot.lane.b32.xlu0 %v1489, 125
    %v1510 = vpop.permute.xlu0 %1509
    %1511 = vrot.lane.b32.xlu0 %v1490, 125
    %v1512 = vpop.permute.xlu0 %1511
    %1513 = vrot.lane.b32.xlu0 %v1491, 125
    %v1514 = vpop.permute.xlu0 %1513
    %1515 = vrot.lane.b32.xlu0 %v1492, 125
    %v1516 = vpop.permute.xlu0 %1515
    %v1517 = vsel %vm316, %v1502, %v1504
    %v1518 = vsel %vm316, %v1504, %v1506
    %v1519 = vsel %vm316, %v1506, %v1508
    %v1520 = vsel %vm316, %v1508, %v1510
    %v1521 = vsel %vm316, %v1510, %v1512
    %v1522 = vsel %vm316, %v1512, %v1514
    %v1523 = vsel %vm316, %v1514, %v1516
    %v1531 = vadd.f32 %v1474, %v1517
    %v1532 = vadd.f32 %v1475, %v1518
    %v1533 = vadd.f32 %v1476, %v1519
    %v1534 = vadd.f32 %v1477, %v1520
    %v1535 = vadd.f32 %v1478, %v1521
    %v1536 = vadd.f32 %v1479, %v1522
    %v1537 = vadd.f32 %v1480, %v1523
    %1538 = vset.pattern.permute.xlu0 24
    %1539 = vperm.xlu0 %1538, %v56
    %v1540 = vpop.permute.xlu0 %1539
    %v1542 = vmul.f32 %v1540, %v1334
    %v1543 = vmul.f32 %v1540, %v1338
    %v1544 = vmul.f32 %v1540, %v1342
    %v1545 = vmul.f32 %v1540, %v1346
    %v1546 = vmul.f32 %v1540, %v1350
    %v1547 = vmul.f32 %v1540, %v1354
    %v1548 = vmul.f32 %v1540, %v1358
    %v1549 = vmul.f32 %v1540, %v1362
    %1558 = vrot.lane.b32.xlu0 %v1542, 124
    %v1559 = vpop.permute.xlu0 %1558
    %1560 = vrot.lane.b32.xlu0 %v1543, 124
    %v1561 = vpop.permute.xlu0 %1560
    %1562 = vrot.lane.b32.xlu0 %v1544, 124
    %v1563 = vpop.permute.xlu0 %1562
    %1564 = vrot.lane.b32.xlu0 %v1545, 124
    %v1565 = vpop.permute.xlu0 %1564
    %1566 = vrot.lane.b32.xlu0 %v1546, 124
    %v1567 = vpop.permute.xlu0 %1566
    %1568 = vrot.lane.b32.xlu0 %v1547, 124
    %v1569 = vpop.permute.xlu0 %1568
    %1570 = vrot.lane.b32.xlu0 %v1548, 124
    %v1571 = vpop.permute.xlu0 %1570
    %1572 = vrot.lane.b32.xlu0 %v1549, 124
    %v1573 = vpop.permute.xlu0 %1572
    %v1574 = vsel %vm374, %v1559, %v1561
    %v1575 = vsel %vm374, %v1561, %v1563
    %v1576 = vsel %vm374, %v1563, %v1565
    %v1577 = vsel %vm374, %v1565, %v1567
    %v1578 = vsel %vm374, %v1567, %v1569
    %v1579 = vsel %vm374, %v1569, %v1571
    %v1580 = vsel %vm374, %v1571, %v1573
    %v1588 = vadd.f32 %v1531, %v1574
    %v1589 = vadd.f32 %v1532, %v1575
    %v1590 = vadd.f32 %v1533, %v1576
    %v1591 = vadd.f32 %v1534, %v1577
    %v1592 = vadd.f32 %v1535, %v1578
    %v1593 = vadd.f32 %v1536, %v1579
    %v1594 = vadd.f32 %v1537, %v1580
    %1595 = vst [vmem:[#allocation2] sm:$0xff] %v1588
    %1596 = vst [vmem:[#allocation2 + $0x8] sm:$0xff] %v1589
    %1597 = vst [vmem:[#allocation2 + $0x10] sm:$0xff] %v1590
    %1598 = vst [vmem:[#allocation2 + $0x18] sm:$0xff] %v1591
    %1599 = vst [vmem:[#allocation2 + $0x20] sm:$0xff] %v1592
    %1600 = vst [vmem:[#allocation2 + $0x28] sm:$0xff] %v1593
    %1601 = vst [vmem:[#allocation2 + $0x30] sm:$0xff] %v1594
    %v1602 = vld [vmem:[%s2] sm:$0xff]
    %v1603 = vld [vmem:[%s1] sm:$0xff]
    %s1604 = scalar_lea.vmem %s0, 1
    %v1605 = vld [vmem:[%s1604] ss:$8 sm:$0xf]
    %v1606 = vld [vmem:[%s1604] ss:$8 sm:$0xf0]
    %v1607 = vor.u32 %v1605, %v1606
    %1609 = vset.pattern.permute.xlu0 0
    %1610 = vperm.xlu0 %1609, %v1603
    %v1611 = vpop.permute.xlu0 %1610
    %v1614 = vlaneseq
    %v1615 = vshrl.u32 %v1614, 7
    %v1616 = vsub.s32 0, %v1615
    %v1617 = vrot.slane %v1607, %v1616
    %v1618 = vlaneseq
    %v1619 = vshrl.u32 %v1618, 7
    %v1620 = vsub.s32 1, %v1619
    %v1621 = vrot.slane %v1607, %v1620
    %v1622 = vlaneseq
    %v1623 = vshrl.u32 %v1622, 7
    %v1624 = vsub.s32 2, %v1623
    %v1625 = vrot.slane %v1607, %v1624
    %v1626 = vlaneseq
    %v1627 = vshrl.u32 %v1626, 7
    %v1628 = vsub.s32 3, %v1627
    %v1629 = vrot.slane %v1607, %v1628
    %v1630 = vlaneseq
    %v1631 = vshrl.u32 %v1630, 7
    %v1632 = vsub.s32 4, %v1631
    %v1633 = vrot.slane %v1607, %v1632
    %v1634 = vlaneseq
    %v1635 = vshrl.u32 %v1634, 7
    %v1636 = vsub.s32 5, %v1635
    %v1637 = vrot.slane %v1607, %v1636
    %v1638 = vlaneseq
    %v1639 = vshrl.u32 %v1638, 7
    %v1640 = vsub.s32 6, %v1639
    %v1641 = vrot.slane %v1607, %v1640
    %v1649 = vmul.f32 %v1611, %v1617
    %v1650 = vmul.f32 %v1611, %v1621
    %v1651 = vmul.f32 %v1611, %v1625
    %v1652 = vmul.f32 %v1611, %v1629
    %v1653 = vmul.f32 %v1611, %v1633
    %v1654 = vmul.f32 %v1611, %v1637
    %v1655 = vmul.f32 %v1611, %v1641
    %1657 = vset.pattern.permute.xlu0 0
    %1658 = vperm.xlu0 %1657, %v1602
    %v1659 = vpop.permute.xlu0 %1658
    %v1661 = vadd.f32 %v1659, %v1649
    %v1662 = vadd.f32 %v1659, %v1650
    %v1663 = vadd.f32 %v1659, %v1651
    %v1664 = vadd.f32 %v1659, %v1652
    %v1665 = vadd.f32 %v1659, %v1653
    %v1666 = vadd.f32 %v1659, %v1654
    %v1667 = vadd.f32 %v1659, %v1655
    %v1668 = vld [vmem:[%s1604] ss:$8 sm:$0xf]
    %v1669 = vld [vmem:[%s1604] ss:$8 sm:$0xf0]
    %v1670 = vor.u32 %v1668, %v1669
    %1671 = vset.pattern.permute.xlu0 1
    %1672 = vperm.xlu0 %1671, %v1603
    %v1673 = vpop.permute.xlu0 %1672
    %v1676 = vlaneseq
    %v1677 = vshrl.u32 %v1676, 7
    %v1678 = vsub.s32 0, %v1677
    %v1679 = vrot.slane %v1670, %v1678
    %v1680 = vlaneseq
    %v1681 = vshrl.u32 %v1680, 7
    %v1682 = vsub.s32 1, %v1681
    %v1683 = vrot.slane %v1670, %v1682
    %v1684 = vlaneseq
    %v1685 = vshrl.u32 %v1684, 7
    %v1686 = vsub.s32 2, %v1685
    %v1687 = vrot.slane %v1670, %v1686
    %v1688 = vlaneseq
    %v1689 = vshrl.u32 %v1688, 7
    %v1690 = vsub.s32 3, %v1689
    %v1691 = vrot.slane %v1670, %v1690
    %v1692 = vlaneseq
    %v1693 = vshrl.u32 %v1692, 7
    %v1694 = vsub.s32 4, %v1693
    %v1695 = vrot.slane %v1670, %v1694
    %v1696 = vlaneseq
    %v1697 = vshrl.u32 %v1696, 7
    %v1698 = vsub.s32 5, %v1697
    %v1699 = vrot.slane %v1670, %v1698
    %v1700 = vlaneseq
    %v1701 = vshrl.u32 %v1700, 7
    %v1702 = vsub.s32 6, %v1701
    %v1703 = vrot.slane %v1670, %v1702
    %v1704 = vlaneseq
    %v1705 = vshrl.u32 %v1704, 7
    %v1706 = vsub.s32 7, %v1705
    %v1707 = vrot.slane %v1670, %v1706
    %v1716 = vmul.f32 %v1673, %v1679
    %v1717 = vmul.f32 %v1673, %v1683
    %v1718 = vmul.f32 %v1673, %v1687
    %v1719 = vmul.f32 %v1673, %v1691
    %v1720 = vmul.f32 %v1673, %v1695
    %v1721 = vmul.f32 %v1673, %v1699
    %v1722 = vmul.f32 %v1673, %v1703
    %v1723 = vmul.f32 %v1673, %v1707
    %1732 = vrot.lane.b32.xlu0 %v1716, 127
    %v1733 = vpop.permute.xlu0 %1732
    %1734 = vrot.lane.b32.xlu0 %v1717, 127
    %v1735 = vpop.permute.xlu0 %1734
    %1736 = vrot.lane.b32.xlu0 %v1718, 127
    %v1737 = vpop.permute.xlu0 %1736
    %1738 = vrot.lane.b32.xlu0 %v1719, 127
    %v1739 = vpop.permute.xlu0 %1738
    %1740 = vrot.lane.b32.xlu0 %v1720, 127
    %v1741 = vpop.permute.xlu0 %1740
    %1742 = vrot.lane.b32.xlu0 %v1721, 127
    %v1743 = vpop.permute.xlu0 %1742
    %1744 = vrot.lane.b32.xlu0 %v1722, 127
    %v1745 = vpop.permute.xlu0 %1744
    %1746 = vrot.lane.b32.xlu0 %v1723, 127
    %v1747 = vpop.permute.xlu0 %1746
    %v1748 = vsel %vm200, %v1733, %v1735
    %v1749 = vsel %vm200, %v1735, %v1737
    %v1750 = vsel %vm200, %v1737, %v1739
    %v1751 = vsel %vm200, %v1739, %v1741
    %v1752 = vsel %vm200, %v1741, %v1743
    %v1753 = vsel %vm200, %v1743, %v1745
    %v1754 = vsel %vm200, %v1745, %v1747
    %v1762 = vadd.f32 %v1661, %v1748
    %v1763 = vadd.f32 %v1662, %v1749
    %v1764 = vadd.f32 %v1663, %v1750
    %v1765 = vadd.f32 %v1664, %v1751
    %v1766 = vadd.f32 %v1665, %v1752
    %v1767 = vadd.f32 %v1666, %v1753
    %v1768 = vadd.f32 %v1667, %v1754
    %1769 = vset.pattern.permute.xlu0 2
    %1770 = vperm.xlu0 %1769, %v1603
    %v1771 = vpop.permute.xlu0 %1770
    %v1773 = vmul.f32 %v1771, %v1679
    %v1774 = vmul.f32 %v1771, %v1683
    %v1775 = vmul.f32 %v1771, %v1687
    %v1776 = vmul.f32 %v1771, %v1691
    %v1777 = vmul.f32 %v1771, %v1695
    %v1778 = vmul.f32 %v1771, %v1699
    %v1779 = vmul.f32 %v1771, %v1703
    %v1780 = vmul.f32 %v1771, %v1707
    %1789 = vrot.lane.b32.xlu0 %v1773, 126
    %v1790 = vpop.permute.xlu0 %1789
    %1791 = vrot.lane.b32.xlu0 %v1774, 126
    %v1792 = vpop.permute.xlu0 %1791
    %1793 = vrot.lane.b32.xlu0 %v1775, 126
    %v1794 = vpop.permute.xlu0 %1793
    %1795 = vrot.lane.b32.xlu0 %v1776, 126
    %v1796 = vpop.permute.xlu0 %1795
    %1797 = vrot.lane.b32.xlu0 %v1777, 126
    %v1798 = vpop.permute.xlu0 %1797
    %1799 = vrot.lane.b32.xlu0 %v1778, 126
    %v1800 = vpop.permute.xlu0 %1799
    %1801 = vrot.lane.b32.xlu0 %v1779, 126
    %v1802 = vpop.permute.xlu0 %1801
    %1803 = vrot.lane.b32.xlu0 %v1780, 126
    %v1804 = vpop.permute.xlu0 %1803
    %v1805 = vsel %vm258, %v1790, %v1792
    %v1806 = vsel %vm258, %v1792, %v1794
    %v1807 = vsel %vm258, %v1794, %v1796
    %v1808 = vsel %vm258, %v1796, %v1798
    %v1809 = vsel %vm258, %v1798, %v1800
    %v1810 = vsel %vm258, %v1800, %v1802
    %v1811 = vsel %vm258, %v1802, %v1804
    %v1819 = vadd.f32 %v1762, %v1805
    %v1820 = vadd.f32 %v1763, %v1806
    %v1821 = vadd.f32 %v1764, %v1807
    %v1822 = vadd.f32 %v1765, %v1808
    %v1823 = vadd.f32 %v1766, %v1809
    %v1824 = vadd.f32 %v1767, %v1810
    %v1825 = vadd.f32 %v1768, %v1811
    %1826 = vset.pattern.permute.xlu0 3
    %1827 = vperm.xlu0 %1826, %v1603
    %v1828 = vpop.permute.xlu0 %1827
    %v1830 = vmul.f32 %v1828, %v1679
    %v1831 = vmul.f32 %v1828, %v1683
    %v1832 = vmul.f32 %v1828, %v1687
    %v1833 = vmul.f32 %v1828, %v1691
    %v1834 = vmul.f32 %v1828, %v1695
    %v1835 = vmul.f32 %v1828, %v1699
    %v1836 = vmul.f32 %v1828, %v1703
    %v1837 = vmul.f32 %v1828, %v1707
    %1846 = vrot.lane.b32.xlu0 %v1830, 125
    %v1847 = vpop.permute.xlu0 %1846
    %1848 = vrot.lane.b32.xlu0 %v1831, 125
    %v1849 = vpop.permute.xlu0 %1848
    %1850 = vrot.lane.b32.xlu0 %v1832, 125
    %v1851 = vpop.permute.xlu0 %1850
    %1852 = vrot.lane.b32.xlu0 %v1833, 125
    %v1853 = vpop.permute.xlu0 %1852
    %1854 = vrot.lane.b32.xlu0 %v1834, 125
    %v1855 = vpop.permute.xlu0 %1854
    %1856 = vrot.lane.b32.xlu0 %v1835, 125
    %v1857 = vpop.permute.xlu0 %1856
    %1858 = vrot.lane.b32.xlu0 %v1836, 125
    %v1859 = vpop.permute.xlu0 %1858
    %1860 = vrot.lane.b32.xlu0 %v1837, 125
    %v1861 = vpop.permute.xlu0 %1860
    %v1862 = vsel %vm316, %v1847, %v1849
    %v1863 = vsel %vm316, %v1849, %v1851
    %v1864 = vsel %vm316, %v1851, %v1853
    %v1865 = vsel %vm316, %v1853, %v1855
    %v1866 = vsel %vm316, %v1855, %v1857
    %v1867 = vsel %vm316, %v1857, %v1859
    %v1868 = vsel %vm316, %v1859, %v1861
    %v1876 = vadd.f32 %v1819, %v1862
    %v1877 = vadd.f32 %v1820, %v1863
    %v1878 = vadd.f32 %v1821, %v1864
    %v1879 = vadd.f32 %v1822, %v1865
    %v1880 = vadd.f32 %v1823, %v1866
    %v1881 = vadd.f32 %v1824, %v1867
    %v1882 = vadd.f32 %v1825, %v1868
    %1883 = vset.pattern.permute.xlu0 4
    %1884 = vperm.xlu0 %1883, %v1603
    %v1885 = vpop.permute.xlu0 %1884
    %v1887 = vmul.f32 %v1885, %v1679
    %v1888 = vmul.f32 %v1885, %v1683
    %v1889 = vmul.f32 %v1885, %v1687
    %v1890 = vmul.f32 %v1885, %v1691
    %v1891 = vmul.f32 %v1885, %v1695
    %v1892 = vmul.f32 %v1885, %v1699
    %v1893 = vmul.f32 %v1885, %v1703
    %v1894 = vmul.f32 %v1885, %v1707
    %1903 = vrot.lane.b32.xlu0 %v1887, 124
    %v1904 = vpop.permute.xlu0 %1903
    %1905 = vrot.lane.b32.xlu0 %v1888, 124
    %v1906 = vpop.permute.xlu0 %1905
    %1907 = vrot.lane.b32.xlu0 %v1889, 124
    %v1908 = vpop.permute.xlu0 %1907
    %1909 = vrot.lane.b32.xlu0 %v1890, 124
    %v1910 = vpop.permute.xlu0 %1909
    %1911 = vrot.lane.b32.xlu0 %v1891, 124
    %v1912 = vpop.permute.xlu0 %1911
    %1913 = vrot.lane.b32.xlu0 %v1892, 124
    %v1914 = vpop.permute.xlu0 %1913
    %1915 = vrot.lane.b32.xlu0 %v1893, 124
    %v1916 = vpop.permute.xlu0 %1915
    %1917 = vrot.lane.b32.xlu0 %v1894, 124
    %v1918 = vpop.permute.xlu0 %1917
    %v1919 = vsel %vm374, %v1904, %v1906
    %v1920 = vsel %vm374, %v1906, %v1908
    %v1921 = vsel %vm374, %v1908, %v1910
    %v1922 = vsel %vm374, %v1910, %v1912
    %v1923 = vsel %vm374, %v1912, %v1914
    %v1924 = vsel %vm374, %v1914, %v1916
    %v1925 = vsel %vm374, %v1916, %v1918
    %v1933 = vadd.f32 %v1876, %v1919
    %v1934 = vadd.f32 %v1877, %v1920
    %v1935 = vadd.f32 %v1878, %v1921
    %v1936 = vadd.f32 %v1879, %v1922
    %v1937 = vadd.f32 %v1880, %v1923
    %v1938 = vadd.f32 %v1881, %v1924
    %v1939 = vadd.f32 %v1882, %v1925
    %1940 = vset.pattern.permute.xlu0 5
    %1941 = vperm.xlu0 %1940, %v1603
    %v1942 = vpop.permute.xlu0 %1941
    %v1944 = vmul.f32 %v1942, %v1679
    %v1945 = vmul.f32 %v1942, %v1683
    %v1946 = vmul.f32 %v1942, %v1687
    %v1947 = vmul.f32 %v1942, %v1691
    %v1948 = vmul.f32 %v1942, %v1695
    %v1949 = vmul.f32 %v1942, %v1699
    %v1950 = vmul.f32 %v1942, %v1703
    %v1951 = vmul.f32 %v1942, %v1707
    %1960 = vrot.lane.b32.xlu0 %v1944, 96
    %v1961 = vpop.permute.xlu0 %1960
    %1962 = vrot.lane.b32.xlu0 %v1945, 96
    %v1963 = vpop.permute.xlu0 %1962
    %1964 = vrot.lane.b32.xlu0 %v1946, 96
    %v1965 = vpop.permute.xlu0 %1964
    %1966 = vrot.lane.b32.xlu0 %v1947, 96
    %v1967 = vpop.permute.xlu0 %1966
    %1968 = vrot.lane.b32.xlu0 %v1948, 96
    %v1969 = vpop.permute.xlu0 %1968
    %1970 = vrot.lane.b32.xlu0 %v1949, 96
    %v1971 = vpop.permute.xlu0 %1970
    %1972 = vrot.lane.b32.xlu0 %v1950, 96
    %v1973 = vpop.permute.xlu0 %1972
    %1974 = vrot.lane.b32.xlu0 %v1951, 96
    %v1975 = vpop.permute.xlu0 %1974
    %v1976 = vsel %vm432, %v1961, %v1963
    %v1977 = vsel %vm432, %v1963, %v1965
    %v1978 = vsel %vm432, %v1965, %v1967
    %v1979 = vsel %vm432, %v1967, %v1969
    %v1980 = vsel %vm432, %v1969, %v1971
    %v1981 = vsel %vm432, %v1971, %v1973
    %v1982 = vsel %vm432, %v1973, %v1975
    %v1990 = vadd.f32 %v1933, %v1976
    %v1991 = vadd.f32 %v1934, %v1977
    %v1992 = vadd.f32 %v1935, %v1978
    %v1993 = vadd.f32 %v1936, %v1979
    %v1994 = vadd.f32 %v1937, %v1980
    %v1995 = vadd.f32 %v1938, %v1981
    %v1996 = vadd.f32 %v1939, %v1982
    %1997 = vset.pattern.permute.xlu0 6
    %1998 = vperm.xlu0 %1997, %v1603
    %v1999 = vpop.permute.xlu0 %1998
    %v2001 = vmul.f32 %v1999, %v1679
    %v2002 = vmul.f32 %v1999, %v1683
    %v2003 = vmul.f32 %v1999, %v1687
    %v2004 = vmul.f32 %v1999, %v1691
    %v2005 = vmul.f32 %v1999, %v1695
    %v2006 = vmul.f32 %v1999, %v1699
    %v2007 = vmul.f32 %v1999, %v1703
    %v2008 = vmul.f32 %v1999, %v1707
    %2017 = vrot.lane.b32.xlu0 %v2001, 95
    %v2018 = vpop.permute.xlu0 %2017
    %2019 = vrot.lane.b32.xlu0 %v2002, 95
    %v2020 = vpop.permute.xlu0 %2019
    %2021 = vrot.lane.b32.xlu0 %v2003, 95
    %v2022 = vpop.permute.xlu0 %2021
    %2023 = vrot.lane.b32.xlu0 %v2004, 95
    %v2024 = vpop.permute.xlu0 %2023
    %2025 = vrot.lane.b32.xlu0 %v2005, 95
    %v2026 = vpop.permute.xlu0 %2025
    %2027 = vrot.lane.b32.xlu0 %v2006, 95
    %v2028 = vpop.permute.xlu0 %2027
    %2029 = vrot.lane.b32.xlu0 %v2007, 95
    %v2030 = vpop.permute.xlu0 %2029
    %2031 = vrot.lane.b32.xlu0 %v2008, 95
    %v2032 = vpop.permute.xlu0 %2031
    %v2033 = vsel %vm490, %v2018, %v2020
    %v2034 = vsel %vm490, %v2020, %v2022
    %v2035 = vsel %vm490, %v2022, %v2024
    %v2036 = vsel %vm490, %v2024, %v2026
    %v2037 = vsel %vm490, %v2026, %v2028
    %v2038 = vsel %vm490, %v2028, %v2030
    %v2039 = vsel %vm490, %v2030, %v2032
    %v2047 = vadd.f32 %v1990, %v2033
    %v2048 = vadd.f32 %v1991, %v2034
    %v2049 = vadd.f32 %v1992, %v2035
    %v2050 = vadd.f32 %v1993, %v2036
    %v2051 = vadd.f32 %v1994, %v2037
    %v2052 = vadd.f32 %v1995, %v2038
    %v2053 = vadd.f32 %v1996, %v2039
    %2054 = vset.pattern.permute.xlu0 7
    %2055 = vperm.xlu0 %2054, %v1603
    %v2056 = vpop.permute.xlu0 %2055
    %v2058 = vmul.f32 %v2056, %v1679
    %v2059 = vmul.f32 %v2056, %v1683
    %v2060 = vmul.f32 %v2056, %v1687
    %v2061 = vmul.f32 %v2056, %v1691
    %v2062 = vmul.f32 %v2056, %v1695
    %v2063 = vmul.f32 %v2056, %v1699
    %v2064 = vmul.f32 %v2056, %v1703
    %v2065 = vmul.f32 %v2056, %v1707
    %2074 = vrot.lane.b32.xlu0 %v2058, 94
    %v2075 = vpop.permute.xlu0 %2074
    %2076 = vrot.lane.b32.xlu0 %v2059, 94
    %v2077 = vpop.permute.xlu0 %2076
    %2078 = vrot.lane.b32.xlu0 %v2060, 94
    %v2079 = vpop.permute.xlu0 %2078
    %2080 = vrot.lane.b32.xlu0 %v2061, 94
    %v2081 = vpop.permute.xlu0 %2080
    %2082 = vrot.lane.b32.xlu0 %v2062, 94
    %v2083 = vpop.permute.xlu0 %2082
    %2084 = vrot.lane.b32.xlu0 %v2063, 94
    %v2085 = vpop.permute.xlu0 %2084
    %2086 = vrot.lane.b32.xlu0 %v2064, 94
    %v2087 = vpop.permute.xlu0 %2086
    %2088 = vrot.lane.b32.xlu0 %v2065, 94
    %v2089 = vpop.permute.xlu0 %2088
    %v2090 = vsel %vm548, %v2075, %v2077
    %v2091 = vsel %vm548, %v2077, %v2079
    %v2092 = vsel %vm548, %v2079, %v2081
    %v2093 = vsel %vm548, %v2081, %v2083
    %v2094 = vsel %vm548, %v2083, %v2085
    %v2095 = vsel %vm548, %v2085, %v2087
    %v2096 = vsel %vm548, %v2087, %v2089
    %v2104 = vadd.f32 %v2047, %v2090
    %v2105 = vadd.f32 %v2048, %v2091
    %v2106 = vadd.f32 %v2049, %v2092
    %v2107 = vadd.f32 %v2050, %v2093
    %v2108 = vadd.f32 %v2051, %v2094
    %v2109 = vadd.f32 %v2052, %v2095
    %v2110 = vadd.f32 %v2053, %v2096
    %2111 = vset.pattern.permute.xlu0 8
    %2112 = vperm.xlu0 %2111, %v1603
    %v2113 = vpop.permute.xlu0 %2112
    %v2115 = vmul.f32 %v2113, %v1679
    %v2116 = vmul.f32 %v2113, %v1683
    %v2117 = vmul.f32 %v2113, %v1687
    %v2118 = vmul.f32 %v2113, %v1691
    %v2119 = vmul.f32 %v2113, %v1695
    %v2120 = vmul.f32 %v2113, %v1699
    %v2121 = vmul.f32 %v2113, %v1703
    %v2122 = vmul.f32 %v2113, %v1707
    %2131 = vrot.lane.b32.xlu0 %v2115, 93
    %v2132 = vpop.permute.xlu0 %2131
    %2133 = vrot.lane.b32.xlu0 %v2116, 93
    %v2134 = vpop.permute.xlu0 %2133
    %2135 = vrot.lane.b32.xlu0 %v2117, 93
    %v2136 = vpop.permute.xlu0 %2135
    %2137 = vrot.lane.b32.xlu0 %v2118, 93
    %v2138 = vpop.permute.xlu0 %2137
    %2139 = vrot.lane.b32.xlu0 %v2119, 93
    %v2140 = vpop.permute.xlu0 %2139
    %2141 = vrot.lane.b32.xlu0 %v2120, 93
    %v2142 = vpop.permute.xlu0 %2141
    %2143 = vrot.lane.b32.xlu0 %v2121, 93
    %v2144 = vpop.permute.xlu0 %2143
    %2145 = vrot.lane.b32.xlu0 %v2122, 93
    %v2146 = vpop.permute.xlu0 %2145
    %v2147 = vsel %vm606, %v2132, %v2134
    %v2148 = vsel %vm606, %v2134, %v2136
    %v2149 = vsel %vm606, %v2136, %v2138
    %v2150 = vsel %vm606, %v2138, %v2140
    %v2151 = vsel %vm606, %v2140, %v2142
    %v2152 = vsel %vm606, %v2142, %v2144
    %v2153 = vsel %vm606, %v2144, %v2146
    %v2161 = vadd.f32 %v2104, %v2147
    %v2162 = vadd.f32 %v2105, %v2148
    %v2163 = vadd.f32 %v2106, %v2149
    %v2164 = vadd.f32 %v2107, %v2150
    %v2165 = vadd.f32 %v2108, %v2151
    %v2166 = vadd.f32 %v2109, %v2152
    %v2167 = vadd.f32 %v2110, %v2153
    %2168 = vset.pattern.permute.xlu0 9
    %2169 = vperm.xlu0 %2168, %v1603
    %v2170 = vpop.permute.xlu0 %2169
    %v2172 = vmul.f32 %v2170, %v1679
    %v2173 = vmul.f32 %v2170, %v1683
    %v2174 = vmul.f32 %v2170, %v1687
    %v2175 = vmul.f32 %v2170, %v1691
    %v2176 = vmul.f32 %v2170, %v1695
    %v2177 = vmul.f32 %v2170, %v1699
    %v2178 = vmul.f32 %v2170, %v1703
    %v2179 = vmul.f32 %v2170, %v1707
    %2188 = vrot.lane.b32.xlu0 %v2172, 92
    %v2189 = vpop.permute.xlu0 %2188
    %2190 = vrot.lane.b32.xlu0 %v2173, 92
    %v2191 = vpop.permute.xlu0 %2190
    %2192 = vrot.lane.b32.xlu0 %v2174, 92
    %v2193 = vpop.permute.xlu0 %2192
    %2194 = vrot.lane.b32.xlu0 %v2175, 92
    %v2195 = vpop.permute.xlu0 %2194
    %2196 = vrot.lane.b32.xlu0 %v2176, 92
    %v2197 = vpop.permute.xlu0 %2196
    %2198 = vrot.lane.b32.xlu0 %v2177, 92
    %v2199 = vpop.permute.xlu0 %2198
    %2200 = vrot.lane.b32.xlu0 %v2178, 92
    %v2201 = vpop.permute.xlu0 %2200
    %2202 = vrot.lane.b32.xlu0 %v2179, 92
    %v2203 = vpop.permute.xlu0 %2202
    %v2204 = vsel %vm664, %v2189, %v2191
    %v2205 = vsel %vm664, %v2191, %v2193
    %v2206 = vsel %vm664, %v2193, %v2195
    %v2207 = vsel %vm664, %v2195, %v2197
    %v2208 = vsel %vm664, %v2197, %v2199
    %v2209 = vsel %vm664, %v2199, %v2201
    %v2210 = vsel %vm664, %v2201, %v2203
    %v2218 = vadd.f32 %v2161, %v2204
    %v2219 = vadd.f32 %v2162, %v2205
    %v2220 = vadd.f32 %v2163, %v2206
    %v2221 = vadd.f32 %v2164, %v2207
    %v2222 = vadd.f32 %v2165, %v2208
    %v2223 = vadd.f32 %v2166, %v2209
    %v2224 = vadd.f32 %v2167, %v2210
    %2225 = vset.pattern.permute.xlu0 10
    %2226 = vperm.xlu0 %2225, %v1603
    %v2227 = vpop.permute.xlu0 %2226
    %v2229 = vmul.f32 %v2227, %v1679
    %v2230 = vmul.f32 %v2227, %v1683
    %v2231 = vmul.f32 %v2227, %v1687
    %v2232 = vmul.f32 %v2227, %v1691
    %v2233 = vmul.f32 %v2227, %v1695
    %v2234 = vmul.f32 %v2227, %v1699
    %v2235 = vmul.f32 %v2227, %v1703
    %v2236 = vmul.f32 %v2227, %v1707
    %2245 = vrot.lane.b32.xlu0 %v2229, 64
    %v2246 = vpop.permute.xlu0 %2245
    %2247 = vrot.lane.b32.xlu0 %v2230, 64
    %v2248 = vpop.permute.xlu0 %2247
    %2249 = vrot.lane.b32.xlu0 %v2231, 64
    %v2250 = vpop.permute.xlu0 %2249
    %2251 = vrot.lane.b32.xlu0 %v2232, 64
    %v2252 = vpop.permute.xlu0 %2251
    %2253 = vrot.lane.b32.xlu0 %v2233, 64
    %v2254 = vpop.permute.xlu0 %2253
    %2255 = vrot.lane.b32.xlu0 %v2234, 64
    %v2256 = vpop.permute.xlu0 %2255
    %2257 = vrot.lane.b32.xlu0 %v2235, 64
    %v2258 = vpop.permute.xlu0 %2257
    %2259 = vrot.lane.b32.xlu0 %v2236, 64
    %v2260 = vpop.permute.xlu0 %2259
    %v2261 = vsel %vm47, %v2246, %v2248
    %v2262 = vsel %vm47, %v2248, %v2250
    %v2263 = vsel %vm47, %v2250, %v2252
    %v2264 = vsel %vm47, %v2252, %v2254
    %v2265 = vsel %vm47, %v2254, %v2256
    %v2266 = vsel %vm47, %v2256, %v2258
    %v2267 = vsel %vm47, %v2258, %v2260
    %v2275 = vadd.f32 %v2218, %v2261
    %v2276 = vadd.f32 %v2219, %v2262
    %v2277 = vadd.f32 %v2220, %v2263
    %v2278 = vadd.f32 %v2221, %v2264
    %v2279 = vadd.f32 %v2222, %v2265
    %v2280 = vadd.f32 %v2223, %v2266
    %v2281 = vadd.f32 %v2224, %v2267
    %2282 = vset.pattern.permute.xlu0 11
    %2283 = vperm.xlu0 %2282, %v1603
    %v2284 = vpop.permute.xlu0 %2283
    %v2286 = vmul.f32 %v2284, %v1679
    %v2287 = vmul.f32 %v2284, %v1683
    %v2288 = vmul.f32 %v2284, %v1687
    %v2289 = vmul.f32 %v2284, %v1691
    %v2290 = vmul.f32 %v2284, %v1695
    %v2291 = vmul.f32 %v2284, %v1699
    %v2292 = vmul.f32 %v2284, %v1703
    %v2293 = vmul.f32 %v2284, %v1707
    %2302 = vrot.lane.b32.xlu0 %v2286, 63
    %v2303 = vpop.permute.xlu0 %2302
    %2304 = vrot.lane.b32.xlu0 %v2287, 63
    %v2305 = vpop.permute.xlu0 %2304
    %2306 = vrot.lane.b32.xlu0 %v2288, 63
    %v2307 = vpop.permute.xlu0 %2306
    %2308 = vrot.lane.b32.xlu0 %v2289, 63
    %v2309 = vpop.permute.xlu0 %2308
    %2310 = vrot.lane.b32.xlu0 %v2290, 63
    %v2311 = vpop.permute.xlu0 %2310
    %2312 = vrot.lane.b32.xlu0 %v2291, 63
    %v2313 = vpop.permute.xlu0 %2312
    %2314 = vrot.lane.b32.xlu0 %v2292, 63
    %v2315 = vpop.permute.xlu0 %2314
    %2316 = vrot.lane.b32.xlu0 %v2293, 63
    %v2317 = vpop.permute.xlu0 %2316
    %v2318 = vsel %vm779, %v2303, %v2305
    %v2319 = vsel %vm779, %v2305, %v2307
    %v2320 = vsel %vm779, %v2307, %v2309
    %v2321 = vsel %vm779, %v2309, %v2311
    %v2322 = vsel %vm779, %v2311, %v2313
    %v2323 = vsel %vm779, %v2313, %v2315
    %v2324 = vsel %vm779, %v2315, %v2317
    %v2332 = vadd.f32 %v2275, %v2318
    %v2333 = vadd.f32 %v2276, %v2319
    %v2334 = vadd.f32 %v2277, %v2320
    %v2335 = vadd.f32 %v2278, %v2321
    %v2336 = vadd.f32 %v2279, %v2322
    %v2337 = vadd.f32 %v2280, %v2323
    %v2338 = vadd.f32 %v2281, %v2324
    %2339 = vset.pattern.permute.xlu0 12
    %2340 = vperm.xlu0 %2339, %v1603
    %v2341 = vpop.permute.xlu0 %2340
    %v2343 = vmul.f32 %v2341, %v1679
    %v2344 = vmul.f32 %v2341, %v1683
    %v2345 = vmul.f32 %v2341, %v1687
    %v2346 = vmul.f32 %v2341, %v1691
    %v2347 = vmul.f32 %v2341, %v1695
    %v2348 = vmul.f32 %v2341, %v1699
    %v2349 = vmul.f32 %v2341, %v1703
    %v2350 = vmul.f32 %v2341, %v1707
    %2359 = vrot.lane.b32.xlu0 %v2343, 62
    %v2360 = vpop.permute.xlu0 %2359
    %2361 = vrot.lane.b32.xlu0 %v2344, 62
    %v2362 = vpop.permute.xlu0 %2361
    %2363 = vrot.lane.b32.xlu0 %v2345, 62
    %v2364 = vpop.permute.xlu0 %2363
    %2365 = vrot.lane.b32.xlu0 %v2346, 62
    %v2366 = vpop.permute.xlu0 %2365
    %2367 = vrot.lane.b32.xlu0 %v2347, 62
    %v2368 = vpop.permute.xlu0 %2367
    %2369 = vrot.lane.b32.xlu0 %v2348, 62
    %v2370 = vpop.permute.xlu0 %2369
    %2371 = vrot.lane.b32.xlu0 %v2349, 62
    %v2372 = vpop.permute.xlu0 %2371
    %2373 = vrot.lane.b32.xlu0 %v2350, 62
    %v2374 = vpop.permute.xlu0 %2373
    %v2375 = vsel %vm837, %v2360, %v2362
    %v2376 = vsel %vm837, %v2362, %v2364
    %v2377 = vsel %vm837, %v2364, %v2366
    %v2378 = vsel %vm837, %v2366, %v2368
    %v2379 = vsel %vm837, %v2368, %v2370
    %v2380 = vsel %vm837, %v2370, %v2372
    %v2381 = vsel %vm837, %v2372, %v2374
    %v2389 = vadd.f32 %v2332, %v2375
    %v2390 = vadd.f32 %v2333, %v2376
    %v2391 = vadd.f32 %v2334, %v2377
    %v2392 = vadd.f32 %v2335, %v2378
    %v2393 = vadd.f32 %v2336, %v2379
    %v2394 = vadd.f32 %v2337, %v2380
    %v2395 = vadd.f32 %v2338, %v2381
    %2396 = vset.pattern.permute.xlu0 13
    %2397 = vperm.xlu0 %2396, %v1603
    %v2398 = vpop.permute.xlu0 %2397
    %v2400 = vmul.f32 %v2398, %v1679
    %v2401 = vmul.f32 %v2398, %v1683
    %v2402 = vmul.f32 %v2398, %v1687
    %v2403 = vmul.f32 %v2398, %v1691
    %v2404 = vmul.f32 %v2398, %v1695
    %v2405 = vmul.f32 %v2398, %v1699
    %v2406 = vmul.f32 %v2398, %v1703
    %v2407 = vmul.f32 %v2398, %v1707
    %2416 = vrot.lane.b32.xlu0 %v2400, 61
    %v2417 = vpop.permute.xlu0 %2416
    %2418 = vrot.lane.b32.xlu0 %v2401, 61
    %v2419 = vpop.permute.xlu0 %2418
    %2420 = vrot.lane.b32.xlu0 %v2402, 61
    %v2421 = vpop.permute.xlu0 %2420
    %2422 = vrot.lane.b32.xlu0 %v2403, 61
    %v2423 = vpop.permute.xlu0 %2422
    %2424 = vrot.lane.b32.xlu0 %v2404, 61
    %v2425 = vpop.permute.xlu0 %2424
    %2426 = vrot.lane.b32.xlu0 %v2405, 61
    %v2427 = vpop.permute.xlu0 %2426
    %2428 = vrot.lane.b32.xlu0 %v2406, 61
    %v2429 = vpop.permute.xlu0 %2428
    %2430 = vrot.lane.b32.xlu0 %v2407, 61
    %v2431 = vpop.permute.xlu0 %2430
    %v2432 = vsel %vm895, %v2417, %v2419
    %v2433 = vsel %vm895, %v2419, %v2421
    %v2434 = vsel %vm895, %v2421, %v2423
    %v2435 = vsel %vm895, %v2423, %v2425
    %v2436 = vsel %vm895, %v2425, %v2427
    %v2437 = vsel %vm895, %v2427, %v2429
    %v2438 = vsel %vm895, %v2429, %v2431
    %v2446 = vadd.f32 %v2389, %v2432
    %v2447 = vadd.f32 %v2390, %v2433
    %v2448 = vadd.f32 %v2391, %v2434
    %v2449 = vadd.f32 %v2392, %v2435
    %v2450 = vadd.f32 %v2393, %v2436
    %v2451 = vadd.f32 %v2394, %v2437
    %v2452 = vadd.f32 %v2395, %v2438
    %2453 = vset.pattern.permute.xlu0 14
    %2454 = vperm.xlu0 %2453, %v1603
    %v2455 = vpop.permute.xlu0 %2454
    %v2457 = vmul.f32 %v2455, %v1679
    %v2458 = vmul.f32 %v2455, %v1683
    %v2459 = vmul.f32 %v2455, %v1687
    %v2460 = vmul.f32 %v2455, %v1691
    %v2461 = vmul.f32 %v2455, %v1695
    %v2462 = vmul.f32 %v2455, %v1699
    %v2463 = vmul.f32 %v2455, %v1703
    %v2464 = vmul.f32 %v2455, %v1707
    %2473 = vrot.lane.b32.xlu0 %v2457, 60
    %v2474 = vpop.permute.xlu0 %2473
    %2475 = vrot.lane.b32.xlu0 %v2458, 60
    %v2476 = vpop.permute.xlu0 %2475
    %2477 = vrot.lane.b32.xlu0 %v2459, 60
    %v2478 = vpop.permute.xlu0 %2477
    %2479 = vrot.lane.b32.xlu0 %v2460, 60
    %v2480 = vpop.permute.xlu0 %2479
    %2481 = vrot.lane.b32.xlu0 %v2461, 60
    %v2482 = vpop.permute.xlu0 %2481
    %2483 = vrot.lane.b32.xlu0 %v2462, 60
    %v2484 = vpop.permute.xlu0 %2483
    %2485 = vrot.lane.b32.xlu0 %v2463, 60
    %v2486 = vpop.permute.xlu0 %2485
    %2487 = vrot.lane.b32.xlu0 %v2464, 60
    %v2488 = vpop.permute.xlu0 %2487
    %v2489 = vsel %vm953, %v2474, %v2476
    %v2490 = vsel %vm953, %v2476, %v2478
    %v2491 = vsel %vm953, %v2478, %v2480
    %v2492 = vsel %vm953, %v2480, %v2482
    %v2493 = vsel %vm953, %v2482, %v2484
    %v2494 = vsel %vm953, %v2484, %v2486
    %v2495 = vsel %vm953, %v2486, %v2488
    %v2503 = vadd.f32 %v2446, %v2489
    %v2504 = vadd.f32 %v2447, %v2490
    %v2505 = vadd.f32 %v2448, %v2491
    %v2506 = vadd.f32 %v2449, %v2492
    %v2507 = vadd.f32 %v2450, %v2493
    %v2508 = vadd.f32 %v2451, %v2494
    %v2509 = vadd.f32 %v2452, %v2495
    %2510 = vset.pattern.permute.xlu0 15
    %2511 = vperm.xlu0 %2510, %v1603
    %v2512 = vpop.permute.xlu0 %2511
    %v2514 = vmul.f32 %v2512, %v1679
    %v2515 = vmul.f32 %v2512, %v1683
    %v2516 = vmul.f32 %v2512, %v1687
    %v2517 = vmul.f32 %v2512, %v1691
    %v2518 = vmul.f32 %v2512, %v1695
    %v2519 = vmul.f32 %v2512, %v1699
    %v2520 = vmul.f32 %v2512, %v1703
    %v2521 = vmul.f32 %v2512, %v1707
    %2530 = vrot.lane.b32.xlu0 %v2514, 32
    %v2531 = vpop.permute.xlu0 %2530
    %2532 = vrot.lane.b32.xlu0 %v2515, 32
    %v2533 = vpop.permute.xlu0 %2532
    %2534 = vrot.lane.b32.xlu0 %v2516, 32
    %v2535 = vpop.permute.xlu0 %2534
    %2536 = vrot.lane.b32.xlu0 %v2517, 32
    %v2537 = vpop.permute.xlu0 %2536
    %2538 = vrot.lane.b32.xlu0 %v2518, 32
    %v2539 = vpop.permute.xlu0 %2538
    %2540 = vrot.lane.b32.xlu0 %v2519, 32
    %v2541 = vpop.permute.xlu0 %2540
    %2542 = vrot.lane.b32.xlu0 %v2520, 32
    %v2543 = vpop.permute.xlu0 %2542
    %2544 = vrot.lane.b32.xlu0 %v2521, 32
    %v2545 = vpop.permute.xlu0 %2544
    %v2546 = vsel %vm1011, %v2531, %v2533
    %v2547 = vsel %vm1011, %v2533, %v2535
    %v2548 = vsel %vm1011, %v2535, %v2537
    %v2549 = vsel %vm1011, %v2537, %v2539
    %v2550 = vsel %vm1011, %v2539, %v2541
    %v2551 = vsel %vm1011, %v2541, %v2543
    %v2552 = vsel %vm1011, %v2543, %v2545
    %v2560 = vadd.f32 %v2503, %v2546
    %v2561 = vadd.f32 %v2504, %v2547
    %v2562 = vadd.f32 %v2505, %v2548
    %v2563 = vadd.f32 %v2506, %v2549
    %v2564 = vadd.f32 %v2507, %v2550
    %v2565 = vadd.f32 %v2508, %v2551
    %v2566 = vadd.f32 %v2509, %v2552
    %2567 = vset.pattern.permute.xlu0 16
    %2568 = vperm.xlu0 %2567, %v1603
    %v2569 = vpop.permute.xlu0 %2568
    %v2571 = vmul.f32 %v2569, %v1679
    %v2572 = vmul.f32 %v2569, %v1683
    %v2573 = vmul.f32 %v2569, %v1687
    %v2574 = vmul.f32 %v2569, %v1691
    %v2575 = vmul.f32 %v2569, %v1695
    %v2576 = vmul.f32 %v2569, %v1699
    %v2577 = vmul.f32 %v2569, %v1703
    %v2578 = vmul.f32 %v2569, %v1707
    %2587 = vrot.lane.b32.xlu0 %v2571, 31
    %v2588 = vpop.permute.xlu0 %2587
    %2589 = vrot.lane.b32.xlu0 %v2572, 31
    %v2590 = vpop.permute.xlu0 %2589
    %2591 = vrot.lane.b32.xlu0 %v2573, 31
    %v2592 = vpop.permute.xlu0 %2591
    %2593 = vrot.lane.b32.xlu0 %v2574, 31
    %v2594 = vpop.permute.xlu0 %2593
    %2595 = vrot.lane.b32.xlu0 %v2575, 31
    %v2596 = vpop.permute.xlu0 %2595
    %2597 = vrot.lane.b32.xlu0 %v2576, 31
    %v2598 = vpop.permute.xlu0 %2597
    %2599 = vrot.lane.b32.xlu0 %v2577, 31
    %v2600 = vpop.permute.xlu0 %2599
    %2601 = vrot.lane.b32.xlu0 %v2578, 31
    %v2602 = vpop.permute.xlu0 %2601
    %v2603 = vsel %vm1069, %v2588, %v2590
    %v2604 = vsel %vm1069, %v2590, %v2592
    %v2605 = vsel %vm1069, %v2592, %v2594
    %v2606 = vsel %vm1069, %v2594, %v2596
    %v2607 = vsel %vm1069, %v2596, %v2598
    %v2608 = vsel %vm1069, %v2598, %v2600
    %v2609 = vsel %vm1069, %v2600, %v2602
    %v2617 = vadd.f32 %v2560, %v2603
    %v2618 = vadd.f32 %v2561, %v2604
    %v2619 = vadd.f32 %v2562, %v2605
    %v2620 = vadd.f32 %v2563, %v2606
    %v2621 = vadd.f32 %v2564, %v2607
    %v2622 = vadd.f32 %v2565, %v2608
    %v2623 = vadd.f32 %v2566, %v2609
    %2624 = vset.pattern.permute.xlu0 17
    %2625 = vperm.xlu0 %2624, %v1603
    %v2626 = vpop.permute.xlu0 %2625
    %v2628 = vmul.f32 %v2626, %v1679
    %v2629 = vmul.f32 %v2626, %v1683
    %v2630 = vmul.f32 %v2626, %v1687
    %v2631 = vmul.f32 %v2626, %v1691
    %v2632 = vmul.f32 %v2626, %v1695
    %v2633 = vmul.f32 %v2626, %v1699
    %v2634 = vmul.f32 %v2626, %v1703
    %v2635 = vmul.f32 %v2626, %v1707
    %2644 = vrot.lane.b32.xlu0 %v2628, 30
    %v2645 = vpop.permute.xlu0 %2644
    %2646 = vrot.lane.b32.xlu0 %v2629, 30
    %v2647 = vpop.permute.xlu0 %2646
    %2648 = vrot.lane.b32.xlu0 %v2630, 30
    %v2649 = vpop.permute.xlu0 %2648
    %2650 = vrot.lane.b32.xlu0 %v2631, 30
    %v2651 = vpop.permute.xlu0 %2650
    %2652 = vrot.lane.b32.xlu0 %v2632, 30
    %v2653 = vpop.permute.xlu0 %2652
    %2654 = vrot.lane.b32.xlu0 %v2633, 30
    %v2655 = vpop.permute.xlu0 %2654
    %2656 = vrot.lane.b32.xlu0 %v2634, 30
    %v2657 = vpop.permute.xlu0 %2656
    %2658 = vrot.lane.b32.xlu0 %v2635, 30
    %v2659 = vpop.permute.xlu0 %2658
    %v2660 = vsel %vm1127, %v2645, %v2647
    %v2661 = vsel %vm1127, %v2647, %v2649
    %v2662 = vsel %vm1127, %v2649, %v2651
    %v2663 = vsel %vm1127, %v2651, %v2653
    %v2664 = vsel %vm1127, %v2653, %v2655
    %v2665 = vsel %vm1127, %v2655, %v2657
    %v2666 = vsel %vm1127, %v2657, %v2659
    %v2674 = vadd.f32 %v2617, %v2660
    %v2675 = vadd.f32 %v2618, %v2661
    %v2676 = vadd.f32 %v2619, %v2662
    %v2677 = vadd.f32 %v2620, %v2663
    %v2678 = vadd.f32 %v2621, %v2664
    %v2679 = vadd.f32 %v2622, %v2665
    %v2680 = vadd.f32 %v2623, %v2666
    %2681 = vset.pattern.permute.xlu0 18
    %2682 = vperm.xlu0 %2681, %v1603
    %v2683 = vpop.permute.xlu0 %2682
    %v2685 = vmul.f32 %v2683, %v1679
    %v2686 = vmul.f32 %v2683, %v1683
    %v2687 = vmul.f32 %v2683, %v1687
    %v2688 = vmul.f32 %v2683, %v1691
    %v2689 = vmul.f32 %v2683, %v1695
    %v2690 = vmul.f32 %v2683, %v1699
    %v2691 = vmul.f32 %v2683, %v1703
    %v2692 = vmul.f32 %v2683, %v1707
    %2701 = vrot.lane.b32.xlu0 %v2685, 29
    %v2702 = vpop.permute.xlu0 %2701
    %2703 = vrot.lane.b32.xlu0 %v2686, 29
    %v2704 = vpop.permute.xlu0 %2703
    %2705 = vrot.lane.b32.xlu0 %v2687, 29
    %v2706 = vpop.permute.xlu0 %2705
    %2707 = vrot.lane.b32.xlu0 %v2688, 29
    %v2708 = vpop.permute.xlu0 %2707
    %2709 = vrot.lane.b32.xlu0 %v2689, 29
    %v2710 = vpop.permute.xlu0 %2709
    %2711 = vrot.lane.b32.xlu0 %v2690, 29
    %v2712 = vpop.permute.xlu0 %2711
    %2713 = vrot.lane.b32.xlu0 %v2691, 29
    %v2714 = vpop.permute.xlu0 %2713
    %2715 = vrot.lane.b32.xlu0 %v2692, 29
    %v2716 = vpop.permute.xlu0 %2715
    %v2717 = vsel %vm1185, %v2702, %v2704
    %v2718 = vsel %vm1185, %v2704, %v2706
    %v2719 = vsel %vm1185, %v2706, %v2708
    %v2720 = vsel %vm1185, %v2708, %v2710
    %v2721 = vsel %vm1185, %v2710, %v2712
    %v2722 = vsel %vm1185, %v2712, %v2714
    %v2723 = vsel %vm1185, %v2714, %v2716
    %v2731 = vadd.f32 %v2674, %v2717
    %v2732 = vadd.f32 %v2675, %v2718
    %v2733 = vadd.f32 %v2676, %v2719
    %v2734 = vadd.f32 %v2677, %v2720
    %v2735 = vadd.f32 %v2678, %v2721
    %v2736 = vadd.f32 %v2679, %v2722
    %v2737 = vadd.f32 %v2680, %v2723
    %2738 = vset.pattern.permute.xlu0 19
    %2739 = vperm.xlu0 %2738, %v1603
    %v2740 = vpop.permute.xlu0 %2739
    %v2742 = vmul.f32 %v2740, %v1679
    %v2743 = vmul.f32 %v2740, %v1683
    %v2744 = vmul.f32 %v2740, %v1687
    %v2745 = vmul.f32 %v2740, %v1691
    %v2746 = vmul.f32 %v2740, %v1695
    %v2747 = vmul.f32 %v2740, %v1699
    %v2748 = vmul.f32 %v2740, %v1703
    %v2749 = vmul.f32 %v2740, %v1707
    %2758 = vrot.lane.b32.xlu0 %v2742, 28
    %v2759 = vpop.permute.xlu0 %2758
    %2760 = vrot.lane.b32.xlu0 %v2743, 28
    %v2761 = vpop.permute.xlu0 %2760
    %2762 = vrot.lane.b32.xlu0 %v2744, 28
    %v2763 = vpop.permute.xlu0 %2762
    %2764 = vrot.lane.b32.xlu0 %v2745, 28
    %v2765 = vpop.permute.xlu0 %2764
    %2766 = vrot.lane.b32.xlu0 %v2746, 28
    %v2767 = vpop.permute.xlu0 %2766
    %2768 = vrot.lane.b32.xlu0 %v2747, 28
    %v2769 = vpop.permute.xlu0 %2768
    %2770 = vrot.lane.b32.xlu0 %v2748, 28
    %v2771 = vpop.permute.xlu0 %2770
    %2772 = vrot.lane.b32.xlu0 %v2749, 28
    %v2773 = vpop.permute.xlu0 %2772
    %v2774 = vsel %vm1243, %v2759, %v2761
    %v2775 = vsel %vm1243, %v2761, %v2763
    %v2776 = vsel %vm1243, %v2763, %v2765
    %v2777 = vsel %vm1243, %v2765, %v2767
    %v2778 = vsel %vm1243, %v2767, %v2769
    %v2779 = vsel %vm1243, %v2769, %v2771
    %v2780 = vsel %vm1243, %v2771, %v2773
    %v2788 = vadd.f32 %v2731, %v2774
    %v2789 = vadd.f32 %v2732, %v2775
    %v2790 = vadd.f32 %v2733, %v2776
    %v2791 = vadd.f32 %v2734, %v2777
    %v2792 = vadd.f32 %v2735, %v2778
    %v2793 = vadd.f32 %v2736, %v2779
    %v2794 = vadd.f32 %v2737, %v2780
    %s2795 = scalar_lea.vmem %s0, 9
    %v2796 = vld [vmem:[%s2795] ss:$8 sm:$0xf]
    %v2797 = vld [vmem:[%s2795] ss:$8 sm:$0xf0]
    %v2798 = vor.u32 %v2796, %v2797
    %2799 = vset.pattern.permute.xlu0 20
    %2800 = vperm.xlu0 %2799, %v1603
    %v2801 = vpop.permute.xlu0 %2800
    %v2804 = vlaneseq
    %v2805 = vshrl.u32 %v2804, 7
    %v2806 = vsub.s32 0, %v2805
    %v2807 = vrot.slane %v2798, %v2806
    %v2808 = vlaneseq
    %v2809 = vshrl.u32 %v2808, 7
    %v2810 = vsub.s32 1, %v2809
    %v2811 = vrot.slane %v2798, %v2810
    %v2812 = vlaneseq
    %v2813 = vshrl.u32 %v2812, 7
    %v2814 = vsub.s32 2, %v2813
    %v2815 = vrot.slane %v2798, %v2814
    %v2816 = vlaneseq
    %v2817 = vshrl.u32 %v2816, 7
    %v2818 = vsub.s32 3, %v2817
    %v2819 = vrot.slane %v2798, %v2818
    %v2820 = vlaneseq
    %v2821 = vshrl.u32 %v2820, 7
    %v2822 = vsub.s32 4, %v2821
    %v2823 = vrot.slane %v2798, %v2822
    %v2824 = vlaneseq
    %v2825 = vshrl.u32 %v2824, 7
    %v2826 = vsub.s32 5, %v2825
    %v2827 = vrot.slane %v2798, %v2826
    %v2828 = vlaneseq
    %v2829 = vshrl.u32 %v2828, 7
    %v2830 = vsub.s32 6, %v2829
    %v2831 = vrot.slane %v2798, %v2830
    %v2839 = vmul.f32 %v2801, %v2807
    %v2840 = vmul.f32 %v2801, %v2811
    %v2841 = vmul.f32 %v2801, %v2815
    %v2842 = vmul.f32 %v2801, %v2819
    %v2843 = vmul.f32 %v2801, %v2823
    %v2844 = vmul.f32 %v2801, %v2827
    %v2845 = vmul.f32 %v2801, %v2831
    %v2846 = vadd.f32 %v2788, %v2839
    %v2847 = vadd.f32 %v2789, %v2840
    %v2848 = vadd.f32 %v2790, %v2841
    %v2849 = vadd.f32 %v2791, %v2842
    %v2850 = vadd.f32 %v2792, %v2843
    %v2851 = vadd.f32 %v2793, %v2844
    %v2852 = vadd.f32 %v2794, %v2845
    %v2853 = vld [vmem:[%s2795] ss:$8 sm:$0xf]
    %v2854 = vld [vmem:[%s2795] ss:$8 sm:$0xf0]
    %v2855 = vor.u32 %v2853, %v2854
    %2856 = vset.pattern.permute.xlu0 21
    %2857 = vperm.xlu0 %2856, %v1603
    %v2858 = vpop.permute.xlu0 %2857
    %v2861 = vlaneseq
    %v2862 = vshrl.u32 %v2861, 7
    %v2863 = vsub.s32 0, %v2862
    %v2864 = vrot.slane %v2855, %v2863
    %v2865 = vlaneseq
    %v2866 = vshrl.u32 %v2865, 7
    %v2867 = vsub.s32 1, %v2866
    %v2868 = vrot.slane %v2855, %v2867
    %v2869 = vlaneseq
    %v2870 = vshrl.u32 %v2869, 7
    %v2871 = vsub.s32 2, %v2870
    %v2872 = vrot.slane %v2855, %v2871
    %v2873 = vlaneseq
    %v2874 = vshrl.u32 %v2873, 7
    %v2875 = vsub.s32 3, %v2874
    %v2876 = vrot.slane %v2855, %v2875
    %v2877 = vlaneseq
    %v2878 = vshrl.u32 %v2877, 7
    %v2879 = vsub.s32 4, %v2878
    %v2880 = vrot.slane %v2855, %v2879
    %v2881 = vlaneseq
    %v2882 = vshrl.u32 %v2881, 7
    %v2883 = vsub.s32 5, %v2882
    %v2884 = vrot.slane %v2855, %v2883
    %v2885 = vlaneseq
    %v2886 = vshrl.u32 %v2885, 7
    %v2887 = vsub.s32 6, %v2886
    %v2888 = vrot.slane %v2855, %v2887
    %v2889 = vlaneseq
    %v2890 = vshrl.u32 %v2889, 7
    %v2891 = vsub.s32 7, %v2890
    %v2892 = vrot.slane %v2855, %v2891
    %v2901 = vmul.f32 %v2858, %v2864
    %v2902 = vmul.f32 %v2858, %v2868
    %v2903 = vmul.f32 %v2858, %v2872
    %v2904 = vmul.f32 %v2858, %v2876
    %v2905 = vmul.f32 %v2858, %v2880
    %v2906 = vmul.f32 %v2858, %v2884
    %v2907 = vmul.f32 %v2858, %v2888
    %v2908 = vmul.f32 %v2858, %v2892
    %2917 = vrot.lane.b32.xlu0 %v2901, 127
    %v2918 = vpop.permute.xlu0 %2917
    %2919 = vrot.lane.b32.xlu0 %v2902, 127
    %v2920 = vpop.permute.xlu0 %2919
    %2921 = vrot.lane.b32.xlu0 %v2903, 127
    %v2922 = vpop.permute.xlu0 %2921
    %2923 = vrot.lane.b32.xlu0 %v2904, 127
    %v2924 = vpop.permute.xlu0 %2923
    %2925 = vrot.lane.b32.xlu0 %v2905, 127
    %v2926 = vpop.permute.xlu0 %2925
    %2927 = vrot.lane.b32.xlu0 %v2906, 127
    %v2928 = vpop.permute.xlu0 %2927
    %2929 = vrot.lane.b32.xlu0 %v2907, 127
    %v2930 = vpop.permute.xlu0 %2929
    %2931 = vrot.lane.b32.xlu0 %v2908, 127
    %v2932 = vpop.permute.xlu0 %2931
    %v2933 = vsel %vm200, %v2918, %v2920
    %v2934 = vsel %vm200, %v2920, %v2922
    %v2935 = vsel %vm200, %v2922, %v2924
    %v2936 = vsel %vm200, %v2924, %v2926
    %v2937 = vsel %vm200, %v2926, %v2928
    %v2938 = vsel %vm200, %v2928, %v2930
    %v2939 = vsel %vm200, %v2930, %v2932
    %v2947 = vadd.f32 %v2846, %v2933
    %v2948 = vadd.f32 %v2847, %v2934
    %v2949 = vadd.f32 %v2848, %v2935
    %v2950 = vadd.f32 %v2849, %v2936
    %v2951 = vadd.f32 %v2850, %v2937
    %v2952 = vadd.f32 %v2851, %v2938
    %v2953 = vadd.f32 %v2852, %v2939
    %2954 = vset.pattern.permute.xlu0 22
    %2955 = vperm.xlu0 %2954, %v1603
    %v2956 = vpop.permute.xlu0 %2955
    %v2958 = vmul.f32 %v2956, %v2864
    %v2959 = vmul.f32 %v2956, %v2868
    %v2960 = vmul.f32 %v2956, %v2872
    %v2961 = vmul.f32 %v2956, %v2876
    %v2962 = vmul.f32 %v2956, %v2880
    %v2963 = vmul.f32 %v2956, %v2884
    %v2964 = vmul.f32 %v2956, %v2888
    %v2965 = vmul.f32 %v2956, %v2892
    %2974 = vrot.lane.b32.xlu0 %v2958, 126
    %v2975 = vpop.permute.xlu0 %2974
    %2976 = vrot.lane.b32.xlu0 %v2959, 126
    %v2977 = vpop.permute.xlu0 %2976
    %2978 = vrot.lane.b32.xlu0 %v2960, 126
    %v2979 = vpop.permute.xlu0 %2978
    %2980 = vrot.lane.b32.xlu0 %v2961, 126
    %v2981 = vpop.permute.xlu0 %2980
    %2982 = vrot.lane.b32.xlu0 %v2962, 126
    %v2983 = vpop.permute.xlu0 %2982
    %2984 = vrot.lane.b32.xlu0 %v2963, 126
    %v2985 = vpop.permute.xlu0 %2984
    %2986 = vrot.lane.b32.xlu0 %v2964, 126
    %v2987 = vpop.permute.xlu0 %2986
    %2988 = vrot.lane.b32.xlu0 %v2965, 126
    %v2989 = vpop.permute.xlu0 %2988
    %v2990 = vsel %vm258, %v2975, %v2977
    %v2991 = vsel %vm258, %v2977, %v2979
    %v2992 = vsel %vm258, %v2979, %v2981
    %v2993 = vsel %vm258, %v2981, %v2983
    %v2994 = vsel %vm258, %v2983, %v2985
    %v2995 = vsel %vm258, %v2985, %v2987
    %v2996 = vsel %vm258, %v2987, %v2989
    %v3004 = vadd.f32 %v2947, %v2990
    %v3005 = vadd.f32 %v2948, %v2991
    %v3006 = vadd.f32 %v2949, %v2992
    %v3007 = vadd.f32 %v2950, %v2993
    %v3008 = vadd.f32 %v2951, %v2994
    %v3009 = vadd.f32 %v2952, %v2995
    %v3010 = vadd.f32 %v2953, %v2996
    %3011 = vset.pattern.permute.xlu0 23
    %3012 = vperm.xlu0 %3011, %v1603
    %v3013 = vpop.permute.xlu0 %3012
    %v3015 = vmul.f32 %v3013, %v2864
    %v3016 = vmul.f32 %v3013, %v2868
    %v3017 = vmul.f32 %v3013, %v2872
    %v3018 = vmul.f32 %v3013, %v2876
    %v3019 = vmul.f32 %v3013, %v2880
    %v3020 = vmul.f32 %v3013, %v2884
    %v3021 = vmul.f32 %v3013, %v2888
    %v3022 = vmul.f32 %v3013, %v2892
    %3031 = vrot.lane.b32.xlu0 %v3015, 125
    %v3032 = vpop.permute.xlu0 %3031
    %3033 = vrot.lane.b32.xlu0 %v3016, 125
    %v3034 = vpop.permute.xlu0 %3033
    %3035 = vrot.lane.b32.xlu0 %v3017, 125
    %v3036 = vpop.permute.xlu0 %3035
    %3037 = vrot.lane.b32.xlu0 %v3018, 125
    %v3038 = vpop.permute.xlu0 %3037
    %3039 = vrot.lane.b32.xlu0 %v3019, 125
    %v3040 = vpop.permute.xlu0 %3039
    %3041 = vrot.lane.b32.xlu0 %v3020, 125
    %v3042 = vpop.permute.xlu0 %3041
    %3043 = vrot.lane.b32.xlu0 %v3021, 125
    %v3044 = vpop.permute.xlu0 %3043
    %3045 = vrot.lane.b32.xlu0 %v3022, 125
    %v3046 = vpop.permute.xlu0 %3045
    %v3047 = vsel %vm316, %v3032, %v3034
    %v3048 = vsel %vm316, %v3034, %v3036
    %v3049 = vsel %vm316, %v3036, %v3038
    %v3050 = vsel %vm316, %v3038, %v3040
    %v3051 = vsel %vm316, %v3040, %v3042
    %v3052 = vsel %vm316, %v3042, %v3044
    %v3053 = vsel %vm316, %v3044, %v3046
    %v3061 = vadd.f32 %v3004, %v3047
    %v3062 = vadd.f32 %v3005, %v3048
    %v3063 = vadd.f32 %v3006, %v3049
    %v3064 = vadd.f32 %v3007, %v3050
    %v3065 = vadd.f32 %v3008, %v3051
    %v3066 = vadd.f32 %v3009, %v3052
    %v3067 = vadd.f32 %v3010, %v3053
    %3068 = vset.pattern.permute.xlu0 24
    %3069 = vperm.xlu0 %3068, %v1603
    %v3070 = vpop.permute.xlu0 %3069
    %v3072 = vmul.f32 %v3070, %v2864
    %v3073 = vmul.f32 %v3070, %v2868
    %v3074 = vmul.f32 %v3070, %v2872
    %v3075 = vmul.f32 %v3070, %v2876
    %v3076 = vmul.f32 %v3070, %v2880
    %v3077 = vmul.f32 %v3070, %v2884
    %v3078 = vmul.f32 %v3070, %v2888
    %v3079 = vmul.f32 %v3070, %v2892
    %3088 = vrot.lane.b32.xlu0 %v3072, 124
    %v3089 = vpop.permute.xlu0 %3088
    %3090 = vrot.lane.b32.xlu0 %v3073, 124
    %v3091 = vpop.permute.xlu0 %3090
    %3092 = vrot.lane.b32.xlu0 %v3074, 124
    %v3093 = vpop.permute.xlu0 %3092
    %3094 = vrot.lane.b32.xlu0 %v3075, 124
    %v3095 = vpop.permute.xlu0 %3094
    %3096 = vrot.lane.b32.xlu0 %v3076, 124
    %v3097 = vpop.permute.xlu0 %3096
    %3098 = vrot.lane.b32.xlu0 %v3077, 124
    %v3099 = vpop.permute.xlu0 %3098
    %3100 = vrot.lane.b32.xlu0 %v3078, 124
    %v3101 = vpop.permute.xlu0 %3100
    %3102 = vrot.lane.b32.xlu0 %v3079, 124
    %v3103 = vpop.permute.xlu0 %3102
    %v3104 = vsel %vm374, %v3089, %v3091
    %v3105 = vsel %vm374, %v3091, %v3093
    %v3106 = vsel %vm374, %v3093, %v3095
    %v3107 = vsel %vm374, %v3095, %v3097
    %v3108 = vsel %vm374, %v3097, %v3099
    %v3109 = vsel %vm374, %v3099, %v3101
    %v3110 = vsel %vm374, %v3101, %v3103
    %v3118 = vadd.f32 %v3061, %v3104
    %v3119 = vadd.f32 %v3062, %v3105
    %v3120 = vadd.f32 %v3063, %v3106
    %v3121 = vadd.f32 %v3064, %v3107
    %v3122 = vadd.f32 %v3065, %v3108
    %v3123 = vadd.f32 %v3066, %v3109
    %v3124 = vadd.f32 %v3067, %v3110
    %3125 = vst [vmem:[#allocation2 + $0x38] sm:$0xff] %v3118
    %3126 = vst [vmem:[#allocation2 + $0x40] sm:$0xff] %v3119
    %3127 = vst [vmem:[#allocation2 + $0x48] sm:$0xff] %v3120
    %3128 = vst [vmem:[#allocation2 + $0x50] sm:$0xff] %v3121
    %3129 = vst [vmem:[#allocation2 + $0x58] sm:$0xff] %v3122
    %3130 = vst [vmem:[#allocation2 + $0x60] sm:$0xff] %v3123
    %3131 = vst [vmem:[#allocation2 + $0x68] sm:$0xff] %v3124
    %v3132 = vld [vmem:[#allocation2] sm:$0xff]
    %v3133 = vld [vmem:[#allocation2 + $0x8] sm:$0xff]
    %v3134 = vld [vmem:[#allocation2 + $0x10] sm:$0xff]
    %v3135 = vld [vmem:[#allocation2 + $0x18] sm:$0xff]
    %v3136 = vld [vmem:[#allocation2 + $0x20] sm:$0xff]
    %v3137 = vld [vmem:[#allocation2 + $0x28] sm:$0xff]
    %v3138 = vld [vmem:[#allocation2 + $0x30] sm:$0xff]
    %v3139 = vld [vmem:[#allocation2 + $0x38] sm:$0xff]
    %v3140 = vld [vmem:[#allocation2 + $0x40] sm:$0xff]
    %v3141 = vld [vmem:[#allocation2 + $0x48] sm:$0xff]
    %v3142 = vld [vmem:[#allocation2 + $0x50] sm:$0xff]
    %v3143 = vld [vmem:[#allocation2 + $0x58] sm:$0xff]
    %v3144 = vld [vmem:[#allocation2 + $0x60] sm:$0xff]
    %v3145 = vld [vmem:[#allocation2 + $0x68] sm:$0xff]
    %v3146 = vld [vmem:[#allocation2 + $0x70] sm:$0xff]
    %3162 = vrot.lane.b32.xlu0 %v3132, 127
    %v3163 = vpop.permute.xlu0 %3162
    %3164 = vrot.lane.b32.xlu0 %v3133, 127
    %v3165 = vpop.permute.xlu0 %3164
    %3166 = vrot.lane.b32.xlu0 %v3134, 127
    %v3167 = vpop.permute.xlu0 %3166
    %3168 = vrot.lane.b32.xlu0 %v3135, 127
    %v3169 = vpop.permute.xlu0 %3168
    %3170 = vrot.lane.b32.xlu0 %v3136, 127
    %v3171 = vpop.permute.xlu0 %3170
    %3172 = vrot.lane.b32.xlu0 %v3137, 127
    %v3173 = vpop.permute.xlu0 %3172
    %3174 = vrot.lane.b32.xlu0 %v3138, 127
    %v3175 = vpop.permute.xlu0 %3174
    %3176 = vrot.lane.b32.xlu0 %v3139, 127
    %v3177 = vpop.permute.xlu0 %3176
    %3178 = vrot.lane.b32.xlu0 %v3140, 127
    %v3179 = vpop.permute.xlu0 %3178
    %3180 = vrot.lane.b32.xlu0 %v3141, 127
    %v3181 = vpop.permute.xlu0 %3180
    %3182 = vrot.lane.b32.xlu0 %v3142, 127
    %v3183 = vpop.permute.xlu0 %3182
    %3184 = vrot.lane.b32.xlu0 %v3143, 127
    %v3185 = vpop.permute.xlu0 %3184
    %3186 = vrot.lane.b32.xlu0 %v3144, 127
    %v3187 = vpop.permute.xlu0 %3186
    %3188 = vrot.lane.b32.xlu0 %v3145, 127
    %v3189 = vpop.permute.xlu0 %3188
    %3190 = vrot.lane.b32.xlu0 %v3146, 127
    %v3191 = vpop.permute.xlu0 %3190
    %v3192 = vsel %vm200, %v3163, %v3165
    %v3193 = vsel %vm200, %v3165, %v3167
    %v3194 = vsel %vm200, %v3167, %v3169
    %v3195 = vsel %vm200, %v3169, %v3171
    %v3196 = vsel %vm200, %v3171, %v3173
    %v3197 = vsel %vm200, %v3173, %v3175
    %v3198 = vsel %vm200, %v3175, %v3177
    %v3199 = vsel %vm200, %v3177, %v3179
    %v3200 = vsel %vm200, %v3179, %v3181
    %v3201 = vsel %vm200, %v3181, %v3183
    %v3202 = vsel %vm200, %v3183, %v3185
    %v3203 = vsel %vm200, %v3185, %v3187
    %v3204 = vsel %vm200, %v3187, %v3189
    %v3205 = vsel %vm200, %v3189, %v3191
    %v3220 = vmax.f32 %v3132, %v3192
    %v3221 = vmax.f32 %v3133, %v3193
    %v3222 = vmax.f32 %v3134, %v3194
    %v3223 = vmax.f32 %v3135, %v3195
    %v3224 = vmax.f32 %v3136, %v3196
    %v3225 = vmax.f32 %v3137, %v3197
    %v3226 = vmax.f32 %v3138, %v3198
    %v3227 = vmax.f32 %v3139, %v3199
    %v3228 = vmax.f32 %v3140, %v3200
    %v3229 = vmax.f32 %v3141, %v3201
    %v3230 = vmax.f32 %v3142, %v3202
    %v3231 = vmax.f32 %v3143, %v3203
    %v3232 = vmax.f32 %v3144, %v3204
    %v3233 = vmax.f32 %v3145, %v3205
    %v3235 = vmax.f32 %v3146, %v3191
    %3251 = vrot.lane.b32.xlu0 %v3220, 96
    %v3252 = vpop.permute.xlu0 %3251
    %3253 = vrot.lane.b32.xlu0 %v3221, 96
    %v3254 = vpop.permute.xlu0 %3253
    %3255 = vrot.lane.b32.xlu0 %v3222, 96
    %v3256 = vpop.permute.xlu0 %3255
    %3257 = vrot.lane.b32.xlu0 %v3223, 96
    %v3258 = vpop.permute.xlu0 %3257
    %3259 = vrot.lane.b32.xlu0 %v3224, 96
    %v3260 = vpop.permute.xlu0 %3259
    %3261 = vrot.lane.b32.xlu0 %v3225, 96
    %v3262 = vpop.permute.xlu0 %3261
    %3263 = vrot.lane.b32.xlu0 %v3226, 96
    %v3264 = vpop.permute.xlu0 %3263
    %3265 = vrot.lane.b32.xlu0 %v3227, 96
    %v3266 = vpop.permute.xlu0 %3265
    %3267 = vrot.lane.b32.xlu0 %v3228, 96
    %v3268 = vpop.permute.xlu0 %3267
    %3269 = vrot.lane.b32.xlu0 %v3229, 96
    %v3270 = vpop.permute.xlu0 %3269
    %3271 = vrot.lane.b32.xlu0 %v3230, 96
    %v3272 = vpop.permute.xlu0 %3271
    %3273 = vrot.lane.b32.xlu0 %v3231, 96
    %v3274 = vpop.permute.xlu0 %3273
    %3275 = vrot.lane.b32.xlu0 %v3232, 96
    %v3276 = vpop.permute.xlu0 %3275
    %3277 = vrot.lane.b32.xlu0 %v3233, 96
    %v3278 = vpop.permute.xlu0 %3277
    %3279 = vrot.lane.b32.xlu0 %v3235, 96
    %v3280 = vpop.permute.xlu0 %3279
    %v3281 = vsel %vm432, %v3252, %v3254
    %v3282 = vsel %vm432, %v3254, %v3256
    %v3283 = vsel %vm432, %v3256, %v3258
    %v3284 = vsel %vm432, %v3258, %v3260
    %v3285 = vsel %vm432, %v3260, %v3262
    %v3286 = vsel %vm432, %v3262, %v3264
    %v3287 = vsel %vm432, %v3264, %v3266
    %v3288 = vsel %vm432, %v3266, %v3268
    %v3289 = vsel %vm432, %v3268, %v3270
    %v3290 = vsel %vm432, %v3270, %v3272
    %v3291 = vsel %vm432, %v3272, %v3274
    %v3292 = vsel %vm432, %v3274, %v3276
    %v3293 = vsel %vm432, %v3276, %v3278
    %v3294 = vsel %vm432, %v3278, %v3280
    %v3309 = vmax.f32 %v3220, %v3281
    %v3310 = vmax.f32 %v3221, %v3282
    %v3311 = vmax.f32 %v3222, %v3283
    %v3312 = vmax.f32 %v3223, %v3284
    %v3313 = vmax.f32 %v3224, %v3285
    %v3314 = vmax.f32 %v3225, %v3286
    %v3315 = vmax.f32 %v3226, %v3287
    %v3316 = vmax.f32 %v3227, %v3288
    %v3317 = vmax.f32 %v3228, %v3289
    %v3318 = vmax.f32 %v3229, %v3290
    %v3319 = vmax.f32 %v3230, %v3291
    %v3320 = vmax.f32 %v3231, %v3292
    %v3321 = vmax.f32 %v3232, %v3293
    %v3322 = vmax.f32 %v3233, %v3294
    %v3323 = vmax.f32 %v3309, 0.0
    %v3324 = vmax.f32 %v3310, 0.0
    %v3325 = vmax.f32 %v3311, 0.0
    %v3326 = vmax.f32 %v3312, 0.0
    %v3327 = vmax.f32 %v3313, 0.0
    %v3328 = vmax.f32 %v3314, 0.0
    %v3329 = vmax.f32 %v3315, 0.0
    %v3330 = vmax.f32 %v3316, 0.0
    %v3331 = vmax.f32 %v3317, 0.0
    %v3332 = vmax.f32 %v3318, 0.0
    %v3333 = vmax.f32 %v3319, 0.0
    %v3334 = vmax.f32 %v3320, 0.0
    %v3335 = vmax.f32 %v3321, 0.0
    %v3336 = vmax.f32 %v3322, 0.0
    %3337 = vst.msk [vmem:[#allocation3] sm:$0xff] %vm1011, %v3323
    %3339 = vrot.lane.b32.xlu0 %v3323, 96
    %v3340 = vpop.permute.xlu0 %3339
    %vm3342 = vcmask 523520
    %3343 = vst.msk [vmem:[#allocation3] sm:$0xff] %vm3342, %v3340
    %3345 = vrot.lane.b32.xlu0 %v3324, 64
    %v3346 = vpop.permute.xlu0 %3345
    %vm3348 = vcmask 785920
    %3349 = vst.msk [vmem:[#allocation3] sm:$0xff] %vm3348, %v3346
    %3350 = vrot.lane.b32.xlu0 %v3324, 32
    %v3351 = vpop.permute.xlu0 %3350
    %vm3353 = vcmask 1048320
    %3354 = vst.msk [vmem:[#allocation3] sm:$0xff] %vm3353, %v3351
    %3355 = vst.msk [vmem:[#allocation3 + $0x8] sm:$0xff] %vm1011, %v3325
    %3357 = vrot.lane.b32.xlu0 %v3325, 96
    %v3358 = vpop.permute.xlu0 %3357
    %3360 = vst.msk [vmem:[#allocation3 + $0x8] sm:$0xff] %vm3342, %v3358
    %3362 = vrot.lane.b32.xlu0 %v3326, 64
    %v3363 = vpop.permute.xlu0 %3362
    %3365 = vst.msk [vmem:[#allocation3 + $0x8] sm:$0xff] %vm3348, %v3363
    %3366 = vrot.lane.b32.xlu0 %v3326, 32
    %v3367 = vpop.permute.xlu0 %3366
    %3369 = vst.msk [vmem:[#allocation3 + $0x8] sm:$0xff] %vm3353, %v3367
    %3370 = vst.msk [vmem:[#allocation3 + $0x10] sm:$0xff] %vm1011, %v3327
    %3372 = vrot.lane.b32.xlu0 %v3327, 96
    %v3373 = vpop.permute.xlu0 %3372
    %3375 = vst.msk [vmem:[#allocation3 + $0x10] sm:$0xff] %vm3342, %v3373
    %3377 = vrot.lane.b32.xlu0 %v3328, 64
    %v3378 = vpop.permute.xlu0 %3377
    %3380 = vst.msk [vmem:[#allocation3 + $0x10] sm:$0xff] %vm3348, %v3378
    %3381 = vrot.lane.b32.xlu0 %v3328, 32
    %v3382 = vpop.permute.xlu0 %3381
    %3384 = vst.msk [vmem:[#allocation3 + $0x10] sm:$0xff] %vm3353, %v3382
    %3385 = vst.msk [vmem:[#allocation3 + $0x18] sm:$0xff] %vm1011, %v3329
    %3387 = vrot.lane.b32.xlu0 %v3329, 96
    %v3388 = vpop.permute.xlu0 %3387
    %3390 = vst.msk [vmem:[#allocation3 + $0x18] sm:$0xff] %vm3342, %v3388
    %3392 = vrot.lane.b32.xlu0 %v3330, 64
    %v3393 = vpop.permute.xlu0 %3392
    %3395 = vst.msk [vmem:[#allocation3 + $0x18] sm:$0xff] %vm3348, %v3393
    %3396 = vrot.lane.b32.xlu0 %v3330, 32
    %v3397 = vpop.permute.xlu0 %3396
    %3399 = vst.msk [vmem:[#allocation3 + $0x18] sm:$0xff] %vm3353, %v3397
    %3400 = vst.msk [vmem:[#allocation3 + $0x20] sm:$0xff] %vm1011, %v3331
    %3402 = vrot.lane.b32.xlu0 %v3331, 96
    %v3403 = vpop.permute.xlu0 %3402
    %3405 = vst.msk [vmem:[#allocation3 + $0x20] sm:$0xff] %vm3342, %v3403
    %3407 = vrot.lane.b32.xlu0 %v3332, 64
    %v3408 = vpop.permute.xlu0 %3407
    %3410 = vst.msk [vmem:[#allocation3 + $0x20] sm:$0xff] %vm3348, %v3408
    %3411 = vrot.lane.b32.xlu0 %v3332, 32
    %v3412 = vpop.permute.xlu0 %3411
    %3414 = vst.msk [vmem:[#allocation3 + $0x20] sm:$0xff] %vm3353, %v3412
    %3415 = vst.msk [vmem:[#allocation3 + $0x28] sm:$0xff] %vm1011, %v3333
    %3417 = vrot.lane.b32.xlu0 %v3333, 96
    %v3418 = vpop.permute.xlu0 %3417
    %3420 = vst.msk [vmem:[#allocation3 + $0x28] sm:$0xff] %vm3342, %v3418
    %3422 = vrot.lane.b32.xlu0 %v3334, 64
    %v3423 = vpop.permute.xlu0 %3422
    %3425 = vst.msk [vmem:[#allocation3 + $0x28] sm:$0xff] %vm3348, %v3423
    %3426 = vrot.lane.b32.xlu0 %v3334, 32
    %v3427 = vpop.permute.xlu0 %3426
    %3429 = vst.msk [vmem:[#allocation3 + $0x28] sm:$0xff] %vm3353, %v3427
    %3430 = vst.msk [vmem:[#allocation3 + $0x30] sm:$0xff] %vm1011, %v3335
    %3432 = vrot.lane.b32.xlu0 %v3335, 96
    %v3433 = vpop.permute.xlu0 %3432
    %3435 = vst.msk [vmem:[#allocation3 + $0x30] sm:$0xff] %vm3342, %v3433
    %3437 = vrot.lane.b32.xlu0 %v3336, 64
    %v3438 = vpop.permute.xlu0 %3437
    %3440 = vst.msk [vmem:[#allocation3 + $0x30] sm:$0xff] %vm3348, %v3438
    %3441 = vrot.lane.b32.xlu0 %v3336, 32
    %v3442 = vpop.permute.xlu0 %3441
    %3444 = vst.msk [vmem:[#allocation3 + $0x30] sm:$0xff] %vm3353, %v3442
    %v3445 = vld [vmem:[#allocation3] sm:$0xff]
    %v3446 = vld [vmem:[#allocation3 + $0x8] sm:$0xff]
    %v3447 = vld [vmem:[#allocation3 + $0x10] sm:$0xff]
    %3448 = vst [vmem:[#allocation4] sm:$0xff] %v3445
    %3449 = vst [vmem:[#allocation4 + $0x8] sm:$0xff] %v3446
    %vm3450 = vcmask 457728
    %3451 = vst.msk [vmem:[#allocation4 + $0x10] sm:$0xff] %vm3450, %v3447
    %v3452 = vld [vmem:[#allocation3] sm:$0xff]
    %v3453 = vld [vmem:[#allocation3 + $0x8] sm:$0xff]
    %v3454 = vld [vmem:[#allocation3 + $0x10] sm:$0xff]
    %3458 = vrot.lane.b32.xlu0 %v3452, 126
    %v3459 = vpop.permute.xlu0 %3458
    %3460 = vrot.lane.b32.xlu0 %v3453, 126
    %v3461 = vpop.permute.xlu0 %3460
    %3462 = vrot.lane.b32.xlu0 %v3454, 126
    %v3463 = vpop.permute.xlu0 %3462
    %v3464 = vsel %vm258, %v3459, %v3461
    %v3465 = vsel %vm258, %v3461, %v3463
    %3469 = vst [vmem:[#allocation4 + $0x28] sm:$0xff] %v3464
    %3470 = vst [vmem:[#allocation4 + $0x30] sm:$0xff] %v3465
    %3471 = vst.msk [vmem:[#allocation4 + $0x38] sm:$0xff] %vm3450, %v3463
    %v3472 = vld [vmem:[#allocation3] sm:$0xff]
    %v3473 = vld [vmem:[#allocation3 + $0x8] sm:$0xff]
    %v3474 = vld [vmem:[#allocation3 + $0x10] sm:$0xff]
    %3478 = vrot.lane.b32.xlu0 %v3472, 124
    %v3479 = vpop.permute.xlu0 %3478
    %3480 = vrot.lane.b32.xlu0 %v3473, 124
    %v3481 = vpop.permute.xlu0 %3480
    %3482 = vrot.lane.b32.xlu0 %v3474, 124
    %v3483 = vpop.permute.xlu0 %3482
    %v3484 = vsel %vm374, %v3479, %v3481
    %v3485 = vsel %vm374, %v3481, %v3483
    %3489 = vst [vmem:[#allocation4 + $0x50] sm:$0xff] %v3484
    %3490 = vst [vmem:[#allocation4 + $0x58] sm:$0xff] %v3485
    %3491 = vst.msk [vmem:[#allocation4 + $0x60] sm:$0xff] %vm3450, %v3483
    %v3492 = vld [vmem:[#allocation3] sm:$0xff]
    %v3493 = vld [vmem:[#allocation3 + $0x8] sm:$0xff]
    %v3494 = vld [vmem:[#allocation3 + $0x10] sm:$0xff]
    %3498 = vrot.lane.b32.xlu0 %v3492, 122
    %v3499 = vpop.permute.xlu0 %3498
    %3500 = vrot.lane.b32.xlu0 %v3493, 122
    %v3501 = vpop.permute.xlu0 %3500
    %3502 = vrot.lane.b32.xlu0 %v3494, 122
    %v3503 = vpop.permute.xlu0 %3502
    %vm3504 = vcmask 998400
    %v3505 = vsel %vm3504, %v3499, %v3501
    %v3506 = vsel %vm3504, %v3501, %v3503
    %3510 = vst [vmem:[#allocation4 + $0x78] sm:$0xff] %v3505
    %3511 = vst [vmem:[#allocation4 + $0x80] sm:$0xff] %v3506
    %3512 = vst.msk [vmem:[#allocation4 + $0x88] sm:$0xff] %vm3450, %v3503
    %v3513 = vld [vmem:[#allocation3] sm:$0xff]
    %v3514 = vld [vmem:[#allocation3 + $0x8] sm:$0xff]
    %v3515 = vld [vmem:[#allocation3 + $0x10] sm:$0xff]
    %3519 = vrot.lane.b32.xlu0 %v3513, 120
    %v3520 = vpop.permute.xlu0 %3519
    %3521 = vrot.lane.b32.xlu0 %v3514, 120
    %v3522 = vpop.permute.xlu0 %3521
    %3523 = vrot.lane.b32.xlu0 %v3515, 120
    %v3524 = vpop.permute.xlu0 %3523
    %vm3525 = vcmask 982016
    %v3526 = vsel %vm3525, %v3520, %v3522
    %v3527 = vsel %vm3525, %v3522, %v3524
    %3531 = vst [vmem:[#allocation4 + $0xa0] sm:$0xff] %v3526
    %3532 = vst [vmem:[#allocation4 + $0xa8] sm:$0xff] %v3527
    %3533 = vst.msk [vmem:[#allocation4 + $0xb0] sm:$0xff] %vm3450, %v3524
    %v3534 = vld [vmem:[#allocation3] sm:$0xff]
    %v3535 = vld [vmem:[#allocation3 + $0x8] sm:$0xff]
    %v3536 = vld [vmem:[#allocation3 + $0x10] sm:$0xff]
    %3540 = vrot.lane.b32.xlu0 %v3534, 96
    %v3541 = vpop.permute.xlu0 %3540
    %3542 = vrot.lane.b32.xlu0 %v3535, 96
    %v3543 = vpop.permute.xlu0 %3542
    %3544 = vrot.lane.b32.xlu0 %v3536, 96
    %v3545 = vpop.permute.xlu0 %3544
    %v3546 = vsel %vm432, %v3541, %v3543
    %v3547 = vsel %vm432, %v3543, %v3545
    %3551 = vst [vmem:[#allocation4 + $0xc8] sm:$0xff] %v3546
    %3552 = vst [vmem:[#allocation4 + $0xd0] sm:$0xff] %v3547
    %3553 = vst.msk [vmem:[#allocation4 + $0xd8] sm:$0xff] %vm3450, %v3545
    %v3554 = vld [vmem:[#allocation3] sm:$0xff]
    %v3555 = vld [vmem:[#allocation3 + $0x8] sm:$0xff]
    %v3556 = vld [vmem:[#allocation3 + $0x10] sm:$0xff]
    %3560 = vrot.lane.b32.xlu0 %v3554, 94
    %v3561 = vpop.permute.xlu0 %3560
    %3562 = vrot.lane.b32.xlu0 %v3555, 94
    %v3563 = vpop.permute.xlu0 %3562
    %3564 = vrot.lane.b32.xlu0 %v3556, 94
    %v3565 = vpop.permute.xlu0 %3564
    %v3566 = vsel %vm548, %v3561, %v3563
    %v3567 = vsel %vm548, %v3563, %v3565
    %3571 = vst [vmem:[#allocation4 + $0xf0] sm:$0xff] %v3566
    %3572 = vst [vmem:[#allocation4 + $0xf8] sm:$0xff] %v3567
    %3573 = vst.msk [vmem:[#allocation4 + $0x100] sm:$0xff] %vm3450, %v3565
    %v3574 = vld [vmem:[#allocation3] sm:$0xff]
    %v3575 = vld [vmem:[#allocation3 + $0x8] sm:$0xff]
    %v3576 = vld [vmem:[#allocation3 + $0x10] sm:$0xff]
    %3580 = vrot.lane.b32.xlu0 %v3574, 92
    %v3581 = vpop.permute.xlu0 %3580
    %3582 = vrot.lane.b32.xlu0 %v3575, 92
    %v3583 = vpop.permute.xlu0 %3582
    %3584 = vrot.lane.b32.xlu0 %v3576, 92
    %v3585 = vpop.permute.xlu0 %3584
    %v3586 = vsel %vm664, %v3581, %v3583
    %v3587 = vsel %vm664, %v3583, %v3585
    %3591 = vst [vmem:[#allocation4 + $0x118] sm:$0xff] %v3586
    %3592 = vst [vmem:[#allocation4 + $0x120] sm:$0xff] %v3587
    %3593 = vst.msk [vmem:[#allocation4 + $0x128] sm:$0xff] %vm3450, %v3585
    %v3594 = vld [vmem:[#allocation3] sm:$0xff]
    %v3595 = vld [vmem:[#allocation3 + $0x8] sm:$0xff]
    %v3596 = vld [vmem:[#allocation3 + $0x10] sm:$0xff]
    %3600 = vrot.lane.b32.xlu0 %v3594, 90
    %v3601 = vpop.permute.xlu0 %3600
    %3602 = vrot.lane.b32.xlu0 %v3595, 90
    %v3603 = vpop.permute.xlu0 %3602
    %3604 = vrot.lane.b32.xlu0 %v3596, 90
    %v3605 = vpop.permute.xlu0 %3604
    %vm3606 = vcmask 736256
    %v3607 = vsel %vm3606, %v3601, %v3603
    %v3608 = vsel %vm3606, %v3603, %v3605
    %3612 = vst [vmem:[#allocation4 + $0x140] sm:$0xff] %v3607
    %3613 = vst [vmem:[#allocation4 + $0x148] sm:$0xff] %v3608
    %3614 = vst.msk [vmem:[#allocation4 + $0x150] sm:$0xff] %vm3450, %v3605
    %v3615 = vld [vmem:[#allocation3] sm:$0xff]
    %v3616 = vld [vmem:[#allocation3 + $0x8] sm:$0xff]
    %v3617 = vld [vmem:[#allocation3 + $0x10] sm:$0xff]
    %3621 = vrot.lane.b32.xlu0 %v3615, 88
    %v3622 = vpop.permute.xlu0 %3621
    %3623 = vrot.lane.b32.xlu0 %v3616, 88
    %v3624 = vpop.permute.xlu0 %3623
    %3625 = vrot.lane.b32.xlu0 %v3617, 88
    %v3626 = vpop.permute.xlu0 %3625
    %vm3627 = vcmask 719872
    %v3628 = vsel %vm3627, %v3622, %v3624
    %v3629 = vsel %vm3627, %v3624, %v3626
    %3633 = vst [vmem:[#allocation4 + $0x168] sm:$0xff] %v3628
    %3634 = vst [vmem:[#allocation4 + $0x170] sm:$0xff] %v3629
    %3635 = vst.msk [vmem:[#allocation4 + $0x178] sm:$0xff] %vm3450, %v3626
    %v3636 = vld [vmem:[#allocation3] sm:$0xff]
    %v3637 = vld [vmem:[#allocation3 + $0x8] sm:$0xff]
    %v3638 = vld [vmem:[#allocation3 + $0x10] sm:$0xff]
    %3642 = vrot.lane.b32.xlu0 %v3636, 64
    %v3643 = vpop.permute.xlu0 %3642
    %3644 = vrot.lane.b32.xlu0 %v3637, 64
    %v3645 = vpop.permute.xlu0 %3644
    %3646 = vrot.lane.b32.xlu0 %v3638, 64
    %v3647 = vpop.permute.xlu0 %3646
    %v3648 = vsel %vm47, %v3643, %v3645
    %v3649 = vsel %vm47, %v3645, %v3647
    %3653 = vst [vmem:[#allocation4 + $0x190] sm:$0xff] %v3648
    %3654 = vst [vmem:[#allocation4 + $0x198] sm:$0xff] %v3649
    %3655 = vst.msk [vmem:[#allocation4 + $0x1a0] sm:$0xff] %vm3450, %v3647
    %v3656 = vld [vmem:[#allocation3] sm:$0xff]
    %v3657 = vld [vmem:[#allocation3 + $0x8] sm:$0xff]
    %v3658 = vld [vmem:[#allocation3 + $0x10] sm:$0xff]
    %3662 = vrot.lane.b32.xlu0 %v3656, 62
    %v3663 = vpop.permute.xlu0 %3662
    %3664 = vrot.lane.b32.xlu0 %v3657, 62
    %v3665 = vpop.permute.xlu0 %3664
    %3666 = vrot.lane.b32.xlu0 %v3658, 62
    %v3667 = vpop.permute.xlu0 %3666
    %v3668 = vsel %vm837, %v3663, %v3665
    %v3669 = vsel %vm837, %v3665, %v3667
    %3673 = vst [vmem:[#allocation4 + $0x1b8] sm:$0xff] %v3668
    %3674 = vst [vmem:[#allocation4 + $0x1c0] sm:$0xff] %v3669
    %3675 = vst.msk [vmem:[#allocation4 + $0x1c8] sm:$0xff] %vm3450, %v3667
    %v3676 = vld [vmem:[#allocation3] sm:$0xff]
    %v3677 = vld [vmem:[#allocation3 + $0x8] sm:$0xff]
    %v3678 = vld [vmem:[#allocation3 + $0x10] sm:$0xff]
    %3682 = vrot.lane.b32.xlu0 %v3676, 60
    %v3683 = vpop.permute.xlu0 %3682
    %3684 = vrot.lane.b32.xlu0 %v3677, 60
    %v3685 = vpop.permute.xlu0 %3684
    %3686 = vrot.lane.b32.xlu0 %v3678, 60
    %v3687 = vpop.permute.xlu0 %3686
    %v3688 = vsel %vm953, %v3683, %v3685
    %v3689 = vsel %vm953, %v3685, %v3687
    %3693 = vst [vmem:[#allocation4 + $0x1e0] sm:$0xff] %v3688
    %3694 = vst [vmem:[#allocation4 + $0x1e8] sm:$0xff] %v3689
    %3695 = vst.msk [vmem:[#allocation4 + $0x1f0] sm:$0xff] %vm3450, %v3687
    %v3696 = vld [vmem:[#allocation3] sm:$0xff]
    %v3697 = vld [vmem:[#allocation3 + $0x8] sm:$0xff]
    %v3698 = vld [vmem:[#allocation3 + $0x10] sm:$0xff]
    %3702 = vrot.lane.b32.xlu0 %v3696, 58
    %v3703 = vpop.permute.xlu0 %3702
    %3704 = vrot.lane.b32.xlu0 %v3697, 58
    %v3705 = vpop.permute.xlu0 %3704
    %3706 = vrot.lane.b32.xlu0 %v3698, 58
    %v3707 = vpop.permute.xlu0 %3706
    %vm3708 = vcmask 474112
    %v3709 = vsel %vm3708, %v3703, %v3705
    %v3710 = vsel %vm3708, %v3705, %v3707
    %3714 = vst [vmem:[#allocation4 + $0x208] sm:$0xff] %v3709
    %3715 = vst [vmem:[#allocation4 + $0x210] sm:$0xff] %v3710
    %3716 = vst.msk [vmem:[#allocation4 + $0x218] sm:$0xff] %vm3450, %v3707
    %v3717 = vld [vmem:[#allocation3] sm:$0xff]
    %v3718 = vld [vmem:[#allocation3 + $0x8] sm:$0xff]
    %v3719 = vld [vmem:[#allocation3 + $0x10] sm:$0xff]
    %3723 = vrot.lane.b32.xlu0 %v3717, 56
    %v3724 = vpop.permute.xlu0 %3723
    %3725 = vrot.lane.b32.xlu0 %v3718, 56
    %v3726 = vpop.permute.xlu0 %3725
    %3727 = vrot.lane.b32.xlu0 %v3719, 56
    %v3728 = vpop.permute.xlu0 %3727
    %v3729 = vsel %vm3450, %v3724, %v3726
    %v3730 = vsel %vm3450, %v3726, %v3728
    %3734 = vst [vmem:[#allocation4 + $0x230] sm:$0xff] %v3729
    %3735 = vst [vmem:[#allocation4 + $0x238] sm:$0xff] %v3730
    %3736 = vst.msk [vmem:[#allocation4 + $0x240] sm:$0xff] %vm3450, %v3728
    %v3737 = vld [vmem:[#allocation3] sm:$0xff]
    %v3738 = vld [vmem:[#allocation3 + $0x8] sm:$0xff]
    %v3739 = vld [vmem:[#allocation3 + $0x10] sm:$0xff]
    %v3740 = vld [vmem:[#allocation3 + $0x18] sm:$0xff]
    %3745 = vrot.lane.b32.xlu0 %v3737, 32
    %v3746 = vpop.permute.xlu0 %3745
    %3747 = vrot.lane.b32.xlu0 %v3738, 32
    %v3748 = vpop.permute.xlu0 %3747
    %3749 = vrot.lane.b32.xlu0 %v3739, 32
    %v3750 = vpop.permute.xlu0 %3749
    %3751 = vrot.lane.b32.xlu0 %v3740, 32
    %v3752 = vpop.permute.xlu0 %3751
    %v3753 = vsel %vm1011, %v3746, %v3748
    %v3754 = vsel %vm1011, %v3748, %v3750
    %v3755 = vsel %vm1011, %v3750, %v3752
    %3759 = vst [vmem:[#allocation4 + $0x258] sm:$0xff] %v3753
    %3760 = vst [vmem:[#allocation4 + $0x260] sm:$0xff] %v3754
    %3761 = vst.msk [vmem:[#allocation4 + $0x268] sm:$0xff] %vm3450, %v3755
    %v3762 = vld [vmem:[#allocation3] sm:$0xff]
    %v3763 = vld [vmem:[#allocation3 + $0x8] sm:$0xff]
    %v3764 = vld [vmem:[#allocation3 + $0x10] sm:$0xff]
    %v3765 = vld [vmem:[#allocation3 + $0x18] sm:$0xff]
    %3770 = vrot.lane.b32.xlu0 %v3762, 30
    %v3771 = vpop.permute.xlu0 %3770
    %3772 = vrot.lane.b32.xlu0 %v3763, 30
    %v3773 = vpop.permute.xlu0 %3772
    %3774 = vrot.lane.b32.xlu0 %v3764, 30
    %v3775 = vpop.permute.xlu0 %3774
    %3776 = vrot.lane.b32.xlu0 %v3765, 30
    %v3777 = vpop.permute.xlu0 %3776
    %v3778 = vsel %vm1127, %v3771, %v3773
    %v3779 = vsel %vm1127, %v3773, %v3775
    %v3780 = vsel %vm1127, %v3775, %v3777
    %3784 = vst [vmem:[#allocation4 + $0x280] sm:$0xff] %v3778
    %3785 = vst [vmem:[#allocation4 + $0x288] sm:$0xff] %v3779
    %3786 = vst.msk [vmem:[#allocation4 + $0x290] sm:$0xff] %vm3450, %v3780
    %v3787 = vld [vmem:[#allocation3] sm:$0xff]
    %v3788 = vld [vmem:[#allocation3 + $0x8] sm:$0xff]
    %v3789 = vld [vmem:[#allocation3 + $0x10] sm:$0xff]
    %v3790 = vld [vmem:[#allocation3 + $0x18] sm:$0xff]
    %3795 = vrot.lane.b32.xlu0 %v3787, 28
    %v3796 = vpop.permute.xlu0 %3795
    %3797 = vrot.lane.b32.xlu0 %v3788, 28
    %v3798 = vpop.permute.xlu0 %3797
    %3799 = vrot.lane.b32.xlu0 %v3789, 28
    %v3800 = vpop.permute.xlu0 %3799
    %3801 = vrot.lane.b32.xlu0 %v3790, 28
    %v3802 = vpop.permute.xlu0 %3801
    %v3803 = vsel %vm1243, %v3796, %v3798
    %v3804 = vsel %vm1243, %v3798, %v3800
    %v3805 = vsel %vm1243, %v3800, %v3802
    %3809 = vst [vmem:[#allocation4 + $0x2a8] sm:$0xff] %v3803
    %3810 = vst [vmem:[#allocation4 + $0x2b0] sm:$0xff] %v3804
    %3811 = vst.msk [vmem:[#allocation4 + $0x2b8] sm:$0xff] %vm3450, %v3805
    %v3812 = vld [vmem:[#allocation3] sm:$0xff]
    %v3813 = vld [vmem:[#allocation3 + $0x8] sm:$0xff]
    %v3814 = vld [vmem:[#allocation3 + $0x10] sm:$0xff]
    %v3815 = vld [vmem:[#allocation3 + $0x18] sm:$0xff]
    %3820 = vrot.lane.b32.xlu0 %v3812, 26
    %v3821 = vpop.permute.xlu0 %3820
    %3822 = vrot.lane.b32.xlu0 %v3813, 26
    %v3823 = vpop.permute.xlu0 %3822
    %3824 = vrot.lane.b32.xlu0 %v3814, 26
    %v3825 = vpop.permute.xlu0 %3824
    %3826 = vrot.lane.b32.xlu0 %v3815, 26
    %v3827 = vpop.permute.xlu0 %3826
    %vm3828 = vcmask 211968
    %v3829 = vsel %vm3828, %v3821, %v3823
    %v3830 = vsel %vm3828, %v3823, %v3825
    %v3831 = vsel %vm3828, %v3825, %v3827
    %3835 = vst [vmem:[#allocation4 + $0x2d0] sm:$0xff] %v3829
    %3836 = vst [vmem:[#allocation4 + $0x2d8] sm:$0xff] %v3830
    %3837 = vst.msk [vmem:[#allocation4 + $0x2e0] sm:$0xff] %vm3450, %v3831
    %v3838 = vld [vmem:[#allocation3] sm:$0xff]
    %v3839 = vld [vmem:[#allocation3 + $0x8] sm:$0xff]
    %v3840 = vld [vmem:[#allocation3 + $0x10] sm:$0xff]
    %v3841 = vld [vmem:[#allocation3 + $0x18] sm:$0xff]
    %3846 = vrot.lane.b32.xlu0 %v3838, 24
    %v3847 = vpop.permute.xlu0 %3846
    %3848 = vrot.lane.b32.xlu0 %v3839, 24
    %v3849 = vpop.permute.xlu0 %3848
    %3850 = vrot.lane.b32.xlu0 %v3840, 24
    %v3851 = vpop.permute.xlu0 %3850
    %3852 = vrot.lane.b32.xlu0 %v3841, 24
    %v3853 = vpop.permute.xlu0 %3852
    %vm3854 = vcmask 195584
    %v3855 = vsel %vm3854, %v3847, %v3849
    %v3856 = vsel %vm3854, %v3849, %v3851
    %v3857 = vsel %vm3854, %v3851, %v3853
    %3861 = vst [vmem:[#allocation4 + $0x2f8] sm:$0xff] %v3855
    %3862 = vst [vmem:[#allocation4 + $0x300] sm:$0xff] %v3856
    %3863 = vst.msk [vmem:[#allocation4 + $0x308] sm:$0xff] %vm3450, %v3857
    %v3864 = vld [vmem:[#allocation3 + $0x8] sm:$0xff]
    %v3865 = vld [vmem:[#allocation3 + $0x10] sm:$0xff]
    %v3866 = vld [vmem:[#allocation3 + $0x18] sm:$0xff]
    %3867 = vst [vmem:[#allocation4 + $0x320] sm:$0xff] %v3864
    %3868 = vst [vmem:[#allocation4 + $0x328] sm:$0xff] %v3865
    %3869 = vst.msk [vmem:[#allocation4 + $0x330] sm:$0xff] %vm3450, %v3866
    %v3870 = vld [vmem:[#allocation3 + $0x8] sm:$0xff]
    %v3871 = vld [vmem:[#allocation3 + $0x10] sm:$0xff]
    %v3872 = vld [vmem:[#allocation3 + $0x18] sm:$0xff]
    %3876 = vrot.lane.b32.xlu0 %v3870, 126
    %v3877 = vpop.permute.xlu0 %3876
    %3878 = vrot.lane.b32.xlu0 %v3871, 126
    %v3879 = vpop.permute.xlu0 %3878
    %3880 = vrot.lane.b32.xlu0 %v3872, 126
    %v3881 = vpop.permute.xlu0 %3880
    %v3882 = vsel %vm258, %v3877, %v3879
    %v3883 = vsel %vm258, %v3879, %v3881
    %3887 = vst [vmem:[#allocation4 + $0x348] sm:$0xff] %v3882
    %3888 = vst [vmem:[#allocation4 + $0x350] sm:$0xff] %v3883
    %3889 = vst.msk [vmem:[#allocation4 + $0x358] sm:$0xff] %vm3450, %v3881
    %v3890 = vld [vmem:[#allocation3 + $0x8] sm:$0xff]
    %v3891 = vld [vmem:[#allocation3 + $0x10] sm:$0xff]
    %v3892 = vld [vmem:[#allocation3 + $0x18] sm:$0xff]
    %3896 = vrot.lane.b32.xlu0 %v3890, 124
    %v3897 = vpop.permute.xlu0 %3896
    %3898 = vrot.lane.b32.xlu0 %v3891, 124
    %v3899 = vpop.permute.xlu0 %3898
    %3900 = vrot.lane.b32.xlu0 %v3892, 124
    %v3901 = vpop.permute.xlu0 %3900
    %v3902 = vsel %vm374, %v3897, %v3899
    %v3903 = vsel %vm374, %v3899, %v3901
    %3907 = vst [vmem:[#allocation4 + $0x370] sm:$0xff] %v3902
    %3908 = vst [vmem:[#allocation4 + $0x378] sm:$0xff] %v3903
    %3909 = vst.msk [vmem:[#allocation4 + $0x380] sm:$0xff] %vm3450, %v3901
    %v3910 = vld [vmem:[#allocation3 + $0x8] sm:$0xff]
    %v3911 = vld [vmem:[#allocation3 + $0x10] sm:$0xff]
    %v3912 = vld [vmem:[#allocation3 + $0x18] sm:$0xff]
    %3916 = vrot.lane.b32.xlu0 %v3910, 122
    %v3917 = vpop.permute.xlu0 %3916
    %3918 = vrot.lane.b32.xlu0 %v3911, 122
    %v3919 = vpop.permute.xlu0 %3918
    %3920 = vrot.lane.b32.xlu0 %v3912, 122
    %v3921 = vpop.permute.xlu0 %3920
    %v3922 = vsel %vm3504, %v3917, %v3919
    %v3923 = vsel %vm3504, %v3919, %v3921
    %3927 = vst [vmem:[#allocation4 + $0x398] sm:$0xff] %v3922
    %3928 = vst [vmem:[#allocation4 + $0x3a0] sm:$0xff] %v3923
    %3929 = vst.msk [vmem:[#allocation4 + $0x3a8] sm:$0xff] %vm3450, %v3921
    %v3930 = vld [vmem:[#allocation3 + $0x8] sm:$0xff]
    %v3931 = vld [vmem:[#allocation3 + $0x10] sm:$0xff]
    %v3932 = vld [vmem:[#allocation3 + $0x18] sm:$0xff]
    %3936 = vrot.lane.b32.xlu0 %v3930, 120
    %v3937 = vpop.permute.xlu0 %3936
    %3938 = vrot.lane.b32.xlu0 %v3931, 120
    %v3939 = vpop.permute.xlu0 %3938
    %3940 = vrot.lane.b32.xlu0 %v3932, 120
    %v3941 = vpop.permute.xlu0 %3940
    %v3942 = vsel %vm3525, %v3937, %v3939
    %v3943 = vsel %vm3525, %v3939, %v3941
    %3947 = vst [vmem:[#allocation4 + $0x3c0] sm:$0xff] %v3942
    %3948 = vst [vmem:[#allocation4 + $0x3c8] sm:$0xff] %v3943
    %3949 = vst.msk [vmem:[#allocation4 + $0x3d0] sm:$0xff] %vm3450, %v3941
    %v3950 = vld [vmem:[#allocation3 + $0x18] sm:$0xff]
    %v3951 = vld [vmem:[#allocation3 + $0x20] sm:$0xff]
    %v3952 = vld [vmem:[#allocation3 + $0x28] sm:$0xff]
    %3956 = vrot.lane.b32.xlu0 %v3950, 120
    %v3957 = vpop.permute.xlu0 %3956
    %3958 = vrot.lane.b32.xlu0 %v3951, 120
    %v3959 = vpop.permute.xlu0 %3958
    %3960 = vrot.lane.b32.xlu0 %v3952, 120
    %v3961 = vpop.permute.xlu0 %3960
    %v3962 = vsel %vm3525, %v3957, %v3959
    %v3963 = vsel %vm3525, %v3959, %v3961
    %vm3967 = vcmask 1048000
    %3968 = vst.msk [vmem:[#allocation4 + $0x10] sm:$0xff] %vm3967, %v3962
    %3969 = vst [vmem:[#allocation4 + $0x18] sm:$0xff] %v3963
    %vm3970 = vcmask 916480
    %3971 = vst.msk [vmem:[#allocation4 + $0x20] sm:$0xff] %vm3970, %v3961
    %v3972 = vld [vmem:[#allocation3 + $0x18] sm:$0xff]
    %v3973 = vld [vmem:[#allocation3 + $0x20] sm:$0xff]
    %v3974 = vld [vmem:[#allocation3 + $0x28] sm:$0xff]
    %3978 = vrot.lane.b32.xlu0 %v3972, 118
    %v3979 = vpop.permute.xlu0 %3978
    %3980 = vrot.lane.b32.xlu0 %v3973, 118
    %v3981 = vpop.permute.xlu0 %3980
    %3982 = vrot.lane.b32.xlu0 %v3974, 118
    %v3983 = vpop.permute.xlu0 %3982
    %vm3984 = vcmask 965632
    %v3985 = vsel %vm3984, %v3979, %v3981
    %v3986 = vsel %vm3984, %v3981, %v3983
    %3990 = vst.msk [vmem:[#allocation4 + $0x38] sm:$0xff] %vm3967, %v3985
    %3991 = vst [vmem:[#allocation4 + $0x40] sm:$0xff] %v3986
    %3992 = vst.msk [vmem:[#allocation4 + $0x48] sm:$0xff] %vm3970, %v3983
    %v3993 = vld [vmem:[#allocation3 + $0x18] sm:$0xff]
    %v3994 = vld [vmem:[#allocation3 + $0x20] sm:$0xff]
    %v3995 = vld [vmem:[#allocation3 + $0x28] sm:$0xff]
    %3999 = vrot.lane.b32.xlu0 %v3993, 116
    %v4000 = vpop.permute.xlu0 %3999
    %4001 = vrot.lane.b32.xlu0 %v3994, 116
    %v4002 = vpop.permute.xlu0 %4001
    %4003 = vrot.lane.b32.xlu0 %v3995, 116
    %v4004 = vpop.permute.xlu0 %4003
    %vm4005 = vcmask 949248
    %v4006 = vsel %vm4005, %v4000, %v4002
    %v4007 = vsel %vm4005, %v4002, %v4004
    %4011 = vst.msk [vmem:[#allocation4 + $0x60] sm:$0xff] %vm3967, %v4006
    %4012 = vst [vmem:[#allocation4 + $0x68] sm:$0xff] %v4007
    %4013 = vst.msk [vmem:[#allocation4 + $0x70] sm:$0xff] %vm3970, %v4004
    %v4014 = vld [vmem:[#allocation3 + $0x18] sm:$0xff]
    %v4015 = vld [vmem:[#allocation3 + $0x20] sm:$0xff]
    %v4016 = vld [vmem:[#allocation3 + $0x28] sm:$0xff]
    %4020 = vrot.lane.b32.xlu0 %v4014, 114
    %v4021 = vpop.permute.xlu0 %4020
    %4022 = vrot.lane.b32.xlu0 %v4015, 114
    %v4023 = vpop.permute.xlu0 %4022
    %4024 = vrot.lane.b32.xlu0 %v4016, 114
    %v4025 = vpop.permute.xlu0 %4024
    %vm4026 = vcmask 932864
    %v4027 = vsel %vm4026, %v4021, %v4023
    %v4028 = vsel %vm4026, %v4023, %v4025
    %4032 = vst.msk [vmem:[#allocation4 + $0x88] sm:$0xff] %vm3967, %v4027
    %4033 = vst [vmem:[#allocation4 + $0x90] sm:$0xff] %v4028
    %4034 = vst.msk [vmem:[#allocation4 + $0x98] sm:$0xff] %vm3970, %v4025
    %v4035 = vld [vmem:[#allocation3 + $0x18] sm:$0xff]
    %v4036 = vld [vmem:[#allocation3 + $0x20] sm:$0xff]
    %v4037 = vld [vmem:[#allocation3 + $0x28] sm:$0xff]
    %4041 = vrot.lane.b32.xlu0 %v4035, 112
    %v4042 = vpop.permute.xlu0 %4041
    %4043 = vrot.lane.b32.xlu0 %v4036, 112
    %v4044 = vpop.permute.xlu0 %4043
    %4045 = vrot.lane.b32.xlu0 %v4037, 112
    %v4046 = vpop.permute.xlu0 %4045
    %v4047 = vsel %vm3970, %v4042, %v4044
    %v4048 = vsel %vm3970, %v4044, %v4046
    %4052 = vst.msk [vmem:[#allocation4 + $0xb0] sm:$0xff] %vm3967, %v4047
    %4053 = vst [vmem:[#allocation4 + $0xb8] sm:$0xff] %v4048
    %4054 = vst.msk [vmem:[#allocation4 + $0xc0] sm:$0xff] %vm3970, %v4046
    %v4055 = vld [vmem:[#allocation3 + $0x18] sm:$0xff]
    %v4056 = vld [vmem:[#allocation3 + $0x20] sm:$0xff]
    %v4057 = vld [vmem:[#allocation3 + $0x28] sm:$0xff]
    %v4058 = vld [vmem:[#allocation3 + $0x30] sm:$0xff]
    %4063 = vrot.lane.b32.xlu0 %v4055, 88
    %v4064 = vpop.permute.xlu0 %4063
    %4065 = vrot.lane.b32.xlu0 %v4056, 88
    %v4066 = vpop.permute.xlu0 %4065
    %4067 = vrot.lane.b32.xlu0 %v4057, 88
    %v4068 = vpop.permute.xlu0 %4067
    %4069 = vrot.lane.b32.xlu0 %v4058, 88
    %v4070 = vpop.permute.xlu0 %4069
    %v4071 = vsel %vm3627, %v4064, %v4066
    %v4072 = vsel %vm3627, %v4066, %v4068
    %v4073 = vsel %vm3627, %v4068, %v4070
    %4077 = vst.msk [vmem:[#allocation4 + $0xd8] sm:$0xff] %vm3967, %v4071
    %4078 = vst [vmem:[#allocation4 + $0xe0] sm:$0xff] %v4072
    %4079 = vst.msk [vmem:[#allocation4 + $0xe8] sm:$0xff] %vm3970, %v4073
    %v4080 = vld [vmem:[#allocation3 + $0x18] sm:$0xff]
    %v4081 = vld [vmem:[#allocation3 + $0x20] sm:$0xff]
    %v4082 = vld [vmem:[#allocation3 + $0x28] sm:$0xff]
    %v4083 = vld [vmem:[#allocation3 + $0x30] sm:$0xff]
    %4088 = vrot.lane.b32.xlu0 %v4080, 86
    %v4089 = vpop.permute.xlu0 %4088
    %4090 = vrot.lane.b32.xlu0 %v4081, 86
    %v4091 = vpop.permute.xlu0 %4090
    %4092 = vrot.lane.b32.xlu0 %v4082, 86
    %v4093 = vpop.permute.xlu0 %4092
    %4094 = vrot.lane.b32.xlu0 %v4083, 86
    %v4095 = vpop.permute.xlu0 %4094
    %vm4096 = vcmask 703488
    %v4097 = vsel %vm4096, %v4089, %v4091
    %v4098 = vsel %vm4096, %v4091, %v4093
    %v4099 = vsel %vm4096, %v4093, %v4095
    %4103 = vst.msk [vmem:[#allocation4 + $0x100] sm:$0xff] %vm3967, %v4097
    %4104 = vst [vmem:[#allocation4 + $0x108] sm:$0xff] %v4098
    %4105 = vst.msk [vmem:[#allocation4 + $0x110] sm:$0xff] %vm3970, %v4099
    %v4106 = vld [vmem:[#allocation3 + $0x18] sm:$0xff]
    %v4107 = vld [vmem:[#allocation3 + $0x20] sm:$0xff]
    %v4108 = vld [vmem:[#allocation3 + $0x28] sm:$0xff]
    %v4109 = vld [vmem:[#allocation3 + $0x30] sm:$0xff]
    %4114 = vrot.lane.b32.xlu0 %v4106, 84
    %v4115 = vpop.permute.xlu0 %4114
    %4116 = vrot.lane.b32.xlu0 %v4107, 84
    %v4117 = vpop.permute.xlu0 %4116
    %4118 = vrot.lane.b32.xlu0 %v4108, 84
    %v4119 = vpop.permute.xlu0 %4118
    %4120 = vrot.lane.b32.xlu0 %v4109, 84
    %v4121 = vpop.permute.xlu0 %4120
    %vm4122 = vcmask 687104
    %v4123 = vsel %vm4122, %v4115, %v4117
    %v4124 = vsel %vm4122, %v4117, %v4119
    %v4125 = vsel %vm4122, %v4119, %v4121
    %4129 = vst.msk [vmem:[#allocation4 + $0x128] sm:$0xff] %vm3967, %v4123
    %4130 = vst [vmem:[#allocation4 + $0x130] sm:$0xff] %v4124
    %4131 = vst.msk [vmem:[#allocation4 + $0x138] sm:$0xff] %vm3970, %v4125
    %v4132 = vld [vmem:[#allocation3 + $0x18] sm:$0xff]
    %v4133 = vld [vmem:[#allocation3 + $0x20] sm:$0xff]
    %v4134 = vld [vmem:[#allocation3 + $0x28] sm:$0xff]
    %v4135 = vld [vmem:[#allocation3 + $0x30] sm:$0xff]
    %4140 = vrot.lane.b32.xlu0 %v4132, 82
    %v4141 = vpop.permute.xlu0 %4140
    %4142 = vrot.lane.b32.xlu0 %v4133, 82
    %v4143 = vpop.permute.xlu0 %4142
    %4144 = vrot.lane.b32.xlu0 %v4134, 82
    %v4145 = vpop.permute.xlu0 %4144
    %4146 = vrot.lane.b32.xlu0 %v4135, 82
    %v4147 = vpop.permute.xlu0 %4146
    %vm4148 = vcmask 670720
    %v4149 = vsel %vm4148, %v4141, %v4143
    %v4150 = vsel %vm4148, %v4143, %v4145
    %v4151 = vsel %vm4148, %v4145, %v4147
    %4155 = vst.msk [vmem:[#allocation4 + $0x150] sm:$0xff] %vm3967, %v4149
    %4156 = vst [vmem:[#allocation4 + $0x158] sm:$0xff] %v4150
    %4157 = vst.msk [vmem:[#allocation4 + $0x160] sm:$0xff] %vm3970, %v4151
    %v4158 = vld [vmem:[#allocation3 + $0x18] sm:$0xff]
    %v4159 = vld [vmem:[#allocation3 + $0x20] sm:$0xff]
    %v4160 = vld [vmem:[#allocation3 + $0x28] sm:$0xff]
    %v4161 = vld [vmem:[#allocation3 + $0x30] sm:$0xff]
    %4166 = vrot.lane.b32.xlu0 %v4158, 80
    %v4167 = vpop.permute.xlu0 %4166
    %4168 = vrot.lane.b32.xlu0 %v4159, 80
    %v4169 = vpop.permute.xlu0 %4168
    %4170 = vrot.lane.b32.xlu0 %v4160, 80
    %v4171 = vpop.permute.xlu0 %4170
    %4172 = vrot.lane.b32.xlu0 %v4161, 80
    %v4173 = vpop.permute.xlu0 %4172
    %vm4174 = vcmask 654336
    %v4175 = vsel %vm4174, %v4167, %v4169
    %v4176 = vsel %vm4174, %v4169, %v4171
    %v4177 = vsel %vm4174, %v4171, %v4173
    %4181 = vst.msk [vmem:[#allocation4 + $0x178] sm:$0xff] %vm3967, %v4175
    %4182 = vst [vmem:[#allocation4 + $0x180] sm:$0xff] %v4176
    %4183 = vst.msk [vmem:[#allocation4 + $0x188] sm:$0xff] %vm3970, %v4177
    %v4184 = vld [vmem:[#allocation3 + $0x20] sm:$0xff]
    %v4185 = vld [vmem:[#allocation3 + $0x28] sm:$0xff]
    %v4186 = vld [vmem:[#allocation3 + $0x30] sm:$0xff]
    %4190 = vrot.lane.b32.xlu0 %v4184, 56
    %v4191 = vpop.permute.xlu0 %4190
    %4192 = vrot.lane.b32.xlu0 %v4185, 56
    %v4193 = vpop.permute.xlu0 %4192
    %4194 = vrot.lane.b32.xlu0 %v4186, 56
    %v4195 = vpop.permute.xlu0 %4194
    %v4196 = vsel %vm3450, %v4191, %v4193
    %v4197 = vsel %vm3450, %v4193, %v4195
    %4201 = vst.msk [vmem:[#allocation4 + $0x1a0] sm:$0xff] %vm3967, %v4191
    %4202 = vst [vmem:[#allocation4 + $0x1a8] sm:$0xff] %v4196
    %4203 = vst.msk [vmem:[#allocation4 + $0x1b0] sm:$0xff] %vm3970, %v4197
    %v4204 = vld [vmem:[#allocation3 + $0x20] sm:$0xff]
    %v4205 = vld [vmem:[#allocation3 + $0x28] sm:$0xff]
    %v4206 = vld [vmem:[#allocation3 + $0x30] sm:$0xff]
    %4210 = vrot.lane.b32.xlu0 %v4204, 54
    %v4211 = vpop.permute.xlu0 %4210
    %4212 = vrot.lane.b32.xlu0 %v4205, 54
    %v4213 = vpop.permute.xlu0 %4212
    %4214 = vrot.lane.b32.xlu0 %v4206, 54
    %v4215 = vpop.permute.xlu0 %4214
    %vm4216 = vcmask 441344
    %v4217 = vsel %vm4216, %v4211, %v4213
    %v4218 = vsel %vm4216, %v4213, %v4215
    %4222 = vst.msk [vmem:[#allocation4 + $0x1c8] sm:$0xff] %vm3967, %v4211
    %4223 = vst [vmem:[#allocation4 + $0x1d0] sm:$0xff] %v4217
    %4224 = vst.msk [vmem:[#allocation4 + $0x1d8] sm:$0xff] %vm3970, %v4218
    %v4225 = vld [vmem:[#allocation3 + $0x20] sm:$0xff]
    %v4226 = vld [vmem:[#allocation3 + $0x28] sm:$0xff]
    %v4227 = vld [vmem:[#allocation3 + $0x30] sm:$0xff]
    %4231 = vrot.lane.b32.xlu0 %v4225, 52
    %v4232 = vpop.permute.xlu0 %4231
    %4233 = vrot.lane.b32.xlu0 %v4226, 52
    %v4234 = vpop.permute.xlu0 %4233
    %4235 = vrot.lane.b32.xlu0 %v4227, 52
    %v4236 = vpop.permute.xlu0 %4235
    %vm4237 = vcmask 424960
    %v4238 = vsel %vm4237, %v4232, %v4234
    %v4239 = vsel %vm4237, %v4234, %v4236
    %4243 = vst.msk [vmem:[#allocation4 + $0x1f0] sm:$0xff] %vm3967, %v4232
    %4244 = vst [vmem:[#allocation4 + $0x1f8] sm:$0xff] %v4238
    %4245 = vst.msk [vmem:[#allocation4 + $0x200] sm:$0xff] %vm3970, %v4239
    %v4246 = vld [vmem:[#allocation3 + $0x20] sm:$0xff]
    %v4247 = vld [vmem:[#allocation3 + $0x28] sm:$0xff]
    %v4248 = vld [vmem:[#allocation3 + $0x30] sm:$0xff]
    %4252 = vrot.lane.b32.xlu0 %v4246, 50
    %v4253 = vpop.permute.xlu0 %4252
    %4254 = vrot.lane.b32.xlu0 %v4247, 50
    %v4255 = vpop.permute.xlu0 %4254
    %4256 = vrot.lane.b32.xlu0 %v4248, 50
    %v4257 = vpop.permute.xlu0 %4256
    %vm4258 = vcmask 408576
    %v4259 = vsel %vm4258, %v4253, %v4255
    %v4260 = vsel %vm4258, %v4255, %v4257
    %4264 = vst.msk [vmem:[#allocation4 + $0x218] sm:$0xff] %vm3967, %v4253
    %4265 = vst [vmem:[#allocation4 + $0x220] sm:$0xff] %v4259
    %4266 = vst.msk [vmem:[#allocation4 + $0x228] sm:$0xff] %vm3970, %v4260
    %v4267 = vld [vmem:[#allocation3 + $0x20] sm:$0xff]
    %v4268 = vld [vmem:[#allocation3 + $0x28] sm:$0xff]
    %v4269 = vld [vmem:[#allocation3 + $0x30] sm:$0xff]
    %4273 = vrot.lane.b32.xlu0 %v4267, 48
    %v4274 = vpop.permute.xlu0 %4273
    %4275 = vrot.lane.b32.xlu0 %v4268, 48
    %v4276 = vpop.permute.xlu0 %4275
    %4277 = vrot.lane.b32.xlu0 %v4269, 48
    %v4278 = vpop.permute.xlu0 %4277
    %v4279 = vsel %vm51, %v4274, %v4276
    %v4280 = vsel %vm51, %v4276, %v4278
    %4284 = vst.msk [vmem:[#allocation4 + $0x240] sm:$0xff] %vm3967, %v4274
    %4285 = vst [vmem:[#allocation4 + $0x248] sm:$0xff] %v4279
    %4286 = vst.msk [vmem:[#allocation4 + $0x250] sm:$0xff] %vm3970, %v4280
    %v4287 = vld [vmem:[#allocation3 + $0x20] sm:$0xff]
    %v4288 = vld [vmem:[#allocation3 + $0x28] sm:$0xff]
    %v4289 = vld [vmem:[#allocation3 + $0x30] sm:$0xff]
    %4293 = vrot.lane.b32.xlu0 %v4287, 24
    %v4294 = vpop.permute.xlu0 %4293
    %4295 = vrot.lane.b32.xlu0 %v4288, 24
    %v4296 = vpop.permute.xlu0 %4295
    %4297 = vrot.lane.b32.xlu0 %v4289, 24
    %v4298 = vpop.permute.xlu0 %4297
    %v4299 = vsel %vm3854, %v4294, %v4296
    %v4300 = vsel %vm3854, %v4296, %v4298
    %4304 = vst.msk [vmem:[#allocation4 + $0x268] sm:$0xff] %vm3967, %v4294
    %4305 = vst [vmem:[#allocation4 + $0x270] sm:$0xff] %v4299
    %4306 = vst.msk [vmem:[#allocation4 + $0x278] sm:$0xff] %vm3970, %v4300
    %v4307 = vld [vmem:[#allocation3 + $0x20] sm:$0xff]
    %v4308 = vld [vmem:[#allocation3 + $0x28] sm:$0xff]
    %v4309 = vld [vmem:[#allocation3 + $0x30] sm:$0xff]
    %4313 = vrot.lane.b32.xlu0 %v4307, 22
    %v4314 = vpop.permute.xlu0 %4313
    %4315 = vrot.lane.b32.xlu0 %v4308, 22
    %v4316 = vpop.permute.xlu0 %4315
    %4317 = vrot.lane.b32.xlu0 %v4309, 22
    %v4318 = vpop.permute.xlu0 %4317
    %vm4319 = vcmask 179200
    %v4320 = vsel %vm4319, %v4314, %v4316
    %v4321 = vsel %vm4319, %v4316, %v4318
    %4325 = vst.msk [vmem:[#allocation4 + $0x290] sm:$0xff] %vm3967, %v4314
    %4326 = vst [vmem:[#allocation4 + $0x298] sm:$0xff] %v4320
    %4327 = vst.msk [vmem:[#allocation4 + $0x2a0] sm:$0xff] %vm3970, %v4321
    %v4328 = vld [vmem:[#allocation3 + $0x20] sm:$0xff]
    %v4329 = vld [vmem:[#allocation3 + $0x28] sm:$0xff]
    %v4330 = vld [vmem:[#allocation3 + $0x30] sm:$0xff]
    %4334 = vrot.lane.b32.xlu0 %v4328, 20
    %v4335 = vpop.permute.xlu0 %4334
    %4336 = vrot.lane.b32.xlu0 %v4329, 20
    %v4337 = vpop.permute.xlu0 %4336
    %4338 = vrot.lane.b32.xlu0 %v4330, 20
    %v4339 = vpop.permute.xlu0 %4338
    %vm4340 = vcmask 162816
    %v4341 = vsel %vm4340, %v4335, %v4337
    %v4342 = vsel %vm4340, %v4337, %v4339
    %4346 = vst.msk [vmem:[#allocation4 + $0x2b8] sm:$0xff] %vm3967, %v4335
    %4347 = vst [vmem:[#allocation4 + $0x2c0] sm:$0xff] %v4341
    %4348 = vst.msk [vmem:[#allocation4 + $0x2c8] sm:$0xff] %vm3970, %v4342
    %v4349 = vld [vmem:[#allocation3 + $0x20] sm:$0xff]
    %v4350 = vld [vmem:[#allocation3 + $0x28] sm:$0xff]
    %v4351 = vld [vmem:[#allocation3 + $0x30] sm:$0xff]
    %4355 = vrot.lane.b32.xlu0 %v4349, 18
    %v4356 = vpop.permute.xlu0 %4355
    %4357 = vrot.lane.b32.xlu0 %v4350, 18
    %v4358 = vpop.permute.xlu0 %4357
    %4359 = vrot.lane.b32.xlu0 %v4351, 18
    %v4360 = vpop.permute.xlu0 %4359
    %vm4361 = vcmask 146432
    %v4362 = vsel %vm4361, %v4356, %v4358
    %v4363 = vsel %vm4361, %v4358, %v4360
    %4367 = vst.msk [vmem:[#allocation4 + $0x2e0] sm:$0xff] %vm3967, %v4356
    %4368 = vst [vmem:[#allocation4 + $0x2e8] sm:$0xff] %v4362
    %4369 = vst.msk [vmem:[#allocation4 + $0x2f0] sm:$0xff] %vm3970, %v4363
    %v4370 = vld [vmem:[#allocation3 + $0x20] sm:$0xff]
    %v4371 = vld [vmem:[#allocation3 + $0x28] sm:$0xff]
    %v4372 = vld [vmem:[#allocation3 + $0x30] sm:$0xff]
    %4376 = vrot.lane.b32.xlu0 %v4370, 16
    %v4377 = vpop.permute.xlu0 %4376
    %4378 = vrot.lane.b32.xlu0 %v4371, 16
    %v4379 = vpop.permute.xlu0 %4378
    %4380 = vrot.lane.b32.xlu0 %v4372, 16
    %v4381 = vpop.permute.xlu0 %4380
    %vm4382 = vcmask 130048
    %v4383 = vsel %vm4382, %v4377, %v4379
    %v4384 = vsel %vm4382, %v4379, %v4381
    %4388 = vst.msk [vmem:[#allocation4 + $0x308] sm:$0xff] %vm3967, %v4377
    %4389 = vst [vmem:[#allocation4 + $0x310] sm:$0xff] %v4383
    %4390 = vst.msk [vmem:[#allocation4 + $0x318] sm:$0xff] %vm3970, %v4384
    %v4391 = vld [vmem:[#allocation3 + $0x20] sm:$0xff]
    %v4392 = vld [vmem:[#allocation3 + $0x28] sm:$0xff]
    %v4393 = vld [vmem:[#allocation3 + $0x30] sm:$0xff]
    %4397 = vrot.lane.b32.xlu0 %v4391, 120
    %v4398 = vpop.permute.xlu0 %4397
    %4399 = vrot.lane.b32.xlu0 %v4392, 120
    %v4400 = vpop.permute.xlu0 %4399
    %4401 = vrot.lane.b32.xlu0 %v4393, 120
    %v4402 = vpop.permute.xlu0 %4401
    %v4403 = vsel %vm3525, %v4398, %v4400
    %v4404 = vsel %vm3525, %v4400, %v4402
    %4408 = vst.msk [vmem:[#allocation4 + $0x330] sm:$0xff] %vm3967, %v4403
    %4409 = vst [vmem:[#allocation4 + $0x338] sm:$0xff] %v4404
    %4410 = vst.msk [vmem:[#allocation4 + $0x340] sm:$0xff] %vm3970, %v4402
    %v4411 = vld [vmem:[#allocation3 + $0x20] sm:$0xff]
    %v4412 = vld [vmem:[#allocation3 + $0x28] sm:$0xff]
    %v4413 = vld [vmem:[#allocation3 + $0x30] sm:$0xff]
    %4417 = vrot.lane.b32.xlu0 %v4411, 118
    %v4418 = vpop.permute.xlu0 %4417
    %4419 = vrot.lane.b32.xlu0 %v4412, 118
    %v4420 = vpop.permute.xlu0 %4419
    %4421 = vrot.lane.b32.xlu0 %v4413, 118
    %v4422 = vpop.permute.xlu0 %4421
    %v4423 = vsel %vm3984, %v4418, %v4420
    %v4424 = vsel %vm3984, %v4420, %v4422
    %4428 = vst.msk [vmem:[#allocation4 + $0x358] sm:$0xff] %vm3967, %v4423
    %4429 = vst [vmem:[#allocation4 + $0x360] sm:$0xff] %v4424
    %4430 = vst.msk [vmem:[#allocation4 + $0x368] sm:$0xff] %vm3970, %v4422
    %v4431 = vld [vmem:[#allocation3 + $0x20] sm:$0xff]
    %v4432 = vld [vmem:[#allocation3 + $0x28] sm:$0xff]
    %v4433 = vld [vmem:[#allocation3 + $0x30] sm:$0xff]
    %4437 = vrot.lane.b32.xlu0 %v4431, 116
    %v4438 = vpop.permute.xlu0 %4437
    %4439 = vrot.lane.b32.xlu0 %v4432, 116
    %v4440 = vpop.permute.xlu0 %4439
    %4441 = vrot.lane.b32.xlu0 %v4433, 116
    %v4442 = vpop.permute.xlu0 %4441
    %v4443 = vsel %vm4005, %v4438, %v4440
    %v4444 = vsel %vm4005, %v4440, %v4442
    %4448 = vst.msk [vmem:[#allocation4 + $0x380] sm:$0xff] %vm3967, %v4443
    %4449 = vst [vmem:[#allocation4 + $0x388] sm:$0xff] %v4444
    %4450 = vst.msk [vmem:[#allocation4 + $0x390] sm:$0xff] %vm3970, %v4442
    %v4451 = vld [vmem:[#allocation3 + $0x20] sm:$0xff]
    %v4452 = vld [vmem:[#allocation3 + $0x28] sm:$0xff]
    %v4453 = vld [vmem:[#allocation3 + $0x30] sm:$0xff]
    %4457 = vrot.lane.b32.xlu0 %v4451, 114
    %v4458 = vpop.permute.xlu0 %4457
    %4459 = vrot.lane.b32.xlu0 %v4452, 114
    %v4460 = vpop.permute.xlu0 %4459
    %4461 = vrot.lane.b32.xlu0 %v4453, 114
    %v4462 = vpop.permute.xlu0 %4461
    %v4463 = vsel %vm4026, %v4458, %v4460
    %v4464 = vsel %vm4026, %v4460, %v4462
    %4468 = vst.msk [vmem:[#allocation4 + $0x3a8] sm:$0xff] %vm3967, %v4463
    %4469 = vst [vmem:[#allocation4 + $0x3b0] sm:$0xff] %v4464
    %4470 = vst.msk [vmem:[#allocation4 + $0x3b8] sm:$0xff] %vm3970, %v4462
    %v4471 = vld [vmem:[#allocation3 + $0x20] sm:$0xff]
    %v4472 = vld [vmem:[#allocation3 + $0x28] sm:$0xff]
    %v4473 = vld [vmem:[#allocation3 + $0x30] sm:$0xff]
    %4477 = vrot.lane.b32.xlu0 %v4471, 112
    %v4478 = vpop.permute.xlu0 %4477
    %4479 = vrot.lane.b32.xlu0 %v4472, 112
    %v4480 = vpop.permute.xlu0 %4479
    %4481 = vrot.lane.b32.xlu0 %v4473, 112
    %v4482 = vpop.permute.xlu0 %4481
    %v4483 = vsel %vm3970, %v4478, %v4480
    %v4484 = vsel %vm3970, %v4480, %v4482
    %4488 = vst.msk [vmem:[#allocation4 + $0x3d0] sm:$0xff] %vm3967, %v4483
    %4489 = vst [vmem:[#allocation4 + $0x3d8] sm:$0xff] %v4484
    %4490 = vst.msk [vmem:[#allocation4 + $0x3e0] sm:$0xff] %vm3970, %v4482
    %v4491 = vld [vmem:[%s3] sm:$0xff]
    %v4492 = vld [vmem:[%s3 + $0x8] sm:$0xff]
    %v4493 = vld [vmem:[%s3 + $0x10] sm:$0xff]
    %v4494 = vld [vmem:[%s3 + $0x18] sm:$0xff]
    %v4495 = vld [vmem:[#allocation4] sm:$0xff]
    %v4496 = vld [vmem:[#allocation4 + $0x8] sm:$0xff]
    %v4497 = vld [vmem:[#allocation4 + $0x10] sm:$0xff]
    %v4498 = vld [vmem:[#allocation4 + $0x18] sm:$0xff]
    %v4499 = vld [vmem:[#allocation4 + $0x20] sm:$0xff]
    %v4500 = vld [vmem:[#allocation4 + $0x28] sm:$0xff]
    %v4501 = vld [vmem:[#allocation4 + $0x30] sm:$0xff]
    %v4502 = vld [vmem:[#allocation4 + $0x38] sm:$0xff]
    %v4503 = vld [vmem:[#allocation4 + $0x40] sm:$0xff]
    %v4504 = vld [vmem:[#allocation4 + $0x48] sm:$0xff]
    %v4505 = vld [vmem:[#allocation4 + $0x50] sm:$0xff]
    %v4506 = vld [vmem:[#allocation4 + $0x58] sm:$0xff]
    %v4507 = vld [vmem:[#allocation4 + $0x60] sm:$0xff]
    %v4508 = vld [vmem:[#allocation4 + $0x68] sm:$0xff]
    %v4509 = vld [vmem:[#allocation4 + $0x70] sm:$0xff]
    %v4510 = vld [vmem:[#allocation4 + $0x78] sm:$0xff]
    %v4511 = vld [vmem:[#allocation4 + $0x80] sm:$0xff]
    %v4512 = vld [vmem:[#allocation4 + $0x88] sm:$0xff]
    %v4513 = vld [vmem:[#allocation4 + $0x90] sm:$0xff]
    %v4514 = vld [vmem:[#allocation4 + $0x98] sm:$0xff]
    %v4515 = vld [vmem:[#allocation4 + $0xa0] sm:$0xff]
    %v4516 = vld [vmem:[#allocation4 + $0xa8] sm:$0xff]
    %v4517 = vld [vmem:[#allocation4 + $0xb0] sm:$0xff]
    %v4518 = vld [vmem:[#allocation4 + $0xb8] sm:$0xff]
    %v4519 = vld [vmem:[#allocation4 + $0xc0] sm:$0xff]
    %v4520 = vld [vmem:[#allocation4 + $0xc8] sm:$0xff]
    %v4521 = vld [vmem:[#allocation4 + $0xd0] sm:$0xff]
    %v4522 = vld [vmem:[#allocation4 + $0xd8] sm:$0xff]
    %v4523 = vld [vmem:[#allocation4 + $0xe0] sm:$0xff]
    %v4524 = vld [vmem:[#allocation4 + $0xe8] sm:$0xff]
    %v4525 = vld [vmem:[#allocation4 + $0xf0] sm:$0xff]
    %v4526 = vld [vmem:[#allocation4 + $0xf8] sm:$0xff]
    %v4527 = vld [vmem:[#allocation4 + $0x100] sm:$0xff]
    %v4528 = vld [vmem:[#allocation4 + $0x108] sm:$0xff]
    %v4529 = vld [vmem:[#allocation4 + $0x110] sm:$0xff]
    %v4530 = vld [vmem:[#allocation4 + $0x118] sm:$0xff]
    %v4531 = vld [vmem:[#allocation4 + $0x120] sm:$0xff]
    %v4532 = vld [vmem:[#allocation4 + $0x128] sm:$0xff]
    %v4533 = vld [vmem:[#allocation4 + $0x130] sm:$0xff]
    %v4534 = vld [vmem:[#allocation4 + $0x138] sm:$0xff]
    %v4535 = vld [vmem:[#allocation4 + $0x140] sm:$0xff]
    %v4536 = vld [vmem:[#allocation4 + $0x148] sm:$0xff]
    %v4537 = vld [vmem:[#allocation4 + $0x150] sm:$0xff]
    %v4538 = vld [vmem:[#allocation4 + $0x158] sm:$0xff]
    %v4539 = vld [vmem:[#allocation4 + $0x160] sm:$0xff]
    %v4540 = vld [vmem:[#allocation4 + $0x168] sm:$0xff]
    %v4541 = vld [vmem:[#allocation4 + $0x170] sm:$0xff]
    %v4542 = vld [vmem:[#allocation4 + $0x178] sm:$0xff]
    %v4543 = vld [vmem:[#allocation4 + $0x180] sm:$0xff]
    %v4544 = vld [vmem:[#allocation4 + $0x188] sm:$0xff]
    %v4545 = vld [vmem:[#allocation4 + $0x190] sm:$0xff]
    %v4546 = vld [vmem:[#allocation4 + $0x198] sm:$0xff]
    %v4547 = vld [vmem:[#allocation4 + $0x1a0] sm:$0xff]
    %v4548 = vld [vmem:[#allocation4 + $0x1a8] sm:$0xff]
    %v4549 = vld [vmem:[#allocation4 + $0x1b0] sm:$0xff]
    %v4550 = vld [vmem:[#allocation4 + $0x1b8] sm:$0xff]
    %v4551 = vld [vmem:[#allocation4 + $0x1c0] sm:$0xff]
    %v4552 = vld [vmem:[#allocation4 + $0x1c8] sm:$0xff]
    %v4553 = vld [vmem:[#allocation4 + $0x1d0] sm:$0xff]
    %v4554 = vld [vmem:[#allocation4 + $0x1d8] sm:$0xff]
    %v4555 = vld [vmem:[#allocation4 + $0x1e0] sm:$0xff]
    %v4556 = vld [vmem:[#allocation4 + $0x1e8] sm:$0xff]
    %v4557 = vld [vmem:[#allocation4 + $0x1f0] sm:$0xff]
    %v4558 = vld [vmem:[#allocation4 + $0x1f8] sm:$0xff]
    %v4559 = vld [vmem:[#allocation4 + $0x200] sm:$0xff]
    %v4560 = vld [vmem:[#allocation4 + $0x208] sm:$0xff]
    %v4561 = vld [vmem:[#allocation4 + $0x210] sm:$0xff]
    %v4562 = vld [vmem:[#allocation4 + $0x218] sm:$0xff]
    %v4563 = vld [vmem:[#allocation4 + $0x220] sm:$0xff]
    %v4564 = vld [vmem:[#allocation4 + $0x228] sm:$0xff]
    %v4565 = vld [vmem:[#allocation4 + $0x230] sm:$0xff]
    %v4566 = vld [vmem:[#allocation4 + $0x238] sm:$0xff]
    %v4567 = vld [vmem:[#allocation4 + $0x240] sm:$0xff]
    %v4568 = vld [vmem:[#allocation4 + $0x248] sm:$0xff]
    %v4569 = vld [vmem:[#allocation4 + $0x250] sm:$0xff]
    %v4570 = vld [vmem:[#allocation4 + $0x258] sm:$0xff]
    %v4571 = vld [vmem:[#allocation4 + $0x260] sm:$0xff]
    %v4572 = vld [vmem:[#allocation4 + $0x268] sm:$0xff]
    %v4573 = vld [vmem:[#allocation4 + $0x270] sm:$0xff]
    %v4574 = vld [vmem:[#allocation4 + $0x278] sm:$0xff]
    %v4575 = vld [vmem:[#allocation4 + $0x280] sm:$0xff]
    %v4576 = vld [vmem:[#allocation4 + $0x288] sm:$0xff]
    %v4577 = vld [vmem:[#allocation4 + $0x290] sm:$0xff]
    %v4578 = vld [vmem:[#allocation4 + $0x298] sm:$0xff]
    %v4579 = vld [vmem:[#allocation4 + $0x2a0] sm:$0xff]
    %v4580 = vld [vmem:[#allocation4 + $0x2a8] sm:$0xff]
    %v4581 = vld [vmem:[#allocation4 + $0x2b0] sm:$0xff]
    %v4582 = vld [vmem:[#allocation4 + $0x2b8] sm:$0xff]
    %v4583 = vld [vmem:[#allocation4 + $0x2c0] sm:$0xff]
    %v4584 = vld [vmem:[#allocation4 + $0x2c8] sm:$0xff]
    %v4585 = vld [vmem:[#allocation4 + $0x2d0] sm:$0xff]
    %v4586 = vld [vmem:[#allocation4 + $0x2d8] sm:$0xff]
    %v4587 = vld [vmem:[#allocation4 + $0x2e0] sm:$0xff]
    %v4588 = vld [vmem:[#allocation4 + $0x2e8] sm:$0xff]
    %v4589 = vld [vmem:[#allocation4 + $0x2f0] sm:$0xff]
    %v4590 = vld [vmem:[#allocation4 + $0x2f8] sm:$0xff]
    %v4591 = vld [vmem:[#allocation4 + $0x300] sm:$0xff]
    %v4592 = vld [vmem:[#allocation4 + $0x308] sm:$0xff]
    %v4593 = vld [vmem:[#allocation4 + $0x310] sm:$0xff]
    %v4594 = vld [vmem:[#allocation4 + $0x318] sm:$0xff]
    %v4595 = vld [vmem:[#allocation4 + $0x320] sm:$0xff]
    %v4596 = vld [vmem:[#allocation4 + $0x328] sm:$0xff]
    %v4597 = vld [vmem:[#allocation4 + $0x330] sm:$0xff]
    %v4598 = vld [vmem:[#allocation4 + $0x338] sm:$0xff]
    %v4599 = vld [vmem:[#allocation4 + $0x340] sm:$0xff]
    %v4600 = vld [vmem:[#allocation4 + $0x348] sm:$0xff]
    %v4601 = vld [vmem:[#allocation4 + $0x350] sm:$0xff]
    %v4602 = vld [vmem:[#allocation4 + $0x358] sm:$0xff]
    %v4603 = vld [vmem:[#allocation4 + $0x360] sm:$0xff]
    %v4604 = vld [vmem:[#allocation4 + $0x368] sm:$0xff]
    %v4605 = vld [vmem:[#allocation4 + $0x370] sm:$0xff]
    %v4606 = vld [vmem:[#allocation4 + $0x378] sm:$0xff]
    %v4607 = vld [vmem:[#allocation4 + $0x380] sm:$0xff]
    %v4608 = vld [vmem:[#allocation4 + $0x388] sm:$0xff]
    %v4609 = vld [vmem:[#allocation4 + $0x390] sm:$0xff]
    %v4610 = vld [vmem:[#allocation4 + $0x398] sm:$0xff]
    %v4611 = vld [vmem:[#allocation4 + $0x3a0] sm:$0xff]
    %v4612 = vld [vmem:[#allocation4 + $0x3a8] sm:$0xff]
    %v4613 = vld [vmem:[#allocation4 + $0x3b0] sm:$0xff]
    %v4614 = vld [vmem:[#allocation4 + $0x3b8] sm:$0xff]
    %v4615 = vld [vmem:[#allocation4 + $0x3c0] sm:$0xff]
    %v4616 = vld [vmem:[#allocation4 + $0x3c8] sm:$0xff]
    %v4617 = vld [vmem:[#allocation4 + $0x3d0] sm:$0xff]
    %v4618 = vld [vmem:[#allocation4 + $0x3d8] sm:$0xff]
    %v4619 = vld [vmem:[#allocation4 + $0x3e0] sm:$0xff]
    %v4620 = vld [vmem:[%s4] sm:$0xff]
    %v4621 = vld [vmem:[%s4 + $0x8] sm:$0xff]
    %4623 = vset.pattern.permute.xlu0 0
    %4624 = vperm.xlu0 %4623, %v4620
    %v4625 = vpop.permute.xlu0 %4624
    %4628 = vset.pattern.permute.xlu0 0
    %4629 = vperm.xlu0 %4628, %v4621
    %v4630 = vpop.permute.xlu0 %4629
    %vm4632 = vcmask 588800
    %v4634 = vsel %vm4632, %v4492, 0
    %v4637 = vsel %vm4632, %v4494, 0
    %4639 = vmatprep.subr.mxu0 %v4496
    %4640 = vmatpush1.msra.mxu0 %v4495
    %4641 = vmatprep.subr.mxu0 %v4501
    %4642 = vmatpush1.msra.mxu0 %v4500
    %4643 = vmatprep.subr.mxu0 %v4506
    %4644 = vmatpush1.msra.mxu0 %v4505
    %4645 = vmatprep.subr.mxu0 %v4511
    %4646 = vmatpush1.msra.mxu0 %v4510
    %4647 = vmatprep.subr.mxu0 %v4516
    %4648 = vmatpush1.msra.mxu0 %v4515
    %4649 = vmatprep.subr.mxu0 %v4521
    %4650 = vmatpush1.msra.mxu0 %v4520
    %4651 = vmatprep.subr.mxu0 %v4526
    %4652 = vmatpush1.msra.mxu0 %v4525
    %4653 = vmatprep.subr.mxu0 %v4531
    %4654 = vmatpush1.msra.mxu0 %v4530
    %4655 = vmatprep.subr.mxu0 %v4536
    %4656 = vmatpush1.msra.mxu0 %v4535
    %4657 = vmatprep.subr.mxu0 %v4541
    %4658 = vmatpush1.msra.mxu0 %v4540
    %4659 = vmatprep.subr.mxu0 %v4546
    %4660 = vmatpush1.msra.mxu0 %v4545
    %4661 = vmatprep.subr.mxu0 %v4551
    %4662 = vmatpush1.msra.mxu0 %v4550
    %4663 = vmatprep.subr.mxu0 %v4556
    %4664 = vmatpush1.msra.mxu0 %v4555
    %4665 = vmatprep.subr.mxu0 %v4561
    %4666 = vmatpush1.msra.mxu0 %v4560
    %4667 = vmatprep.subr.mxu0 %v4566
    %4668 = vmatpush1.msra.mxu0 %v4565
    %4669 = vmatprep.subr.mxu0 %v4571
    %4670 = vmatpush1.msra.mxu0 %v4570
    %4671 = vmatprep.subr.mxu0 %v4576
    %4672 = vmatpush1.msra.mxu0 %v4575
    %4673 = vmatprep.subr.mxu0 %v4581
    %4674 = vmatpush1.msra.mxu0 %v4580
    %4675 = vmatprep.subr.mxu0 %v4586
    %4676 = vmatpush1.msra.mxu0 %v4585
    %4677 = vmatprep.subr.mxu0 %v4591
    %4678 = vmatpush1.msra.mxu0 %v4590
    %4679 = vmatprep.subr.mxu0 %v4596
    %4680 = vmatpush1.msra.mxu0 %v4595
    %4681 = vmatprep.subr.mxu0 %v4601
    %4682 = vmatpush1.msra.mxu0 %v4600
    %4683 = vmatprep.subr.mxu0 %v4606
    %4684 = vmatpush1.msra.mxu0 %v4605
    %4685 = vmatprep.subr.mxu0 %v4611
    %4686 = vmatpush1.msra.mxu0 %v4610
    %4687 = vmatprep.subr.mxu0 %v4616
    %4688 = vmatpush1.msra.mxu0 %v4615
    %4689 = vmatprep.subr.mxu0 0.0
    %4690 = vmatpush1.msra.mxu0 0.0
    %4691 = vmatprep.subr.mxu0 0.0
    %4692 = vmatpush1.msra.mxu0 0.0
    %4693 = vmatprep.subr.mxu0 0.0
    %4694 = vmatpush1.msra.mxu0 0.0
    %4695 = vmatprep.subr.mxu0 0.0
    %4696 = vmatpush1.msra.mxu0 0.0
    %4697 = vmatprep.subr.mxu0 0.0
    %4698 = vmatpush1.msra.mxu0 0.0
    %4699 = vmatprep.subr.mxu0 0.0
    %4700 = vmatpush1.msra.mxu0 0.0
    %4701 = vmatprep.subr.mxu0 0.0
    %4702 = vmatpush1.msra.mxu0 0.0
    %4703 = vmatprep.mubr.f32.mxu0 %v4634
    %4704 = vmatmul.mubr.f32.gmra.mrb[0].mxu0 %v4491
    %v4705 = vpop.f32.mrb[0].mxu0
    %v4706 = vadd.f32 %v4625, %v4705
    %v4707 = vpop.f32.mrb[0].mxu0
    %v4708 = vadd.f32 %v4625, %v4707
    %4709 = vmatprep.mubr.f32.mxu0 %v4637
    %4710 = vmatmul.mubr.f32.gmra.mrb[0].mxu0 %v4493
    %v4711 = vpop.f32.mrb[0].mxu0
    %v4712 = vadd.f32 %v4630, %v4711
    %v4713 = vpop.f32.mrb[0].mxu0
    %v4714 = vadd.f32 %v4630, %v4713
    %4715 = vdwg.mxu0
    %4716 = vmatprep.subr.mxu0 %v4498
    %4717 = vmatpush1.msra.mxu0 %v4497
    %4718 = vmatprep.subr.mxu0 %v4503
    %4719 = vmatpush1.msra.mxu0 %v4502
    %4720 = vmatprep.subr.mxu0 %v4508
    %4721 = vmatpush1.msra.mxu0 %v4507
    %4722 = vmatprep.subr.mxu0 %v4513
    %4723 = vmatpush1.msra.mxu0 %v4512
    %4724 = vmatprep.subr.mxu0 %v4518
    %4725 = vmatpush1.msra.mxu0 %v4517
    %4726 = vmatprep.subr.mxu0 %v4523
    %4727 = vmatpush1.msra.mxu0 %v4522
    %4728 = vmatprep.subr.mxu0 %v4528
    %4729 = vmatpush1.msra.mxu0 %v4527
    %4730 = vmatprep.subr.mxu0 %v4533
    %4731 = vmatpush1.msra.mxu0 %v4532
    %4732 = vmatprep.subr.mxu0 %v4538
    %4733 = vmatpush1.msra.mxu0 %v4537
    %4734 = vmatprep.subr.mxu0 %v4543
    %4735 = vmatpush1.msra.mxu0 %v4542
    %4736 = vmatprep.subr.mxu0 %v4548
    %4737 = vmatpush1.msra.mxu0 %v4547
    %4738 = vmatprep.subr.mxu0 %v4553
    %4739 = vmatpush1.msra.mxu0 %v4552
    %4740 = vmatprep.subr.mxu0 %v4558
    %4741 = vmatpush1.msra.mxu0 %v4557
    %4742 = vmatprep.subr.mxu0 %v4563
    %4743 = vmatpush1.msra.mxu0 %v4562
    %4744 = vmatprep.subr.mxu0 %v4568
    %4745 = vmatpush1.msra.mxu0 %v4567
    %4746 = vmatprep.subr.mxu0 %v4573
    %4747 = vmatpush1.msra.mxu0 %v4572
    %4748 = vmatprep.subr.mxu0 %v4578
    %4749 = vmatpush1.msra.mxu0 %v4577
    %4750 = vmatprep.subr.mxu0 %v4583
    %4751 = vmatpush1.msra.mxu0 %v4582
    %4752 = vmatprep.subr.mxu0 %v4588
    %4753 = vmatpush1.msra.mxu0 %v4587
    %4754 = vmatprep.subr.mxu0 %v4593
    %4755 = vmatpush1.msra.mxu0 %v4592
    %4756 = vmatprep.subr.mxu0 %v4598
    %4757 = vmatpush1.msra.mxu0 %v4597
    %4758 = vmatprep.subr.mxu0 %v4603
    %4759 = vmatpush1.msra.mxu0 %v4602
    %4760 = vmatprep.subr.mxu0 %v4608
    %4761 = vmatpush1.msra.mxu0 %v4607
    %4762 = vmatprep.subr.mxu0 %v4613
    %4763 = vmatpush1.msra.mxu0 %v4612
    %4764 = vmatprep.subr.mxu0 %v4618
    %4765 = vmatpush1.msra.mxu0 %v4617
    %4766 = vmatprep.subr.mxu0 0.0
    %4767 = vmatpush1.msra.mxu0 0.0
    %4768 = vmatprep.subr.mxu0 0.0
    %4769 = vmatpush1.msra.mxu0 0.0
    %4770 = vmatprep.subr.mxu0 0.0
    %4771 = vmatpush1.msra.mxu0 0.0
    %4772 = vmatprep.subr.mxu0 0.0
    %4773 = vmatpush1.msra.mxu0 0.0
    %4774 = vmatprep.subr.mxu0 0.0
    %4775 = vmatpush1.msra.mxu0 0.0
    %4776 = vmatprep.subr.mxu0 0.0
    %4777 = vmatpush1.msra.mxu0 0.0
    %4778 = vmatprep.subr.mxu0 0.0
    %4779 = vmatpush1.msra.mxu0 0.0
    %4780 = vmatprep.mubr.f32.mxu0 %v4634
    %4781 = vmatmul.mubr.f32.gmra.mrb[0].mxu0 %v4491
    %v4782 = vpop.f32.mrb[0].mxu0
    %v4783 = vadd.f32 %v4625, %v4782
    %v4784 = vpop.f32.mrb[0].mxu0
    %v4785 = vadd.f32 %v4625, %v4784
    %4786 = vmatprep.mubr.f32.mxu0 %v4637
    %4787 = vmatmul.mubr.f32.gmra.mrb[0].mxu0 %v4493
    %v4788 = vpop.f32.mrb[0].mxu0
    %v4789 = vadd.f32 %v4630, %v4788
    %v4790 = vpop.f32.mrb[0].mxu0
    %v4791 = vadd.f32 %v4630, %v4790
    %4792 = vdwg.mxu0
    %4793 = vmatprep.subr.mxu0 0.0
    %4794 = vmatpush1.msra.mxu0 %v4499
    %4795 = vmatprep.subr.mxu0 0.0
    %4796 = vmatpush1.msra.mxu0 %v4504
    %4797 = vmatprep.subr.mxu0 0.0
    %4798 = vmatpush1.msra.mxu0 %v4509
    %4799 = vmatprep.subr.mxu0 0.0
    %4800 = vmatpush1.msra.mxu0 %v4514
    %4801 = vmatprep.subr.mxu0 0.0
    %4802 = vmatpush1.msra.mxu0 %v4519
    %4803 = vmatprep.subr.mxu0 0.0
    %4804 = vmatpush1.msra.mxu0 %v4524
    %4805 = vmatprep.subr.mxu0 0.0
    %4806 = vmatpush1.msra.mxu0 %v4529
    %4807 = vmatprep.subr.mxu0 0.0
    %4808 = vmatpush1.msra.mxu0 %v4534
    %4809 = vmatprep.subr.mxu0 0.0
    %4810 = vmatpush1.msra.mxu0 %v4539
    %4811 = vmatprep.subr.mxu0 0.0
    %4812 = vmatpush1.msra.mxu0 %v4544
    %4813 = vmatprep.subr.mxu0 0.0
    %4814 = vmatpush1.msra.mxu0 %v4549
    %4815 = vmatprep.subr.mxu0 0.0
    %4816 = vmatpush1.msra.mxu0 %v4554
    %4817 = vmatprep.subr.mxu0 0.0
    %4818 = vmatpush1.msra.mxu0 %v4559
    %4819 = vmatprep.subr.mxu0 0.0
    %4820 = vmatpush1.msra.mxu0 %v4564
    %4821 = vmatprep.subr.mxu0 0.0
    %4822 = vmatpush1.msra.mxu0 %v4569
    %4823 = vmatprep.subr.mxu0 0.0
    %4824 = vmatpush1.msra.mxu0 %v4574
    %4825 = vmatprep.subr.mxu0 0.0
    %4826 = vmatpush1.msra.mxu0 %v4579
    %4827 = vmatprep.subr.mxu0 0.0
    %4828 = vmatpush1.msra.mxu0 %v4584
    %4829 = vmatprep.subr.mxu0 0.0
    %4830 = vmatpush1.msra.mxu0 %v4589
    %4831 = vmatprep.subr.mxu0 0.0
    %4832 = vmatpush1.msra.mxu0 %v4594
    %4833 = vmatprep.subr.mxu0 0.0
    %4834 = vmatpush1.msra.mxu0 %v4599
    %4835 = vmatprep.subr.mxu0 0.0
    %4836 = vmatpush1.msra.mxu0 %v4604
    %4837 = vmatprep.subr.mxu0 0.0
    %4838 = vmatpush1.msra.mxu0 %v4609
    %4839 = vmatprep.subr.mxu0 0.0
    %4840 = vmatpush1.msra.mxu0 %v4614
    %4841 = vmatprep.subr.mxu0 0.0
    %4842 = vmatpush1.msra.mxu0 %v4619
    %4843 = vmatprep.subr.mxu0 0.0
    %4844 = vmatpush1.msra.mxu0 0.0
    %4845 = vmatprep.subr.mxu0 0.0
    %4846 = vmatpush1.msra.mxu0 0.0
    %4847 = vmatprep.subr.mxu0 0.0
    %4848 = vmatpush1.msra.mxu0 0.0
    %4849 = vmatprep.subr.mxu0 0.0
    %4850 = vmatpush1.msra.mxu0 0.0
    %4851 = vmatprep.subr.mxu0 0.0
    %4852 = vmatpush1.msra.mxu0 0.0
    %4853 = vmatprep.subr.mxu0 0.0
    %4854 = vmatpush1.msra.mxu0 0.0
    %4855 = vmatprep.subr.mxu0 0.0
    %4856 = vmatpush1.msra.mxu0 0.0
    %4857 = vmatprep.mubr.f32.mxu0 %v4634
    %4858 = vmatmul.mubr.f32.gmra.mrb[0].mxu0 %v4491
    %v4859 = vpop.f32.mrb[0].mxu0
    %v4860 = vadd.f32 %v4625, %v4859
    %v4861 = vpop.f32.mrb[0].mxu0
    %4862 = vmatprep.mubr.f32.mxu0 %v4637
    %4863 = vmatmul.mubr.f32.gmra.mrb[0].mxu0 %v4493
    %v4864 = vpop.f32.mrb[0].mxu0
    %v4865 = vadd.f32 %v4630, %v4864
    %v4866 = vpop.f32.mrb[0].mxu0
    %4867 = vdwg.mxu0
    %4868 = vst [vmem:[#allocation5] sm:$0xff] %v4706
    %4869 = vst [vmem:[#allocation5 + $0x8] sm:$0xff] %v4708
    %4870 = vst [vmem:[#allocation5 + $0x10] sm:$0xff] %v4783
    %4871 = vst [vmem:[#allocation5 + $0x18] sm:$0xff] %v4785
    %4872 = vst.msk [vmem:[#allocation5 + $0x20] sm:$0xff] %vm3970, %v4860
    %4873 = vst [vmem:[#allocation5 + $0x30] sm:$0xff] %v4712
    %4874 = vst [vmem:[#allocation5 + $0x38] sm:$0xff] %v4714
    %4875 = vst [vmem:[#allocation5 + $0x40] sm:$0xff] %v4789
    %4876 = vst [vmem:[#allocation5 + $0x48] sm:$0xff] %v4791
    %4877 = vst.msk [vmem:[#allocation5 + $0x50] sm:$0xff] %vm3970, %v4865
    %v4878 = vld [vmem:[#allocation5] sm:$0xff]
    %v4879 = vld [vmem:[#allocation5 + $0x8] sm:$0xff]
    %v4880 = vld [vmem:[#allocation5 + $0x10] sm:$0xff]
    %v4881 = vld [vmem:[#allocation5 + $0x18] sm:$0xff]
    %v4882 = vld [vmem:[#allocation5 + $0x20] sm:$0xff]
    %v4883 = vld [vmem:[#allocation5 + $0x30] sm:$0xff]
    %v4884 = vld [vmem:[#allocation5 + $0x38] sm:$0xff]
    %v4885 = vld [vmem:[#allocation5 + $0x40] sm:$0xff]
    %v4886 = vld [vmem:[#allocation5 + $0x48] sm:$0xff]
    %v4887 = vld [vmem:[#allocation5 + $0x50] sm:$0xff]
    %4898 = vrot.lane.b32.xlu0 %v4878, 126
    %v4899 = vpop.permute.xlu0 %4898
    %4900 = vrot.lane.b32.xlu0 %v4879, 126
    %v4901 = vpop.permute.xlu0 %4900
    %4902 = vrot.lane.b32.xlu0 %v4880, 126
    %v4903 = vpop.permute.xlu0 %4902
    %4904 = vrot.lane.b32.xlu0 %v4881, 126
    %v4905 = vpop.permute.xlu0 %4904
    %4906 = vrot.lane.b32.xlu0 %v4882, 126
    %v4907 = vpop.permute.xlu0 %4906
    %4908 = vrot.lane.b32.xlu0 %v4883, 126
    %v4909 = vpop.permute.xlu0 %4908
    %4910 = vrot.lane.b32.xlu0 %v4884, 126
    %v4911 = vpop.permute.xlu0 %4910
    %4912 = vrot.lane.b32.xlu0 %v4885, 126
    %v4913 = vpop.permute.xlu0 %4912
    %4914 = vrot.lane.b32.xlu0 %v4886, 126
    %v4915 = vpop.permute.xlu0 %4914
    %4916 = vrot.lane.b32.xlu0 %v4887, 126
    %v4917 = vpop.permute.xlu0 %4916
    %v4918 = vsel %vm258, %v4899, %v4901
    %v4919 = vsel %vm258, %v4901, %v4903
    %v4920 = vsel %vm258, %v4903, %v4905
    %v4921 = vsel %vm258, %v4905, %v4907
    %v4922 = vsel %vm258, %v4909, %v4911
    %v4923 = vsel %vm258, %v4911, %v4913
    %v4924 = vsel %vm258, %v4913, %v4915
    %v4925 = vsel %vm258, %v4915, %v4917
    %v4936 = vmax.f32 %v4878, %v4918
    %v4937 = vmax.f32 %v4879, %v4919
    %v4938 = vmax.f32 %v4880, %v4920
    %v4939 = vmax.f32 %v4881, %v4921
    %v4940 = vmax.f32 %v4882, %v4907
    %v4941 = vmax.f32 %v4883, %v4922
    %v4942 = vmax.f32 %v4884, %v4923
    %v4943 = vmax.f32 %v4885, %v4924
    %v4944 = vmax.f32 %v4886, %v4925
    %v4945 = vmax.f32 %v4887, %v4917
    %v4946 = vld [vmem:[#allocation5 + $0x28] sm:$0xff]
    %v4947 = vld [vmem:[#allocation5 + $0x58] sm:$0xff]
    %4950 = vrot.lane.b32.xlu0 %v4946, 126
    %v4951 = vpop.permute.xlu0 %4950
    %4952 = vrot.lane.b32.xlu0 %v4947, 126
    %v4953 = vpop.permute.xlu0 %4952
    %v4954 = vsel %vm258, %v4907, %v4951
    %v4955 = vsel %vm258, %v4917, %v4953
    %v4960 = vmax.f32 %v4882, %v4954
    %v4961 = vmax.f32 %v4946, %v4951
    %v4962 = vmax.f32 %v4887, %v4955
    %v4963 = vmax.f32 %v4947, %v4953
    %4976 = vrot.lane.b32.xlu0 %v4936, 96
    %v4977 = vpop.permute.xlu0 %4976
    %4978 = vrot.lane.b32.xlu0 %v4937, 96
    %v4979 = vpop.permute.xlu0 %4978
    %4980 = vrot.lane.b32.xlu0 %v4938, 96
    %v4981 = vpop.permute.xlu0 %4980
    %4982 = vrot.lane.b32.xlu0 %v4939, 96
    %v4983 = vpop.permute.xlu0 %4982
    %4984 = vrot.lane.b32.xlu0 %v4960, 96
    %v4985 = vpop.permute.xlu0 %4984
    %4986 = vrot.lane.b32.xlu0 %v4961, 96
    %v4987 = vpop.permute.xlu0 %4986
    %4988 = vrot.lane.b32.xlu0 %v4941, 96
    %v4989 = vpop.permute.xlu0 %4988
    %4990 = vrot.lane.b32.xlu0 %v4942, 96
    %v4991 = vpop.permute.xlu0 %4990
    %4992 = vrot.lane.b32.xlu0 %v4943, 96
    %v4993 = vpop.permute.xlu0 %4992
    %4994 = vrot.lane.b32.xlu0 %v4944, 96
    %v4995 = vpop.permute.xlu0 %4994
    %4996 = vrot.lane.b32.xlu0 %v4962, 96
    %v4997 = vpop.permute.xlu0 %4996
    %4998 = vrot.lane.b32.xlu0 %v4963, 96
    %v4999 = vpop.permute.xlu0 %4998
    %v5000 = vsel %vm432, %v4977, %v4979
    %v5001 = vsel %vm432, %v4979, %v4981
    %v5002 = vsel %vm432, %v4981, %v4983
    %v5003 = vsel %vm432, %v4983, %v4985
    %v5004 = vsel %vm432, %v4985, %v4987
    %v5005 = vsel %vm432, %v4989, %v4991
    %v5006 = vsel %vm432, %v4991, %v4993
    %v5007 = vsel %vm432, %v4993, %v4995
    %v5008 = vsel %vm432, %v4995, %v4997
    %v5009 = vsel %vm432, %v4997, %v4999
    %v5020 = vmax.f32 %v4936, %v5000
    %v5021 = vmax.f32 %v4937, %v5001
    %v5022 = vmax.f32 %v4938, %v5002
    %v5023 = vmax.f32 %v4939, %v5003
    %v5024 = vmax.f32 %v4940, %v5004
    %v5025 = vmax.f32 %v4941, %v5005
    %v5026 = vmax.f32 %v4942, %v5006
    %v5027 = vmax.f32 %v4943, %v5007
    %v5028 = vmax.f32 %v4944, %v5008
    %v5029 = vmax.f32 %v4945, %v5009
    %v5030 = vmax.f32 %v5020, 0.0
    %v5031 = vmax.f32 %v5021, 0.0
    %v5032 = vmax.f32 %v5022, 0.0
    %v5033 = vmax.f32 %v5023, 0.0
    %v5034 = vmax.f32 %v5024, 0.0
    %v5035 = vmax.f32 %v5025, 0.0
    %v5036 = vmax.f32 %v5026, 0.0
    %v5037 = vmax.f32 %v5027, 0.0
    %v5038 = vmax.f32 %v5028, 0.0
    %v5039 = vmax.f32 %v5029, 0.0
    %5040 = vst [vmem:[#allocation6] sm:$0xff] %v5030
    %5041 = vst [vmem:[#allocation6 + $0x8] sm:$0xff] %v5031
    %5042 = vst [vmem:[#allocation6 + $0x10] sm:$0xff] %v5032
    %5043 = vst [vmem:[#allocation6 + $0x18] sm:$0xff] %v5033
    %5044 = vst.msk [vmem:[#allocation6 + $0x20] sm:$0xff] %vm3970, %v5034
    %5045 = vst [vmem:[#allocation6 + $0x28] sm:$0xff] %v5035
    %5046 = vst [vmem:[#allocation6 + $0x30] sm:$0xff] %v5036
    %5047 = vst [vmem:[#allocation6 + $0x38] sm:$0xff] %v5037
    %5048 = vst [vmem:[#allocation6 + $0x40] sm:$0xff] %v5038
    %5049 = vst.msk [vmem:[#allocation6 + $0x48] sm:$0xff] %vm3970, %v5039
    %v5050 = vld [vmem:[#allocation6] sm:$0xff]
    %v5051 = vld [vmem:[#allocation6 + $0x28] sm:$0xff]
    %vm5052 = vcmask 7168
    %5053 = vst.msk [vmem:[#allocation7] sm:$0xff] %vm5052, %v5050
    %5054 = vst.msk [vmem:[#allocation7 + $0x8] sm:$0xff] %vm5052, %v5051
    %v5055 = vld [vmem:[#allocation6] sm:$0xff]
    %v5056 = vld [vmem:[#allocation6 + $0x28] sm:$0xff]
    %5059 = vrot.lane.b32.xlu0 %v5055, 124
    %v5060 = vpop.permute.xlu0 %5059
    %5061 = vrot.lane.b32.xlu0 %v5056, 124
    %v5062 = vpop.permute.xlu0 %5061
    %5065 = vst.msk [vmem:[#allocation7 + $0x10] sm:$0xff] %vm5052, %v5060
    %5066 = vst.msk [vmem:[#allocation7 + $0x18] sm:$0xff] %vm5052, %v5062
    %v5067 = vld [vmem:[#allocation6] sm:$0xff]
    %v5068 = vld [vmem:[#allocation6 + $0x28] sm:$0xff]
    %5071 = vrot.lane.b32.xlu0 %v5067, 120
    %v5072 = vpop.permute.xlu0 %5071
    %5073 = vrot.lane.b32.xlu0 %v5068, 120
    %v5074 = vpop.permute.xlu0 %5073
    %5077 = vst.msk [vmem:[#allocation7 + $0x20] sm:$0xff] %vm5052, %v5072
    %5078 = vst.msk [vmem:[#allocation7 + $0x28] sm:$0xff] %vm5052, %v5074
    %v5079 = vld [vmem:[#allocation6] sm:$0xff]
    %v5080 = vld [vmem:[#allocation6 + $0x28] sm:$0xff]
    %5083 = vrot.lane.b32.xlu0 %v5079, 116
    %v5084 = vpop.permute.xlu0 %5083
    %5085 = vrot.lane.b32.xlu0 %v5080, 116
    %v5086 = vpop.permute.xlu0 %5085
    %5089 = vst.msk [vmem:[#allocation7 + $0x30] sm:$0xff] %vm5052, %v5084
    %5090 = vst.msk [vmem:[#allocation7 + $0x38] sm:$0xff] %vm5052, %v5086
    %v5091 = vld [vmem:[#allocation6] sm:$0xff]
    %v5092 = vld [vmem:[#allocation6 + $0x28] sm:$0xff]
    %5095 = vrot.lane.b32.xlu0 %v5091, 112
    %v5096 = vpop.permute.xlu0 %5095
    %5097 = vrot.lane.b32.xlu0 %v5092, 112
    %v5098 = vpop.permute.xlu0 %5097
    %5101 = vst.msk [vmem:[#allocation7 + $0x40] sm:$0xff] %vm5052, %v5096
    %5102 = vst.msk [vmem:[#allocation7 + $0x48] sm:$0xff] %vm5052, %v5098
    %v5103 = vld [vmem:[#allocation6] sm:$0xff]
    %v5104 = vld [vmem:[#allocation6 + $0x28] sm:$0xff]
    %5107 = vrot.lane.b32.xlu0 %v5103, 64
    %v5108 = vpop.permute.xlu0 %5107
    %5109 = vrot.lane.b32.xlu0 %v5104, 64
    %v5110 = vpop.permute.xlu0 %5109
    %5113 = vst.msk [vmem:[#allocation7 + $0x50] sm:$0xff] %vm5052, %v5108
    %5114 = vst.msk [vmem:[#allocation7 + $0x58] sm:$0xff] %vm5052, %v5110
    %v5115 = vld [vmem:[#allocation6] sm:$0xff]
    %v5116 = vld [vmem:[#allocation6 + $0x28] sm:$0xff]
    %5119 = vrot.lane.b32.xlu0 %v5115, 60
    %v5120 = vpop.permute.xlu0 %5119
    %5121 = vrot.lane.b32.xlu0 %v5116, 60
    %v5122 = vpop.permute.xlu0 %5121
    %5125 = vst.msk [vmem:[#allocation7 + $0x60] sm:$0xff] %vm5052, %v5120
    %5126 = vst.msk [vmem:[#allocation7 + $0x68] sm:$0xff] %vm5052, %v5122
    %v5127 = vld [vmem:[#allocation6] sm:$0xff]
    %v5128 = vld [vmem:[#allocation6 + $0x28] sm:$0xff]
    %5131 = vrot.lane.b32.xlu0 %v5127, 56
    %v5132 = vpop.permute.xlu0 %5131
    %5133 = vrot.lane.b32.xlu0 %v5128, 56
    %v5134 = vpop.permute.xlu0 %5133
    %5137 = vst.msk [vmem:[#allocation7 + $0x70] sm:$0xff] %vm5052, %v5132
    %5138 = vst.msk [vmem:[#allocation7 + $0x78] sm:$0xff] %vm5052, %v5134
    %v5139 = vld [vmem:[#allocation6] sm:$0xff]
    %v5140 = vld [vmem:[#allocation6 + $0x28] sm:$0xff]
    %5143 = vrot.lane.b32.xlu0 %v5139, 52
    %v5144 = vpop.permute.xlu0 %5143
    %5145 = vrot.lane.b32.xlu0 %v5140, 52
    %v5146 = vpop.permute.xlu0 %5145
    %5149 = vst.msk [vmem:[#allocation7 + $0x80] sm:$0xff] %vm5052, %v5144
    %5150 = vst.msk [vmem:[#allocation7 + $0x88] sm:$0xff] %vm5052, %v5146
    %v5151 = vld [vmem:[#allocation6] sm:$0xff]
    %v5152 = vld [vmem:[#allocation6 + $0x28] sm:$0xff]
    %5155 = vrot.lane.b32.xlu0 %v5151, 48
    %v5156 = vpop.permute.xlu0 %5155
    %5157 = vrot.lane.b32.xlu0 %v5152, 48
    %v5158 = vpop.permute.xlu0 %5157
    %5161 = vst.msk [vmem:[#allocation7 + $0x90] sm:$0xff] %vm5052, %v5156
    %5162 = vst.msk [vmem:[#allocation7 + $0x98] sm:$0xff] %vm5052, %v5158
    %v5163 = vld [vmem:[#allocation6 + $0x8] sm:$0xff]
    %v5164 = vld [vmem:[#allocation6 + $0x30] sm:$0xff]
    %5165 = vst.msk [vmem:[#allocation7 + $0xa0] sm:$0xff] %vm5052, %v5163
    %5166 = vst.msk [vmem:[#allocation7 + $0xa8] sm:$0xff] %vm5052, %v5164
    %v5167 = vld [vmem:[#allocation6 + $0x8] sm:$0xff]
    %v5168 = vld [vmem:[#allocation6 + $0x30] sm:$0xff]
    %5171 = vrot.lane.b32.xlu0 %v5167, 124
    %v5172 = vpop.permute.xlu0 %5171
    %5173 = vrot.lane.b32.xlu0 %v5168, 124
    %v5174 = vpop.permute.xlu0 %5173
    %5177 = vst.msk [vmem:[#allocation7 + $0xb0] sm:$0xff] %vm5052, %v5172
    %5178 = vst.msk [vmem:[#allocation7 + $0xb8] sm:$0xff] %vm5052, %v5174
    %v5179 = vld [vmem:[#allocation6 + $0x8] sm:$0xff]
    %v5180 = vld [vmem:[#allocation6 + $0x30] sm:$0xff]
    %5183 = vrot.lane.b32.xlu0 %v5179, 120
    %v5184 = vpop.permute.xlu0 %5183
    %5185 = vrot.lane.b32.xlu0 %v5180, 120
    %v5186 = vpop.permute.xlu0 %5185
    %5189 = vst.msk [vmem:[#allocation7 + $0xc0] sm:$0xff] %vm5052, %v5184
    %5190 = vst.msk [vmem:[#allocation7 + $0xc8] sm:$0xff] %vm5052, %v5186
    %v5191 = vld [vmem:[#allocation6 + $0x8] sm:$0xff]
    %v5192 = vld [vmem:[#allocation6 + $0x30] sm:$0xff]
    %5195 = vrot.lane.b32.xlu0 %v5191, 116
    %v5196 = vpop.permute.xlu0 %5195
    %5197 = vrot.lane.b32.xlu0 %v5192, 116
    %v5198 = vpop.permute.xlu0 %5197
    %5201 = vst.msk [vmem:[#allocation7 + $0xd0] sm:$0xff] %vm5052, %v5196
    %5202 = vst.msk [vmem:[#allocation7 + $0xd8] sm:$0xff] %vm5052, %v5198
    %v5203 = vld [vmem:[#allocation6 + $0x8] sm:$0xff]
    %v5204 = vld [vmem:[#allocation6 + $0x30] sm:$0xff]
    %5207 = vrot.lane.b32.xlu0 %v5203, 112
    %v5208 = vpop.permute.xlu0 %5207
    %5209 = vrot.lane.b32.xlu0 %v5204, 112
    %v5210 = vpop.permute.xlu0 %5209
    %5213 = vst.msk [vmem:[#allocation7 + $0xe0] sm:$0xff] %vm5052, %v5208
    %5214 = vst.msk [vmem:[#allocation7 + $0xe8] sm:$0xff] %vm5052, %v5210
    %v5215 = vld [vmem:[#allocation6 + $0x8] sm:$0xff]
    %v5216 = vld [vmem:[#allocation6 + $0x30] sm:$0xff]
    %5219 = vrot.lane.b32.xlu0 %v5215, 64
    %v5220 = vpop.permute.xlu0 %5219
    %5221 = vrot.lane.b32.xlu0 %v5216, 64
    %v5222 = vpop.permute.xlu0 %5221
    %5225 = vst.msk [vmem:[#allocation7 + $0xf0] sm:$0xff] %vm5052, %v5220
    %5226 = vst.msk [vmem:[#allocation7 + $0xf8] sm:$0xff] %vm5052, %v5222
    %v5227 = vld [vmem:[#allocation6 + $0x8] sm:$0xff]
    %v5228 = vld [vmem:[#allocation6 + $0x30] sm:$0xff]
    %5231 = vrot.lane.b32.xlu0 %v5227, 60
    %v5232 = vpop.permute.xlu0 %5231
    %5233 = vrot.lane.b32.xlu0 %v5228, 60
    %v5234 = vpop.permute.xlu0 %5233
    %5237 = vst.msk [vmem:[#allocation7 + $0x100] sm:$0xff] %vm5052, %v5232
    %5238 = vst.msk [vmem:[#allocation7 + $0x108] sm:$0xff] %vm5052, %v5234
    %v5239 = vld [vmem:[#allocation6 + $0x8] sm:$0xff]
    %v5240 = vld [vmem:[#allocation6 + $0x30] sm:$0xff]
    %5243 = vrot.lane.b32.xlu0 %v5239, 56
    %v5244 = vpop.permute.xlu0 %5243
    %5245 = vrot.lane.b32.xlu0 %v5240, 56
    %v5246 = vpop.permute.xlu0 %5245
    %5249 = vst.msk [vmem:[#allocation7 + $0x110] sm:$0xff] %vm5052, %v5244
    %5250 = vst.msk [vmem:[#allocation7 + $0x118] sm:$0xff] %vm5052, %v5246
    %v5251 = vld [vmem:[#allocation6 + $0x8] sm:$0xff]
    %v5252 = vld [vmem:[#allocation6 + $0x30] sm:$0xff]
    %5255 = vrot.lane.b32.xlu0 %v5251, 52
    %v5256 = vpop.permute.xlu0 %5255
    %5257 = vrot.lane.b32.xlu0 %v5252, 52
    %v5258 = vpop.permute.xlu0 %5257
    %5261 = vst.msk [vmem:[#allocation7 + $0x120] sm:$0xff] %vm5052, %v5256
    %5262 = vst.msk [vmem:[#allocation7 + $0x128] sm:$0xff] %vm5052, %v5258
    %v5263 = vld [vmem:[#allocation6 + $0x8] sm:$0xff]
    %v5264 = vld [vmem:[#allocation6 + $0x30] sm:$0xff]
    %5267 = vrot.lane.b32.xlu0 %v5263, 48
    %v5268 = vpop.permute.xlu0 %5267
    %5269 = vrot.lane.b32.xlu0 %v5264, 48
    %v5270 = vpop.permute.xlu0 %5269
    %5273 = vst.msk [vmem:[#allocation7 + $0x130] sm:$0xff] %vm5052, %v5268
    %5274 = vst.msk [vmem:[#allocation7 + $0x138] sm:$0xff] %vm5052, %v5270
    %v5275 = vld [vmem:[#allocation6 + $0x10] sm:$0xff]
    %v5276 = vld [vmem:[#allocation6 + $0x38] sm:$0xff]
    %5277 = vst.msk [vmem:[#allocation7 + $0x140] sm:$0xff] %vm5052, %v5275
    %5278 = vst.msk [vmem:[#allocation7 + $0x148] sm:$0xff] %vm5052, %v5276
    %v5279 = vld [vmem:[#allocation6 + $0x10] sm:$0xff]
    %v5280 = vld [vmem:[#allocation6 + $0x38] sm:$0xff]
    %5283 = vrot.lane.b32.xlu0 %v5279, 124
    %v5284 = vpop.permute.xlu0 %5283
    %5285 = vrot.lane.b32.xlu0 %v5280, 124
    %v5286 = vpop.permute.xlu0 %5285
    %5289 = vst.msk [vmem:[#allocation7 + $0x150] sm:$0xff] %vm5052, %v5284
    %5290 = vst.msk [vmem:[#allocation7 + $0x158] sm:$0xff] %vm5052, %v5286
    %v5291 = vld [vmem:[#allocation6 + $0x10] sm:$0xff]
    %v5292 = vld [vmem:[#allocation6 + $0x38] sm:$0xff]
    %5295 = vrot.lane.b32.xlu0 %v5291, 120
    %v5296 = vpop.permute.xlu0 %5295
    %5297 = vrot.lane.b32.xlu0 %v5292, 120
    %v5298 = vpop.permute.xlu0 %5297
    %5301 = vst.msk [vmem:[#allocation7 + $0x160] sm:$0xff] %vm5052, %v5296
    %5302 = vst.msk [vmem:[#allocation7 + $0x168] sm:$0xff] %vm5052, %v5298
    %v5303 = vld [vmem:[#allocation6 + $0x10] sm:$0xff]
    %v5304 = vld [vmem:[#allocation6 + $0x38] sm:$0xff]
    %5307 = vrot.lane.b32.xlu0 %v5303, 116
    %v5308 = vpop.permute.xlu0 %5307
    %5309 = vrot.lane.b32.xlu0 %v5304, 116
    %v5310 = vpop.permute.xlu0 %5309
    %5313 = vst.msk [vmem:[#allocation7 + $0x170] sm:$0xff] %vm5052, %v5308
    %5314 = vst.msk [vmem:[#allocation7 + $0x178] sm:$0xff] %vm5052, %v5310
    %v5315 = vld [vmem:[#allocation6 + $0x10] sm:$0xff]
    %v5316 = vld [vmem:[#allocation6 + $0x38] sm:$0xff]
    %5319 = vrot.lane.b32.xlu0 %v5315, 112
    %v5320 = vpop.permute.xlu0 %5319
    %5321 = vrot.lane.b32.xlu0 %v5316, 112
    %v5322 = vpop.permute.xlu0 %5321
    %5325 = vst.msk [vmem:[#allocation7 + $0x180] sm:$0xff] %vm5052, %v5320
    %5326 = vst.msk [vmem:[#allocation7 + $0x188] sm:$0xff] %vm5052, %v5322
    %v5327 = vld [vmem:[#allocation6 + $0x10] sm:$0xff]
    %v5328 = vld [vmem:[#allocation6 + $0x38] sm:$0xff]
    %5331 = vrot.lane.b32.xlu0 %v5327, 73
    %v5332 = vpop.permute.xlu0 %5331
    %5333 = vrot.lane.b32.xlu0 %v5328, 73
    %v5334 = vpop.permute.xlu0 %5333
    %vm5337 = vcmask 15368
    %5338 = vst.msk [vmem:[#allocation7] sm:$0xff] %vm5337, %v5332
    %5339 = vst.msk [vmem:[#allocation7 + $0x8] sm:$0xff] %vm5337, %v5334
    %v5340 = vld [vmem:[#allocation6 + $0x10] sm:$0xff]
    %v5341 = vld [vmem:[#allocation6 + $0x38] sm:$0xff]
    %5344 = vrot.lane.b32.xlu0 %v5340, 69
    %v5345 = vpop.permute.xlu0 %5344
    %5346 = vrot.lane.b32.xlu0 %v5341, 69
    %v5347 = vpop.permute.xlu0 %5346
    %5350 = vst.msk [vmem:[#allocation7 + $0x10] sm:$0xff] %vm5337, %v5345
    %5351 = vst.msk [vmem:[#allocation7 + $0x18] sm:$0xff] %vm5337, %v5347
    %v5352 = vld [vmem:[#allocation6 + $0x10] sm:$0xff]
    %v5353 = vld [vmem:[#allocation6 + $0x38] sm:$0xff]
    %5356 = vrot.lane.b32.xlu0 %v5352, 65
    %v5357 = vpop.permute.xlu0 %5356
    %5358 = vrot.lane.b32.xlu0 %v5353, 65
    %v5359 = vpop.permute.xlu0 %5358
    %5362 = vst.msk [vmem:[#allocation7 + $0x20] sm:$0xff] %vm5337, %v5357
    %5363 = vst.msk [vmem:[#allocation7 + $0x28] sm:$0xff] %vm5337, %v5359
    %v5364 = vld [vmem:[#allocation6 + $0x10] sm:$0xff]
    %v5365 = vld [vmem:[#allocation6 + $0x38] sm:$0xff]
    %5368 = vrot.lane.b32.xlu0 %v5364, 61
    %v5369 = vpop.permute.xlu0 %5368
    %5370 = vrot.lane.b32.xlu0 %v5365, 61
    %v5371 = vpop.permute.xlu0 %5370
    %5374 = vst.msk [vmem:[#allocation7 + $0x30] sm:$0xff] %vm5337, %v5369
    %5375 = vst.msk [vmem:[#allocation7 + $0x38] sm:$0xff] %vm5337, %v5371
    %v5376 = vld [vmem:[#allocation6 + $0x10] sm:$0xff]
    %v5377 = vld [vmem:[#allocation6 + $0x38] sm:$0xff]
    %5380 = vrot.lane.b32.xlu0 %v5376, 57
    %v5381 = vpop.permute.xlu0 %5380
    %5382 = vrot.lane.b32.xlu0 %v5377, 57
    %v5383 = vpop.permute.xlu0 %5382
    %5386 = vst.msk [vmem:[#allocation7 + $0x40] sm:$0xff] %vm5337, %v5381
    %5387 = vst.msk [vmem:[#allocation7 + $0x48] sm:$0xff] %vm5337, %v5383
    %v5388 = vld [vmem:[#allocation6 + $0x10] sm:$0xff]
    %v5389 = vld [vmem:[#allocation6 + $0x38] sm:$0xff]
    %5392 = vrot.lane.b32.xlu0 %v5388, 9
    %v5393 = vpop.permute.xlu0 %5392
    %5394 = vrot.lane.b32.xlu0 %v5389, 9
    %v5395 = vpop.permute.xlu0 %5394
    %5398 = vst.msk [vmem:[#allocation7 + $0x50] sm:$0xff] %vm5337, %v5393
    %5399 = vst.msk [vmem:[#allocation7 + $0x58] sm:$0xff] %vm5337, %v5395
    %v5400 = vld [vmem:[#allocation6 + $0x10] sm:$0xff]
    %v5401 = vld [vmem:[#allocation6 + $0x38] sm:$0xff]
    %5404 = vrot.lane.b32.xlu0 %v5400, 5
    %v5405 = vpop.permute.xlu0 %5404
    %5406 = vrot.lane.b32.xlu0 %v5401, 5
    %v5407 = vpop.permute.xlu0 %5406
    %5410 = vst.msk [vmem:[#allocation7 + $0x60] sm:$0xff] %vm5337, %v5405
    %5411 = vst.msk [vmem:[#allocation7 + $0x68] sm:$0xff] %vm5337, %v5407
    %v5412 = vld [vmem:[#allocation6 + $0x18] sm:$0xff]
    %v5413 = vld [vmem:[#allocation6 + $0x40] sm:$0xff]
    %5416 = vrot.lane.b32.xlu0 %v5412, 1
    %v5417 = vpop.permute.xlu0 %5416
    %5418 = vrot.lane.b32.xlu0 %v5413, 1
    %v5419 = vpop.permute.xlu0 %5418
    %5422 = vst.msk [vmem:[#allocation7 + $0x70] sm:$0xff] %vm5337, %v5417
    %5423 = vst.msk [vmem:[#allocation7 + $0x78] sm:$0xff] %vm5337, %v5419
    %v5424 = vld [vmem:[#allocation6 + $0x18] sm:$0xff]
    %v5425 = vld [vmem:[#allocation6 + $0x40] sm:$0xff]
    %5428 = vrot.lane.b32.xlu0 %v5424, 125
    %v5429 = vpop.permute.xlu0 %5428
    %5430 = vrot.lane.b32.xlu0 %v5425, 125
    %v5431 = vpop.permute.xlu0 %5430
    %5434 = vst.msk [vmem:[#allocation7 + $0x80] sm:$0xff] %vm5337, %v5429
    %5435 = vst.msk [vmem:[#allocation7 + $0x88] sm:$0xff] %vm5337, %v5431
    %v5436 = vld [vmem:[#allocation6 + $0x18] sm:$0xff]
    %v5437 = vld [vmem:[#allocation6 + $0x40] sm:$0xff]
    %5440 = vrot.lane.b32.xlu0 %v5436, 121
    %v5441 = vpop.permute.xlu0 %5440
    %5442 = vrot.lane.b32.xlu0 %v5437, 121
    %v5443 = vpop.permute.xlu0 %5442
    %5446 = vst.msk [vmem:[#allocation7 + $0x90] sm:$0xff] %vm5337, %v5441
    %5447 = vst.msk [vmem:[#allocation7 + $0x98] sm:$0xff] %vm5337, %v5443
    %v5448 = vld [vmem:[#allocation6 + $0x18] sm:$0xff]
    %v5449 = vld [vmem:[#allocation6 + $0x40] sm:$0xff]
    %5452 = vrot.lane.b32.xlu0 %v5448, 73
    %v5453 = vpop.permute.xlu0 %5452
    %5454 = vrot.lane.b32.xlu0 %v5449, 73
    %v5455 = vpop.permute.xlu0 %5454
    %5458 = vst.msk [vmem:[#allocation7 + $0xa0] sm:$0xff] %vm5337, %v5453
    %5459 = vst.msk [vmem:[#allocation7 + $0xa8] sm:$0xff] %vm5337, %v5455
    %v5460 = vld [vmem:[#allocation6 + $0x18] sm:$0xff]
    %v5461 = vld [vmem:[#allocation6 + $0x40] sm:$0xff]
    %5464 = vrot.lane.b32.xlu0 %v5460, 69
    %v5465 = vpop.permute.xlu0 %5464
    %5466 = vrot.lane.b32.xlu0 %v5461, 69
    %v5467 = vpop.permute.xlu0 %5466
    %5470 = vst.msk [vmem:[#allocation7 + $0xb0] sm:$0xff] %vm5337, %v5465
    %5471 = vst.msk [vmem:[#allocation7 + $0xb8] sm:$0xff] %vm5337, %v5467
    %v5472 = vld [vmem:[#allocation6 + $0x18] sm:$0xff]
    %v5473 = vld [vmem:[#allocation6 + $0x40] sm:$0xff]
    %5476 = vrot.lane.b32.xlu0 %v5472, 65
    %v5477 = vpop.permute.xlu0 %5476
    %5478 = vrot.lane.b32.xlu0 %v5473, 65
    %v5479 = vpop.permute.xlu0 %5478
    %5482 = vst.msk [vmem:[#allocation7 + $0xc0] sm:$0xff] %vm5337, %v5477
    %5483 = vst.msk [vmem:[#allocation7 + $0xc8] sm:$0xff] %vm5337, %v5479
    %v5484 = vld [vmem:[#allocation6 + $0x18] sm:$0xff]
    %v5485 = vld [vmem:[#allocation6 + $0x40] sm:$0xff]
    %5488 = vrot.lane.b32.xlu0 %v5484, 61
    %v5489 = vpop.permute.xlu0 %5488
    %5490 = vrot.lane.b32.xlu0 %v5485, 61
    %v5491 = vpop.permute.xlu0 %5490
    %5494 = vst.msk [vmem:[#allocation7 + $0xd0] sm:$0xff] %vm5337, %v5489
    %5495 = vst.msk [vmem:[#allocation7 + $0xd8] sm:$0xff] %vm5337, %v5491
    %v5496 = vld [vmem:[#allocation6 + $0x18] sm:$0xff]
    %v5497 = vld [vmem:[#allocation6 + $0x40] sm:$0xff]
    %5500 = vrot.lane.b32.xlu0 %v5496, 57
    %v5501 = vpop.permute.xlu0 %5500
    %5502 = vrot.lane.b32.xlu0 %v5497, 57
    %v5503 = vpop.permute.xlu0 %5502
    %5506 = vst.msk [vmem:[#allocation7 + $0xe0] sm:$0xff] %vm5337, %v5501
    %5507 = vst.msk [vmem:[#allocation7 + $0xe8] sm:$0xff] %vm5337, %v5503
    %v5508 = vld [vmem:[#allocation6 + $0x18] sm:$0xff]
    %v5509 = vld [vmem:[#allocation6 + $0x40] sm:$0xff]
    %5512 = vrot.lane.b32.xlu0 %v5508, 9
    %v5513 = vpop.permute.xlu0 %5512
    %5514 = vrot.lane.b32.xlu0 %v5509, 9
    %v5515 = vpop.permute.xlu0 %5514
    %5518 = vst.msk [vmem:[#allocation7 + $0xf0] sm:$0xff] %vm5337, %v5513
    %5519 = vst.msk [vmem:[#allocation7 + $0xf8] sm:$0xff] %vm5337, %v5515
    %v5520 = vld [vmem:[#allocation6 + $0x18] sm:$0xff]
    %v5521 = vld [vmem:[#allocation6 + $0x40] sm:$0xff]
    %5524 = vrot.lane.b32.xlu0 %v5520, 5
    %v5525 = vpop.permute.xlu0 %5524
    %5526 = vrot.lane.b32.xlu0 %v5521, 5
    %v5527 = vpop.permute.xlu0 %5526
    %5530 = vst.msk [vmem:[#allocation7 + $0x100] sm:$0xff] %vm5337, %v5525
    %5531 = vst.msk [vmem:[#allocation7 + $0x108] sm:$0xff] %vm5337, %v5527
    %v5532 = vld [vmem:[#allocation6 + $0x20] sm:$0xff]
    %v5533 = vld [vmem:[#allocation6 + $0x48] sm:$0xff]
    %5536 = vrot.lane.b32.xlu0 %v5532, 1
    %v5537 = vpop.permute.xlu0 %5536
    %5538 = vrot.lane.b32.xlu0 %v5533, 1
    %v5539 = vpop.permute.xlu0 %5538
    %5542 = vst.msk [vmem:[#allocation7 + $0x110] sm:$0xff] %vm5337, %v5537
    %5543 = vst.msk [vmem:[#allocation7 + $0x118] sm:$0xff] %vm5337, %v5539
    %v5544 = vld [vmem:[#allocation6 + $0x20] sm:$0xff]
    %v5545 = vld [vmem:[#allocation6 + $0x48] sm:$0xff]
    %5548 = vrot.lane.b32.xlu0 %v5544, 125
    %v5549 = vpop.permute.xlu0 %5548
    %5550 = vrot.lane.b32.xlu0 %v5545, 125
    %v5551 = vpop.permute.xlu0 %5550
    %5554 = vst.msk [vmem:[#allocation7 + $0x120] sm:$0xff] %vm5337, %v5549
    %5555 = vst.msk [vmem:[#allocation7 + $0x128] sm:$0xff] %vm5337, %v5551
    %v5556 = vld [vmem:[#allocation6 + $0x20] sm:$0xff]
    %v5557 = vld [vmem:[#allocation6 + $0x48] sm:$0xff]
    %5560 = vrot.lane.b32.xlu0 %v5556, 121
    %v5561 = vpop.permute.xlu0 %5560
    %5562 = vrot.lane.b32.xlu0 %v5557, 121
    %v5563 = vpop.permute.xlu0 %5562
    %5566 = vst.msk [vmem:[#allocation7 + $0x130] sm:$0xff] %vm5337, %v5561
    %5567 = vst.msk [vmem:[#allocation7 + $0x138] sm:$0xff] %vm5337, %v5563
    %v5568 = vld [vmem:[#allocation6 + $0x20] sm:$0xff]
    %v5569 = vld [vmem:[#allocation6 + $0x48] sm:$0xff]
    %5572 = vrot.lane.b32.xlu0 %v5568, 73
    %v5573 = vpop.permute.xlu0 %5572
    %5574 = vrot.lane.b32.xlu0 %v5569, 73
    %v5575 = vpop.permute.xlu0 %5574
    %5578 = vst.msk [vmem:[#allocation7 + $0x140] sm:$0xff] %vm5337, %v5573
    %5579 = vst.msk [vmem:[#allocation7 + $0x148] sm:$0xff] %vm5337, %v5575
    %v5580 = vld [vmem:[#allocation6 + $0x20] sm:$0xff]
    %v5581 = vld [vmem:[#allocation6 + $0x48] sm:$0xff]
    %5584 = vrot.lane.b32.xlu0 %v5580, 69
    %v5585 = vpop.permute.xlu0 %5584
    %5586 = vrot.lane.b32.xlu0 %v5581, 69
    %v5587 = vpop.permute.xlu0 %5586
    %5590 = vst.msk [vmem:[#allocation7 + $0x150] sm:$0xff] %vm5337, %v5585
    %5591 = vst.msk [vmem:[#allocation7 + $0x158] sm:$0xff] %vm5337, %v5587
    %v5592 = vld [vmem:[#allocation6 + $0x20] sm:$0xff]
    %v5593 = vld [vmem:[#allocation6 + $0x48] sm:$0xff]
    %5596 = vrot.lane.b32.xlu0 %v5592, 65
    %v5597 = vpop.permute.xlu0 %5596
    %5598 = vrot.lane.b32.xlu0 %v5593, 65
    %v5599 = vpop.permute.xlu0 %5598
    %5602 = vst.msk [vmem:[#allocation7 + $0x160] sm:$0xff] %vm5337, %v5597
    %5603 = vst.msk [vmem:[#allocation7 + $0x168] sm:$0xff] %vm5337, %v5599
    %v5604 = vld [vmem:[#allocation6 + $0x20] sm:$0xff]
    %v5605 = vld [vmem:[#allocation6 + $0x48] sm:$0xff]
    %5608 = vrot.lane.b32.xlu0 %v5604, 61
    %v5609 = vpop.permute.xlu0 %5608
    %5610 = vrot.lane.b32.xlu0 %v5605, 61
    %v5611 = vpop.permute.xlu0 %5610
    %5614 = vst.msk [vmem:[#allocation7 + $0x170] sm:$0xff] %vm5337, %v5609
    %5615 = vst.msk [vmem:[#allocation7 + $0x178] sm:$0xff] %vm5337, %v5611
    %v5616 = vld [vmem:[#allocation6 + $0x20] sm:$0xff]
    %v5617 = vld [vmem:[#allocation6 + $0x48] sm:$0xff]
    %5620 = vrot.lane.b32.xlu0 %v5616, 57
    %v5621 = vpop.permute.xlu0 %5620
    %5622 = vrot.lane.b32.xlu0 %v5617, 57
    %v5623 = vpop.permute.xlu0 %5622
    %5626 = vst.msk [vmem:[#allocation7 + $0x180] sm:$0xff] %vm5337, %v5621
    %5627 = vst.msk [vmem:[#allocation7 + $0x188] sm:$0xff] %vm5337, %v5623
    %v5628 = vld [vmem:[%s5] sm:$0xff]
    %v5629 = vld [vmem:[%s5 + $0x8] sm:$0xff]
    %v5630 = vld [vmem:[%s5 + $0x10] sm:$0xff]
    %v5631 = vld [vmem:[%s5 + $0x18] sm:$0xff]
    %v5632 = vld [vmem:[%s5 + $0x20] sm:$0xff]
    %v5633 = vld [vmem:[%s5 + $0x28] sm:$0xff]
    %v5634 = vld [vmem:[%s5 + $0x30] sm:$0xff]
    %v5635 = vld [vmem:[%s5 + $0x38] sm:$0xff]
    %v5636 = vld [vmem:[%s5 + $0x40] sm:$0xff]
    %v5637 = vld [vmem:[%s5 + $0x48] sm:$0xff]
    %v5638 = vld [vmem:[%s5 + $0x50] sm:$0xff]
    %v5639 = vld [vmem:[%s5 + $0x58] sm:$0xff]
    %v5640 = vld [vmem:[%s5 + $0x60] sm:$0xff]
    %v5641 = vld [vmem:[%s5 + $0x68] sm:$0xff]
    %v5642 = vld [vmem:[%s5 + $0x70] sm:$0xff]
    %v5643 = vld [vmem:[%s5 + $0x78] sm:$0xff]
    %v5644 = vld [vmem:[%s5 + $0x80] sm:$0xff]
    %v5645 = vld [vmem:[%s5 + $0x88] sm:$0xff]
    %v5646 = vld [vmem:[%s5 + $0x90] sm:$0xff]
    %v5647 = vld [vmem:[%s5 + $0x98] sm:$0xff]
    %v5648 = vld [vmem:[%s5 + $0xa0] sm:$0xff]
    %v5649 = vld [vmem:[%s5 + $0xa8] sm:$0xff]
    %v5650 = vld [vmem:[%s5 + $0xb0] sm:$0xff]
    %v5651 = vld [vmem:[%s5 + $0xb8] sm:$0xff]
    %v5652 = vld [vmem:[%s5 + $0xc0] sm:$0xff]
    %v5653 = vld [vmem:[%s5 + $0xc8] sm:$0xff]
    %v5654 = vld [vmem:[%s5 + $0xd0] sm:$0xff]
    %v5655 = vld [vmem:[%s5 + $0xd8] sm:$0xff]
    %v5656 = vld [vmem:[%s5 + $0xe0] sm:$0xff]
    %v5657 = vld [vmem:[%s5 + $0xe8] sm:$0xff]
    %v5658 = vld [vmem:[%s5 + $0xf0] sm:$0xff]
    %v5659 = vld [vmem:[%s5 + $0xf8] sm:$0xff]
    %v5660 = vld [vmem:[%s5 + $0x100] sm:$0xff]
    %v5661 = vld [vmem:[%s5 + $0x108] sm:$0xff]
    %v5662 = vld [vmem:[%s5 + $0x110] sm:$0xff]
    %v5663 = vld [vmem:[%s5 + $0x118] sm:$0xff]
    %v5664 = vld [vmem:[%s5 + $0x120] sm:$0xff]
    %v5665 = vld [vmem:[%s5 + $0x128] sm:$0xff]
    %v5666 = vld [vmem:[%s5 + $0x130] sm:$0xff]
    %v5667 = vld [vmem:[%s5 + $0x138] sm:$0xff]
    %v5668 = vld [vmem:[%s5 + $0x140] sm:$0xff]
    %v5669 = vld [vmem:[%s5 + $0x148] sm:$0xff]
    %v5670 = vld [vmem:[%s5 + $0x150] sm:$0xff]
    %v5671 = vld [vmem:[%s5 + $0x158] sm:$0xff]
    %v5672 = vld [vmem:[%s5 + $0x160] sm:$0xff]
    %v5673 = vld [vmem:[%s5 + $0x168] sm:$0xff]
    %v5674 = vld [vmem:[%s5 + $0x170] sm:$0xff]
    %v5675 = vld [vmem:[%s5 + $0x178] sm:$0xff]
    %v5676 = vld [vmem:[%s5 + $0x180] sm:$0xff]
    %v5677 = vld [vmem:[%s5 + $0x188] sm:$0xff]
    %v5678 = vld [vmem:[%s5 + $0x190] sm:$0xff]
    %v5679 = vld [vmem:[%s5 + $0x198] sm:$0xff]
    %v5680 = vld [vmem:[%s5 + $0x1a0] sm:$0xff]
    %v5681 = vld [vmem:[%s5 + $0x1a8] sm:$0xff]
    %v5682 = vld [vmem:[%s5 + $0x1b0] sm:$0xff]
    %v5683 = vld [vmem:[%s5 + $0x1b8] sm:$0xff]
    %v5684 = vld [vmem:[%s5 + $0x1c0] sm:$0xff]
    %v5685 = vld [vmem:[%s5 + $0x1c8] sm:$0xff]
    %v5686 = vld [vmem:[%s5 + $0x1d0] sm:$0xff]
    %v5687 = vld [vmem:[%s5 + $0x1d8] sm:$0xff]
    %v5688 = vld [vmem:[#allocation7] sm:$0xff]
    %v5689 = vld [vmem:[#allocation7 + $0x8] sm:$0xff]
    %v5690 = vld [vmem:[#allocation7 + $0x10] sm:$0xff]
    %v5691 = vld [vmem:[#allocation7 + $0x18] sm:$0xff]
    %v5692 = vld [vmem:[#allocation7 + $0x20] sm:$0xff]
    %v5693 = vld [vmem:[#allocation7 + $0x28] sm:$0xff]
    %v5694 = vld [vmem:[#allocation7 + $0x30] sm:$0xff]
    %v5695 = vld [vmem:[#allocation7 + $0x38] sm:$0xff]
    %v5696 = vld [vmem:[#allocation7 + $0x40] sm:$0xff]
    %v5697 = vld [vmem:[#allocation7 + $0x48] sm:$0xff]
    %v5698 = vld [vmem:[#allocation7 + $0x50] sm:$0xff]
    %v5699 = vld [vmem:[#allocation7 + $0x58] sm:$0xff]
    %v5700 = vld [vmem:[#allocation7 + $0x60] sm:$0xff]
    %v5701 = vld [vmem:[#allocation7 + $0x68] sm:$0xff]
    %v5702 = vld [vmem:[#allocation7 + $0x70] sm:$0xff]
    %v5703 = vld [vmem:[#allocation7 + $0x78] sm:$0xff]
    %v5704 = vld [vmem:[#allocation7 + $0x80] sm:$0xff]
    %v5705 = vld [vmem:[#allocation7 + $0x88] sm:$0xff]
    %v5706 = vld [vmem:[#allocation7 + $0x90] sm:$0xff]
    %v5707 = vld [vmem:[#allocation7 + $0x98] sm:$0xff]
    %v5708 = vld [vmem:[#allocation7 + $0xa0] sm:$0xff]
    %v5709 = vld [vmem:[#allocation7 + $0xa8] sm:$0xff]
    %v5710 = vld [vmem:[#allocation7 + $0xb0] sm:$0xff]
    %v5711 = vld [vmem:[#allocation7 + $0xb8] sm:$0xff]
    %v5712 = vld [vmem:[#allocation7 + $0xc0] sm:$0xff]
    %v5713 = vld [vmem:[#allocation7 + $0xc8] sm:$0xff]
    %v5714 = vld [vmem:[#allocation7 + $0xd0] sm:$0xff]
    %v5715 = vld [vmem:[#allocation7 + $0xd8] sm:$0xff]
    %v5716 = vld [vmem:[#allocation7 + $0xe0] sm:$0xff]
    %v5717 = vld [vmem:[#allocation7 + $0xe8] sm:$0xff]
    %v5718 = vld [vmem:[#allocation7 + $0xf0] sm:$0xff]
    %v5719 = vld [vmem:[#allocation7 + $0xf8] sm:$0xff]
    %v5720 = vld [vmem:[#allocation7 + $0x100] sm:$0xff]
    %v5721 = vld [vmem:[#allocation7 + $0x108] sm:$0xff]
    %v5722 = vld [vmem:[#allocation7 + $0x110] sm:$0xff]
    %v5723 = vld [vmem:[#allocation7 + $0x118] sm:$0xff]
    %v5724 = vld [vmem:[#allocation7 + $0x120] sm:$0xff]
    %v5725 = vld [vmem:[#allocation7 + $0x128] sm:$0xff]
    %v5726 = vld [vmem:[#allocation7 + $0x130] sm:$0xff]
    %v5727 = vld [vmem:[#allocation7 + $0x138] sm:$0xff]
    %v5728 = vld [vmem:[#allocation7 + $0x140] sm:$0xff]
    %v5729 = vld [vmem:[#allocation7 + $0x148] sm:$0xff]
    %v5730 = vld [vmem:[#allocation7 + $0x150] sm:$0xff]
    %v5731 = vld [vmem:[#allocation7 + $0x158] sm:$0xff]
    %v5732 = vld [vmem:[#allocation7 + $0x160] sm:$0xff]
    %v5733 = vld [vmem:[#allocation7 + $0x168] sm:$0xff]
    %v5734 = vld [vmem:[#allocation7 + $0x170] sm:$0xff]
    %v5735 = vld [vmem:[#allocation7 + $0x178] sm:$0xff]
    %v5736 = vld [vmem:[#allocation7 + $0x180] sm:$0xff]
    %v5737 = vld [vmem:[#allocation7 + $0x188] sm:$0xff]
    %v5738 = vld [vmem:[%s6] sm:$0xff]
    %v5739 = vld [vmem:[%s6 + $0x8] sm:$0xff]
    %v5740 = vld [vmem:[%s6 + $0x10] sm:$0xff]
    %v5741 = vld [vmem:[%s6 + $0x18] sm:$0xff]
    %v5742 = vld [vmem:[%s6 + $0x20] sm:$0xff]
    %v5743 = vld [vmem:[%s6 + $0x28] sm:$0xff]
    %v5744 = vld [vmem:[%s6 + $0x30] sm:$0xff]
    %v5745 = vld [vmem:[%s6 + $0x38] sm:$0xff]
    %v5746 = vld [vmem:[%s6 + $0x40] sm:$0xff]
    %v5747 = vld [vmem:[%s6 + $0x48] sm:$0xff]
    %v5748 = vld [vmem:[%s6 + $0x50] sm:$0xff]
    %v5749 = vld [vmem:[%s6 + $0x58] sm:$0xff]
    %v5750 = vld [vmem:[%s6 + $0x60] sm:$0xff]
    %v5751 = vld [vmem:[%s6 + $0x68] sm:$0xff]
    %v5752 = vld [vmem:[%s6 + $0x70] sm:$0xff]
    %5754 = vset.pattern.permute.xlu0 0
    %5755 = vperm.xlu0 %5754, %v5738
    %v5756 = vpop.permute.xlu0 %5755
    %5759 = vset.pattern.permute.xlu0 0
    %5760 = vperm.xlu0 %5759, %v5739
    %v5761 = vpop.permute.xlu0 %5760
    %5764 = vset.pattern.permute.xlu0 0
    %5765 = vperm.xlu0 %5764, %v5740
    %v5766 = vpop.permute.xlu0 %5765
    %5769 = vset.pattern.permute.xlu0 0
    %5770 = vperm.xlu0 %5769, %v5741
    %v5771 = vpop.permute.xlu0 %5770
    %5774 = vset.pattern.permute.xlu0 0
    %5775 = vperm.xlu0 %5774, %v5742
    %v5776 = vpop.permute.xlu0 %5775
    %5779 = vset.pattern.permute.xlu0 0
    %5780 = vperm.xlu0 %5779, %v5743
    %v5781 = vpop.permute.xlu0 %5780
    %5784 = vset.pattern.permute.xlu0 0
    %5785 = vperm.xlu0 %5784, %v5744
    %v5786 = vpop.permute.xlu0 %5785
    %5789 = vset.pattern.permute.xlu0 0
    %5790 = vperm.xlu0 %5789, %v5745
    %v5791 = vpop.permute.xlu0 %5790
    %5794 = vset.pattern.permute.xlu0 0
    %5795 = vperm.xlu0 %5794, %v5746
    %v5796 = vpop.permute.xlu0 %5795
    %5799 = vset.pattern.permute.xlu0 0
    %5800 = vperm.xlu0 %5799, %v5747
    %v5801 = vpop.permute.xlu0 %5800
    %5804 = vset.pattern.permute.xlu0 0
    %5805 = vperm.xlu0 %5804, %v5748
    %v5806 = vpop.permute.xlu0 %5805
    %5809 = vset.pattern.permute.xlu0 0
    %5810 = vperm.xlu0 %5809, %v5749
    %v5811 = vpop.permute.xlu0 %5810
    %5814 = vset.pattern.permute.xlu0 0
    %5815 = vperm.xlu0 %5814, %v5750
    %v5816 = vpop.permute.xlu0 %5815
    %5819 = vset.pattern.permute.xlu0 0
    %5820 = vperm.xlu0 %5819, %v5751
    %v5821 = vpop.permute.xlu0 %5820
    %5824 = vset.pattern.permute.xlu0 0
    %5825 = vperm.xlu0 %5824, %v5752
    %v5826 = vpop.permute.xlu0 %5825
    %v5829 = vsel %vm4382, %v5631, 0
    %v5832 = vsel %vm4382, %v5635, 0
    %v5835 = vsel %vm4382, %v5639, 0
    %v5838 = vsel %vm4382, %v5643, 0
    %v5841 = vsel %vm4382, %v5647, 0
    %v5844 = vsel %vm4382, %v5651, 0
    %v5847 = vsel %vm4382, %v5655, 0
    %v5850 = vsel %vm4382, %v5659, 0
    %v5853 = vsel %vm4382, %v5663, 0
    %v5856 = vsel %vm4382, %v5667, 0
    %v5859 = vsel %vm4382, %v5671, 0
    %v5862 = vsel %vm4382, %v5675, 0
    %v5865 = vsel %vm4382, %v5679, 0
    %v5868 = vsel %vm4382, %v5683, 0
    %v5871 = vsel %vm4382, %v5687, 0
    %5873 = vmatprep.subr.mxu0 0.0
    %5874 = vmatpush1.msra.mxu0 %v5688
    %5875 = vmatprep.subr.mxu0 0.0
    %5876 = vmatpush1.msra.mxu0 %v5689
    %5877 = vmatprep.subr.mxu0 0.0
    %5878 = vmatpush1.msra.mxu0 %v5690
    %5879 = vmatprep.subr.mxu0 0.0
    %5880 = vmatpush1.msra.mxu0 %v5691
    %5881 = vmatprep.subr.mxu0 0.0
    %5882 = vmatpush1.msra.mxu0 %v5692
    %5883 = vmatprep.subr.mxu0 0.0
    %5884 = vmatpush1.msra.mxu0 %v5693
    %5885 = vmatprep.subr.mxu0 0.0
    %5886 = vmatpush1.msra.mxu0 %v5694
    %5887 = vmatprep.subr.mxu0 0.0
    %5888 = vmatpush1.msra.mxu0 %v5695
    %5889 = vmatprep.subr.mxu0 0.0
    %5890 = vmatpush1.msra.mxu0 %v5696
    %5891 = vmatprep.subr.mxu0 0.0
    %5892 = vmatpush1.msra.mxu0 %v5697
    %5893 = vmatprep.subr.mxu0 0.0
    %5894 = vmatpush1.msra.mxu0 %v5698
    %5895 = vmatprep.subr.mxu0 0.0
    %5896 = vmatpush1.msra.mxu0 %v5699
    %5897 = vmatprep.subr.mxu0 0.0
    %5898 = vmatpush1.msra.mxu0 %v5700
    %5899 = vmatprep.subr.mxu0 0.0
    %5900 = vmatpush1.msra.mxu0 %v5701
    %5901 = vmatprep.subr.mxu0 0.0
    %5902 = vmatpush1.msra.mxu0 %v5702
    %5903 = vmatprep.subr.mxu0 0.0
    %5904 = vmatpush1.msra.mxu0 %v5703
    %5905 = vmatprep.subr.mxu0 0.0
    %5906 = vmatpush1.msra.mxu0 %v5704
    %5907 = vmatprep.subr.mxu0 0.0
    %5908 = vmatpush1.msra.mxu0 %v5705
    %5909 = vmatprep.subr.mxu0 0.0
    %5910 = vmatpush1.msra.mxu0 %v5706
    %5911 = vmatprep.subr.mxu0 0.0
    %5912 = vmatpush1.msra.mxu0 %v5707
    %5913 = vmatprep.subr.mxu0 0.0
    %5914 = vmatpush1.msra.mxu0 %v5708
    %5915 = vmatprep.subr.mxu0 0.0
    %5916 = vmatpush1.msra.mxu0 %v5709
    %5917 = vmatprep.subr.mxu0 0.0
    %5918 = vmatpush1.msra.mxu0 %v5710
    %5919 = vmatprep.subr.mxu0 0.0
    %5920 = vmatpush1.msra.mxu0 %v5711
    %5921 = vmatprep.subr.mxu0 0.0
    %5922 = vmatpush1.msra.mxu0 %v5712
    %5923 = vmatprep.subr.mxu0 0.0
    %5924 = vmatpush1.msra.mxu0 %v5713
    %5925 = vmatprep.subr.mxu0 0.0
    %5926 = vmatpush1.msra.mxu0 %v5714
    %5927 = vmatprep.subr.mxu0 0.0
    %5928 = vmatpush1.msra.mxu0 %v5715
    %5929 = vmatprep.subr.mxu0 0.0
    %5930 = vmatpush1.msra.mxu0 %v5716
    %5931 = vmatprep.subr.mxu0 0.0
    %5932 = vmatpush1.msra.mxu0 %v5717
    %5933 = vmatprep.subr.mxu0 0.0
    %5934 = vmatpush1.msra.mxu0 %v5718
    %5935 = vmatprep.subr.mxu0 0.0
    %5936 = vmatpush1.msra.mxu0 %v5719
    %5937 = vmatprep.mubr.f32.mxu0 %v5629
    %5938 = vmatmul.mubr.f32.gmra.mrb[0].mxu0 %v5628
    %v5939 = vpop.f32.mrb[0].mxu0
    %v5940 = vadd.f32 %v5756, %v5939
    %v5941 = vpop.f32.mrb[0].mxu0
    %5942 = vmatprep.mubr.f32.mxu0 %v5633
    %5943 = vmatmul.mubr.f32.gmra.mrb[0].mxu0 %v5632
    %v5944 = vpop.f32.mrb[0].mxu0
    %v5945 = vadd.f32 %v5761, %v5944
    %v5946 = vpop.f32.mrb[0].mxu0
    %5947 = vmatprep.mubr.f32.mxu0 %v5637
    %5948 = vmatmul.mubr.f32.gmra.mrb[0].mxu0 %v5636
    %v5949 = vpop.f32.mrb[0].mxu0
    %v5950 = vadd.f32 %v5766, %v5949
    %v5951 = vpop.f32.mrb[0].mxu0
    %5952 = vmatprep.mubr.f32.mxu0 %v5641
    %5953 = vmatmul.mubr.f32.gmra.mrb[0].mxu0 %v5640
    %v5954 = vpop.f32.mrb[0].mxu0
    %v5955 = vadd.f32 %v5771, %v5954
    %v5956 = vpop.f32.mrb[0].mxu0
    %5957 = vmatprep.mubr.f32.mxu0 %v5645
    %5958 = vmatmul.mubr.f32.gmra.mrb[0].mxu0 %v5644
    %v5959 = vpop.f32.mrb[0].mxu0
    %v5960 = vadd.f32 %v5776, %v5959
    %v5961 = vpop.f32.mrb[0].mxu0
    %5962 = vmatprep.mubr.f32.mxu0 %v5649
    %5963 = vmatmul.mubr.f32.gmra.mrb[0].mxu0 %v5648
    %v5964 = vpop.f32.mrb[0].mxu0
    %v5965 = vadd.f32 %v5781, %v5964
    %v5966 = vpop.f32.mrb[0].mxu0
    %5967 = vmatprep.mubr.f32.mxu0 %v5653
    %5968 = vmatmul.mubr.f32.gmra.mrb[0].mxu0 %v5652
    %v5969 = vpop.f32.mrb[0].mxu0
    %v5970 = vadd.f32 %v5786, %v5969
    %v5971 = vpop.f32.mrb[0].mxu0
    %5972 = vmatprep.mubr.f32.mxu0 %v5657
    %5973 = vmatmul.mubr.f32.gmra.mrb[0].mxu0 %v5656
    %v5974 = vpop.f32.mrb[0].mxu0
    %v5975 = vadd.f32 %v5791, %v5974
    %v5976 = vpop.f32.mrb[0].mxu0
    %5977 = vmatprep.mubr.f32.mxu0 %v5661
    %5978 = vmatmul.mubr.f32.gmra.mrb[0].mxu0 %v5660
    %v5979 = vpop.f32.mrb[0].mxu0
    %v5980 = vadd.f32 %v5796, %v5979
    %v5981 = vpop.f32.mrb[0].mxu0
    %5982 = vmatprep.mubr.f32.mxu0 %v5665
    %5983 = vmatmul.mubr.f32.gmra.mrb[0].mxu0 %v5664
    %v5984 = vpop.f32.mrb[0].mxu0
    %v5985 = vadd.f32 %v5801, %v5984
    %v5986 = vpop.f32.mrb[0].mxu0
    %5987 = vmatprep.mubr.f32.mxu0 %v5669
    %5988 = vmatmul.mubr.f32.gmra.mrb[0].mxu0 %v5668
    %v5989 = vpop.f32.mrb[0].mxu0
    %v5990 = vadd.f32 %v5806, %v5989
    %v5991 = vpop.f32.mrb[0].mxu0
    %5992 = vmatprep.mubr.f32.mxu0 %v5673
    %5993 = vmatmul.mubr.f32.gmra.mrb[0].mxu0 %v5672
    %v5994 = vpop.f32.mrb[0].mxu0
    %v5995 = vadd.f32 %v5811, %v5994
    %v5996 = vpop.f32.mrb[0].mxu0
    %5997 = vmatprep.mubr.f32.mxu0 %v5677
    %5998 = vmatmul.mubr.f32.gmra.mrb[0].mxu0 %v5676
    %v5999 = vpop.f32.mrb[0].mxu0
    %v6000 = vadd.f32 %v5816, %v5999
    %v6001 = vpop.f32.mrb[0].mxu0
    %6002 = vmatprep.mubr.f32.mxu0 %v5681
    %6003 = vmatmul.mubr.f32.gmra.mrb[0].mxu0 %v5680
    %v6004 = vpop.f32.mrb[0].mxu0
    %v6005 = vadd.f32 %v5821, %v6004
    %v6006 = vpop.f32.mrb[0].mxu0
    %6007 = vmatprep.mubr.f32.mxu0 %v5685
    %6008 = vmatmul.mubr.f32.gmra.mrb[0].mxu0 %v5684
    %v6009 = vpop.f32.mrb[0].mxu0
    %v6010 = vadd.f32 %v5826, %v6009
    %v6011 = vpop.f32.mrb[0].mxu0
    %6012 = vdwg.mxu0
    %6013 = vmatprep.subr.mxu0 0.0
    %6014 = vmatpush1.msra.mxu0 %v5720
    %6015 = vmatprep.subr.mxu0 0.0
    %6016 = vmatpush1.msra.mxu0 %v5721
    %6017 = vmatprep.subr.mxu0 0.0
    %6018 = vmatpush1.msra.mxu0 %v5722
    %6019 = vmatprep.subr.mxu0 0.0
    %6020 = vmatpush1.msra.mxu0 %v5723
    %6021 = vmatprep.subr.mxu0 0.0
    %6022 = vmatpush1.msra.mxu0 %v5724
    %6023 = vmatprep.subr.mxu0 0.0
    %6024 = vmatpush1.msra.mxu0 %v5725
    %6025 = vmatprep.subr.mxu0 0.0
    %6026 = vmatpush1.msra.mxu0 %v5726
    %6027 = vmatprep.subr.mxu0 0.0
    %6028 = vmatpush1.msra.mxu0 %v5727
    %6029 = vmatprep.subr.mxu0 0.0
    %6030 = vmatpush1.msra.mxu0 %v5728
    %6031 = vmatprep.subr.mxu0 0.0
    %6032 = vmatpush1.msra.mxu0 %v5729
    %6033 = vmatprep.subr.mxu0 0.0
    %6034 = vmatpush1.msra.mxu0 %v5730
    %6035 = vmatprep.subr.mxu0 0.0
    %6036 = vmatpush1.msra.mxu0 %v5731
    %6037 = vmatprep.subr.mxu0 0.0
    %6038 = vmatpush1.msra.mxu0 %v5732
    %6039 = vmatprep.subr.mxu0 0.0
    %6040 = vmatpush1.msra.mxu0 %v5733
    %6041 = vmatprep.subr.mxu0 0.0
    %6042 = vmatpush1.msra.mxu0 %v5734
    %6043 = vmatprep.subr.mxu0 0.0
    %6044 = vmatpush1.msra.mxu0 %v5735
    %6045 = vmatprep.subr.mxu0 0.0
    %6046 = vmatpush1.msra.mxu0 %v5736
    %6047 = vmatprep.subr.mxu0 0.0
    %6048 = vmatpush1.msra.mxu0 %v5737
    %6049 = vmatprep.subr.mxu0 0.0
    %6050 = vmatpush1.msra.mxu0 0.0
    %6051 = vmatprep.subr.mxu0 0.0
    %6052 = vmatpush1.msra.mxu0 0.0
    %6053 = vmatprep.subr.mxu0 0.0
    %6054 = vmatpush1.msra.mxu0 0.0
    %6055 = vmatprep.subr.mxu0 0.0
    %6056 = vmatpush1.msra.mxu0 0.0
    %6057 = vmatprep.subr.mxu0 0.0
    %6058 = vmatpush1.msra.mxu0 0.0
    %6059 = vmatprep.subr.mxu0 0.0
    %6060 = vmatpush1.msra.mxu0 0.0
    %6061 = vmatprep.subr.mxu0 0.0
    %6062 = vmatpush1.msra.mxu0 0.0
    %6063 = vmatprep.subr.mxu0 0.0
    %6064 = vmatpush1.msra.mxu0 0.0
    %6065 = vmatprep.subr.mxu0 0.0
    %6066 = vmatpush1.msra.mxu0 0.0
    %6067 = vmatprep.subr.mxu0 0.0
    %6068 = vmatpush1.msra.mxu0 0.0
    %6069 = vmatprep.subr.mxu0 0.0
    %6070 = vmatpush1.msra.mxu0 0.0
    %6071 = vmatprep.subr.mxu0 0.0
    %6072 = vmatpush1.msra.mxu0 0.0
    %6073 = vmatprep.subr.mxu0 0.0
    %6074 = vmatpush1.msra.mxu0 0.0
    %6075 = vmatprep.subr.mxu0 0.0
    %6076 = vmatpush1.msra.mxu0 0.0
    %6077 = vmatprep.mubr.f32.mxu0 %v5829
    %6078 = vmatmul.mubr.f32.gmra.mrb[0].mxu0 %v5630
    %v6079 = vpop.f32.mrb[0].mxu0
    %v6080 = vadd.f32 %v5940, %v6079
    %v6081 = vpop.f32.mrb[0].mxu0
    %6082 = vmatprep.mubr.f32.mxu0 %v5832
    %6083 = vmatmul.mubr.f32.gmra.mrb[0].mxu0 %v5634
    %v6084 = vpop.f32.mrb[0].mxu0
    %v6085 = vadd.f32 %v5945, %v6084
    %v6086 = vpop.f32.mrb[0].mxu0
    %6087 = vmatprep.mubr.f32.mxu0 %v5835
    %6088 = vmatmul.mubr.f32.gmra.mrb[0].mxu0 %v5638
    %v6089 = vpop.f32.mrb[0].mxu0
    %v6090 = vadd.f32 %v5950, %v6089
    %v6091 = vpop.f32.mrb[0].mxu0
    %6092 = vmatprep.mubr.f32.mxu0 %v5838
    %6093 = vmatmul.mubr.f32.gmra.mrb[0].mxu0 %v5642
    %v6094 = vpop.f32.mrb[0].mxu0
    %v6095 = vadd.f32 %v5955, %v6094
    %v6096 = vpop.f32.mrb[0].mxu0
    %6097 = vmatprep.mubr.f32.mxu0 %v5841
    %6098 = vmatmul.mubr.f32.gmra.mrb[0].mxu0 %v5646
    %v6099 = vpop.f32.mrb[0].mxu0
    %v6100 = vadd.f32 %v5960, %v6099
    %v6101 = vpop.f32.mrb[0].mxu0
    %6102 = vmatprep.mubr.f32.mxu0 %v5844
    %6103 = vmatmul.mubr.f32.gmra.mrb[0].mxu0 %v5650
    %v6104 = vpop.f32.mrb[0].mxu0
    %v6105 = vadd.f32 %v5965, %v6104
    %v6106 = vpop.f32.mrb[0].mxu0
    %6107 = vmatprep.mubr.f32.mxu0 %v5847
    %6108 = vmatmul.mubr.f32.gmra.mrb[0].mxu0 %v5654
    %v6109 = vpop.f32.mrb[0].mxu0
    %v6110 = vadd.f32 %v5970, %v6109
    %v6111 = vpop.f32.mrb[0].mxu0
    %6112 = vmatprep.mubr.f32.mxu0 %v5850
    %6113 = vmatmul.mubr.f32.gmra.mrb[0].mxu0 %v5658
    %v6114 = vpop.f32.mrb[0].mxu0
    %v6115 = vadd.f32 %v5975, %v6114
    %v6116 = vpop.f32.mrb[0].mxu0
    %6117 = vmatprep.mubr.f32.mxu0 %v5853
    %6118 = vmatmul.mubr.f32.gmra.mrb[0].mxu0 %v5662
    %v6119 = vpop.f32.mrb[0].mxu0
    %v6120 = vadd.f32 %v5980, %v6119
    %v6121 = vpop.f32.mrb[0].mxu0
    %6122 = vmatprep.mubr.f32.mxu0 %v5856
    %6123 = vmatmul.mubr.f32.gmra.mrb[0].mxu0 %v5666
    %v6124 = vpop.f32.mrb[0].mxu0
    %v6125 = vadd.f32 %v5985, %v6124
    %v6126 = vpop.f32.mrb[0].mxu0
    %6127 = vmatprep.mubr.f32.mxu0 %v5859
    %6128 = vmatmul.mubr.f32.gmra.mrb[0].mxu0 %v5670
    %v6129 = vpop.f32.mrb[0].mxu0
    %v6130 = vadd.f32 %v5990, %v6129
    %v6131 = vpop.f32.mrb[0].mxu0
    %6132 = vmatprep.mubr.f32.mxu0 %v5862
    %6133 = vmatmul.mubr.f32.gmra.mrb[0].mxu0 %v5674
    %v6134 = vpop.f32.mrb[0].mxu0
    %v6135 = vadd.f32 %v5995, %v6134
    %v6136 = vpop.f32.mrb[0].mxu0
    %6137 = vmatprep.mubr.f32.mxu0 %v5865
    %6138 = vmatmul.mubr.f32.gmra.mrb[0].mxu0 %v5678
    %v6139 = vpop.f32.mrb[0].mxu0
    %v6140 = vadd.f32 %v6000, %v6139
    %v6141 = vpop.f32.mrb[0].mxu0
    %6142 = vmatprep.mubr.f32.mxu0 %v5868
    %6143 = vmatmul.mubr.f32.gmra.mrb[0].mxu0 %v5682
    %v6144 = vpop.f32.mrb[0].mxu0
    %v6145 = vadd.f32 %v6005, %v6144
    %v6146 = vpop.f32.mrb[0].mxu0
    %6147 = vmatprep.mubr.f32.mxu0 %v5871
    %6148 = vmatmul.mubr.f32.gmra.mrb[0].mxu0 %v5686
    %v6149 = vpop.f32.mrb[0].mxu0
    %v6150 = vadd.f32 %v6010, %v6149
    %v6151 = vpop.f32.mrb[0].mxu0
    %6152 = vdwg.mxu0
    %v6153 = vmax.f32 %v6080, 0.0
    %v6154 = vmax.f32 %v6085, 0.0
    %v6155 = vmax.f32 %v6090, 0.0
    %v6156 = vmax.f32 %v6095, 0.0
    %v6157 = vmax.f32 %v6100, 0.0
    %v6158 = vmax.f32 %v6105, 0.0
    %v6159 = vmax.f32 %v6110, 0.0
    %v6160 = vmax.f32 %v6115, 0.0
    %v6161 = vmax.f32 %v6120, 0.0
    %v6162 = vmax.f32 %v6125, 0.0
    %v6163 = vmax.f32 %v6130, 0.0
    %v6164 = vmax.f32 %v6135, 0.0
    %v6165 = vmax.f32 %v6140, 0.0
    %v6166 = vmax.f32 %v6145, 0.0
    %v6167 = vmax.f32 %v6150, 0.0
    %v6168 = vld [vmem:[%s7] sm:$0xff]
    %v6169 = vld [vmem:[%s7 + $0x8] sm:$0xff]
    %v6170 = vld [vmem:[%s7 + $0x10] sm:$0xff]
    %v6171 = vld [vmem:[%s7 + $0x18] sm:$0xff]
    %v6172 = vld [vmem:[%s7 + $0x20] sm:$0xff]
    %v6173 = vld [vmem:[%s7 + $0x28] sm:$0xff]
    %v6174 = vld [vmem:[%s7 + $0x30] sm:$0xff]
    %v6175 = vld [vmem:[%s7 + $0x38] sm:$0xff]
    %v6176 = vld [vmem:[%s7 + $0x40] sm:$0xff]
    %v6177 = vld [vmem:[%s7 + $0x48] sm:$0xff]
    %v6178 = vld [vmem:[%s7 + $0x50] sm:$0xf]
    %v6179 = vld [vmem:[%s8] sm:$0xff]
    %v6180 = vld [vmem:[%s8 + $0x8] sm:$0xff]
    %v6181 = vld [vmem:[%s8 + $0x10] sm:$0xff]
    %v6182 = vld [vmem:[%s8 + $0x18] sm:$0xff]
    %v6183 = vld [vmem:[%s8 + $0x20] sm:$0xff]
    %v6184 = vld [vmem:[%s8 + $0x28] sm:$0xff]
    %v6185 = vld [vmem:[%s8 + $0x30] sm:$0xff]
    %v6186 = vld [vmem:[%s8 + $0x38] sm:$0xff]
    %v6187 = vld [vmem:[%s8 + $0x40] sm:$0xff]
    %v6188 = vld [vmem:[%s8 + $0x48] sm:$0xff]
    %v6189 = vld [vmem:[%s8 + $0x50] sm:$0xf]
    %6191 = vset.pattern.permute.xlu0 0
    %6192 = vperm.xlu0 %6191, %v6179
    %v6193 = vpop.permute.xlu0 %6192
    %6196 = vset.pattern.permute.xlu0 0
    %6197 = vperm.xlu0 %6196, %v6180
    %v6198 = vpop.permute.xlu0 %6197
    %6201 = vset.pattern.permute.xlu0 0
    %6202 = vperm.xlu0 %6201, %v6181
    %v6203 = vpop.permute.xlu0 %6202
    %6206 = vset.pattern.permute.xlu0 0
    %6207 = vperm.xlu0 %6206, %v6182
    %v6208 = vpop.permute.xlu0 %6207
    %6211 = vset.pattern.permute.xlu0 0
    %6212 = vperm.xlu0 %6211, %v6183
    %v6213 = vpop.permute.xlu0 %6212
    %6216 = vset.pattern.permute.xlu0 0
    %6217 = vperm.xlu0 %6216, %v6184
    %v6218 = vpop.permute.xlu0 %6217
    %6221 = vset.pattern.permute.xlu0 0
    %6222 = vperm.xlu0 %6221, %v6185
    %v6223 = vpop.permute.xlu0 %6222
    %6226 = vset.pattern.permute.xlu0 0
    %6227 = vperm.xlu0 %6226, %v6186
    %v6228 = vpop.permute.xlu0 %6227
    %6231 = vset.pattern.permute.xlu0 0
    %6232 = vperm.xlu0 %6231, %v6187
    %v6233 = vpop.permute.xlu0 %6232
    %6236 = vset.pattern.permute.xlu0 0
    %6237 = vperm.xlu0 %6236, %v6188
    %v6238 = vpop.permute.xlu0 %6237
    %6241 = vset.pattern.permute.xlu0 0
    %6242 = vperm.xlu0 %6241, %v6189
    %v6243 = vpop.permute.xlu0 %6242
    %v6246 = vsel %vm3525, %v6168, 0
    %v6249 = vsel %vm3525, %v6169, 0
    %v6252 = vsel %vm3525, %v6170, 0
    %v6255 = vsel %vm3525, %v6171, 0
    %v6258 = vsel %vm3525, %v6172, 0
    %v6261 = vsel %vm3525, %v6173, 0
    %v6264 = vsel %vm3525, %v6174, 0
    %v6267 = vsel %vm3525, %v6175, 0
    %v6270 = vsel %vm3525, %v6176, 0
    %v6273 = vsel %vm3525, %v6177, 0
    %v6276 = vsel %vm3525, %v6178, 0
    %6278 = vmatprep.subr.mxu0 0.0
    %6279 = vmatpush1.msra.mxu0 %v6153
    %6280 = vmatprep.subr.mxu0 0.0
    %6281 = vmatpush1.msra.mxu0 %v6154
    %6282 = vmatprep.subr.mxu0 0.0
    %6283 = vmatpush1.msra.mxu0 %v6155
    %6284 = vmatprep.subr.mxu0 0.0
    %6285 = vmatpush1.msra.mxu0 %v6156
    %6286 = vmatprep.subr.mxu0 0.0
    %6287 = vmatpush1.msra.mxu0 %v6157
    %6288 = vmatprep.subr.mxu0 0.0
    %6289 = vmatpush1.msra.mxu0 %v6158
    %6290 = vmatprep.subr.mxu0 0.0
    %6291 = vmatpush1.msra.mxu0 %v6159
    %6292 = vmatprep.subr.mxu0 0.0
    %6293 = vmatpush1.msra.mxu0 %v6160
    %6294 = vmatprep.subr.mxu0 0.0
    %6295 = vmatpush1.msra.mxu0 %v6161
    %6296 = vmatprep.subr.mxu0 0.0
    %6297 = vmatpush1.msra.mxu0 %v6162
    %6298 = vmatprep.subr.mxu0 0.0
    %6299 = vmatpush1.msra.mxu0 %v6163
    %6300 = vmatprep.subr.mxu0 0.0
    %6301 = vmatpush1.msra.mxu0 %v6164
    %6302 = vmatprep.subr.mxu0 0.0
    %6303 = vmatpush1.msra.mxu0 %v6165
    %6304 = vmatprep.subr.mxu0 0.0
    %6305 = vmatpush1.msra.mxu0 %v6166
    %6306 = vmatprep.subr.mxu0 0.0
    %6307 = vmatpush1.msra.mxu0 %v6167
    %6308 = vmatprep.subr.mxu0 0.0
    %6309 = vmatpush1.msra.mxu0 0.0
    %6310 = vmatprep.subr.mxu0 0.0
    %6311 = vmatpush1.msra.mxu0 0.0
    %6312 = vmatprep.subr.mxu0 0.0
    %6313 = vmatpush1.msra.mxu0 0.0
    %6314 = vmatprep.subr.mxu0 0.0
    %6315 = vmatpush1.msra.mxu0 0.0
    %6316 = vmatprep.subr.mxu0 0.0
    %6317 = vmatpush1.msra.mxu0 0.0
    %6318 = vmatprep.subr.mxu0 0.0
    %6319 = vmatpush1.msra.mxu0 0.0
    %6320 = vmatprep.subr.mxu0 0.0
    %6321 = vmatpush1.msra.mxu0 0.0
    %6322 = vmatprep.subr.mxu0 0.0
    %6323 = vmatpush1.msra.mxu0 0.0
    %6324 = vmatprep.subr.mxu0 0.0
    %6325 = vmatpush1.msra.mxu0 0.0
    %6326 = vmatprep.subr.mxu0 0.0
    %6327 = vmatpush1.msra.mxu0 0.0
    %6328 = vmatprep.subr.mxu0 0.0
    %6329 = vmatpush1.msra.mxu0 0.0
    %6330 = vmatprep.subr.mxu0 0.0
    %6331 = vmatpush1.msra.mxu0 0.0
    %6332 = vmatprep.subr.mxu0 0.0
    %6333 = vmatpush1.msra.mxu0 0.0
    %6334 = vmatprep.subr.mxu0 0.0
    %6335 = vmatpush1.msra.mxu0 0.0
    %6336 = vmatprep.subr.mxu0 0.0
    %6337 = vmatpush1.msra.mxu0 0.0
    %6338 = vmatprep.subr.mxu0 0.0
    %6339 = vmatpush1.msra.mxu0 0.0
    %6340 = vmatprep.subr.mxu0 0.0
    %6341 = vmatpush1.msra.mxu0 0.0
    %6342 = vmatprep.mubr.f32.mxu0 0.0
    %6343 = vmatmul.mubr.f32.gmra.mrb[0].mxu0 %v6246
    %v6344 = vpop.f32.mrb[0].mxu0
    %v6345 = vadd.f32 %v6193, %v6344
    %v6346 = vpop.f32.mrb[0].mxu0
    %6347 = vmatprep.mubr.f32.mxu0 0.0
    %6348 = vmatmul.mubr.f32.gmra.mrb[0].mxu0 %v6249
    %v6349 = vpop.f32.mrb[0].mxu0
    %v6350 = vadd.f32 %v6198, %v6349
    %v6351 = vpop.f32.mrb[0].mxu0
    %6352 = vmatprep.mubr.f32.mxu0 0.0
    %6353 = vmatmul.mubr.f32.gmra.mrb[0].mxu0 %v6252
    %v6354 = vpop.f32.mrb[0].mxu0
    %v6355 = vadd.f32 %v6203, %v6354
    %v6356 = vpop.f32.mrb[0].mxu0
    %6357 = vmatprep.mubr.f32.mxu0 0.0
    %6358 = vmatmul.mubr.f32.gmra.mrb[0].mxu0 %v6255
    %v6359 = vpop.f32.mrb[0].mxu0
    %v6360 = vadd.f32 %v6208, %v6359
    %v6361 = vpop.f32.mrb[0].mxu0
    %6362 = vmatprep.mubr.f32.mxu0 0.0
    %6363 = vmatmul.mubr.f32.gmra.mrb[0].mxu0 %v6258
    %v6364 = vpop.f32.mrb[0].mxu0
    %v6365 = vadd.f32 %v6213, %v6364
    %v6366 = vpop.f32.mrb[0].mxu0
    %6367 = vmatprep.mubr.f32.mxu0 0.0
    %6368 = vmatmul.mubr.f32.gmra.mrb[0].mxu0 %v6261
    %v6369 = vpop.f32.mrb[0].mxu0
    %v6370 = vadd.f32 %v6218, %v6369
    %v6371 = vpop.f32.mrb[0].mxu0
    %6372 = vmatprep.mubr.f32.mxu0 0.0
    %6373 = vmatmul.mubr.f32.gmra.mrb[0].mxu0 %v6264
    %v6374 = vpop.f32.mrb[0].mxu0
    %v6375 = vadd.f32 %v6223, %v6374
    %v6376 = vpop.f32.mrb[0].mxu0
    %6377 = vmatprep.mubr.f32.mxu0 0.0
    %6378 = vmatmul.mubr.f32.gmra.mrb[0].mxu0 %v6267
    %v6379 = vpop.f32.mrb[0].mxu0
    %v6380 = vadd.f32 %v6228, %v6379
    %v6381 = vpop.f32.mrb[0].mxu0
    %6382 = vmatprep.mubr.f32.mxu0 0.0
    %6383 = vmatmul.mubr.f32.gmra.mrb[0].mxu0 %v6270
    %v6384 = vpop.f32.mrb[0].mxu0
    %v6385 = vadd.f32 %v6233, %v6384
    %v6386 = vpop.f32.mrb[0].mxu0
    %6387 = vmatprep.mubr.f32.mxu0 0.0
    %6388 = vmatmul.mubr.f32.gmra.mrb[0].mxu0 %v6273
    %v6389 = vpop.f32.mrb[0].mxu0
    %v6390 = vadd.f32 %v6238, %v6389
    %v6391 = vpop.f32.mrb[0].mxu0
    %6392 = vmatprep.mubr.f32.mxu0 0.0
    %6393 = vmatmul.mubr.f32.gmra.mrb[0].mxu0 %v6276
    %v6394 = vpop.f32.mrb[0].mxu0
    %v6395 = vadd.f32 %v6243, %v6394
    %v6396 = vpop.f32.mrb[0].mxu0
    %6397 = vdwg.mxu0
    %vm6398 = vcmask 15360
    %v6399 = vsel %vm6398, %v6345, 0.0
    %6400 = vadd.xlane.f32.xlu0 %v6399
    %v6401 = vpop.xlane.xlu0 %6400
    %v6402 = vsel %vm6398, %v6350, 0.0
    %6403 = vadd.xlane.f32.xlu0 %v6402
    %v6404 = vpop.xlane.xlu0 %6403
    %v6405 = vsel %vm6398, %v6355, 0.0
    %6406 = vadd.xlane.f32.xlu0 %v6405
    %v6407 = vpop.xlane.xlu0 %6406
    %v6408 = vsel %vm6398, %v6360, 0.0
    %6409 = vadd.xlane.f32.xlu0 %v6408
    %v6410 = vpop.xlane.xlu0 %6409
    %v6411 = vsel %vm6398, %v6365, 0.0
    %6412 = vadd.xlane.f32.xlu0 %v6411
    %v6413 = vpop.xlane.xlu0 %6412
    %v6414 = vsel %vm6398, %v6370, 0.0
    %6415 = vadd.xlane.f32.xlu0 %v6414
    %v6416 = vpop.xlane.xlu0 %6415
    %v6417 = vsel %vm6398, %v6375, 0.0
    %6418 = vadd.xlane.f32.xlu0 %v6417
    %v6419 = vpop.xlane.xlu0 %6418
    %v6420 = vsel %vm6398, %v6380, 0.0
    %6421 = vadd.xlane.f32.xlu0 %v6420
    %v6422 = vpop.xlane.xlu0 %6421
    %v6423 = vsel %vm6398, %v6385, 0.0
    %6424 = vadd.xlane.f32.xlu0 %v6423
    %v6425 = vpop.xlane.xlu0 %6424
    %v6426 = vsel %vm6398, %v6390, 0.0
    %6427 = vadd.xlane.f32.xlu0 %v6426
    %v6428 = vpop.xlane.xlu0 %6427
    %vm6429 = vcmask 11264
    %v6430 = vsel %vm6429, %v6395, 0.0
    %6431 = vadd.xlane.f32.xlu0 %v6430
    %v6432 = vpop.xlane.xlu0 %6431
    %v6433 = vrcp.pop 2.0
    %v6434 = vmul.f32 %v6401, %v6433
    %v6435 = vmul.f32 %v6404, %v6433
    %v6436 = vmul.f32 %v6407, %v6433
    %v6437 = vmul.f32 %v6410, %v6433
    %v6438 = vmul.f32 %v6413, %v6433
    %v6439 = vmul.f32 %v6416, %v6433
    %v6440 = vmul.f32 %v6419, %v6433
    %v6441 = vmul.f32 %v6422, %v6433
    %v6442 = vmul.f32 %v6425, %v6433
    %v6443 = vmul.f32 %v6428, %v6433
    %v6444 = vmul.f32 %v6432, %v6433
    %v6445 = vsub.f32 %v6345, %v6434
    %v6446 = vsub.f32 %v6350, %v6435
    %v6447 = vsub.f32 %v6355, %v6436
    %v6448 = vsub.f32 %v6360, %v6437
    %v6449 = vsub.f32 %v6365, %v6438
    %v6450 = vsub.f32 %v6370, %v6439
    %v6451 = vsub.f32 %v6375, %v6440
    %v6452 = vsub.f32 %v6380, %v6441
    %v6453 = vsub.f32 %v6385, %v6442
    %v6454 = vsub.f32 %v6390, %v6443
    %v6455 = vsub.f32 %v6395, %v6444
    %v6456 = vmul.f32 %v6445, %v6445
    %v6457 = vmul.f32 %v6446, %v6446
    %v6458 = vmul.f32 %v6447, %v6447
    %v6459 = vmul.f32 %v6448, %v6448
    %v6460 = vmul.f32 %v6449, %v6449
    %v6461 = vmul.f32 %v6450, %v6450
    %v6462 = vmul.f32 %v6451, %v6451
    %v6463 = vmul.f32 %v6452, %v6452
    %v6464 = vmul.f32 %v6453, %v6453
    %v6465 = vmul.f32 %v6454, %v6454
    %v6466 = vmul.f32 %v6455, %v6455
    %v6467 = vsel %vm6398, %v6456, 0.0
    %6468 = vadd.xlane.f32.xlu0 %v6467
    %v6469 = vpop.xlane.xlu0 %6468
    %v6470 = vsel %vm6398, %v6457, 0.0
    %6471 = vadd.xlane.f32.xlu0 %v6470
    %v6472 = vpop.xlane.xlu0 %6471
    %v6473 = vsel %vm6398, %v6458, 0.0
    %6474 = vadd.xlane.f32.xlu0 %v6473
    %v6475 = vpop.xlane.xlu0 %6474
    %v6476 = vsel %vm6398, %v6459, 0.0
    %6477 = vadd.xlane.f32.xlu0 %v6476
    %v6478 = vpop.xlane.xlu0 %6477
    %v6479 = vsel %vm6398, %v6460, 0.0
    %6480 = vadd.xlane.f32.xlu0 %v6479
    %v6481 = vpop.xlane.xlu0 %6480
    %v6482 = vsel %vm6398, %v6461, 0.0
    %6483 = vadd.xlane.f32.xlu0 %v6482
    %v6484 = vpop.xlane.xlu0 %6483
    %v6485 = vsel %vm6398, %v6462, 0.0
    %6486 = vadd.xlane.f32.xlu0 %v6485
    %v6487 = vpop.xlane.xlu0 %6486
    %v6488 = vsel %vm6398, %v6463, 0.0
    %6489 = vadd.xlane.f32.xlu0 %v6488
    %v6490 = vpop.xlane.xlu0 %6489
    %v6491 = vsel %vm6398, %v6464, 0.0
    %6492 = vadd.xlane.f32.xlu0 %v6491
    %v6493 = vpop.xlane.xlu0 %6492
    %v6494 = vsel %vm6398, %v6465, 0.0
    %6495 = vadd.xlane.f32.xlu0 %v6494
    %v6496 = vpop.xlane.xlu0 %6495
    %v6497 = vsel %vm6429, %v6466, 0.0
    %6498 = vadd.xlane.f32.xlu0 %v6497
    %v6499 = vpop.xlane.xlu0 %6498
    %v6500 = vmul.f32 %v6469, %v6433
    %v6501 = vmul.f32 %v6472, %v6433
    %v6502 = vmul.f32 %v6475, %v6433
    %v6503 = vmul.f32 %v6478, %v6433
    %v6504 = vmul.f32 %v6481, %v6433
    %v6505 = vmul.f32 %v6484, %v6433
    %v6506 = vmul.f32 %v6487, %v6433
    %v6507 = vmul.f32 %v6490, %v6433
    %v6508 = vmul.f32 %v6493, %v6433
    %v6509 = vmul.f32 %v6496, %v6433
    %v6510 = vmul.f32 %v6499, %v6433
    %v6511 = vadd.f32 %v6500, 1e-05
    %v6512 = vadd.f32 %v6501, 1e-05
    %v6513 = vadd.f32 %v6502, 1e-05
    %v6514 = vadd.f32 %v6503, 1e-05
    %v6515 = vadd.f32 %v6504, 1e-05
    %v6516 = vadd.f32 %v6505, 1e-05
    %v6517 = vadd.f32 %v6506, 1e-05
    %v6518 = vadd.f32 %v6507, 1e-05
    %v6519 = vadd.f32 %v6508, 1e-05
    %v6520 = vadd.f32 %v6509, 1e-05
    %v6521 = vadd.f32 %v6510, 1e-05
    %v6522 = vrsqrt.pop %v6511
    %v6523 = vrsqrt.pop %v6512
    %v6524 = vrsqrt.pop %v6513
    %v6525 = vrsqrt.pop %v6514
    %v6526 = vrsqrt.pop %v6515
    %v6527 = vrsqrt.pop %v6516
    %v6528 = vrsqrt.pop %v6517
    %v6529 = vrsqrt.pop %v6518
    %v6530 = vrsqrt.pop %v6519
    %v6531 = vrsqrt.pop %v6520
    %v6532 = vrsqrt.pop %v6521
    %v6533 = vmul.f32 %v6445, %v6522
    %v6534 = vmul.f32 %v6446, %v6523
    %v6535 = vmul.f32 %v6447, %v6524
    %v6536 = vmul.f32 %v6448, %v6525
    %v6537 = vmul.f32 %v6449, %v6526
    %v6538 = vmul.f32 %v6450, %v6527
    %v6539 = vmul.f32 %v6451, %v6528
    %v6540 = vmul.f32 %v6452, %v6529
    %v6541 = vmul.f32 %v6453, %v6530
    %v6542 = vmul.f32 %v6454, %v6531
    %v6543 = vmul.f32 %v6455, %v6532
    %v6544 = vld [vmem:[%s9] sm:$0xff]
    %v6545 = vld [vmem:[%s9 + $0x8] sm:$0xff]
    %v6546 = vld [vmem:[%s9 + $0x10] sm:$0xff]
    %v6547 = vld [vmem:[%s9 + $0x18] sm:$0xff]
    %v6548 = vld [vmem:[%s9 + $0x20] sm:$0xff]
    %v6549 = vld [vmem:[%s9 + $0x28] sm:$0xff]
    %v6550 = vld [vmem:[%s9 + $0x30] sm:$0xff]
    %v6551 = vld [vmem:[%s9 + $0x38] sm:$0xff]
    %v6552 = vld [vmem:[%s9 + $0x40] sm:$0xff]
    %v6553 = vld [vmem:[%s9 + $0x48] sm:$0xff]
    %v6554 = vld [vmem:[%s9 + $0x50] sm:$0xf]
    %6556 = vset.pattern.permute.xlu0 0
    %6557 = vperm.xlu0 %6556, %v6544
    %v6558 = vpop.permute.xlu0 %6557
    %6561 = vset.pattern.permute.xlu0 0
    %6562 = vperm.xlu0 %6561, %v6545
    %v6563 = vpop.permute.xlu0 %6562
    %6566 = vset.pattern.permute.xlu0 0
    %6567 = vperm.xlu0 %6566, %v6546
    %v6568 = vpop.permute.xlu0 %6567
    %6571 = vset.pattern.permute.xlu0 0
    %6572 = vperm.xlu0 %6571, %v6547
    %v6573 = vpop.permute.xlu0 %6572
    %6576 = vset.pattern.permute.xlu0 0
    %6577 = vperm.xlu0 %6576, %v6548
    %v6578 = vpop.permute.xlu0 %6577
    %6581 = vset.pattern.permute.xlu0 0
    %6582 = vperm.xlu0 %6581, %v6549
    %v6583 = vpop.permute.xlu0 %6582
    %6586 = vset.pattern.permute.xlu0 0
    %6587 = vperm.xlu0 %6586, %v6550
    %v6588 = vpop.permute.xlu0 %6587
    %6591 = vset.pattern.permute.xlu0 0
    %6592 = vperm.xlu0 %6591, %v6551
    %v6593 = vpop.permute.xlu0 %6592
    %6596 = vset.pattern.permute.xlu0 0
    %6597 = vperm.xlu0 %6596, %v6552
    %v6598 = vpop.permute.xlu0 %6597
    %6601 = vset.pattern.permute.xlu0 0
    %6602 = vperm.xlu0 %6601, %v6553
    %v6603 = vpop.permute.xlu0 %6602
    %6606 = vset.pattern.permute.xlu0 0
    %6607 = vperm.xlu0 %6606, %v6554
    %v6608 = vpop.permute.xlu0 %6607
    %v6610 = vmul.f32 %v6533, %v6558
    %v6611 = vmul.f32 %v6534, %v6563
    %v6612 = vmul.f32 %v6535, %v6568
    %v6613 = vmul.f32 %v6536, %v6573
    %v6614 = vmul.f32 %v6537, %v6578
    %v6615 = vmul.f32 %v6538, %v6583
    %v6616 = vmul.f32 %v6539, %v6588
    %v6617 = vmul.f32 %v6540, %v6593
    %v6618 = vmul.f32 %v6541, %v6598
    %v6619 = vmul.f32 %v6542, %v6603
    %v6620 = vmul.f32 %v6543, %v6608
    %v6621 = vld [vmem:[%s10] sm:$0xff]
    %v6622 = vld [vmem:[%s10 + $0x8] sm:$0xff]
    %v6623 = vld [vmem:[%s10 + $0x10] sm:$0xff]
    %v6624 = vld [vmem:[%s10 + $0x18] sm:$0xff]
    %v6625 = vld [vmem:[%s10 + $0x20] sm:$0xff]
    %v6626 = vld [vmem:[%s10 + $0x28] sm:$0xff]
    %v6627 = vld [vmem:[%s10 + $0x30] sm:$0xff]
    %v6628 = vld [vmem:[%s10 + $0x38] sm:$0xff]
    %v6629 = vld [vmem:[%s10 + $0x40] sm:$0xff]
    %v6630 = vld [vmem:[%s10 + $0x48] sm:$0xff]
    %v6631 = vld [vmem:[%s10 + $0x50] sm:$0xf]
    %6633 = vset.pattern.permute.xlu0 0
    %6634 = vperm.xlu0 %6633, %v6621
    %v6635 = vpop.permute.xlu0 %6634
    %6638 = vset.pattern.permute.xlu0 0
    %6639 = vperm.xlu0 %6638, %v6622
    %v6640 = vpop.permute.xlu0 %6639
    %6643 = vset.pattern.permute.xlu0 0
    %6644 = vperm.xlu0 %6643, %v6623
    %v6645 = vpop.permute.xlu0 %6644
    %6648 = vset.pattern.permute.xlu0 0
    %6649 = vperm.xlu0 %6648, %v6624
    %v6650 = vpop.permute.xlu0 %6649
    %6653 = vset.pattern.permute.xlu0 0
    %6654 = vperm.xlu0 %6653, %v6625
    %v6655 = vpop.permute.xlu0 %6654
    %6658 = vset.pattern.permute.xlu0 0
    %6659 = vperm.xlu0 %6658, %v6626
    %v6660 = vpop.permute.xlu0 %6659
    %6663 = vset.pattern.permute.xlu0 0
    %6664 = vperm.xlu0 %6663, %v6627
    %v6665 = vpop.permute.xlu0 %6664
    %6668 = vset.pattern.permute.xlu0 0
    %6669 = vperm.xlu0 %6668, %v6628
    %v6670 = vpop.permute.xlu0 %6669
    %6673 = vset.pattern.permute.xlu0 0
    %6674 = vperm.xlu0 %6673, %v6629
    %v6675 = vpop.permute.xlu0 %6674
    %6678 = vset.pattern.permute.xlu0 0
    %6679 = vperm.xlu0 %6678, %v6630
    %v6680 = vpop.permute.xlu0 %6679
    %6683 = vset.pattern.permute.xlu0 0
    %6684 = vperm.xlu0 %6683, %v6631
    %v6685 = vpop.permute.xlu0 %6684
    %v6687 = vadd.f32 %v6610, %v6635
    %v6688 = vadd.f32 %v6611, %v6640
    %v6689 = vadd.f32 %v6612, %v6645
    %v6690 = vadd.f32 %v6613, %v6650
    %v6691 = vadd.f32 %v6614, %v6655
    %v6692 = vadd.f32 %v6615, %v6660
    %v6693 = vadd.f32 %v6616, %v6665
    %v6694 = vadd.f32 %v6617, %v6670
    %v6695 = vadd.f32 %v6618, %v6675
    %v6696 = vadd.f32 %v6619, %v6680
    %v6697 = vadd.f32 %v6620, %v6685
    %v6698 = vmax.f32 %v6687, 0.0
    %v6699 = vmax.f32 %v6688, 0.0
    %v6700 = vmax.f32 %v6689, 0.0
    %v6701 = vmax.f32 %v6690, 0.0
    %v6702 = vmax.f32 %v6691, 0.0
    %v6703 = vmax.f32 %v6692, 0.0
    %v6704 = vmax.f32 %v6693, 0.0
    %v6705 = vmax.f32 %v6694, 0.0
    %v6706 = vmax.f32 %v6695, 0.0
    %v6707 = vmax.f32 %v6696, 0.0
    %v6708 = vmax.f32 %v6697, 0.0
    %v6709 = vld [vmem:[%s11] sm:$0x1]
    %v6710 = vld [vmem:[#allocation8] sm:$0x1]
    %6712 = vset.pattern.permute.xlu0 0
    %6713 = vperm.xlu0 %6712, %v6710
    %v6714 = vpop.permute.xlu0 %6713
    %v6716 = vlaneseq
    %v6717 = vshrl.u32 %v6716, 7
    %v6718 = vsub.s32 0, %v6717
    %v6719 = vrot.slane %v6714, %v6718
    %v6721 = vsel %vm4122, %v6709, 0
    %vm6723 = vcmask 1043456
    %v6725 = vsel %vm6723, %v6708, 0
    %6727 = vmatprep.subr.mxu0 0.0
    %6728 = vmatpush1.msra.mxu0 %v6698
    %6729 = vmatprep.subr.mxu0 0.0
    %6730 = vmatpush1.msra.mxu0 %v6699
    %6731 = vmatprep.subr.mxu0 0.0
    %6732 = vmatpush1.msra.mxu0 %v6700
    %6733 = vmatprep.subr.mxu0 0.0
    %6734 = vmatpush1.msra.mxu0 %v6701
    %6735 = vmatprep.subr.mxu0 0.0
    %6736 = vmatpush1.msra.mxu0 %v6702
    %6737 = vmatprep.subr.mxu0 0.0
    %6738 = vmatpush1.msra.mxu0 %v6703
    %6739 = vmatprep.subr.mxu0 0.0
    %6740 = vmatpush1.msra.mxu0 %v6704
    %6741 = vmatprep.subr.mxu0 0.0
    %6742 = vmatpush1.msra.mxu0 %v6705
    %6743 = vmatprep.subr.mxu0 0.0
    %6744 = vmatpush1.msra.mxu0 %v6706
    %6745 = vmatprep.subr.mxu0 0.0
    %6746 = vmatpush1.msra.mxu0 %v6707
    %6747 = vmatprep.subr.mxu0 0.0
    %6748 = vmatpush1.msra.mxu0 %v6725
    %6749 = vmatprep.subr.mxu0 0.0
    %6750 = vmatpush1.msra.mxu0 0.0
    %6751 = vmatprep.subr.mxu0 0.0
    %6752 = vmatpush1.msra.mxu0 0.0
    %6753 = vmatprep.subr.mxu0 0.0
    %6754 = vmatpush1.msra.mxu0 0.0
    %6755 = vmatprep.subr.mxu0 0.0
    %6756 = vmatpush1.msra.mxu0 0.0
    %6757 = vmatprep.subr.mxu0 0.0
    %6758 = vmatpush1.msra.mxu0 0.0
    %6759 = vmatprep.subr.mxu0 0.0
    %6760 = vmatpush1.msra.mxu0 0.0
    %6761 = vmatprep.subr.mxu0 0.0
    %6762 = vmatpush1.msra.mxu0 0.0
    %6763 = vmatprep.subr.mxu0 0.0
    %6764 = vmatpush1.msra.mxu0 0.0
    %6765 = vmatprep.subr.mxu0 0.0
    %6766 = vmatpush1.msra.mxu0 0.0
    %6767 = vmatprep.subr.mxu0 0.0
    %6768 = vmatpush1.msra.mxu0 0.0
    %6769 = vmatprep.subr.mxu0 0.0
    %6770 = vmatpush1.msra.mxu0 0.0
    %6771 = vmatprep.subr.mxu0 0.0
    %6772 = vmatpush1.msra.mxu0 0.0
    %6773 = vmatprep.subr.mxu0 0.0
    %6774 = vmatpush1.msra.mxu0 0.0
    %6775 = vmatprep.subr.mxu0 0.0
    %6776 = vmatpush1.msra.mxu0 0.0
    %6777 = vmatprep.subr.mxu0 0.0
    %6778 = vmatpush1.msra.mxu0 0.0
    %6779 = vmatprep.subr.mxu0 0.0
    %6780 = vmatpush1.msra.mxu0 0.0
    %6781 = vmatprep.subr.mxu0 0.0
    %6782 = vmatpush1.msra.mxu0 0.0
    %6783 = vmatprep.subr.mxu0 0.0
    %6784 = vmatpush1.msra.mxu0 0.0
    %6785 = vmatprep.subr.mxu0 0.0
    %6786 = vmatpush1.msra.mxu0 0.0
    %6787 = vmatprep.subr.mxu0 0.0
    %6788 = vmatpush1.msra.mxu0 0.0
    %6789 = vmatprep.subr.mxu0 0.0
    %6790 = vmatpush1.msra.mxu0 0.0
    %6791 = vmatprep.mubr.f32.mxu0 0.0
    %6792 = vmatmul.mubr.f32.gmra.mrb[0].mxu0 %v6721
    %v6793 = vpop.f32.mrb[0].mxu0
    %v6794 = vadd.f32 %v6719, %v6793
    %v6795 = vpop.f32.mrb[0].mxu0
    %6796 = vdwg.mxu0
    %vm6797 = vcmask 8192
    %6798 = vst.msk [vmem:[#allocation9] sm:$0x1] %vm6797, %v6794
    // Predicated region
    $region54: #{mixlenet_forward.1} parent=1 // pred_check
      _
    $region55: #{mixlenet_forward.1} parent=1 // pred_check_branch
      %6800 = sbr.rel (0) target = $region57
    $region56: #{mixlenet_forward.1} parent=1 // pred_region
      %s6802 = ssub.s32 16, 16
      %6803 = vsyncadd [#allocation10], %s6802
      %s6805 = sshll.u32 [#allocation9], 4
      %s6806 = int_to_ptr.vmem [resolvable:$true] %s6805
      %6808 = dma.vmem_to_hbm [thread:$0]  %s6806, 16, %s13, [#allocation10]
    $region57: #{mixlenet_forward.1} parent=1 // pred_fallthru
      _
    // Predicated region
    $region58: #{mixlenet_forward.1} parent=1 // pred_check
      _
    $region59: #{mixlenet_forward.1} parent=1 // pred_check_branch
      %6810 = sbr.rel (0) target = $region61
    $region60: #{mixlenet_forward.1} parent=1 // pred_region
      %6811 = dma.done [#allocation10], 16
    $region61: #{mixlenet_forward.1} parent=1 // pred_fallthru
      _
    %6812 = vsyncpa [#allocation10], 1

</llo_original>
